<compile_context>
chip_gen: v7x
topology: tpu7x:2x2x1
jax: 0.10.0
libtpu: 0.0.40
codegen_flags: <defaults>
</compile_context>

<pallas_src>
import numpy as np
import jax
import jax.numpy as jnp
from jax.experimental import pallas as pl
from jax.experimental.pallas import tpu as pltpu


# ---------------------------------------------------------------------------
# Fused Pallas kernel: conv1 + relu + conv2 + relu + fc1 + relu + fc2 + softmax
# ---------------------------------------------------------------------------
def _convnet_kernel(p_ref, w1_ref, b1_ref, w2_ref, b2_ref,
                    a1_ref, b3_ref, w4_ref, b4_ref, o_ref):
    # p_ref : [1, 25, 16*tb, 25]  conv1 im2col patches for this batch tile,
    #         dim1 = conv2 tap t = kh2*5+kw2,
    #         dim2 = row r = s*tb + b   (s = oh2*4+ow2 conv2 output position),
    #         dim3 = conv1 patch feature f = kh1*5+kw1.
    # w1_ref: [25, K1]       conv1 weight (feature-major)     b1_ref: [1, K1]
    # w2_ref: [25, K1, K2]   conv2 weight per tap             b2_ref: [1, K2]
    # a1_ref: [16, K2, H]    fc1 weight per conv2 position    b3_ref: [1, H]
    # w4_ref: [H, 10]        fc2 weight                       b4_ref: [1, 10]
    # o_ref : [tb, 10]       softmax output for this batch tile
    tb = o_ref.shape[0]
    rows = 16 * tb
    k2 = b2_ref.shape[1]
    hidden = b3_ref.shape[1]

    w1 = w1_ref[...]                                    # [25, K1]
    b1 = b1_ref[...]                                    # [1, K1]

    # conv1 + relu + conv2, one 5x5 tap at a time; everything stays in vregs/VMEM.
    acc2 = jnp.zeros((rows, k2), jnp.float32)
    for t in range(25):
        pt = p_ref[0, t]                                # [16*tb, 25]
        h1 = jnp.dot(pt, w1, preferred_element_type=jnp.float32) + b1
        h1 = jnp.maximum(h1, 0.0)                       # relu(conv1) at this tap's positions
        acc2 = acc2 + jnp.dot(h1, w2_ref[t],            # [16*tb, K2]
                              preferred_element_type=jnp.float32)
    h2 = jnp.maximum(acc2 + b2_ref[...], 0.0)           # relu(conv2), rows ordered (s, b)

    # fc1 + relu: accumulate over the 16 conv2 spatial positions (torch .view
    # order is folded into the pre-permuted weight slabs a1_ref[s]).
    acc3 = jnp.zeros((tb, hidden), jnp.float32)
    for s in range(16):
        acc3 = acc3 + jnp.dot(h2[s * tb:(s + 1) * tb, :], a1_ref[s],
                              preferred_element_type=jnp.float32)
    h3 = jnp.maximum(acc3 + b3_ref[...], 0.0)           # [tb, H]

    # fc2 + softmax(dim=1)
    logits = jnp.dot(h3, w4_ref[...], preferred_element_type=jnp.float32) + b4_ref[...]
    m = jnp.max(logits, axis=1, keepdims=True)
    e = jnp.exp(logits - m)
    o_ref[...] = e * pl.reciprocal(jnp.sum(e, axis=1, keepdims=True), approx=True)


# ---------------------------------------------------------------------------
# Wrapper-side layout plumbing (runs once per forward, on the tiny raw input)
# ---------------------------------------------------------------------------
def _build_patches(x, tb):
    """x: [B, 1, 28, 28] NCHW -> [nT, 25, 16*tb, 25] patches for the fused kernel."""
    B = x.shape[0]
    img = x.reshape(B, 28, 28)
    # conv1 im2col on the raw input: p1[b, oh1, ow1, kh1*5+kw1]
    cols = [img[:, kh:kh + 24:2, kw:kw + 24:2] for kh in range(5) for kw in range(5)]
    p1 = jnp.stack(cols, axis=-1)                       # [B, 12, 12, 25]
    # conv1-output coordinate needed by conv2 output position s and tap t
    oh2, ow2 = np.meshgrid(np.arange(4), np.arange(4), indexing="ij")
    kh2, kw2 = np.meshgrid(np.arange(5), np.arange(5), indexing="ij")
    oh1 = 2 * oh2.reshape(1, 16) + kh2.reshape(25, 1)   # [25, 16]
    ow1 = 2 * ow2.reshape(1, 16) + kw2.reshape(25, 1)   # [25, 16]
    pdup = p1[:, oh1, ow1, :]                           # [B, 25, 16, 25]
    bpad = -(-B // tb) * tb
    if bpad != B:
        pdup = jnp.pad(pdup, ((0, bpad - B), (0, 0), (0, 0), (0, 0)))
    nt = bpad // tb
    pdup = pdup.reshape(nt, tb, 25, 16, 25).transpose(0, 2, 3, 1, 4)  # [nT,25,16,tb,25]
    return pdup.reshape(nt, 25, 16 * tb, 25), bpad


def prepare_params(params):
    """Hoisted, one-time weight layout prep (not in the per-forward path)."""
    k1 = params["w_conv1"].shape[0]
    k2 = params["w_conv2"].shape[0]
    hidden = params["w_fc1"].shape[0]
    return {
        "w1": params["w_conv1"].reshape(k1, 25).T,                       # [25, K1]
        "b1": params["b_conv1"].reshape(1, k1),
        # per-tap conv2 weight: w2[t=kh*5+kw, c1, c2] = w_conv2[c2, c1, kh, kw]
        "w2": params["w_conv2"].transpose(2, 3, 1, 0).reshape(25, k1, k2),
        "b2": params["b_conv2"].reshape(1, k2),
        # fc1 weight per conv2 spatial position s: a1[s, c2, j] = w_fc1[j, c2*16+s]
        "a1": params["w_fc1"].reshape(hidden, k2, 16).transpose(2, 1, 0),  # [16, K2, H]
        "b3": params["b_fc1"].reshape(1, hidden),
        "w4": params["w_fc2"].T,                                          # [H, 10]
        "b4": params["b_fc2"].reshape(1, 10),
    }


def convnet_forward(x, prep, *, tb=8):
    assert tb % 8 == 0, "batch tile must be a multiple of 8 (sublane tiling)"
    B = x.shape[0]
    k1 = prep["w1"].shape[1]
    k2 = prep["w2"].shape[2]
    hidden = prep["a1"].shape[2]
    n_cls = prep["w4"].shape[1]

    p, bpad = _build_patches(x, tb)
    nt = bpad // tb

    out = pl.pallas_call(
        _convnet_kernel,
        out_shape=jax.ShapeDtypeStruct((bpad, n_cls), jnp.float32),
        grid=(nt,),
        in_specs=[
            pl.BlockSpec((1, 25, 16 * tb, 25), lambda i: (i, 0, 0, 0)),
            pl.BlockSpec((25, k1), lambda i: (0, 0)),
            pl.BlockSpec((1, k1), lambda i: (0, 0)),
            pl.BlockSpec((25, k1, k2), lambda i: (0, 0, 0)),
            pl.BlockSpec((1, k2), lambda i: (0, 0)),
            pl.BlockSpec((16, k2, hidden), lambda i: (0, 0, 0)),
            pl.BlockSpec((1, hidden), lambda i: (0, 0)),
            pl.BlockSpec((hidden, n_cls), lambda i: (0, 0)),
            pl.BlockSpec((1, n_cls), lambda i: (0, 0)),
        ],
        out_specs=pl.BlockSpec((tb, n_cls), lambda i: (i, 0)),
        compiler_params=pltpu.CompilerParams(
            dimension_semantics=("parallel",)),      # shards batch tiles across v7x's 2 TCs
    )(p, prep["w1"], prep["b1"], prep["w2"], prep["b2"],
      prep["a1"], prep["b3"], prep["w4"], prep["b4"])
    return out[:B]


# ---------------------------------------------------------------------------
# Reference forward in plain JAX (for correctness check)
# ---------------------------------------------------------------------------
def convnet_forward_ref(x, params):
    B = x.shape[0]
    k2 = params["w_conv2"].shape[0]
    dn = ("NCHW", "OIHW", "NCHW")
    y = jax.lax.conv_general_dilated(x, params["w_conv1"], (2, 2), "VALID",
                                     dimension_numbers=dn)
    y = jax.nn.relu(y + params["b_conv1"][None, :, None, None])
    y = jax.lax.conv_general_dilated(y, params["w_conv2"], (2, 2), "VALID",
                                     dimension_numbers=dn)
    y = jax.nn.relu(y + params["b_conv2"][None, :, None, None])
    y = y.reshape(B, 16 * k2)
    y = jax.nn.relu(y @ params["w_fc1"].T + params["b_fc1"])
    y = y @ params["w_fc2"].T + params["b_fc2"]
    return jax.nn.softmax(y, axis=1)


# ---------------------------------------------------------------------------
def init_params(key, kernels_1=10, kernels_2=20, hidden=60):
    ks = jax.random.split(key, 8)
    s = 0.1
    return {
        "w_conv1": s * jax.random.normal(ks[0], (kernels_1, 1, 5, 5), jnp.float32),
        "b_conv1": s * jax.random.normal(ks[1], (kernels_1,), jnp.float32),
        "w_conv2": s * jax.random.normal(ks[2], (kernels_2, kernels_1, 5, 5), jnp.float32),
        "b_conv2": s * jax.random.normal(ks[3], (kernels_2,), jnp.float32),
        "w_fc1": s * jax.random.normal(ks[4], (hidden, 16 * kernels_2), jnp.float32),
        "b_fc1": s * jax.random.normal(ks[5], (hidden,), jnp.float32),
        "w_fc2": s * jax.random.normal(ks[6], (10, hidden), jnp.float32),
        "b_fc2": s * jax.random.normal(ks[7], (10,), jnp.float32),
    }


if __name__ == "__main__":
    key = jax.random.PRNGKey(0)
    k_x, k_p = jax.random.split(key)

    # Input shape implied by the module: fc1 expects 16*kernels_2 features,
    # which requires a 28x28 single-channel image (MNIST-style).
    x = jax.random.normal(k_x, (2, 1, 28, 28), jnp.float32)
    params = init_params(k_p)
    prep = prepare_params(params)          # weight layout prep hoisted out of the forward

    fwd = jax.jit(convnet_forward)
    out = jax.block_until_ready(fwd(x, prep))

    ref = convnet_forward_ref(x, params)
    assert out.shape == (2, 10)
    # tolerances leave room for the approximate (EUP) reciprocal in the softmax
    assert jnp.allclose(jnp.sum(out, axis=1), 1.0, atol=5e-3)
    assert jnp.allclose(out, ref, atol=2e-3, rtol=2e-3), float(jnp.max(jnp.abs(out - ref)))

    print("KERNEL_OK")
</pallas_src>

<mosaic_0001>
module attributes {stable_mosaic.version = 11 : i64} {
  func.func @_convnet_kernel(%arg0: i32, %arg1: memref<1x25x128x25xf32, #tpu.memory_space<vmem>>, %arg2: memref<25x10xf32, #tpu.memory_space<vmem>>, %arg3: memref<1x10xf32, #tpu.memory_space<vmem>>, %arg4: memref<25x10x20xf32, #tpu.memory_space<vmem>>, %arg5: memref<1x20xf32, #tpu.memory_space<vmem>>, %arg6: memref<16x20x60xf32, #tpu.memory_space<vmem>>, %arg7: memref<1x60xf32, #tpu.memory_space<vmem>>, %arg8: memref<60x10xf32, #tpu.memory_space<vmem>>, %arg9: memref<1x10xf32, #tpu.memory_space<vmem>>, %arg10: memref<8x10xf32, #tpu.memory_space<vmem>>) attributes {dimension_semantics = [#tpu.dimension_semantics<parallel>], iteration_bounds = array<i64: 1>, scalar_prefetch = 0 : i64, scratch_operands = 0 : i64, tpu.core_type = #tpu.core_type<tc>, window_params = [{transform_indices = @transform_0, window_bounds = array<i64: 1, 25, 128, 25>}, {pipeline_mode = #tpu.pipeline_mode<synchronous>, transform_indices = @transform_1, window_bounds = array<i64: 25, 10>}, {pipeline_mode = #tpu.pipeline_mode<synchronous>, transform_indices = @transform_2, window_bounds = array<i64: 1, 10>}, {pipeline_mode = #tpu.pipeline_mode<synchronous>, transform_indices = @transform_3, window_bounds = array<i64: 25, 10, 20>}, {pipeline_mode = #tpu.pipeline_mode<synchronous>, transform_indices = @transform_4, window_bounds = array<i64: 1, 20>}, {pipeline_mode = #tpu.pipeline_mode<synchronous>, transform_indices = @transform_5, window_bounds = array<i64: 16, 20, 60>}, {pipeline_mode = #tpu.pipeline_mode<synchronous>, transform_indices = @transform_6, window_bounds = array<i64: 1, 60>}, {pipeline_mode = #tpu.pipeline_mode<synchronous>, transform_indices = @transform_7, window_bounds = array<i64: 60, 10>}, {pipeline_mode = #tpu.pipeline_mode<synchronous>, transform_indices = @transform_8, window_bounds = array<i64: 1, 10>}, {transform_indices = @transform_9, window_bounds = array<i64: 8, 10>}]} {
    %c0 = arith.constant 0 : index
    %c0_0 = arith.constant 0 : index
    %0 = vector.load %arg2[%c0, %c0_0] : memref<25x10xf32, #tpu.memory_space<vmem>>, vector<25x10xf32>
    %c0_1 = arith.constant 0 : index
    %c0_2 = arith.constant 0 : index
    %1 = vector.load %arg3[%c0_1, %c0_2] : memref<1x10xf32, #tpu.memory_space<vmem>>, vector<1x10xf32>
    %cst = arith.constant 0.000000e+00 : f32
    %2 = vector.broadcast %cst : f32 to vector<128x20xf32>
    %c0_3 = arith.constant 0 : index
    %c0_4 = arith.constant 0 : index
    %c0_5 = arith.constant 0 : index
    %c0_6 = arith.constant 0 : index
    %3 = vector.load %arg1[%c0_3, %c0_4, %c0_5, %c0_6] : memref<1x25x128x25xf32, #tpu.memory_space<vmem>>, vector<1x1x128x25xf32>
    %4 = vector.shape_cast %3 : vector<1x1x128x25xf32> to vector<128x25xf32>
    %cst_7 = arith.constant dense<0.000000e+00> : vector<128x10xf32>
    %5 = tpu.matmul %4, %0, %cst_7 {dimension_numbers = #tpu.dot_dimension_numbers<[1], [0], [0], [1], [0, 0, 1, 1], [], []>} : vector<128x25xf32>, vector<25x10xf32>, vector<128x10xf32> -> vector<128x10xf32>
    %6 = vector.broadcast %1 : vector<1x10xf32> to vector<128x10xf32>
    %7 = arith.addf %5, %6 : vector<128x10xf32>
    %cst_8 = arith.constant 0.000000e+00 : f32
    %8 = vector.broadcast %cst_8 : f32 to vector<128x10xf32>
    %9 = arith.maximumf %7, %8 : vector<128x10xf32>
    %c0_9 = arith.constant 0 : index
    %c0_10 = arith.constant 0 : index
    %c0_11 = arith.constant 0 : index
    %10 = vector.load %arg4[%c0_9, %c0_10, %c0_11] : memref<25x10x20xf32, #tpu.memory_space<vmem>>, vector<1x10x20xf32>
    %11 = vector.shape_cast %10 : vector<1x10x20xf32> to vector<10x20xf32>
    %cst_12 = arith.constant dense<0.000000e+00> : vector<128x20xf32>
    %12 = tpu.matmul %9, %11, %cst_12 {dimension_numbers = #tpu.dot_dimension_numbers<[1], [0], [0], [1], [0, 0, 1, 1], [], []>} : vector<128x10xf32>, vector<10x20xf32>, vector<128x20xf32> -> vector<128x20xf32>
    %13 = arith.addf %2, %12 : vector<128x20xf32>
    %c0_13 = arith.constant 0 : index
    %c1 = arith.constant 1 : index
    %c0_14 = arith.constant 0 : index
    %c0_15 = arith.constant 0 : index
    %14 = vector.load %arg1[%c0_13, %c1, %c0_14, %c0_15] : memref<1x25x128x25xf32, #tpu.memory_space<vmem>>, vector<1x1x128x25xf32>
    %15 = vector.shape_cast %14 : vector<1x1x128x25xf32> to vector<128x25xf32>
    %cst_16 = arith.constant dense<0.000000e+00> : vector<128x10xf32>
    %16 = tpu.matmul %15, %0, %cst_16 {dimension_numbers = #tpu.dot_dimension_numbers<[1], [0], [0], [1], [0, 0, 1, 1], [], []>} : vector<128x25xf32>, vector<25x10xf32>, vector<128x10xf32> -> vector<128x10xf32>
    %17 = vector.broadcast %1 : vector<1x10xf32> to vector<128x10xf32>
    %18 = arith.addf %16, %17 : vector<128x10xf32>
    %cst_17 = arith.constant 0.000000e+00 : f32
    %19 = vector.broadcast %cst_17 : f32 to vector<128x10xf32>
    %20 = arith.maximumf %18, %19 : vector<128x10xf32>
    %c1_18 = arith.constant 1 : index
    %c0_19 = arith.constant 0 : index
    %c0_20 = arith.constant 0 : index
    %21 = vector.load %arg4[%c1_18, %c0_19, %c0_20] : memref<25x10x20xf32, #tpu.memory_space<vmem>>, vector<1x10x20xf32>
    %22 = vector.shape_cast %21 : vector<1x10x20xf32> to vector<10x20xf32>
    %cst_21 = arith.constant dense<0.000000e+00> : vector<128x20xf32>
    %23 = tpu.matmul %20, %22, %cst_21 {dimension_numbers = #tpu.dot_dimension_numbers<[1], [0], [0], [1], [0, 0, 1, 1], [], []>} : vector<128x10xf32>, vector<10x20xf32>, vector<128x20xf32> -> vector<128x20xf32>
    %24 = arith.addf %13, %23 : vector<128x20xf32>
    %c0_22 = arith.constant 0 : index
    %c2 = arith.constant 2 : index
    %c0_23 = arith.constant 0 : index
    %c0_24 = arith.constant 0 : index
    %25 = vector.load %arg1[%c0_22, %c2, %c0_23, %c0_24] : memref<1x25x128x25xf32, #tpu.memory_space<vmem>>, vector<1x1x128x25xf32>
    %26 = vector.shape_cast %25 : vector<1x1x128x25xf32> to vector<128x25xf32>
    %cst_25 = arith.constant dense<0.000000e+00> : vector<128x10xf32>
    %27 = tpu.matmul %26, %0, %cst_25 {dimension_numbers = #tpu.dot_dimension_numbers<[1], [0], [0], [1], [0, 0, 1, 1], [], []>} : vector<128x25xf32>, vector<25x10xf32>, vector<128x10xf32> -> vector<128x10xf32>
    %28 = vector.broadcast %1 : vector<1x10xf32> to vector<128x10xf32>
    %29 = arith.addf %27, %28 : vector<128x10xf32>
    %cst_26 = arith.constant 0.000000e+00 : f32
    %30 = vector.broadcast %cst_26 : f32 to vector<128x10xf32>
    %31 = arith.maximumf %29, %30 : vector<128x10xf32>
    %c2_27 = arith.constant 2 : index
    %c0_28 = arith.constant 0 : index
    %c0_29 = arith.constant 0 : index
    %32 = vector.load %arg4[%c2_27, %c0_28, %c0_29] : memref<25x10x20xf32, #tpu.memory_space<vmem>>, vector<1x10x20xf32>
    %33 = vector.shape_cast %32 : vector<1x10x20xf32> to vector<10x20xf32>
    %cst_30 = arith.constant dense<0.000000e+00> : vector<128x20xf32>
    %34 = tpu.matmul %31, %33, %cst_30 {dimension_numbers = #tpu.dot_dimension_numbers<[1], [0], [0], [1], [0, 0, 1, 1], [], []>} : vector<128x10xf32>, vector<10x20xf32>, vector<128x20xf32> -> vector<128x20xf32>
    %35 = arith.addf %24, %34 : vector<128x20xf32>
    %c0_31 = arith.constant 0 : index
    %c3 = arith.constant 3 : index
    %c0_32 = arith.constant 0 : index
    %c0_33 = arith.constant 0 : index
    %36 = vector.load %arg1[%c0_31, %c3, %c0_32, %c0_33] : memref<1x25x128x25xf32, #tpu.memory_space<vmem>>, vector<1x1x128x25xf32>
    %37 = vector.shape_cast %36 : vector<1x1x128x25xf32> to vector<128x25xf32>
    %cst_34 = arith.constant dense<0.000000e+00> : vector<128x10xf32>
    %38 = tpu.matmul %37, %0, %cst_34 {dimension_numbers = #tpu.dot_dimension_numbers<[1], [0], [0], [1], [0, 0, 1, 1], [], []>} : vector<128x25xf32>, vector<25x10xf32>, vector<128x10xf32> -> vector<128x10xf32>
    %39 = vector.broadcast %1 : vector<1x10xf32> to vector<128x10xf32>
    %40 = arith.addf %38, %39 : vector<128x10xf32>
    %cst_35 = arith.constant 0.000000e+00 : f32
    %41 = vector.broadcast %cst_35 : f32 to vector<128x10xf32>
    %42 = arith.maximumf %40, %41 : vector<128x10xf32>
    %c3_36 = arith.constant 3 : index
    %c0_37 = arith.constant 0 : index
    %c0_38 = arith.constant 0 : index
    %43 = vector.load %arg4[%c3_36, %c0_37, %c0_38] : memref<25x10x20xf32, #tpu.memory_space<vmem>>, vector<1x10x20xf32>
    %44 = vector.shape_cast %43 : vector<1x10x20xf32> to vector<10x20xf32>
    %cst_39 = arith.constant dense<0.000000e+00> : vector<128x20xf32>
    %45 = tpu.matmul %42, %44, %cst_39 {dimension_numbers = #tpu.dot_dimension_numbers<[1], [0], [0], [1], [0, 0, 1, 1], [], []>} : vector<128x10xf32>, vector<10x20xf32>, vector<128x20xf32> -> vector<128x20xf32>
    %46 = arith.addf %35, %45 : vector<128x20xf32>
    %c0_40 = arith.constant 0 : index
    %c4 = arith.constant 4 : index
    %c0_41 = arith.constant 0 : index
    %c0_42 = arith.constant 0 : index
    %47 = vector.load %arg1[%c0_40, %c4, %c0_41, %c0_42] : memref<1x25x128x25xf32, #tpu.memory_space<vmem>>, vector<1x1x128x25xf32>
    %48 = vector.shape_cast %47 : vector<1x1x128x25xf32> to vector<128x25xf32>
    %cst_43 = arith.constant dense<0.000000e+00> : vector<128x10xf32>
    %49 = tpu.matmul %48, %0, %cst_43 {dimension_numbers = #tpu.dot_dimension_numbers<[1], [0], [0], [1], [0, 0, 1, 1], [], []>} : vector<128x25xf32>, vector<25x10xf32>, vector<128x10xf32> -> vector<128x10xf32>
    %50 = vector.broadcast %1 : vector<1x10xf32> to vector<128x10xf32>
    %51 = arith.addf %49, %50 : vector<128x10xf32>
    %cst_44 = arith.constant 0.000000e+00 : f32
    %52 = vector.broadcast %cst_44 : f32 to vector<128x10xf32>
    %53 = arith.maximumf %51, %52 : vector<128x10xf32>
    %c4_45 = arith.constant 4 : index
    %c0_46 = arith.constant 0 : index
    %c0_47 = arith.constant 0 : index
    %54 = vector.load %arg4[%c4_45, %c0_46, %c0_47] : memref<25x10x20xf32, #tpu.memory_space<vmem>>, vector<1x10x20xf32>
    %55 = vector.shape_cast %54 : vector<1x10x20xf32> to vector<10x20xf32>
    %cst_48 = arith.constant dense<0.000000e+00> : vector<128x20xf32>
    %56 = tpu.matmul %53, %55, %cst_48 {dimension_numbers = #tpu.dot_dimension_numbers<[1], [0], [0], [1], [0, 0, 1, 1], [], []>} : vector<128x10xf32>, vector<10x20xf32>, vector<128x20xf32> -> vector<128x20xf32>
    %57 = arith.addf %46, %56 : vector<128x20xf32>
    %c0_49 = arith.constant 0 : index
    %c5 = arith.constant 5 : index
    %c0_50 = arith.constant 0 : index
    %c0_51 = arith.constant 0 : index
    %58 = vector.load %arg1[%c0_49, %c5, %c0_50, %c0_51] : memref<1x25x128x25xf32, #tpu.memory_space<vmem>>, vector<1x1x128x25xf32>
    %59 = vector.shape_cast %58 : vector<1x1x128x25xf32> to vector<128x25xf32>
    %cst_52 = arith.constant dense<0.000000e+00> : vector<128x10xf32>
    %60 = tpu.matmul %59, %0, %cst_52 {dimension_numbers = #tpu.dot_dimension_numbers<[1], [0], [0], [1], [0, 0, 1, 1], [], []>} : vector<128x25xf32>, vector<25x10xf32>, vector<128x10xf32> -> vector<128x10xf32>
    %61 = vector.broadcast %1 : vector<1x10xf32> to vector<128x10xf32>
    %62 = arith.addf %60, %61 : vector<128x10xf32>
    %cst_53 = arith.constant 0.000000e+00 : f32
    %63 = vector.broadcast %cst_53 : f32 to vector<128x10xf32>
    %64 = arith.maximumf %62, %63 : vector<128x10xf32>
    %c5_54 = arith.constant 5 : index
    %c0_55 = arith.constant 0 : index
    %c0_56 = arith.constant 0 : index
    %65 = vector.load %arg4[%c5_54, %c0_55, %c0_56] : memref<25x10x20xf32, #tpu.memory_space<vmem>>, vector<1x10x20xf32>
    %66 = vector.shape_cast %65 : vector<1x10x20xf32> to vector<10x20xf32>
    %cst_57 = arith.constant dense<0.000000e+00> : vector<128x20xf32>
    %67 = tpu.matmul %64, %66, %cst_57 {dimension_numbers = #tpu.dot_dimension_numbers<[1], [0], [0], [1], [0, 0, 1, 1], [], []>} : vector<128x10xf32>, vector<10x20xf32>, vector<128x20xf32> -> vector<128x20xf32>
    %68 = arith.addf %57, %67 : vector<128x20xf32>
    %c0_58 = arith.constant 0 : index
    %c6 = arith.constant 6 : index
    %c0_59 = arith.constant 0 : index
    %c0_60 = arith.constant 0 : index
    %69 = vector.load %arg1[%c0_58, %c6, %c0_59, %c0_60] : memref<1x25x128x25xf32, #tpu.memory_space<vmem>>, vector<1x1x128x25xf32>
    %70 = vector.shape_cast %69 : vector<1x1x128x25xf32> to vector<128x25xf32>
    %cst_61 = arith.constant dense<0.000000e+00> : vector<128x10xf32>
    %71 = tpu.matmul %70, %0, %cst_61 {dimension_numbers = #tpu.dot_dimension_numbers<[1], [0], [0], [1], [0, 0, 1, 1], [], []>} : vector<128x25xf32>, vector<25x10xf32>, vector<128x10xf32> -> vector<128x10xf32>
    %72 = vector.broadcast %1 : vector<1x10xf32> to vector<128x10xf32>
    %73 = arith.addf %71, %72 : vector<128x10xf32>
    %cst_62 = arith.constant 0.000000e+00 : f32
    %74 = vector.broadcast %cst_62 : f32 to vector<128x10xf32>
    %75 = arith.maximumf %73, %74 : vector<128x10xf32>
    %c6_63 = arith.constant 6 : index
    %c0_64 = arith.constant 0 : index
    %c0_65 = arith.constant 0 : index
    %76 = vector.load %arg4[%c6_63, %c0_64, %c0_65] : memref<25x10x20xf32, #tpu.memory_space<vmem>>, vector<1x10x20xf32>
    %77 = vector.shape_cast %76 : vector<1x10x20xf32> to vector<10x20xf32>
    %cst_66 = arith.constant dense<0.000000e+00> : vector<128x20xf32>
    %78 = tpu.matmul %75, %77, %cst_66 {dimension_numbers = #tpu.dot_dimension_numbers<[1], [0], [0], [1], [0, 0, 1, 1], [], []>} : vector<128x10xf32>, vector<10x20xf32>, vector<128x20xf32> -> vector<128x20xf32>
    %79 = arith.addf %68, %78 : vector<128x20xf32>
    %c0_67 = arith.constant 0 : index
    %c7 = arith.constant 7 : index
    %c0_68 = arith.constant 0 : index
    %c0_69 = arith.constant 0 : index
    %80 = vector.load %arg1[%c0_67, %c7, %c0_68, %c0_69] : memref<1x25x128x25xf32, #tpu.memory_space<vmem>>, vector<1x1x128x25xf32>
    %81 = vector.shape_cast %80 : vector<1x1x128x25xf32> to vector<128x25xf32>
    %cst_70 = arith.constant dense<0.000000e+00> : vector<128x10xf32>
    %82 = tpu.matmul %81, %0, %cst_70 {dimension_numbers = #tpu.dot_dimension_numbers<[1], [0], [0], [1], [0, 0, 1, 1], [], []>} : vector<128x25xf32>, vector<25x10xf32>, vector<128x10xf32> -> vector<128x10xf32>
    %83 = vector.broadcast %1 : vector<1x10xf32> to vector<128x10xf32>
    %84 = arith.addf %82, %83 : vector<128x10xf32>
    %cst_71 = arith.constant 0.000000e+00 : f32
    %85 = vector.broadcast %cst_71 : f32 to vector<128x10xf32>
    %86 = arith.maximumf %84, %85 : vector<128x10xf32>
    %c7_72 = arith.constant 7 : index
    %c0_73 = arith.constant 0 : index
    %c0_74 = arith.constant 0 : index
    %87 = vector.load %arg4[%c7_72, %c0_73, %c0_74] : memref<25x10x20xf32, #tpu.memory_space<vmem>>, vector<1x10x20xf32>
    %88 = vector.shape_cast %87 : vector<1x10x20xf32> to vector<10x20xf32>
    %cst_75 = arith.constant dense<0.000000e+00> : vector<128x20xf32>
    %89 = tpu.matmul %86, %88, %cst_75 {dimension_numbers = #tpu.dot_dimension_numbers<[1], [0], [0], [1], [0, 0, 1, 1], [], []>} : vector<128x10xf32>, vector<10x20xf32>, vector<128x20xf32> -> vector<128x20xf32>
    %90 = arith.addf %79, %89 : vector<128x20xf32>
    %c0_76 = arith.constant 0 : index
    %c8 = arith.constant 8 : index
    %c0_77 = arith.constant 0 : index
    %c0_78 = arith.constant 0 : index
    %91 = vector.load %arg1[%c0_76, %c8, %c0_77, %c0_78] : memref<1x25x128x25xf32, #tpu.memory_space<vmem>>, vector<1x1x128x25xf32>
    %92 = vector.shape_cast %91 : vector<1x1x128x25xf32> to vector<128x25xf32>
    %cst_79 = arith.constant dense<0.000000e+00> : vector<128x10xf32>
    %93 = tpu.matmul %92, %0, %cst_79 {dimension_numbers = #tpu.dot_dimension_numbers<[1], [0], [0], [1], [0, 0, 1, 1], [], []>} : vector<128x25xf32>, vector<25x10xf32>, vector<128x10xf32> -> vector<128x10xf32>
    %94 = vector.broadcast %1 : vector<1x10xf32> to vector<128x10xf32>
    %95 = arith.addf %93, %94 : vector<128x10xf32>
    %cst_80 = arith.constant 0.000000e+00 : f32
    %96 = vector.broadcast %cst_80 : f32 to vector<128x10xf32>
    %97 = arith.maximumf %95, %96 : vector<128x10xf32>
    %c8_81 = arith.constant 8 : index
    %c0_82 = arith.constant 0 : index
    %c0_83 = arith.constant 0 : index
    %98 = vector.load %arg4[%c8_81, %c0_82, %c0_83] : memref<25x10x20xf32, #tpu.memory_space<vmem>>, vector<1x10x20xf32>
    %99 = vector.shape_cast %98 : vector<1x10x20xf32> to vector<10x20xf32>
    %cst_84 = arith.constant dense<0.000000e+00> : vector<128x20xf32>
    %100 = tpu.matmul %97, %99, %cst_84 {dimension_numbers = #tpu.dot_dimension_numbers<[1], [0], [0], [1], [0, 0, 1, 1], [], []>} : vector<128x10xf32>, vector<10x20xf32>, vector<128x20xf32> -> vector<128x20xf32>
    %101 = arith.addf %90, %100 : vector<128x20xf32>
    %c0_85 = arith.constant 0 : index
    %c9 = arith.constant 9 : index
    %c0_86 = arith.constant 0 : index
    %c0_87 = arith.constant 0 : index
    %102 = vector.load %arg1[%c0_85, %c9, %c0_86, %c0_87] : memref<1x25x128x25xf32, #tpu.memory_space<vmem>>, vector<1x1x128x25xf32>
    %103 = vector.shape_cast %102 : vector<1x1x128x25xf32> to vector<128x25xf32>
    %cst_88 = arith.constant dense<0.000000e+00> : vector<128x10xf32>
    %104 = tpu.matmul %103, %0, %cst_88 {dimension_numbers = #tpu.dot_dimension_numbers<[1], [0], [0], [1], [0, 0, 1, 1], [], []>} : vector<128x25xf32>, vector<25x10xf32>, vector<128x10xf32> -> vector<128x10xf32>
    %105 = vector.broadcast %1 : vector<1x10xf32> to vector<128x10xf32>
    %106 = arith.addf %104, %105 : vector<128x10xf32>
    %cst_89 = arith.constant 0.000000e+00 : f32
    %107 = vector.broadcast %cst_89 : f32 to vector<128x10xf32>
    %108 = arith.maximumf %106, %107 : vector<128x10xf32>
    %c9_90 = arith.constant 9 : index
    %c0_91 = arith.constant 0 : index
    %c0_92 = arith.constant 0 : index
    %109 = vector.load %arg4[%c9_90, %c0_91, %c0_92] : memref<25x10x20xf32, #tpu.memory_space<vmem>>, vector<1x10x20xf32>
    %110 = vector.shape_cast %109 : vector<1x10x20xf32> to vector<10x20xf32>
    %cst_93 = arith.constant dense<0.000000e+00> : vector<128x20xf32>
    %111 = tpu.matmul %108, %110, %cst_93 {dimension_numbers = #tpu.dot_dimension_numbers<[1], [0], [0], [1], [0, 0, 1, 1], [], []>} : vector<128x10xf32>, vector<10x20xf32>, vector<128x20xf32> -> vector<128x20xf32>
    %112 = arith.addf %101, %111 : vector<128x20xf32>
    %c0_94 = arith.constant 0 : index
    %c10 = arith.constant 10 : index
    %c0_95 = arith.constant 0 : index
    %c0_96 = arith.constant 0 : index
    %113 = vector.load %arg1[%c0_94, %c10, %c0_95, %c0_96] : memref<1x25x128x25xf32, #tpu.memory_space<vmem>>, vector<1x1x128x25xf32>
    %114 = vector.shape_cast %113 : vector<1x1x128x25xf32> to vector<128x25xf32>
    %cst_97 = arith.constant dense<0.000000e+00> : vector<128x10xf32>
    %115 = tpu.matmul %114, %0, %cst_97 {dimension_numbers = #tpu.dot_dimension_numbers<[1], [0], [0], [1], [0, 0, 1, 1], [], []>} : vector<128x25xf32>, vector<25x10xf32>, vector<128x10xf32> -> vector<128x10xf32>
    %116 = vector.broadcast %1 : vector<1x10xf32> to vector<128x10xf32>
    %117 = arith.addf %115, %116 : vector<128x10xf32>
    %cst_98 = arith.constant 0.000000e+00 : f32
    %118 = vector.broadcast %cst_98 : f32 to vector<128x10xf32>
    %119 = arith.maximumf %117, %118 : vector<128x10xf32>
    %c10_99 = arith.constant 10 : index
    %c0_100 = arith.constant 0 : index
    %c0_101 = arith.constant 0 : index
    %120 = vector.load %arg4[%c10_99, %c0_100, %c0_101] : memref<25x10x20xf32, #tpu.memory_space<vmem>>, vector<1x10x20xf32>
    %121 = vector.shape_cast %120 : vector<1x10x20xf32> to vector<10x20xf32>
    %cst_102 = arith.constant dense<0.000000e+00> : vector<128x20xf32>
    %122 = tpu.matmul %119, %121, %cst_102 {dimension_numbers = #tpu.dot_dimension_numbers<[1], [0], [0], [1], [0, 0, 1, 1], [], []>} : vector<128x10xf32>, vector<10x20xf32>, vector<128x20xf32> -> vector<128x20xf32>
    %123 = arith.addf %112, %122 : vector<128x20xf32>
    %c0_103 = arith.constant 0 : index
    %c11 = arith.constant 11 : index
    %c0_104 = arith.constant 0 : index
    %c0_105 = arith.constant 0 : index
    %124 = vector.load %arg1[%c0_103, %c11, %c0_104, %c0_105] : memref<1x25x128x25xf32, #tpu.memory_space<vmem>>, vector<1x1x128x25xf32>
    %125 = vector.shape_cast %124 : vector<1x1x128x25xf32> to vector<128x25xf32>
    %cst_106 = arith.constant dense<0.000000e+00> : vector<128x10xf32>
    %126 = tpu.matmul %125, %0, %cst_106 {dimension_numbers = #tpu.dot_dimension_numbers<[1], [0], [0], [1], [0, 0, 1, 1], [], []>} : vector<128x25xf32>, vector<25x10xf32>, vector<128x10xf32> -> vector<128x10xf32>
    %127 = vector.broadcast %1 : vector<1x10xf32> to vector<128x10xf32>
    %128 = arith.addf %126, %127 : vector<128x10xf32>
    %cst_107 = arith.constant 0.000000e+00 : f32
    %129 = vector.broadcast %cst_107 : f32 to vector<128x10xf32>
    %130 = arith.maximumf %128, %129 : vector<128x10xf32>
    %c11_108 = arith.constant 11 : index
    %c0_109 = arith.constant 0 : index
    %c0_110 = arith.constant 0 : index
    %131 = vector.load %arg4[%c11_108, %c0_109, %c0_110] : memref<25x10x20xf32, #tpu.memory_space<vmem>>, vector<1x10x20xf32>
    %132 = vector.shape_cast %131 : vector<1x10x20xf32> to vector<10x20xf32>
    %cst_111 = arith.constant dense<0.000000e+00> : vector<128x20xf32>
    %133 = tpu.matmul %130, %132, %cst_111 {dimension_numbers = #tpu.dot_dimension_numbers<[1], [0], [0], [1], [0, 0, 1, 1], [], []>} : vector<128x10xf32>, vector<10x20xf32>, vector<128x20xf32> -> vector<128x20xf32>
    %134 = arith.addf %123, %133 : vector<128x20xf32>
    %c0_112 = arith.constant 0 : index
    %c12 = arith.constant 12 : index
    %c0_113 = arith.constant 0 : index
    %c0_114 = arith.constant 0 : index
    %135 = vector.load %arg1[%c0_112, %c12, %c0_113, %c0_114] : memref<1x25x128x25xf32, #tpu.memory_space<vmem>>, vector<1x1x128x25xf32>
    %136 = vector.shape_cast %135 : vector<1x1x128x25xf32> to vector<128x25xf32>
    %cst_115 = arith.constant dense<0.000000e+00> : vector<128x10xf32>
    %137 = tpu.matmul %136, %0, %cst_115 {dimension_numbers = #tpu.dot_dimension_numbers<[1], [0], [0], [1], [0, 0, 1, 1], [], []>} : vector<128x25xf32>, vector<25x10xf32>, vector<128x10xf32> -> vector<128x10xf32>
    %138 = vector.broadcast %1 : vector<1x10xf32> to vector<128x10xf32>
    %139 = arith.addf %137, %138 : vector<128x10xf32>
    %cst_116 = arith.constant 0.000000e+00 : f32
    %140 = vector.broadcast %cst_116 : f32 to vector<128x10xf32>
    %141 = arith.maximumf %139, %140 : vector<128x10xf32>
    %c12_117 = arith.constant 12 : index
    %c0_118 = arith.constant 0 : index
    %c0_119 = arith.constant 0 : index
    %142 = vector.load %arg4[%c12_117, %c0_118, %c0_119] : memref<25x10x20xf32, #tpu.memory_space<vmem>>, vector<1x10x20xf32>
    %143 = vector.shape_cast %142 : vector<1x10x20xf32> to vector<10x20xf32>
    %cst_120 = arith.constant dense<0.000000e+00> : vector<128x20xf32>
    %144 = tpu.matmul %141, %143, %cst_120 {dimension_numbers = #tpu.dot_dimension_numbers<[1], [0], [0], [1], [0, 0, 1, 1], [], []>} : vector<128x10xf32>, vector<10x20xf32>, vector<128x20xf32> -> vector<128x20xf32>
    %145 = arith.addf %134, %144 : vector<128x20xf32>
    %c0_121 = arith.constant 0 : index
    %c13 = arith.constant 13 : index
    %c0_122 = arith.constant 0 : index
    %c0_123 = arith.constant 0 : index
    %146 = vector.load %arg1[%c0_121, %c13, %c0_122, %c0_123] : memref<1x25x128x25xf32, #tpu.memory_space<vmem>>, vector<1x1x128x25xf32>
    %147 = vector.shape_cast %146 : vector<1x1x128x25xf32> to vector<128x25xf32>
    %cst_124 = arith.constant dense<0.000000e+00> : vector<128x10xf32>
    %148 = tpu.matmul %147, %0, %cst_124 {dimension_numbers = #tpu.dot_dimension_numbers<[1], [0], [0], [1], [0, 0, 1, 1], [], []>} : vector<128x25xf32>, vector<25x10xf32>, vector<128x10xf32> -> vector<128x10xf32>
    %149 = vector.broadcast %1 : vector<1x10xf32> to vector<128x10xf32>
    %150 = arith.addf %148, %149 : vector<128x10xf32>
    %cst_125 = arith.constant 0.000000e+00 : f32
    %151 = vector.broadcast %cst_125 : f32 to vector<128x10xf32>
    %152 = arith.maximumf %150, %151 : vector<128x10xf32>
    %c13_126 = arith.constant 13 : index
    %c0_127 = arith.constant 0 : index
    %c0_128 = arith.constant 0 : index
    %153 = vector.load %arg4[%c13_126, %c0_127, %c0_128] : memref<25x10x20xf32, #tpu.memory_space<vmem>>, vector<1x10x20xf32>
    %154 = vector.shape_cast %153 : vector<1x10x20xf32> to vector<10x20xf32>
    %cst_129 = arith.constant dense<0.000000e+00> : vector<128x20xf32>
    %155 = tpu.matmul %152, %154, %cst_129 {dimension_numbers = #tpu.dot_dimension_numbers<[1], [0], [0], [1], [0, 0, 1, 1], [], []>} : vector<128x10xf32>, vector<10x20xf32>, vector<128x20xf32> -> vector<128x20xf32>
    %156 = arith.addf %145, %155 : vector<128x20xf32>
    %c0_130 = arith.constant 0 : index
    %c14 = arith.constant 14 : index
    %c0_131 = arith.constant 0 : index
    %c0_132 = arith.constant 0 : index
    %157 = vector.load %arg1[%c0_130, %c14, %c0_131, %c0_132] : memref<1x25x128x25xf32, #tpu.memory_space<vmem>>, vector<1x1x128x25xf32>
    %158 = vector.shape_cast %157 : vector<1x1x128x25xf32> to vector<128x25xf32>
    %cst_133 = arith.constant dense<0.000000e+00> : vector<128x10xf32>
    %159 = tpu.matmul %158, %0, %cst_133 {dimension_numbers = #tpu.dot_dimension_numbers<[1], [0], [0], [1], [0, 0, 1, 1], [], []>} : vector<128x25xf32>, vector<25x10xf32>, vector<128x10xf32> -> vector<128x10xf32>
    %160 = vector.broadcast %1 : vector<1x10xf32> to vector<128x10xf32>
    %161 = arith.addf %159, %160 : vector<128x10xf32>
    %cst_134 = arith.constant 0.000000e+00 : f32
    %162 = vector.broadcast %cst_134 : f32 to vector<128x10xf32>
    %163 = arith.maximumf %161, %162 : vector<128x10xf32>
    %c14_135 = arith.constant 14 : index
    %c0_136 = arith.constant 0 : index
    %c0_137 = arith.constant 0 : index
    %164 = vector.load %arg4[%c14_135, %c0_136, %c0_137] : memref<25x10x20xf32, #tpu.memory_space<vmem>>, vector<1x10x20xf32>
    %165 = vector.shape_cast %164 : vector<1x10x20xf32> to vector<10x20xf32>
    %cst_138 = arith.constant dense<0.000000e+00> : vector<128x20xf32>
    %166 = tpu.matmul %163, %165, %cst_138 {dimension_numbers = #tpu.dot_dimension_numbers<[1], [0], [0], [1], [0, 0, 1, 1], [], []>} : vector<128x10xf32>, vector<10x20xf32>, vector<128x20xf32> -> vector<128x20xf32>
    %167 = arith.addf %156, %166 : vector<128x20xf32>
    %c0_139 = arith.constant 0 : index
    %c15 = arith.constant 15 : index
    %c0_140 = arith.constant 0 : index
    %c0_141 = arith.constant 0 : index
    %168 = vector.load %arg1[%c0_139, %c15, %c0_140, %c0_141] : memref<1x25x128x25xf32, #tpu.memory_space<vmem>>, vector<1x1x128x25xf32>
    %169 = vector.shape_cast %168 : vector<1x1x128x25xf32> to vector<128x25xf32>
    %cst_142 = arith.constant dense<0.000000e+00> : vector<128x10xf32>
    %170 = tpu.matmul %169, %0, %cst_142 {dimension_numbers = #tpu.dot_dimension_numbers<[1], [0], [0], [1], [0, 0, 1, 1], [], []>} : vector<128x25xf32>, vector<25x10xf32>, vector<128x10xf32> -> vector<128x10xf32>
    %171 = vector.broadcast %1 : vector<1x10xf32> to vector<128x10xf32>
    %172 = arith.addf %170, %171 : vector<128x10xf32>
    %cst_143 = arith.constant 0.000000e+00 : f32
    %173 = vector.broadcast %cst_143 : f32 to vector<128x10xf32>
    %174 = arith.maximumf %172, %173 : vector<128x10xf32>
    %c15_144 = arith.constant 15 : index
    %c0_145 = arith.constant 0 : index
    %c0_146 = arith.constant 0 : index
    %175 = vector.load %arg4[%c15_144, %c0_145, %c0_146] : memref<25x10x20xf32, #tpu.memory_space<vmem>>, vector<1x10x20xf32>
    %176 = vector.shape_cast %175 : vector<1x10x20xf32> to vector<10x20xf32>
    %cst_147 = arith.constant dense<0.000000e+00> : vector<128x20xf32>
    %177 = tpu.matmul %174, %176, %cst_147 {dimension_numbers = #tpu.dot_dimension_numbers<[1], [0], [0], [1], [0, 0, 1, 1], [], []>} : vector<128x10xf32>, vector<10x20xf32>, vector<128x20xf32> -> vector<128x20xf32>
    %178 = arith.addf %167, %177 : vector<128x20xf32>
    %c0_148 = arith.constant 0 : index
    %c16 = arith.constant 16 : index
    %c0_149 = arith.constant 0 : index
    %c0_150 = arith.constant 0 : index
    %179 = vector.load %arg1[%c0_148, %c16, %c0_149, %c0_150] : memref<1x25x128x25xf32, #tpu.memory_space<vmem>>, vector<1x1x128x25xf32>
    %180 = vector.shape_cast %179 : vector<1x1x128x25xf32> to vector<128x25xf32>
    %cst_151 = arith.constant dense<0.000000e+00> : vector<128x10xf32>
    %181 = tpu.matmul %180, %0, %cst_151 {dimension_numbers = #tpu.dot_dimension_numbers<[1], [0], [0], [1], [0, 0, 1, 1], [], []>} : vector<128x25xf32>, vector<25x10xf32>, vector<128x10xf32> -> vector<128x10xf32>
    %182 = vector.broadcast %1 : vector<1x10xf32> to vector<128x10xf32>
    %183 = arith.addf %181, %182 : vector<128x10xf32>
    %cst_152 = arith.constant 0.000000e+00 : f32
    %184 = vector.broadcast %cst_152 : f32 to vector<128x10xf32>
    %185 = arith.maximumf %183, %184 : vector<128x10xf32>
    %c16_153 = arith.constant 16 : index
    %c0_154 = arith.constant 0 : index
    %c0_155 = arith.constant 0 : index
    %186 = vector.load %arg4[%c16_153, %c0_154, %c0_155] : memref<25x10x20xf32, #tpu.memory_space<vmem>>, vector<1x10x20xf32>
    %187 = vector.shape_cast %186 : vector<1x10x20xf32> to vector<10x20xf32>
    %cst_156 = arith.constant dense<0.000000e+00> : vector<128x20xf32>
    %188 = tpu.matmul %185, %187, %cst_156 {dimension_numbers = #tpu.dot_dimension_numbers<[1], [0], [0], [1], [0, 0, 1, 1], [], []>} : vector<128x10xf32>, vector<10x20xf32>, vector<128x20xf32> -> vector<128x20xf32>
    %189 = arith.addf %178, %188 : vector<128x20xf32>
    %c0_157 = arith.constant 0 : index
    %c17 = arith.constant 17 : index
    %c0_158 = arith.constant 0 : index
    %c0_159 = arith.constant 0 : index
    %190 = vector.load %arg1[%c0_157, %c17, %c0_158, %c0_159] : memref<1x25x128x25xf32, #tpu.memory_space<vmem>>, vector<1x1x128x25xf32>
    %191 = vector.shape_cast %190 : vector<1x1x128x25xf32> to vector<128x25xf32>
    %cst_160 = arith.constant dense<0.000000e+00> : vector<128x10xf32>
    %192 = tpu.matmul %191, %0, %cst_160 {dimension_numbers = #tpu.dot_dimension_numbers<[1], [0], [0], [1], [0, 0, 1, 1], [], []>} : vector<128x25xf32>, vector<25x10xf32>, vector<128x10xf32> -> vector<128x10xf32>
    %193 = vector.broadcast %1 : vector<1x10xf32> to vector<128x10xf32>
    %194 = arith.addf %192, %193 : vector<128x10xf32>
    %cst_161 = arith.constant 0.000000e+00 : f32
    %195 = vector.broadcast %cst_161 : f32 to vector<128x10xf32>
    %196 = arith.maximumf %194, %195 : vector<128x10xf32>
    %c17_162 = arith.constant 17 : index
    %c0_163 = arith.constant 0 : index
    %c0_164 = arith.constant 0 : index
    %197 = vector.load %arg4[%c17_162, %c0_163, %c0_164] : memref<25x10x20xf32, #tpu.memory_space<vmem>>, vector<1x10x20xf32>
    %198 = vector.shape_cast %197 : vector<1x10x20xf32> to vector<10x20xf32>
    %cst_165 = arith.constant dense<0.000000e+00> : vector<128x20xf32>
    %199 = tpu.matmul %196, %198, %cst_165 {dimension_numbers = #tpu.dot_dimension_numbers<[1], [0], [0], [1], [0, 0, 1, 1], [], []>} : vector<128x10xf32>, vector<10x20xf32>, vector<128x20xf32> -> vector<128x20xf32>
    %200 = arith.addf %189, %199 : vector<128x20xf32>
    %c0_166 = arith.constant 0 : index
    %c18 = arith.constant 18 : index
    %c0_167 = arith.constant 0 : index
    %c0_168 = arith.constant 0 : index
    %201 = vector.load %arg1[%c0_166, %c18, %c0_167, %c0_168] : memref<1x25x128x25xf32, #tpu.memory_space<vmem>>, vector<1x1x128x25xf32>
    %202 = vector.shape_cast %201 : vector<1x1x128x25xf32> to vector<128x25xf32>
    %cst_169 = arith.constant dense<0.000000e+00> : vector<128x10xf32>
    %203 = tpu.matmul %202, %0, %cst_169 {dimension_numbers = #tpu.dot_dimension_numbers<[1], [0], [0], [1], [0, 0, 1, 1], [], []>} : vector<128x25xf32>, vector<25x10xf32>, vector<128x10xf32> -> vector<128x10xf32>
    %204 = vector.broadcast %1 : vector<1x10xf32> to vector<128x10xf32>
    %205 = arith.addf %203, %204 : vector<128x10xf32>
    %cst_170 = arith.constant 0.000000e+00 : f32
    %206 = vector.broadcast %cst_170 : f32 to vector<128x10xf32>
    %207 = arith.maximumf %205, %206 : vector<128x10xf32>
    %c18_171 = arith.constant 18 : index
    %c0_172 = arith.constant 0 : index
    %c0_173 = arith.constant 0 : index
    %208 = vector.load %arg4[%c18_171, %c0_172, %c0_173] : memref<25x10x20xf32, #tpu.memory_space<vmem>>, vector<1x10x20xf32>
    %209 = vector.shape_cast %208 : vector<1x10x20xf32> to vector<10x20xf32>
    %cst_174 = arith.constant dense<0.000000e+00> : vector<128x20xf32>
    %210 = tpu.matmul %207, %209, %cst_174 {dimension_numbers = #tpu.dot_dimension_numbers<[1], [0], [0], [1], [0, 0, 1, 1], [], []>} : vector<128x10xf32>, vector<10x20xf32>, vector<128x20xf32> -> vector<128x20xf32>
    %211 = arith.addf %200, %210 : vector<128x20xf32>
    %c0_175 = arith.constant 0 : index
    %c19 = arith.constant 19 : index
    %c0_176 = arith.constant 0 : index
    %c0_177 = arith.constant 0 : index
    %212 = vector.load %arg1[%c0_175, %c19, %c0_176, %c0_177] : memref<1x25x128x25xf32, #tpu.memory_space<vmem>>, vector<1x1x128x25xf32>
    %213 = vector.shape_cast %212 : vector<1x1x128x25xf32> to vector<128x25xf32>
    %cst_178 = arith.constant dense<0.000000e+00> : vector<128x10xf32>
    %214 = tpu.matmul %213, %0, %cst_178 {dimension_numbers = #tpu.dot_dimension_numbers<[1], [0], [0], [1], [0, 0, 1, 1], [], []>} : vector<128x25xf32>, vector<25x10xf32>, vector<128x10xf32> -> vector<128x10xf32>
    %215 = vector.broadcast %1 : vector<1x10xf32> to vector<128x10xf32>
    %216 = arith.addf %214, %215 : vector<128x10xf32>
    %cst_179 = arith.constant 0.000000e+00 : f32
    %217 = vector.broadcast %cst_179 : f32 to vector<128x10xf32>
    %218 = arith.maximumf %216, %217 : vector<128x10xf32>
    %c19_180 = arith.constant 19 : index
    %c0_181 = arith.constant 0 : index
    %c0_182 = arith.constant 0 : index
    %219 = vector.load %arg4[%c19_180, %c0_181, %c0_182] : memref<25x10x20xf32, #tpu.memory_space<vmem>>, vector<1x10x20xf32>
    %220 = vector.shape_cast %219 : vector<1x10x20xf32> to vector<10x20xf32>
    %cst_183 = arith.constant dense<0.000000e+00> : vector<128x20xf32>
    %221 = tpu.matmul %218, %220, %cst_183 {dimension_numbers = #tpu.dot_dimension_numbers<[1], [0], [0], [1], [0, 0, 1, 1], [], []>} : vector<128x10xf32>, vector<10x20xf32>, vector<128x20xf32> -> vector<128x20xf32>
    %222 = arith.addf %211, %221 : vector<128x20xf32>
    %c0_184 = arith.constant 0 : index
    %c20 = arith.constant 20 : index
    %c0_185 = arith.constant 0 : index
    %c0_186 = arith.constant 0 : index
    %223 = vector.load %arg1[%c0_184, %c20, %c0_185, %c0_186] : memref<1x25x128x25xf32, #tpu.memory_space<vmem>>, vector<1x1x128x25xf32>
    %224 = vector.shape_cast %223 : vector<1x1x128x25xf32> to vector<128x25xf32>
    %cst_187 = arith.constant dense<0.000000e+00> : vector<128x10xf32>
    %225 = tpu.matmul %224, %0, %cst_187 {dimension_numbers = #tpu.dot_dimension_numbers<[1], [0], [0], [1], [0, 0, 1, 1], [], []>} : vector<128x25xf32>, vector<25x10xf32>, vector<128x10xf32> -> vector<128x10xf32>
    %226 = vector.broadcast %1 : vector<1x10xf32> to vector<128x10xf32>
    %227 = arith.addf %225, %226 : vector<128x10xf32>
    %cst_188 = arith.constant 0.000000e+00 : f32
    %228 = vector.broadcast %cst_188 : f32 to vector<128x10xf32>
    %229 = arith.maximumf %227, %228 : vector<128x10xf32>
    %c20_189 = arith.constant 20 : index
    %c0_190 = arith.constant 0 : index
    %c0_191 = arith.constant 0 : index
    %230 = vector.load %arg4[%c20_189, %c0_190, %c0_191] : memref<25x10x20xf32, #tpu.memory_space<vmem>>, vector<1x10x20xf32>
    %231 = vector.shape_cast %230 : vector<1x10x20xf32> to vector<10x20xf32>
    %cst_192 = arith.constant dense<0.000000e+00> : vector<128x20xf32>
    %232 = tpu.matmul %229, %231, %cst_192 {dimension_numbers = #tpu.dot_dimension_numbers<[1], [0], [0], [1], [0, 0, 1, 1], [], []>} : vector<128x10xf32>, vector<10x20xf32>, vector<128x20xf32> -> vector<128x20xf32>
    %233 = arith.addf %222, %232 : vector<128x20xf32>
    %c0_193 = arith.constant 0 : index
    %c21 = arith.constant 21 : index
    %c0_194 = arith.constant 0 : index
    %c0_195 = arith.constant 0 : index
    %234 = vector.load %arg1[%c0_193, %c21, %c0_194, %c0_195] : memref<1x25x128x25xf32, #tpu.memory_space<vmem>>, vector<1x1x128x25xf32>
    %235 = vector.shape_cast %234 : vector<1x1x128x25xf32> to vector<128x25xf32>
    %cst_196 = arith.constant dense<0.000000e+00> : vector<128x10xf32>
    %236 = tpu.matmul %235, %0, %cst_196 {dimension_numbers = #tpu.dot_dimension_numbers<[1], [0], [0], [1], [0, 0, 1, 1], [], []>} : vector<128x25xf32>, vector<25x10xf32>, vector<128x10xf32> -> vector<128x10xf32>
    %237 = vector.broadcast %1 : vector<1x10xf32> to vector<128x10xf32>
    %238 = arith.addf %236, %237 : vector<128x10xf32>
    %cst_197 = arith.constant 0.000000e+00 : f32
    %239 = vector.broadcast %cst_197 : f32 to vector<128x10xf32>
    %240 = arith.maximumf %238, %239 : vector<128x10xf32>
    %c21_198 = arith.constant 21 : index
    %c0_199 = arith.constant 0 : index
    %c0_200 = arith.constant 0 : index
    %241 = vector.load %arg4[%c21_198, %c0_199, %c0_200] : memref<25x10x20xf32, #tpu.memory_space<vmem>>, vector<1x10x20xf32>
    %242 = vector.shape_cast %241 : vector<1x10x20xf32> to vector<10x20xf32>
    %cst_201 = arith.constant dense<0.000000e+00> : vector<128x20xf32>
    %243 = tpu.matmul %240, %242, %cst_201 {dimension_numbers = #tpu.dot_dimension_numbers<[1], [0], [0], [1], [0, 0, 1, 1], [], []>} : vector<128x10xf32>, vector<10x20xf32>, vector<128x20xf32> -> vector<128x20xf32>
    %244 = arith.addf %233, %243 : vector<128x20xf32>
    %c0_202 = arith.constant 0 : index
    %c22 = arith.constant 22 : index
    %c0_203 = arith.constant 0 : index
    %c0_204 = arith.constant 0 : index
    %245 = vector.load %arg1[%c0_202, %c22, %c0_203, %c0_204] : memref<1x25x128x25xf32, #tpu.memory_space<vmem>>, vector<1x1x128x25xf32>
    %246 = vector.shape_cast %245 : vector<1x1x128x25xf32> to vector<128x25xf32>
    %cst_205 = arith.constant dense<0.000000e+00> : vector<128x10xf32>
    %247 = tpu.matmul %246, %0, %cst_205 {dimension_numbers = #tpu.dot_dimension_numbers<[1], [0], [0], [1], [0, 0, 1, 1], [], []>} : vector<128x25xf32>, vector<25x10xf32>, vector<128x10xf32> -> vector<128x10xf32>
    %248 = vector.broadcast %1 : vector<1x10xf32> to vector<128x10xf32>
    %249 = arith.addf %247, %248 : vector<128x10xf32>
    %cst_206 = arith.constant 0.000000e+00 : f32
    %250 = vector.broadcast %cst_206 : f32 to vector<128x10xf32>
    %251 = arith.maximumf %249, %250 : vector<128x10xf32>
    %c22_207 = arith.constant 22 : index
    %c0_208 = arith.constant 0 : index
    %c0_209 = arith.constant 0 : index
    %252 = vector.load %arg4[%c22_207, %c0_208, %c0_209] : memref<25x10x20xf32, #tpu.memory_space<vmem>>, vector<1x10x20xf32>
    %253 = vector.shape_cast %252 : vector<1x10x20xf32> to vector<10x20xf32>
    %cst_210 = arith.constant dense<0.000000e+00> : vector<128x20xf32>
    %254 = tpu.matmul %251, %253, %cst_210 {dimension_numbers = #tpu.dot_dimension_numbers<[1], [0], [0], [1], [0, 0, 1, 1], [], []>} : vector<128x10xf32>, vector<10x20xf32>, vector<128x20xf32> -> vector<128x20xf32>
    %255 = arith.addf %244, %254 : vector<128x20xf32>
    %c0_211 = arith.constant 0 : index
    %c23 = arith.constant 23 : index
    %c0_212 = arith.constant 0 : index
    %c0_213 = arith.constant 0 : index
    %256 = vector.load %arg1[%c0_211, %c23, %c0_212, %c0_213] : memref<1x25x128x25xf32, #tpu.memory_space<vmem>>, vector<1x1x128x25xf32>
    %257 = vector.shape_cast %256 : vector<1x1x128x25xf32> to vector<128x25xf32>
    %cst_214 = arith.constant dense<0.000000e+00> : vector<128x10xf32>
    %258 = tpu.matmul %257, %0, %cst_214 {dimension_numbers = #tpu.dot_dimension_numbers<[1], [0], [0], [1], [0, 0, 1, 1], [], []>} : vector<128x25xf32>, vector<25x10xf32>, vector<128x10xf32> -> vector<128x10xf32>
    %259 = vector.broadcast %1 : vector<1x10xf32> to vector<128x10xf32>
    %260 = arith.addf %258, %259 : vector<128x10xf32>
    %cst_215 = arith.constant 0.000000e+00 : f32
    %261 = vector.broadcast %cst_215 : f32 to vector<128x10xf32>
    %262 = arith.maximumf %260, %261 : vector<128x10xf32>
    %c23_216 = arith.constant 23 : index
    %c0_217 = arith.constant 0 : index
    %c0_218 = arith.constant 0 : index
    %263 = vector.load %arg4[%c23_216, %c0_217, %c0_218] : memref<25x10x20xf32, #tpu.memory_space<vmem>>, vector<1x10x20xf32>
    %264 = vector.shape_cast %263 : vector<1x10x20xf32> to vector<10x20xf32>
    %cst_219 = arith.constant dense<0.000000e+00> : vector<128x20xf32>
    %265 = tpu.matmul %262, %264, %cst_219 {dimension_numbers = #tpu.dot_dimension_numbers<[1], [0], [0], [1], [0, 0, 1, 1], [], []>} : vector<128x10xf32>, vector<10x20xf32>, vector<128x20xf32> -> vector<128x20xf32>
    %266 = arith.addf %255, %265 : vector<128x20xf32>
    %c0_220 = arith.constant 0 : index
    %c24 = arith.constant 24 : index
    %c0_221 = arith.constant 0 : index
    %c0_222 = arith.constant 0 : index
    %267 = vector.load %arg1[%c0_220, %c24, %c0_221, %c0_222] : memref<1x25x128x25xf32, #tpu.memory_space<vmem>>, vector<1x1x128x25xf32>
    %268 = vector.shape_cast %267 : vector<1x1x128x25xf32> to vector<128x25xf32>
    %cst_223 = arith.constant dense<0.000000e+00> : vector<128x10xf32>
    %269 = tpu.matmul %268, %0, %cst_223 {dimension_numbers = #tpu.dot_dimension_numbers<[1], [0], [0], [1], [0, 0, 1, 1], [], []>} : vector<128x25xf32>, vector<25x10xf32>, vector<128x10xf32> -> vector<128x10xf32>
    %270 = vector.broadcast %1 : vector<1x10xf32> to vector<128x10xf32>
    %271 = arith.addf %269, %270 : vector<128x10xf32>
    %cst_224 = arith.constant 0.000000e+00 : f32
    %272 = vector.broadcast %cst_224 : f32 to vector<128x10xf32>
    %273 = arith.maximumf %271, %272 : vector<128x10xf32>
    %c24_225 = arith.constant 24 : index
    %c0_226 = arith.constant 0 : index
    %c0_227 = arith.constant 0 : index
    %274 = vector.load %arg4[%c24_225, %c0_226, %c0_227] : memref<25x10x20xf32, #tpu.memory_space<vmem>>, vector<1x10x20xf32>
    %275 = vector.shape_cast %274 : vector<1x10x20xf32> to vector<10x20xf32>
    %cst_228 = arith.constant dense<0.000000e+00> : vector<128x20xf32>
    %276 = tpu.matmul %273, %275, %cst_228 {dimension_numbers = #tpu.dot_dimension_numbers<[1], [0], [0], [1], [0, 0, 1, 1], [], []>} : vector<128x10xf32>, vector<10x20xf32>, vector<128x20xf32> -> vector<128x20xf32>
    %277 = arith.addf %266, %276 : vector<128x20xf32>
    %c0_229 = arith.constant 0 : index
    %c0_230 = arith.constant 0 : index
    %278 = vector.load %arg5[%c0_229, %c0_230] : memref<1x20xf32, #tpu.memory_space<vmem>>, vector<1x20xf32>
    %279 = vector.broadcast %278 : vector<1x20xf32> to vector<128x20xf32>
    %280 = arith.addf %277, %279 : vector<128x20xf32>
    %cst_231 = arith.constant 0.000000e+00 : f32
    %281 = vector.broadcast %cst_231 : f32 to vector<128x20xf32>
    %282 = arith.maximumf %280, %281 : vector<128x20xf32>
    %cst_232 = arith.constant 0.000000e+00 : f32
    %283 = vector.broadcast %cst_232 : f32 to vector<8x60xf32>
    %284 = vector.extract_strided_slice %282 {offsets = [0, 0], sizes = [8, 20], strides = [1, 1]} : vector<128x20xf32> to vector<8x20xf32>
    %c0_233 = arith.constant 0 : index
    %c0_234 = arith.constant 0 : index
    %c0_235 = arith.constant 0 : index
    %285 = vector.load %arg6[%c0_233, %c0_234, %c0_235] : memref<16x20x60xf32, #tpu.memory_space<vmem>>, vector<1x20x60xf32>
    %286 = vector.shape_cast %285 : vector<1x20x60xf32> to vector<20x60xf32>
    %cst_236 = arith.constant dense<0.000000e+00> : vector<8x60xf32>
    %287 = tpu.matmul %284, %286, %cst_236 {dimension_numbers = #tpu.dot_dimension_numbers<[1], [0], [0], [1], [0, 0, 1, 1], [], []>} : vector<8x20xf32>, vector<20x60xf32>, vector<8x60xf32> -> vector<8x60xf32>
    %288 = arith.addf %283, %287 : vector<8x60xf32>
    %289 = vector.extract_strided_slice %282 {offsets = [8, 0], sizes = [8, 20], strides = [1, 1]} : vector<128x20xf32> to vector<8x20xf32>
    %c1_237 = arith.constant 1 : index
    %c0_238 = arith.constant 0 : index
    %c0_239 = arith.constant 0 : index
    %290 = vector.load %arg6[%c1_237, %c0_238, %c0_239] : memref<16x20x60xf32, #tpu.memory_space<vmem>>, vector<1x20x60xf32>
    %291 = vector.shape_cast %290 : vector<1x20x60xf32> to vector<20x60xf32>
    %cst_240 = arith.constant dense<0.000000e+00> : vector<8x60xf32>
    %292 = tpu.matmul %289, %291, %cst_240 {dimension_numbers = #tpu.dot_dimension_numbers<[1], [0], [0], [1], [0, 0, 1, 1], [], []>} : vector<8x20xf32>, vector<20x60xf32>, vector<8x60xf32> -> vector<8x60xf32>
    %293 = arith.addf %288, %292 : vector<8x60xf32>
    %294 = vector.extract_strided_slice %282 {offsets = [16, 0], sizes = [8, 20], strides = [1, 1]} : vector<128x20xf32> to vector<8x20xf32>
    %c2_241 = arith.constant 2 : index
    %c0_242 = arith.constant 0 : index
    %c0_243 = arith.constant 0 : index
    %295 = vector.load %arg6[%c2_241, %c0_242, %c0_243] : memref<16x20x60xf32, #tpu.memory_space<vmem>>, vector<1x20x60xf32>
    %296 = vector.shape_cast %295 : vector<1x20x60xf32> to vector<20x60xf32>
    %cst_244 = arith.constant dense<0.000000e+00> : vector<8x60xf32>
    %297 = tpu.matmul %294, %296, %cst_244 {dimension_numbers = #tpu.dot_dimension_numbers<[1], [0], [0], [1], [0, 0, 1, 1], [], []>} : vector<8x20xf32>, vector<20x60xf32>, vector<8x60xf32> -> vector<8x60xf32>
    %298 = arith.addf %293, %297 : vector<8x60xf32>
    %299 = vector.extract_strided_slice %282 {offsets = [24, 0], sizes = [8, 20], strides = [1, 1]} : vector<128x20xf32> to vector<8x20xf32>
    %c3_245 = arith.constant 3 : index
    %c0_246 = arith.constant 0 : index
    %c0_247 = arith.constant 0 : index
    %300 = vector.load %arg6[%c3_245, %c0_246, %c0_247] : memref<16x20x60xf32, #tpu.memory_space<vmem>>, vector<1x20x60xf32>
    %301 = vector.shape_cast %300 : vector<1x20x60xf32> to vector<20x60xf32>
    %cst_248 = arith.constant dense<0.000000e+00> : vector<8x60xf32>
    %302 = tpu.matmul %299, %301, %cst_248 {dimension_numbers = #tpu.dot_dimension_numbers<[1], [0], [0], [1], [0, 0, 1, 1], [], []>} : vector<8x20xf32>, vector<20x60xf32>, vector<8x60xf32> -> vector<8x60xf32>
    %303 = arith.addf %298, %302 : vector<8x60xf32>
    %304 = vector.extract_strided_slice %282 {offsets = [32, 0], sizes = [8, 20], strides = [1, 1]} : vector<128x20xf32> to vector<8x20xf32>
    %c4_249 = arith.constant 4 : index
    %c0_250 = arith.constant 0 : index
    %c0_251 = arith.constant 0 : index
    %305 = vector.load %arg6[%c4_249, %c0_250, %c0_251] : memref<16x20x60xf32, #tpu.memory_space<vmem>>, vector<1x20x60xf32>
    %306 = vector.shape_cast %305 : vector<1x20x60xf32> to vector<20x60xf32>
    %cst_252 = arith.constant dense<0.000000e+00> : vector<8x60xf32>
    %307 = tpu.matmul %304, %306, %cst_252 {dimension_numbers = #tpu.dot_dimension_numbers<[1], [0], [0], [1], [0, 0, 1, 1], [], []>} : vector<8x20xf32>, vector<20x60xf32>, vector<8x60xf32> -> vector<8x60xf32>
    %308 = arith.addf %303, %307 : vector<8x60xf32>
    %309 = vector.extract_strided_slice %282 {offsets = [40, 0], sizes = [8, 20], strides = [1, 1]} : vector<128x20xf32> to vector<8x20xf32>
    %c5_253 = arith.constant 5 : index
    %c0_254 = arith.constant 0 : index
    %c0_255 = arith.constant 0 : index
    %310 = vector.load %arg6[%c5_253, %c0_254, %c0_255] : memref<16x20x60xf32, #tpu.memory_space<vmem>>, vector<1x20x60xf32>
    %311 = vector.shape_cast %310 : vector<1x20x60xf32> to vector<20x60xf32>
    %cst_256 = arith.constant dense<0.000000e+00> : vector<8x60xf32>
    %312 = tpu.matmul %309, %311, %cst_256 {dimension_numbers = #tpu.dot_dimension_numbers<[1], [0], [0], [1], [0, 0, 1, 1], [], []>} : vector<8x20xf32>, vector<20x60xf32>, vector<8x60xf32> -> vector<8x60xf32>
    %313 = arith.addf %308, %312 : vector<8x60xf32>
    %314 = vector.extract_strided_slice %282 {offsets = [48, 0], sizes = [8, 20], strides = [1, 1]} : vector<128x20xf32> to vector<8x20xf32>
    %c6_257 = arith.constant 6 : index
    %c0_258 = arith.constant 0 : index
    %c0_259 = arith.constant 0 : index
    %315 = vector.load %arg6[%c6_257, %c0_258, %c0_259] : memref<16x20x60xf32, #tpu.memory_space<vmem>>, vector<1x20x60xf32>
    %316 = vector.shape_cast %315 : vector<1x20x60xf32> to vector<20x60xf32>
    %cst_260 = arith.constant dense<0.000000e+00> : vector<8x60xf32>
    %317 = tpu.matmul %314, %316, %cst_260 {dimension_numbers = #tpu.dot_dimension_numbers<[1], [0], [0], [1], [0, 0, 1, 1], [], []>} : vector<8x20xf32>, vector<20x60xf32>, vector<8x60xf32> -> vector<8x60xf32>
    %318 = arith.addf %313, %317 : vector<8x60xf32>
    %319 = vector.extract_strided_slice %282 {offsets = [56, 0], sizes = [8, 20], strides = [1, 1]} : vector<128x20xf32> to vector<8x20xf32>
    %c7_261 = arith.constant 7 : index
    %c0_262 = arith.constant 0 : index
    %c0_263 = arith.constant 0 : index
    %320 = vector.load %arg6[%c7_261, %c0_262, %c0_263] : memref<16x20x60xf32, #tpu.memory_space<vmem>>, vector<1x20x60xf32>
    %321 = vector.shape_cast %320 : vector<1x20x60xf32> to vector<20x60xf32>
    %cst_264 = arith.constant dense<0.000000e+00> : vector<8x60xf32>
    %322 = tpu.matmul %319, %321, %cst_264 {dimension_numbers = #tpu.dot_dimension_numbers<[1], [0], [0], [1], [0, 0, 1, 1], [], []>} : vector<8x20xf32>, vector<20x60xf32>, vector<8x60xf32> -> vector<8x60xf32>
    %323 = arith.addf %318, %322 : vector<8x60xf32>
    %324 = vector.extract_strided_slice %282 {offsets = [64, 0], sizes = [8, 20], strides = [1, 1]} : vector<128x20xf32> to vector<8x20xf32>
    %c8_265 = arith.constant 8 : index
    %c0_266 = arith.constant 0 : index
    %c0_267 = arith.constant 0 : index
    %325 = vector.load %arg6[%c8_265, %c0_266, %c0_267] : memref<16x20x60xf32, #tpu.memory_space<vmem>>, vector<1x20x60xf32>
    %326 = vector.shape_cast %325 : vector<1x20x60xf32> to vector<20x60xf32>
    %cst_268 = arith.constant dense<0.000000e+00> : vector<8x60xf32>
    %327 = tpu.matmul %324, %326, %cst_268 {dimension_numbers = #tpu.dot_dimension_numbers<[1], [0], [0], [1], [0, 0, 1, 1], [], []>} : vector<8x20xf32>, vector<20x60xf32>, vector<8x60xf32> -> vector<8x60xf32>
    %328 = arith.addf %323, %327 : vector<8x60xf32>
    %329 = vector.extract_strided_slice %282 {offsets = [72, 0], sizes = [8, 20], strides = [1, 1]} : vector<128x20xf32> to vector<8x20xf32>
    %c9_269 = arith.constant 9 : index
    %c0_270 = arith.constant 0 : index
    %c0_271 = arith.constant 0 : index
    %330 = vector.load %arg6[%c9_269, %c0_270, %c0_271] : memref<16x20x60xf32, #tpu.memory_space<vmem>>, vector<1x20x60xf32>
    %331 = vector.shape_cast %330 : vector<1x20x60xf32> to vector<20x60xf32>
    %cst_272 = arith.constant dense<0.000000e+00> : vector<8x60xf32>
    %332 = tpu.matmul %329, %331, %cst_272 {dimension_numbers = #tpu.dot_dimension_numbers<[1], [0], [0], [1], [0, 0, 1, 1], [], []>} : vector<8x20xf32>, vector<20x60xf32>, vector<8x60xf32> -> vector<8x60xf32>
    %333 = arith.addf %328, %332 : vector<8x60xf32>
    %334 = vector.extract_strided_slice %282 {offsets = [80, 0], sizes = [8, 20], strides = [1, 1]} : vector<128x20xf32> to vector<8x20xf32>
    %c10_273 = arith.constant 10 : index
    %c0_274 = arith.constant 0 : index
    %c0_275 = arith.constant 0 : index
    %335 = vector.load %arg6[%c10_273, %c0_274, %c0_275] : memref<16x20x60xf32, #tpu.memory_space<vmem>>, vector<1x20x60xf32>
    %336 = vector.shape_cast %335 : vector<1x20x60xf32> to vector<20x60xf32>
    %cst_276 = arith.constant dense<0.000000e+00> : vector<8x60xf32>
    %337 = tpu.matmul %334, %336, %cst_276 {dimension_numbers = #tpu.dot_dimension_numbers<[1], [0], [0], [1], [0, 0, 1, 1], [], []>} : vector<8x20xf32>, vector<20x60xf32>, vector<8x60xf32> -> vector<8x60xf32>
    %338 = arith.addf %333, %337 : vector<8x60xf32>
    %339 = vector.extract_strided_slice %282 {offsets = [88, 0], sizes = [8, 20], strides = [1, 1]} : vector<128x20xf32> to vector<8x20xf32>
    %c11_277 = arith.constant 11 : index
    %c0_278 = arith.constant 0 : index
    %c0_279 = arith.constant 0 : index
    %340 = vector.load %arg6[%c11_277, %c0_278, %c0_279] : memref<16x20x60xf32, #tpu.memory_space<vmem>>, vector<1x20x60xf32>
    %341 = vector.shape_cast %340 : vector<1x20x60xf32> to vector<20x60xf32>
    %cst_280 = arith.constant dense<0.000000e+00> : vector<8x60xf32>
    %342 = tpu.matmul %339, %341, %cst_280 {dimension_numbers = #tpu.dot_dimension_numbers<[1], [0], [0], [1], [0, 0, 1, 1], [], []>} : vector<8x20xf32>, vector<20x60xf32>, vector<8x60xf32> -> vector<8x60xf32>
    %343 = arith.addf %338, %342 : vector<8x60xf32>
    %344 = vector.extract_strided_slice %282 {offsets = [96, 0], sizes = [8, 20], strides = [1, 1]} : vector<128x20xf32> to vector<8x20xf32>
    %c12_281 = arith.constant 12 : index
    %c0_282 = arith.constant 0 : index
    %c0_283 = arith.constant 0 : index
    %345 = vector.load %arg6[%c12_281, %c0_282, %c0_283] : memref<16x20x60xf32, #tpu.memory_space<vmem>>, vector<1x20x60xf32>
    %346 = vector.shape_cast %345 : vector<1x20x60xf32> to vector<20x60xf32>
    %cst_284 = arith.constant dense<0.000000e+00> : vector<8x60xf32>
    %347 = tpu.matmul %344, %346, %cst_284 {dimension_numbers = #tpu.dot_dimension_numbers<[1], [0], [0], [1], [0, 0, 1, 1], [], []>} : vector<8x20xf32>, vector<20x60xf32>, vector<8x60xf32> -> vector<8x60xf32>
    %348 = arith.addf %343, %347 : vector<8x60xf32>
    %349 = vector.extract_strided_slice %282 {offsets = [104, 0], sizes = [8, 20], strides = [1, 1]} : vector<128x20xf32> to vector<8x20xf32>
    %c13_285 = arith.constant 13 : index
    %c0_286 = arith.constant 0 : index
    %c0_287 = arith.constant 0 : index
    %350 = vector.load %arg6[%c13_285, %c0_286, %c0_287] : memref<16x20x60xf32, #tpu.memory_space<vmem>>, vector<1x20x60xf32>
    %351 = vector.shape_cast %350 : vector<1x20x60xf32> to vector<20x60xf32>
    %cst_288 = arith.constant dense<0.000000e+00> : vector<8x60xf32>
    %352 = tpu.matmul %349, %351, %cst_288 {dimension_numbers = #tpu.dot_dimension_numbers<[1], [0], [0], [1], [0, 0, 1, 1], [], []>} : vector<8x20xf32>, vector<20x60xf32>, vector<8x60xf32> -> vector<8x60xf32>
    %353 = arith.addf %348, %352 : vector<8x60xf32>
    %354 = vector.extract_strided_slice %282 {offsets = [112, 0], sizes = [8, 20], strides = [1, 1]} : vector<128x20xf32> to vector<8x20xf32>
    %c14_289 = arith.constant 14 : index
    %c0_290 = arith.constant 0 : index
    %c0_291 = arith.constant 0 : index
    %355 = vector.load %arg6[%c14_289, %c0_290, %c0_291] : memref<16x20x60xf32, #tpu.memory_space<vmem>>, vector<1x20x60xf32>
    %356 = vector.shape_cast %355 : vector<1x20x60xf32> to vector<20x60xf32>
    %cst_292 = arith.constant dense<0.000000e+00> : vector<8x60xf32>
    %357 = tpu.matmul %354, %356, %cst_292 {dimension_numbers = #tpu.dot_dimension_numbers<[1], [0], [0], [1], [0, 0, 1, 1], [], []>} : vector<8x20xf32>, vector<20x60xf32>, vector<8x60xf32> -> vector<8x60xf32>
    %358 = arith.addf %353, %357 : vector<8x60xf32>
    %359 = vector.extract_strided_slice %282 {offsets = [120, 0], sizes = [8, 20], strides = [1, 1]} : vector<128x20xf32> to vector<8x20xf32>
    %c15_293 = arith.constant 15 : index
    %c0_294 = arith.constant 0 : index
    %c0_295 = arith.constant 0 : index
    %360 = vector.load %arg6[%c15_293, %c0_294, %c0_295] : memref<16x20x60xf32, #tpu.memory_space<vmem>>, vector<1x20x60xf32>
    %361 = vector.shape_cast %360 : vector<1x20x60xf32> to vector<20x60xf32>
    %cst_296 = arith.constant dense<0.000000e+00> : vector<8x60xf32>
    %362 = tpu.matmul %359, %361, %cst_296 {dimension_numbers = #tpu.dot_dimension_numbers<[1], [0], [0], [1], [0, 0, 1, 1], [], []>} : vector<8x20xf32>, vector<20x60xf32>, vector<8x60xf32> -> vector<8x60xf32>
    %363 = arith.addf %358, %362 : vector<8x60xf32>
    %c0_297 = arith.constant 0 : index
    %c0_298 = arith.constant 0 : index
    %364 = vector.load %arg7[%c0_297, %c0_298] : memref<1x60xf32, #tpu.memory_space<vmem>>, vector<1x60xf32>
    %365 = vector.broadcast %364 : vector<1x60xf32> to vector<8x60xf32>
    %366 = arith.addf %363, %365 : vector<8x60xf32>
    %cst_299 = arith.constant 0.000000e+00 : f32
    %367 = vector.broadcast %cst_299 : f32 to vector<8x60xf32>
    %368 = arith.maximumf %366, %367 : vector<8x60xf32>
    %c0_300 = arith.constant 0 : index
    %c0_301 = arith.constant 0 : index
    %369 = vector.load %arg8[%c0_300, %c0_301] : memref<60x10xf32, #tpu.memory_space<vmem>>, vector<60x10xf32>
    %cst_302 = arith.constant dense<0.000000e+00> : vector<8x10xf32>
    %370 = tpu.matmul %368, %369, %cst_302 {dimension_numbers = #tpu.dot_dimension_numbers<[1], [0], [0], [1], [0, 0, 1, 1], [], []>} : vector<8x60xf32>, vector<60x10xf32>, vector<8x10xf32> -> vector<8x10xf32>
    %c0_303 = arith.constant 0 : index
    %c0_304 = arith.constant 0 : index
    %371 = vector.load %arg9[%c0_303, %c0_304] : memref<1x10xf32, #tpu.memory_space<vmem>>, vector<1x10xf32>
    %372 = vector.broadcast %371 : vector<1x10xf32> to vector<8x10xf32>
    %373 = arith.addf %370, %372 : vector<8x10xf32>
    %cst_305 = arith.constant dense<0xFF800000> : vector<8xf32>
    %374 = vector.multi_reduction <maximumf>, %373, %cst_305 [1] : vector<8x10xf32> to vector<8xf32>
    %375 = vector.shape_cast %374 : vector<8xf32> to vector<8x1xf32>
    %376 = vector.broadcast %375 : vector<8x1xf32> to vector<8x10xf32>
    %377 = arith.subf %373, %376 : vector<8x10xf32>
    %378 = math.exp %377 : vector<8x10xf32>
    %cst_306 = arith.constant dense<0.000000e+00> : vector<8xf32>
    %379 = vector.multi_reduction <add>, %378, %cst_306 [1] : vector<8x10xf32> to vector<8xf32>
    %380 = vector.shape_cast %379 : vector<8xf32> to vector<8x1xf32>
    %381 = tpu.reciprocal %380 {approx = true} : vector<8x1xf32> -> vector<8x1xf32>
    %382 = vector.broadcast %381 : vector<8x1xf32> to vector<8x10xf32>
    %383 = arith.mulf %378, %382 : vector<8x10xf32>
    %c0_307 = arith.constant 0 : index
    %c0_308 = arith.constant 0 : index
    %384 = vector.load %arg10[%c0_307, %c0_308] : memref<8x10xf32, #tpu.memory_space<vmem>>, vector<8x10xf32>
    tpu.vector_store %arg10[%c0_307, %c0_308], %383 {strides = array<i32>} : memref<8x10xf32, #tpu.memory_space<vmem>>, vector<8x10xf32>,
    return
  }
  func.func @transform_0(%arg0: i32) -> (i32, i32, i32, i32) {
    %c0_i32 = arith.constant 0 : i32
    %c0_i32_0 = arith.constant 0 : i32
    %c0_i32_1 = arith.constant 0 : i32
    %c0_i32_2 = arith.constant 0 : i32
    return %arg0, %c0_i32, %c0_i32_0, %c0_i32_1 : i32, i32, i32, i32
  }
  func.func @transform_1(%arg0: i32) -> (i32, i32) {
    %c0_i32 = arith.constant 0 : i32
    %c0_i32_0 = arith.constant 0 : i32
    %c0_i32_1 = arith.constant 0 : i32
    return %c0_i32, %c0_i32_0 : i32, i32
  }
  func.func @transform_2(%arg0: i32) -> (i32, i32) {
    %c0_i32 = arith.constant 0 : i32
    %c0_i32_0 = arith.constant 0 : i32
    %c0_i32_1 = arith.constant 0 : i32
    return %c0_i32, %c0_i32_0 : i32, i32
  }
  func.func @transform_3(%arg0: i32) -> (i32, i32, i32) {
    %c0_i32 = arith.constant 0 : i32
    %c0_i32_0 = arith.constant 0 : i32
    %c0_i32_1 = arith.constant 0 : i32
    %c0_i32_2 = arith.constant 0 : i32
    return %c0_i32, %c0_i32_0, %c0_i32_1 : i32, i32, i32
  }
  func.func @transform_4(%arg0: i32) -> (i32, i32) {
    %c0_i32 = arith.constant 0 : i32
    %c0_i32_0 = arith.constant 0 : i32
    %c0_i32_1 = arith.constant 0 : i32
    return %c0_i32, %c0_i32_0 : i32, i32
  }
  func.func @transform_5(%arg0: i32) -> (i32, i32, i32) {
    %c0_i32 = arith.constant 0 : i32
    %c0_i32_0 = arith.constant 0 : i32
    %c0_i32_1 = arith.constant 0 : i32
    %c0_i32_2 = arith.constant 0 : i32
    return %c0_i32, %c0_i32_0, %c0_i32_1 : i32, i32, i32
  }
  func.func @transform_6(%arg0: i32) -> (i32, i32) {
    %c0_i32 = arith.constant 0 : i32
    %c0_i32_0 = arith.constant 0 : i32
    %c0_i32_1 = arith.constant 0 : i32
    return %c0_i32, %c0_i32_0 : i32, i32
  }
  func.func @transform_7(%arg0: i32) -> (i32, i32) {
    %c0_i32 = arith.constant 0 : i32
    %c0_i32_0 = arith.constant 0 : i32
    %c0_i32_1 = arith.constant 0 : i32
    return %c0_i32, %c0_i32_0 : i32, i32
  }
  func.func @transform_8(%arg0: i32) -> (i32, i32) {
    %c0_i32 = arith.constant 0 : i32
    %c0_i32_0 = arith.constant 0 : i32
    %c0_i32_1 = arith.constant 0 : i32
    return %c0_i32, %c0_i32_0 : i32, i32
  }
  func.func @transform_9(%arg0: i32) -> (i32, i32) {
    %c0_i32 = arith.constant 0 : i32
    %c0_i32_0 = arith.constant 0 : i32
    return %arg0, %c0_i32 : i32, i32
  }
}

</mosaic_0001>

<llo_original>
// kernel: convnet_forward.1
$region0: #{convnet_forward.1}
  #allocation0 [shape = 'u32[]', space=smem, size = 0x4, offset = 0x4, fixed_abs, tag = 'smem constant byte address 0x4 - core index']
  #allocation1 [shape = 'u32[144,128]{1,0:T(1,128)}', space=vmem, size = 0x12000, scoped, tag = 'internal scratch']
  %s0 = inlined_call_operand.vmem [shape: f32[1,25,128,25], index: 0, kind: input, shape index: {}]
  %s1 = inlined_call_operand.vmem [shape: f32[25,10], index: 1, kind: input, shape index: {}]
  %s2 = inlined_call_operand.vmem [shape: f32[1,10], index: 2, kind: input, shape index: {}]
  %s3 = inlined_call_operand.vmem [shape: f32[25,10,20], index: 3, kind: input, shape index: {}]
  %s4 = inlined_call_operand.vmem [shape: f32[1,20], index: 4, kind: input, shape index: {}]
  %s5 = inlined_call_operand.vmem [shape: f32[16,20,60], index: 5, kind: input, shape index: {}]
  %s6 = inlined_call_operand.vmem [shape: f32[1,60], index: 6, kind: input, shape index: {}]
  %s7 = inlined_call_operand.vmem [shape: f32[60,10], index: 7, kind: input, shape index: {}]
  %s8 = inlined_call_operand.vmem [shape: f32[1,10], index: 8, kind: input, shape index: {}]
  %s9 = inlined_call_operand.vmem [shape: f32[8,10], index: 9, kind: output, shape index: {}]
  %s10 = sld [smem:[#allocation0]]
  $region46: #{convnet_forward.1} parent=0
    _
  %s12 = ssub.s32 1, %s10
  %s13 = scalar_select 0, %s12, %s10
  // Predicated region
  $region2: #{convnet_forward.1} parent=0 // pred_check
    _
  $region3: #{convnet_forward.1} parent=0 // pred_check_branch
    %15 = sbr.rel (0) target = $region5
  $region4: #{convnet_forward.1} parent=0 // pred_region
    _
  $region5: #{convnet_forward.1} parent=0 // pred_fallthru
    _
  // Predicated region
  $region6: #{convnet_forward.1} parent=0 // pred_check
    _
  $region7: #{convnet_forward.1} parent=0 // pred_check_branch
    %17 = sbr.rel (0) target = $region9
  $region8: #{convnet_forward.1} parent=0 // pred_region
    _
  $region9: #{convnet_forward.1} parent=0 // pred_fallthru
    _
  // Predicated region
  $region10: #{convnet_forward.1} parent=0 // pred_check
    _
  $region11: #{convnet_forward.1} parent=0 // pred_check_branch
    %19 = sbr.rel (0) target = $region13
  $region12: #{convnet_forward.1} parent=0 // pred_region
    _
  $region13: #{convnet_forward.1} parent=0 // pred_fallthru
    _
  // Predicated region
  $region14: #{convnet_forward.1} parent=0 // pred_check
    _
  $region15: #{convnet_forward.1} parent=0 // pred_check_branch
    %21 = sbr.rel (0) target = $region17
  $region16: #{convnet_forward.1} parent=0 // pred_region
    _
  $region17: #{convnet_forward.1} parent=0 // pred_fallthru
    _
  // Predicated region
  $region18: #{convnet_forward.1} parent=0 // pred_check
    _
  $region19: #{convnet_forward.1} parent=0 // pred_check_branch
    %23 = sbr.rel (0) target = $region21
  $region20: #{convnet_forward.1} parent=0 // pred_region
    _
  $region21: #{convnet_forward.1} parent=0 // pred_fallthru
    _
  // Predicated region
  $region22: #{convnet_forward.1} parent=0 // pred_check
    _
  $region23: #{convnet_forward.1} parent=0 // pred_check_branch
    %25 = sbr.rel (0) target = $region25
  $region24: #{convnet_forward.1} parent=0 // pred_region
    _
  $region25: #{convnet_forward.1} parent=0 // pred_fallthru
    _
  // Predicated region
  $region26: #{convnet_forward.1} parent=0 // pred_check
    _
  $region27: #{convnet_forward.1} parent=0 // pred_check_branch
    %27 = sbr.rel (0) target = $region29
  $region28: #{convnet_forward.1} parent=0 // pred_region
    _
  $region29: #{convnet_forward.1} parent=0 // pred_fallthru
    _
  // Predicated region
  $region30: #{convnet_forward.1} parent=0 // pred_check
    _
  $region31: #{convnet_forward.1} parent=0 // pred_check_branch
    %29 = sbr.rel (0) target = $region33
  $region32: #{convnet_forward.1} parent=0 // pred_region
    _
  $region33: #{convnet_forward.1} parent=0 // pred_fallthru
    _
  // Predicated region
  $region34: #{convnet_forward.1} parent=0 // pred_check
    _
  $region35: #{convnet_forward.1} parent=0 // pred_check_branch
    %31 = sbr.rel (0) target = $region37
  $region36: #{convnet_forward.1} parent=0 // pred_region
    _
  $region37: #{convnet_forward.1} parent=0 // pred_fallthru
    _
  %v32 = vld [vmem:[%s1] sm:$0xff]
  %v33 = vld [vmem:[%s1 + $0x8] sm:$0xff]
  %v34 = vld [vmem:[%s1 + $0x10] sm:$0xff]
  %v35 = vld [vmem:[%s1 + $0x18] sm:$0x1]
  %v36 = vld [vmem:[%s2] sm:$0x1]
  %v37 = vld [vmem:[%s0] sm:$0xff]
  %v38 = vld [vmem:[%s0 + $0x8] sm:$0xff]
  %v39 = vld [vmem:[%s0 + $0x10] sm:$0xff]
  %v40 = vld [vmem:[%s0 + $0x18] sm:$0xff]
  %v41 = vld [vmem:[%s0 + $0x20] sm:$0xff]
  %v42 = vld [vmem:[%s0 + $0x28] sm:$0xff]
  %v43 = vld [vmem:[%s0 + $0x30] sm:$0xff]
  %v44 = vld [vmem:[%s0 + $0x38] sm:$0xff]
  %v45 = vld [vmem:[%s0 + $0x40] sm:$0xff]
  %v46 = vld [vmem:[%s0 + $0x48] sm:$0xff]
  %v47 = vld [vmem:[%s0 + $0x50] sm:$0xff]
  %v48 = vld [vmem:[%s0 + $0x58] sm:$0xff]
  %v49 = vld [vmem:[%s0 + $0x60] sm:$0xff]
  %v50 = vld [vmem:[%s0 + $0x68] sm:$0xff]
  %v51 = vld [vmem:[%s0 + $0x70] sm:$0xff]
  %v52 = vld [vmem:[%s0 + $0x78] sm:$0xff]
  %v54 = vlaneseq
  %v55 = vshrl.u32 %v54, 7
  %v56 = vsub.s32 0, %v55
  %v57 = vrot.slane %v36, %v56
  %vm59 = vcmask 203776
  %v61 = vsel %vm59, %v37, 0
  %v64 = vsel %vm59, %v38, 0
  %v67 = vsel %vm59, %v39, 0
  %v70 = vsel %vm59, %v40, 0
  %v73 = vsel %vm59, %v41, 0
  %v76 = vsel %vm59, %v42, 0
  %v79 = vsel %vm59, %v43, 0
  %v82 = vsel %vm59, %v44, 0
  %v85 = vsel %vm59, %v45, 0
  %v88 = vsel %vm59, %v46, 0
  %v91 = vsel %vm59, %v47, 0
  %v94 = vsel %vm59, %v48, 0
  %v97 = vsel %vm59, %v49, 0
  %v100 = vsel %vm59, %v50, 0
  %v103 = vsel %vm59, %v51, 0
  %v106 = vsel %vm59, %v52, 0
  %vm108 = vcmask 1040384
  %v110 = vsel %vm108, %v35, 0
  %112 = vmatprep.subr.mxu0 0.0
  %113 = vmatpush1.msra.mxu0 %v32
  %114 = vmatprep.subr.mxu0 0.0
  %115 = vmatpush1.msra.mxu0 %v33
  %116 = vmatprep.subr.mxu0 0.0
  %117 = vmatpush1.msra.mxu0 %v34
  %118 = vmatprep.subr.mxu0 0.0
  %119 = vmatpush1.msra.mxu0 %v110
  %120 = vmatprep.subr.mxu0 0.0
  %121 = vmatpush1.msra.mxu0 0.0
  %122 = vmatprep.subr.mxu0 0.0
  %123 = vmatpush1.msra.mxu0 0.0
  %124 = vmatprep.subr.mxu0 0.0
  %125 = vmatpush1.msra.mxu0 0.0
  %126 = vmatprep.subr.mxu0 0.0
  %127 = vmatpush1.msra.mxu0 0.0
  %128 = vmatprep.subr.mxu0 0.0
  %129 = vmatpush1.msra.mxu0 0.0
  %130 = vmatprep.subr.mxu0 0.0
  %131 = vmatpush1.msra.mxu0 0.0
  %132 = vmatprep.subr.mxu0 0.0
  %133 = vmatpush1.msra.mxu0 0.0
  %134 = vmatprep.subr.mxu0 0.0
  %135 = vmatpush1.msra.mxu0 0.0
  %136 = vmatprep.subr.mxu0 0.0
  %137 = vmatpush1.msra.mxu0 0.0
  %138 = vmatprep.subr.mxu0 0.0
  %139 = vmatpush1.msra.mxu0 0.0
  %140 = vmatprep.subr.mxu0 0.0
  %141 = vmatpush1.msra.mxu0 0.0
  %142 = vmatprep.subr.mxu0 0.0
  %143 = vmatpush1.msra.mxu0 0.0
  %144 = vmatprep.subr.mxu0 0.0
  %145 = vmatpush1.msra.mxu0 0.0
  %146 = vmatprep.subr.mxu0 0.0
  %147 = vmatpush1.msra.mxu0 0.0
  %148 = vmatprep.subr.mxu0 0.0
  %149 = vmatpush1.msra.mxu0 0.0
  %150 = vmatprep.subr.mxu0 0.0
  %151 = vmatpush1.msra.mxu0 0.0
  %152 = vmatprep.subr.mxu0 0.0
  %153 = vmatpush1.msra.mxu0 0.0
  %154 = vmatprep.subr.mxu0 0.0
  %155 = vmatpush1.msra.mxu0 0.0
  %156 = vmatprep.subr.mxu0 0.0
  %157 = vmatpush1.msra.mxu0 0.0
  %158 = vmatprep.subr.mxu0 0.0
  %159 = vmatpush1.msra.mxu0 0.0
  %160 = vmatprep.subr.mxu0 0.0
  %161 = vmatpush1.msra.mxu0 0.0
  %162 = vmatprep.subr.mxu0 0.0
  %163 = vmatpush1.msra.mxu0 0.0
  %164 = vmatprep.subr.mxu0 0.0
  %165 = vmatpush1.msra.mxu0 0.0
  %166 = vmatprep.subr.mxu0 0.0
  %167 = vmatpush1.msra.mxu0 0.0
  %168 = vmatprep.subr.mxu0 0.0
  %169 = vmatpush1.msra.mxu0 0.0
  %170 = vmatprep.subr.mxu0 0.0
  %171 = vmatpush1.msra.mxu0 0.0
  %172 = vmatprep.subr.mxu0 0.0
  %173 = vmatpush1.msra.mxu0 0.0
  %174 = vmatprep.subr.mxu0 0.0
  %175 = vmatpush1.msra.mxu0 0.0
  %176 = vmatprep.mubr.f32.mxu0 0.0
  %177 = vmatmul.mubr.f32.gmra.mrb[0].mxu0 %v61
  %v178 = vpop.f32.mrb[0].mxu0
  %v179 = vadd.f32 %v57, %v178
  %v180 = vpop.f32.mrb[0].mxu0
  %181 = vmatprep.mubr.f32.mxu0 0.0
  %182 = vmatmul.mubr.f32.gmra.mrb[0].mxu0 %v64
  %v183 = vpop.f32.mrb[0].mxu0
  %v184 = vadd.f32 %v57, %v183
  %v185 = vpop.f32.mrb[0].mxu0
  %186 = vmatprep.mubr.f32.mxu0 0.0
  %187 = vmatmul.mubr.f32.gmra.mrb[0].mxu0 %v67
  %v188 = vpop.f32.mrb[0].mxu0
  %v189 = vadd.f32 %v57, %v188
  %v190 = vpop.f32.mrb[0].mxu0
  %191 = vmatprep.mubr.f32.mxu0 0.0
  %192 = vmatmul.mubr.f32.gmra.mrb[0].mxu0 %v70
  %v193 = vpop.f32.mrb[0].mxu0
  %v194 = vadd.f32 %v57, %v193
  %v195 = vpop.f32.mrb[0].mxu0
  %196 = vmatprep.mubr.f32.mxu0 0.0
  %197 = vmatmul.mubr.f32.gmra.mrb[0].mxu0 %v73
  %v198 = vpop.f32.mrb[0].mxu0
  %v199 = vadd.f32 %v57, %v198
  %v200 = vpop.f32.mrb[0].mxu0
  %201 = vmatprep.mubr.f32.mxu0 0.0
  %202 = vmatmul.mubr.f32.gmra.mrb[0].mxu0 %v76
  %v203 = vpop.f32.mrb[0].mxu0
  %v204 = vadd.f32 %v57, %v203
  %v205 = vpop.f32.mrb[0].mxu0
  %206 = vmatprep.mubr.f32.mxu0 0.0
  %207 = vmatmul.mubr.f32.gmra.mrb[0].mxu0 %v79
  %v208 = vpop.f32.mrb[0].mxu0
  %v209 = vadd.f32 %v57, %v208
  %v210 = vpop.f32.mrb[0].mxu0
  %211 = vmatprep.mubr.f32.mxu0 0.0
  %212 = vmatmul.mubr.f32.gmra.mrb[0].mxu0 %v82
  %v213 = vpop.f32.mrb[0].mxu0
  %v214 = vadd.f32 %v57, %v213
  %v215 = vpop.f32.mrb[0].mxu0
  %216 = vmatprep.mubr.f32.mxu0 0.0
  %217 = vmatmul.mubr.f32.gmra.mrb[0].mxu0 %v85
  %v218 = vpop.f32.mrb[0].mxu0
  %v219 = vadd.f32 %v57, %v218
  %v220 = vpop.f32.mrb[0].mxu0
  %221 = vmatprep.mubr.f32.mxu0 0.0
  %222 = vmatmul.mubr.f32.gmra.mrb[0].mxu0 %v88
  %v223 = vpop.f32.mrb[0].mxu0
  %v224 = vadd.f32 %v57, %v223
  %v225 = vpop.f32.mrb[0].mxu0
  %226 = vmatprep.mubr.f32.mxu0 0.0
  %227 = vmatmul.mubr.f32.gmra.mrb[0].mxu0 %v91
  %v228 = vpop.f32.mrb[0].mxu0
  %v229 = vadd.f32 %v57, %v228
  %v230 = vpop.f32.mrb[0].mxu0
  %231 = vmatprep.mubr.f32.mxu0 0.0
  %232 = vmatmul.mubr.f32.gmra.mrb[0].mxu0 %v94
  %v233 = vpop.f32.mrb[0].mxu0
  %v234 = vadd.f32 %v57, %v233
  %v235 = vpop.f32.mrb[0].mxu0
  %236 = vmatprep.mubr.f32.mxu0 0.0
  %237 = vmatmul.mubr.f32.gmra.mrb[0].mxu0 %v97
  %v238 = vpop.f32.mrb[0].mxu0
  %v239 = vadd.f32 %v57, %v238
  %v240 = vpop.f32.mrb[0].mxu0
  %241 = vmatprep.mubr.f32.mxu0 0.0
  %242 = vmatmul.mubr.f32.gmra.mrb[0].mxu0 %v100
  %v243 = vpop.f32.mrb[0].mxu0
  %v244 = vadd.f32 %v57, %v243
  %v245 = vpop.f32.mrb[0].mxu0
  %246 = vmatprep.mubr.f32.mxu0 0.0
  %247 = vmatmul.mubr.f32.gmra.mrb[0].mxu0 %v103
  %v248 = vpop.f32.mrb[0].mxu0
  %v249 = vadd.f32 %v57, %v248
  %v250 = vpop.f32.mrb[0].mxu0
  %251 = vmatprep.mubr.f32.mxu0 0.0
  %252 = vmatmul.mubr.f32.gmra.mrb[0].mxu0 %v106
  %v253 = vpop.f32.mrb[0].mxu0
  %v254 = vadd.f32 %v57, %v253
  %v255 = vpop.f32.mrb[0].mxu0
  %256 = vdwg.mxu0
  %v257 = vmax.f32 %v179, 0.0
  %v258 = vmax.f32 %v184, 0.0
  %v259 = vmax.f32 %v189, 0.0
  %v260 = vmax.f32 %v194, 0.0
  %v261 = vmax.f32 %v199, 0.0
  %v262 = vmax.f32 %v204, 0.0
  %v263 = vmax.f32 %v209, 0.0
  %v264 = vmax.f32 %v214, 0.0
  %v265 = vmax.f32 %v219, 0.0
  %v266 = vmax.f32 %v224, 0.0
  %v267 = vmax.f32 %v229, 0.0
  %v268 = vmax.f32 %v234, 0.0
  %v269 = vmax.f32 %v239, 0.0
  %v270 = vmax.f32 %v244, 0.0
  %v271 = vmax.f32 %v249, 0.0
  %v272 = vmax.f32 %v254, 0.0
  %v273 = vld [vmem:[%s3] sm:$0xff]
  %v274 = vld [vmem:[%s3 + $0x8] sm:$0x3]
  %s275 = scalar_lea.vmem %s0, 128
  %v276 = vld [vmem:[%s275] sm:$0xff]
  %v277 = vld [vmem:[%s275 + $0x8] sm:$0xff]
  %v278 = vld [vmem:[%s275 + $0x10] sm:$0xff]
  %v279 = vld [vmem:[%s275 + $0x18] sm:$0xff]
  %v280 = vld [vmem:[%s275 + $0x20] sm:$0xff]
  %v281 = vld [vmem:[%s275 + $0x28] sm:$0xff]
  %v282 = vld [vmem:[%s275 + $0x30] sm:$0xff]
  %v283 = vld [vmem:[%s275 + $0x38] sm:$0xff]
  %v284 = vld [vmem:[%s275 + $0x40] sm:$0xff]
  %v285 = vld [vmem:[%s275 + $0x48] sm:$0xff]
  %v286 = vld [vmem:[%s275 + $0x50] sm:$0xff]
  %v287 = vld [vmem:[%s275 + $0x58] sm:$0xff]
  %v288 = vld [vmem:[%s275 + $0x60] sm:$0xff]
  %v289 = vld [vmem:[%s275 + $0x68] sm:$0xff]
  %v290 = vld [vmem:[%s275 + $0x70] sm:$0xff]
  %v291 = vld [vmem:[%s275 + $0x78] sm:$0xff]
  %v293 = vsel %vm59, %v276, 0
  %v296 = vsel %vm59, %v277, 0
  %v299 = vsel %vm59, %v278, 0
  %v302 = vsel %vm59, %v279, 0
  %v305 = vsel %vm59, %v280, 0
  %v308 = vsel %vm59, %v281, 0
  %v311 = vsel %vm59, %v282, 0
  %v314 = vsel %vm59, %v283, 0
  %v317 = vsel %vm59, %v284, 0
  %v320 = vsel %vm59, %v285, 0
  %v323 = vsel %vm59, %v286, 0
  %v326 = vsel %vm59, %v287, 0
  %v329 = vsel %vm59, %v288, 0
  %v332 = vsel %vm59, %v289, 0
  %v335 = vsel %vm59, %v290, 0
  %v338 = vsel %vm59, %v291, 0
  %340 = vmatprep.subr.mxu0 0.0
  %341 = vmatpush1.msra.mxu0 %v32
  %342 = vmatprep.subr.mxu0 0.0
  %343 = vmatpush1.msra.mxu0 %v33
  %344 = vmatprep.subr.mxu0 0.0
  %345 = vmatpush1.msra.mxu0 %v34
  %346 = vmatprep.subr.mxu0 0.0
  %347 = vmatpush1.msra.mxu0 %v110
  %348 = vmatprep.subr.mxu0 0.0
  %349 = vmatpush1.msra.mxu0 0.0
  %350 = vmatprep.subr.mxu0 0.0
  %351 = vmatpush1.msra.mxu0 0.0
  %352 = vmatprep.subr.mxu0 0.0
  %353 = vmatpush1.msra.mxu0 0.0
  %354 = vmatprep.subr.mxu0 0.0
  %355 = vmatpush1.msra.mxu0 0.0
  %356 = vmatprep.subr.mxu0 0.0
  %357 = vmatpush1.msra.mxu0 0.0
  %358 = vmatprep.subr.mxu0 0.0
  %359 = vmatpush1.msra.mxu0 0.0
  %360 = vmatprep.subr.mxu0 0.0
  %361 = vmatpush1.msra.mxu0 0.0
  %362 = vmatprep.subr.mxu0 0.0
  %363 = vmatpush1.msra.mxu0 0.0
  %364 = vmatprep.subr.mxu0 0.0
  %365 = vmatpush1.msra.mxu0 0.0
  %366 = vmatprep.subr.mxu0 0.0
  %367 = vmatpush1.msra.mxu0 0.0
  %368 = vmatprep.subr.mxu0 0.0
  %369 = vmatpush1.msra.mxu0 0.0
  %370 = vmatprep.subr.mxu0 0.0
  %371 = vmatpush1.msra.mxu0 0.0
  %372 = vmatprep.subr.mxu0 0.0
  %373 = vmatpush1.msra.mxu0 0.0
  %374 = vmatprep.subr.mxu0 0.0
  %375 = vmatpush1.msra.mxu0 0.0
  %376 = vmatprep.subr.mxu0 0.0
  %377 = vmatpush1.msra.mxu0 0.0
  %378 = vmatprep.subr.mxu0 0.0
  %379 = vmatpush1.msra.mxu0 0.0
  %380 = vmatprep.subr.mxu0 0.0
  %381 = vmatpush1.msra.mxu0 0.0
  %382 = vmatprep.subr.mxu0 0.0
  %383 = vmatpush1.msra.mxu0 0.0
  %384 = vmatprep.subr.mxu0 0.0
  %385 = vmatpush1.msra.mxu0 0.0
  %386 = vmatprep.subr.mxu0 0.0
  %387 = vmatpush1.msra.mxu0 0.0
  %388 = vmatprep.subr.mxu0 0.0
  %389 = vmatpush1.msra.mxu0 0.0
  %390 = vmatprep.subr.mxu0 0.0
  %391 = vmatpush1.msra.mxu0 0.0
  %392 = vmatprep.subr.mxu0 0.0
  %393 = vmatpush1.msra.mxu0 0.0
  %394 = vmatprep.subr.mxu0 0.0
  %395 = vmatpush1.msra.mxu0 0.0
  %396 = vmatprep.subr.mxu0 0.0
  %397 = vmatpush1.msra.mxu0 0.0
  %398 = vmatprep.subr.mxu0 0.0
  %399 = vmatpush1.msra.mxu0 0.0
  %400 = vmatprep.subr.mxu0 0.0
  %401 = vmatpush1.msra.mxu0 0.0
  %402 = vmatprep.subr.mxu0 0.0
  %403 = vmatpush1.msra.mxu0 0.0
  %404 = vmatprep.mubr.f32.mxu0 0.0
  %405 = vmatmul.mubr.f32.gmra.mrb[0].mxu0 %v293
  %v406 = vpop.f32.mrb[0].mxu0
  %v407 = vadd.f32 %v57, %v406
  %v408 = vpop.f32.mrb[0].mxu0
  %409 = vmatprep.mubr.f32.mxu0 0.0
  %410 = vmatmul.mubr.f32.gmra.mrb[0].mxu0 %v296
  %v411 = vpop.f32.mrb[0].mxu0
  %v412 = vadd.f32 %v57, %v411
  %v413 = vpop.f32.mrb[0].mxu0
  %414 = vmatprep.mubr.f32.mxu0 0.0
  %415 = vmatmul.mubr.f32.gmra.mrb[0].mxu0 %v299
  %v416 = vpop.f32.mrb[0].mxu0
  %v417 = vadd.f32 %v57, %v416
  %v418 = vpop.f32.mrb[0].mxu0
  %419 = vmatprep.mubr.f32.mxu0 0.0
  %420 = vmatmul.mubr.f32.gmra.mrb[0].mxu0 %v302
  %v421 = vpop.f32.mrb[0].mxu0
  %v422 = vadd.f32 %v57, %v421
  %v423 = vpop.f32.mrb[0].mxu0
  %424 = vmatprep.mubr.f32.mxu0 0.0
  %425 = vmatmul.mubr.f32.gmra.mrb[0].mxu0 %v305
  %v426 = vpop.f32.mrb[0].mxu0
  %v427 = vadd.f32 %v57, %v426
  %v428 = vpop.f32.mrb[0].mxu0
  %429 = vmatprep.mubr.f32.mxu0 0.0
  %430 = vmatmul.mubr.f32.gmra.mrb[0].mxu0 %v308
  %v431 = vpop.f32.mrb[0].mxu0
  %v432 = vadd.f32 %v57, %v431
  %v433 = vpop.f32.mrb[0].mxu0
  %434 = vmatprep.mubr.f32.mxu0 0.0
  %435 = vmatmul.mubr.f32.gmra.mrb[0].mxu0 %v311
  %v436 = vpop.f32.mrb[0].mxu0
  %v437 = vadd.f32 %v57, %v436
  %v438 = vpop.f32.mrb[0].mxu0
  %439 = vmatprep.mubr.f32.mxu0 0.0
  %440 = vmatmul.mubr.f32.gmra.mrb[0].mxu0 %v314
  %v441 = vpop.f32.mrb[0].mxu0
  %v442 = vadd.f32 %v57, %v441
  %v443 = vpop.f32.mrb[0].mxu0
  %444 = vmatprep.mubr.f32.mxu0 0.0
  %445 = vmatmul.mubr.f32.gmra.mrb[0].mxu0 %v317
  %v446 = vpop.f32.mrb[0].mxu0
  %v447 = vadd.f32 %v57, %v446
  %v448 = vpop.f32.mrb[0].mxu0
  %449 = vmatprep.mubr.f32.mxu0 0.0
  %450 = vmatmul.mubr.f32.gmra.mrb[0].mxu0 %v320
  %v451 = vpop.f32.mrb[0].mxu0
  %v452 = vadd.f32 %v57, %v451
  %v453 = vpop.f32.mrb[0].mxu0
  %454 = vmatprep.mubr.f32.mxu0 0.0
  %455 = vmatmul.mubr.f32.gmra.mrb[0].mxu0 %v323
  %v456 = vpop.f32.mrb[0].mxu0
  %v457 = vadd.f32 %v57, %v456
  %v458 = vpop.f32.mrb[0].mxu0
  %459 = vmatprep.mubr.f32.mxu0 0.0
  %460 = vmatmul.mubr.f32.gmra.mrb[0].mxu0 %v326
  %v461 = vpop.f32.mrb[0].mxu0
  %v462 = vadd.f32 %v57, %v461
  %v463 = vpop.f32.mrb[0].mxu0
  %464 = vmatprep.mubr.f32.mxu0 0.0
  %465 = vmatmul.mubr.f32.gmra.mrb[0].mxu0 %v329
  %v466 = vpop.f32.mrb[0].mxu0
  %v467 = vadd.f32 %v57, %v466
  %v468 = vpop.f32.mrb[0].mxu0
  %469 = vmatprep.mubr.f32.mxu0 0.0
  %470 = vmatmul.mubr.f32.gmra.mrb[0].mxu0 %v332
  %v471 = vpop.f32.mrb[0].mxu0
  %v472 = vadd.f32 %v57, %v471
  %v473 = vpop.f32.mrb[0].mxu0
  %474 = vmatprep.mubr.f32.mxu0 0.0
  %475 = vmatmul.mubr.f32.gmra.mrb[0].mxu0 %v335
  %v476 = vpop.f32.mrb[0].mxu0
  %v477 = vadd.f32 %v57, %v476
  %v478 = vpop.f32.mrb[0].mxu0
  %479 = vmatprep.mubr.f32.mxu0 0.0
  %480 = vmatmul.mubr.f32.gmra.mrb[0].mxu0 %v338
  %v481 = vpop.f32.mrb[0].mxu0
  %v482 = vadd.f32 %v57, %v481
  %v483 = vpop.f32.mrb[0].mxu0
  %484 = vdwg.mxu0
  %v485 = vmax.f32 %v407, 0.0
  %v486 = vmax.f32 %v412, 0.0
  %v487 = vmax.f32 %v417, 0.0
  %v488 = vmax.f32 %v422, 0.0
  %v489 = vmax.f32 %v427, 0.0
  %v490 = vmax.f32 %v432, 0.0
  %v491 = vmax.f32 %v437, 0.0
  %v492 = vmax.f32 %v442, 0.0
  %v493 = vmax.f32 %v447, 0.0
  %v494 = vmax.f32 %v452, 0.0
  %v495 = vmax.f32 %v457, 0.0
  %v496 = vmax.f32 %v462, 0.0
  %v497 = vmax.f32 %v467, 0.0
  %v498 = vmax.f32 %v472, 0.0
  %v499 = vmax.f32 %v477, 0.0
  %v500 = vmax.f32 %v482, 0.0
  %s501 = scalar_lea.vmem %s3, 16
  %v502 = vld [vmem:[%s501] sm:$0xff]
  %v503 = vld [vmem:[%s501 + $0x8] sm:$0x3]
  %vm504 = vcmask 80896
  %v506 = vsel %vm504, %v485, 0
  %v509 = vsel %vm504, %v486, 0
  %v512 = vsel %vm504, %v487, 0
  %v515 = vsel %vm504, %v488, 0
  %v518 = vsel %vm504, %v489, 0
  %v521 = vsel %vm504, %v490, 0
  %v524 = vsel %vm504, %v491, 0
  %v527 = vsel %vm504, %v492, 0
  %v530 = vsel %vm504, %v493, 0
  %v533 = vsel %vm504, %v494, 0
  %v536 = vsel %vm504, %v495, 0
  %v539 = vsel %vm504, %v496, 0
  %v542 = vsel %vm504, %v497, 0
  %v545 = vsel %vm504, %v498, 0
  %v548 = vsel %vm504, %v499, 0
  %v551 = vsel %vm504, %v500, 0
  %vm553 = vcmask 1041408
  %v555 = vsel %vm553, %v503, 0
  %557 = vmatprep.subr.mxu0 0.0
  %558 = vmatpush1.msra.mxu0 %v502
  %559 = vmatprep.subr.mxu0 0.0
  %560 = vmatpush1.msra.mxu0 %v555
  %561 = vmatprep.subr.mxu0 0.0
  %562 = vmatpush1.msra.mxu0 0.0
  %563 = vmatprep.subr.mxu0 0.0
  %564 = vmatpush1.msra.mxu0 0.0
  %565 = vmatprep.subr.mxu0 0.0
  %566 = vmatpush1.msra.mxu0 0.0
  %567 = vmatprep.subr.mxu0 0.0
  %568 = vmatpush1.msra.mxu0 0.0
  %569 = vmatprep.subr.mxu0 0.0
  %570 = vmatpush1.msra.mxu0 0.0
  %571 = vmatprep.subr.mxu0 0.0
  %572 = vmatpush1.msra.mxu0 0.0
  %573 = vmatprep.subr.mxu0 0.0
  %574 = vmatpush1.msra.mxu0 0.0
  %575 = vmatprep.subr.mxu0 0.0
  %576 = vmatpush1.msra.mxu0 0.0
  %577 = vmatprep.subr.mxu0 0.0
  %578 = vmatpush1.msra.mxu0 0.0
  %579 = vmatprep.subr.mxu0 0.0
  %580 = vmatpush1.msra.mxu0 0.0
  %581 = vmatprep.subr.mxu0 0.0
  %582 = vmatpush1.msra.mxu0 0.0
  %583 = vmatprep.subr.mxu0 0.0
  %584 = vmatpush1.msra.mxu0 0.0
  %585 = vmatprep.subr.mxu0 0.0
  %586 = vmatpush1.msra.mxu0 0.0
  %587 = vmatprep.subr.mxu0 0.0
  %588 = vmatpush1.msra.mxu0 0.0
  %589 = vmatprep.subr.mxu0 0.0
  %590 = vmatpush1.msra.mxu0 0.0
  %591 = vmatprep.subr.mxu0 0.0
  %592 = vmatpush1.msra.mxu0 0.0
  %593 = vmatprep.subr.mxu0 0.0
  %594 = vmatpush1.msra.mxu0 0.0
  %595 = vmatprep.subr.mxu0 0.0
  %596 = vmatpush1.msra.mxu0 0.0
  %597 = vmatprep.subr.mxu0 0.0
  %598 = vmatpush1.msra.mxu0 0.0
  %599 = vmatprep.subr.mxu0 0.0
  %600 = vmatpush1.msra.mxu0 0.0
  %601 = vmatprep.subr.mxu0 0.0
  %602 = vmatpush1.msra.mxu0 0.0
  %603 = vmatprep.subr.mxu0 0.0
  %604 = vmatpush1.msra.mxu0 0.0
  %605 = vmatprep.subr.mxu0 0.0
  %606 = vmatpush1.msra.mxu0 0.0
  %607 = vmatprep.subr.mxu0 0.0
  %608 = vmatpush1.msra.mxu0 0.0
  %609 = vmatprep.subr.mxu0 0.0
  %610 = vmatpush1.msra.mxu0 0.0
  %611 = vmatprep.subr.mxu0 0.0
  %612 = vmatpush1.msra.mxu0 0.0
  %613 = vmatprep.subr.mxu0 0.0
  %614 = vmatpush1.msra.mxu0 0.0
  %615 = vmatprep.subr.mxu0 0.0
  %616 = vmatpush1.msra.mxu0 0.0
  %617 = vmatprep.subr.mxu0 0.0
  %618 = vmatpush1.msra.mxu0 0.0
  %619 = vmatprep.subr.mxu0 0.0
  %620 = vmatpush1.msra.mxu0 0.0
  %621 = vmatprep.mubr.f32.mxu0 0.0
  %622 = vmatmul.mubr.f32.gmra.mrb[0].mxu0 %v506
  %v623 = vpop.f32.mrb[0].mxu0
  %v624 = vadd.f32 0.0, %v623
  %v625 = vpop.f32.mrb[0].mxu0
  %626 = vmatprep.mubr.f32.mxu0 0.0
  %627 = vmatmul.mubr.f32.gmra.mrb[0].mxu0 %v509
  %v628 = vpop.f32.mrb[0].mxu0
  %v629 = vadd.f32 0.0, %v628
  %v630 = vpop.f32.mrb[0].mxu0
  %631 = vmatprep.mubr.f32.mxu0 0.0
  %632 = vmatmul.mubr.f32.gmra.mrb[0].mxu0 %v512
  %v633 = vpop.f32.mrb[0].mxu0
  %v634 = vadd.f32 0.0, %v633
  %v635 = vpop.f32.mrb[0].mxu0
  %636 = vmatprep.mubr.f32.mxu0 0.0
  %637 = vmatmul.mubr.f32.gmra.mrb[0].mxu0 %v515
  %v638 = vpop.f32.mrb[0].mxu0
  %v639 = vadd.f32 0.0, %v638
  %v640 = vpop.f32.mrb[0].mxu0
  %641 = vmatprep.mubr.f32.mxu0 0.0
  %642 = vmatmul.mubr.f32.gmra.mrb[0].mxu0 %v518
  %v643 = vpop.f32.mrb[0].mxu0
  %v644 = vadd.f32 0.0, %v643
  %v645 = vpop.f32.mrb[0].mxu0
  %646 = vmatprep.mubr.f32.mxu0 0.0
  %647 = vmatmul.mubr.f32.gmra.mrb[0].mxu0 %v521
  %v648 = vpop.f32.mrb[0].mxu0
  %v649 = vadd.f32 0.0, %v648
  %v650 = vpop.f32.mrb[0].mxu0
  %651 = vmatprep.mubr.f32.mxu0 0.0
  %652 = vmatmul.mubr.f32.gmra.mrb[0].mxu0 %v524
  %v653 = vpop.f32.mrb[0].mxu0
  %v654 = vadd.f32 0.0, %v653
  %v655 = vpop.f32.mrb[0].mxu0
  %656 = vmatprep.mubr.f32.mxu0 0.0
  %657 = vmatmul.mubr.f32.gmra.mrb[0].mxu0 %v527
  %v658 = vpop.f32.mrb[0].mxu0
  %v659 = vadd.f32 0.0, %v658
  %v660 = vpop.f32.mrb[0].mxu0
  %661 = vmatprep.mubr.f32.mxu0 0.0
  %662 = vmatmul.mubr.f32.gmra.mrb[0].mxu0 %v530
  %v663 = vpop.f32.mrb[0].mxu0
  %v664 = vadd.f32 0.0, %v663
  %v665 = vpop.f32.mrb[0].mxu0
  %666 = vmatprep.mubr.f32.mxu0 0.0
  %667 = vmatmul.mubr.f32.gmra.mrb[0].mxu0 %v533
  %v668 = vpop.f32.mrb[0].mxu0
  %v669 = vadd.f32 0.0, %v668
  %v670 = vpop.f32.mrb[0].mxu0
  %671 = vmatprep.mubr.f32.mxu0 0.0
  %672 = vmatmul.mubr.f32.gmra.mrb[0].mxu0 %v536
  %v673 = vpop.f32.mrb[0].mxu0
  %v674 = vadd.f32 0.0, %v673
  %v675 = vpop.f32.mrb[0].mxu0
  %676 = vmatprep.mubr.f32.mxu0 0.0
  %677 = vmatmul.mubr.f32.gmra.mrb[0].mxu0 %v539
  %v678 = vpop.f32.mrb[0].mxu0
  %v679 = vadd.f32 0.0, %v678
  %v680 = vpop.f32.mrb[0].mxu0
  %681 = vmatprep.mubr.f32.mxu0 0.0
  %682 = vmatmul.mubr.f32.gmra.mrb[0].mxu0 %v542
  %v683 = vpop.f32.mrb[0].mxu0
  %v684 = vadd.f32 0.0, %v683
  %v685 = vpop.f32.mrb[0].mxu0
  %686 = vmatprep.mubr.f32.mxu0 0.0
  %687 = vmatmul.mubr.f32.gmra.mrb[0].mxu0 %v545
  %v688 = vpop.f32.mrb[0].mxu0
  %v689 = vadd.f32 0.0, %v688
  %v690 = vpop.f32.mrb[0].mxu0
  %691 = vmatprep.mubr.f32.mxu0 0.0
  %692 = vmatmul.mubr.f32.gmra.mrb[0].mxu0 %v548
  %v693 = vpop.f32.mrb[0].mxu0
  %v694 = vadd.f32 0.0, %v693
  %v695 = vpop.f32.mrb[0].mxu0
  %696 = vmatprep.mubr.f32.mxu0 0.0
  %697 = vmatmul.mubr.f32.gmra.mrb[0].mxu0 %v551
  %v698 = vpop.f32.mrb[0].mxu0
  %v699 = vadd.f32 0.0, %v698
  %v700 = vpop.f32.mrb[0].mxu0
  %701 = vdwg.mxu0
  %v703 = vsel %vm504, %v257, 0
  %v706 = vsel %vm504, %v258, 0
  %v709 = vsel %vm504, %v259, 0
  %v712 = vsel %vm504, %v260, 0
  %v715 = vsel %vm504, %v261, 0
  %v718 = vsel %vm504, %v262, 0
  %v721 = vsel %vm504, %v263, 0
  %v724 = vsel %vm504, %v264, 0
  %v727 = vsel %vm504, %v265, 0
  %v730 = vsel %vm504, %v266, 0
  %v733 = vsel %vm504, %v267, 0
  %v736 = vsel %vm504, %v268, 0
  %v739 = vsel %vm504, %v269, 0
  %v742 = vsel %vm504, %v270, 0
  %v745 = vsel %vm504, %v271, 0
  %v748 = vsel %vm504, %v272, 0
  %v751 = vsel %vm553, %v274, 0
  %753 = vmatprep.subr.mxu0 0.0
  %754 = vmatpush1.msra.mxu0 %v273
  %755 = vmatprep.subr.mxu0 0.0
  %756 = vmatpush1.msra.mxu0 %v751
  %757 = vmatprep.subr.mxu0 0.0
  %758 = vmatpush1.msra.mxu0 0.0
  %759 = vmatprep.subr.mxu0 0.0
  %760 = vmatpush1.msra.mxu0 0.0
  %761 = vmatprep.subr.mxu0 0.0
  %762 = vmatpush1.msra.mxu0 0.0
  %763 = vmatprep.subr.mxu0 0.0
  %764 = vmatpush1.msra.mxu0 0.0
  %765 = vmatprep.subr.mxu0 0.0
  %766 = vmatpush1.msra.mxu0 0.0
  %767 = vmatprep.subr.mxu0 0.0
  %768 = vmatpush1.msra.mxu0 0.0
  %769 = vmatprep.subr.mxu0 0.0
  %770 = vmatpush1.msra.mxu0 0.0
  %771 = vmatprep.subr.mxu0 0.0
  %772 = vmatpush1.msra.mxu0 0.0
  %773 = vmatprep.subr.mxu0 0.0
  %774 = vmatpush1.msra.mxu0 0.0
  %775 = vmatprep.subr.mxu0 0.0
  %776 = vmatpush1.msra.mxu0 0.0
  %777 = vmatprep.subr.mxu0 0.0
  %778 = vmatpush1.msra.mxu0 0.0
  %779 = vmatprep.subr.mxu0 0.0
  %780 = vmatpush1.msra.mxu0 0.0
  %781 = vmatprep.subr.mxu0 0.0
  %782 = vmatpush1.msra.mxu0 0.0
  %783 = vmatprep.subr.mxu0 0.0
  %784 = vmatpush1.msra.mxu0 0.0
  %785 = vmatprep.subr.mxu0 0.0
  %786 = vmatpush1.msra.mxu0 0.0
  %787 = vmatprep.subr.mxu0 0.0
  %788 = vmatpush1.msra.mxu0 0.0
  %789 = vmatprep.subr.mxu0 0.0
  %790 = vmatpush1.msra.mxu0 0.0
  %791 = vmatprep.subr.mxu0 0.0
  %792 = vmatpush1.msra.mxu0 0.0
  %793 = vmatprep.subr.mxu0 0.0
  %794 = vmatpush1.msra.mxu0 0.0
  %795 = vmatprep.subr.mxu0 0.0
  %796 = vmatpush1.msra.mxu0 0.0
  %797 = vmatprep.subr.mxu0 0.0
  %798 = vmatpush1.msra.mxu0 0.0
  %799 = vmatprep.subr.mxu0 0.0
  %800 = vmatpush1.msra.mxu0 0.0
  %801 = vmatprep.subr.mxu0 0.0
  %802 = vmatpush1.msra.mxu0 0.0
  %803 = vmatprep.subr.mxu0 0.0
  %804 = vmatpush1.msra.mxu0 0.0
  %805 = vmatprep.subr.mxu0 0.0
  %806 = vmatpush1.msra.mxu0 0.0
  %807 = vmatprep.subr.mxu0 0.0
  %808 = vmatpush1.msra.mxu0 0.0
  %809 = vmatprep.subr.mxu0 0.0
  %810 = vmatpush1.msra.mxu0 0.0
  %811 = vmatprep.subr.mxu0 0.0
  %812 = vmatpush1.msra.mxu0 0.0
  %813 = vmatprep.subr.mxu0 0.0
  %814 = vmatpush1.msra.mxu0 0.0
  %815 = vmatprep.subr.mxu0 0.0
  %816 = vmatpush1.msra.mxu0 0.0
  %817 = vmatprep.mubr.f32.mxu0 0.0
  %818 = vmatmul.mubr.f32.gmra.mrb[0].mxu0 %v703
  %v819 = vpop.f32.mrb[0].mxu0
  %v820 = vadd.f32 %v624, %v819
  %v821 = vpop.f32.mrb[0].mxu0
  %822 = vmatprep.mubr.f32.mxu0 0.0
  %823 = vmatmul.mubr.f32.gmra.mrb[0].mxu0 %v706
  %v824 = vpop.f32.mrb[0].mxu0
  %v825 = vadd.f32 %v629, %v824
  %v826 = vpop.f32.mrb[0].mxu0
  %827 = vmatprep.mubr.f32.mxu0 0.0
  %828 = vmatmul.mubr.f32.gmra.mrb[0].mxu0 %v709
  %v829 = vpop.f32.mrb[0].mxu0
  %v830 = vadd.f32 %v634, %v829
  %v831 = vpop.f32.mrb[0].mxu0
  %832 = vmatprep.mubr.f32.mxu0 0.0
  %833 = vmatmul.mubr.f32.gmra.mrb[0].mxu0 %v712
  %v834 = vpop.f32.mrb[0].mxu0
  %v835 = vadd.f32 %v639, %v834
  %v836 = vpop.f32.mrb[0].mxu0
  %837 = vmatprep.mubr.f32.mxu0 0.0
  %838 = vmatmul.mubr.f32.gmra.mrb[0].mxu0 %v715
  %v839 = vpop.f32.mrb[0].mxu0
  %v840 = vadd.f32 %v644, %v839
  %v841 = vpop.f32.mrb[0].mxu0
  %842 = vmatprep.mubr.f32.mxu0 0.0
  %843 = vmatmul.mubr.f32.gmra.mrb[0].mxu0 %v718
  %v844 = vpop.f32.mrb[0].mxu0
  %v845 = vadd.f32 %v649, %v844
  %v846 = vpop.f32.mrb[0].mxu0
  %847 = vmatprep.mubr.f32.mxu0 0.0
  %848 = vmatmul.mubr.f32.gmra.mrb[0].mxu0 %v721
  %v849 = vpop.f32.mrb[0].mxu0
  %v850 = vadd.f32 %v654, %v849
  %v851 = vpop.f32.mrb[0].mxu0
  %852 = vmatprep.mubr.f32.mxu0 0.0
  %853 = vmatmul.mubr.f32.gmra.mrb[0].mxu0 %v724
  %v854 = vpop.f32.mrb[0].mxu0
  %v855 = vadd.f32 %v659, %v854
  %v856 = vpop.f32.mrb[0].mxu0
  %857 = vmatprep.mubr.f32.mxu0 0.0
  %858 = vmatmul.mubr.f32.gmra.mrb[0].mxu0 %v727
  %v859 = vpop.f32.mrb[0].mxu0
  %v860 = vadd.f32 %v664, %v859
  %v861 = vpop.f32.mrb[0].mxu0
  %862 = vmatprep.mubr.f32.mxu0 0.0
  %863 = vmatmul.mubr.f32.gmra.mrb[0].mxu0 %v730
  %v864 = vpop.f32.mrb[0].mxu0
  %v865 = vadd.f32 %v669, %v864
  %v866 = vpop.f32.mrb[0].mxu0
  %867 = vmatprep.mubr.f32.mxu0 0.0
  %868 = vmatmul.mubr.f32.gmra.mrb[0].mxu0 %v733
  %v869 = vpop.f32.mrb[0].mxu0
  %v870 = vadd.f32 %v674, %v869
  %v871 = vpop.f32.mrb[0].mxu0
  %872 = vmatprep.mubr.f32.mxu0 0.0
  %873 = vmatmul.mubr.f32.gmra.mrb[0].mxu0 %v736
  %v874 = vpop.f32.mrb[0].mxu0
  %v875 = vadd.f32 %v679, %v874
  %v876 = vpop.f32.mrb[0].mxu0
  %877 = vmatprep.mubr.f32.mxu0 0.0
  %878 = vmatmul.mubr.f32.gmra.mrb[0].mxu0 %v739
  %v879 = vpop.f32.mrb[0].mxu0
  %v880 = vadd.f32 %v684, %v879
  %v881 = vpop.f32.mrb[0].mxu0
  %882 = vmatprep.mubr.f32.mxu0 0.0
  %883 = vmatmul.mubr.f32.gmra.mrb[0].mxu0 %v742
  %v884 = vpop.f32.mrb[0].mxu0
  %v885 = vadd.f32 %v689, %v884
  %v886 = vpop.f32.mrb[0].mxu0
  %887 = vmatprep.mubr.f32.mxu0 0.0
  %888 = vmatmul.mubr.f32.gmra.mrb[0].mxu0 %v745
  %v889 = vpop.f32.mrb[0].mxu0
  %v890 = vadd.f32 %v694, %v889
  %v891 = vpop.f32.mrb[0].mxu0
  %892 = vmatprep.mubr.f32.mxu0 0.0
  %893 = vmatmul.mubr.f32.gmra.mrb[0].mxu0 %v748
  %v894 = vpop.f32.mrb[0].mxu0
  %v895 = vadd.f32 %v699, %v894
  %v896 = vpop.f32.mrb[0].mxu0
  %897 = vdwg.mxu0
  %s898 = scalar_lea.vmem %s0, 256
  %v899 = vld [vmem:[%s898] sm:$0xff]
  %v900 = vld [vmem:[%s898 + $0x8] sm:$0xff]
  %v901 = vld [vmem:[%s898 + $0x10] sm:$0xff]
  %v902 = vld [vmem:[%s898 + $0x18] sm:$0xff]
  %v903 = vld [vmem:[%s898 + $0x20] sm:$0xff]
  %v904 = vld [vmem:[%s898 + $0x28] sm:$0xff]
  %v905 = vld [vmem:[%s898 + $0x30] sm:$0xff]
  %v906 = vld [vmem:[%s898 + $0x38] sm:$0xff]
  %v907 = vld [vmem:[%s898 + $0x40] sm:$0xff]
  %v908 = vld [vmem:[%s898 + $0x48] sm:$0xff]
  %v909 = vld [vmem:[%s898 + $0x50] sm:$0xff]
  %v910 = vld [vmem:[%s898 + $0x58] sm:$0xff]
  %v911 = vld [vmem:[%s898 + $0x60] sm:$0xff]
  %v912 = vld [vmem:[%s898 + $0x68] sm:$0xff]
  %v913 = vld [vmem:[%s898 + $0x70] sm:$0xff]
  %v914 = vld [vmem:[%s898 + $0x78] sm:$0xff]
  %v916 = vsel %vm59, %v899, 0
  %v919 = vsel %vm59, %v900, 0
  %v922 = vsel %vm59, %v901, 0
  %v925 = vsel %vm59, %v902, 0
  %v928 = vsel %vm59, %v903, 0
  %v931 = vsel %vm59, %v904, 0
  %v934 = vsel %vm59, %v905, 0
  %v937 = vsel %vm59, %v906, 0
  %v940 = vsel %vm59, %v907, 0
  %v943 = vsel %vm59, %v908, 0
  %v946 = vsel %vm59, %v909, 0
  %v949 = vsel %vm59, %v910, 0
  %v952 = vsel %vm59, %v911, 0
  %v955 = vsel %vm59, %v912, 0
  %v958 = vsel %vm59, %v913, 0
  %v961 = vsel %vm59, %v914, 0
  %963 = vmatprep.subr.mxu0 0.0
  %964 = vmatpush1.msra.mxu0 %v32
  %965 = vmatprep.subr.mxu0 0.0
  %966 = vmatpush1.msra.mxu0 %v33
  %967 = vmatprep.subr.mxu0 0.0
  %968 = vmatpush1.msra.mxu0 %v34
  %969 = vmatprep.subr.mxu0 0.0
  %970 = vmatpush1.msra.mxu0 %v110
  %971 = vmatprep.subr.mxu0 0.0
  %972 = vmatpush1.msra.mxu0 0.0
  %973 = vmatprep.subr.mxu0 0.0
  %974 = vmatpush1.msra.mxu0 0.0
  %975 = vmatprep.subr.mxu0 0.0
  %976 = vmatpush1.msra.mxu0 0.0
  %977 = vmatprep.subr.mxu0 0.0
  %978 = vmatpush1.msra.mxu0 0.0
  %979 = vmatprep.subr.mxu0 0.0
  %980 = vmatpush1.msra.mxu0 0.0
  %981 = vmatprep.subr.mxu0 0.0
  %982 = vmatpush1.msra.mxu0 0.0
  %983 = vmatprep.subr.mxu0 0.0
  %984 = vmatpush1.msra.mxu0 0.0
  %985 = vmatprep.subr.mxu0 0.0
  %986 = vmatpush1.msra.mxu0 0.0
  %987 = vmatprep.subr.mxu0 0.0
  %988 = vmatpush1.msra.mxu0 0.0
  %989 = vmatprep.subr.mxu0 0.0
  %990 = vmatpush1.msra.mxu0 0.0
  %991 = vmatprep.subr.mxu0 0.0
  %992 = vmatpush1.msra.mxu0 0.0
  %993 = vmatprep.subr.mxu0 0.0
  %994 = vmatpush1.msra.mxu0 0.0
  %995 = vmatprep.subr.mxu0 0.0
  %996 = vmatpush1.msra.mxu0 0.0
  %997 = vmatprep.subr.mxu0 0.0
  %998 = vmatpush1.msra.mxu0 0.0
  %999 = vmatprep.subr.mxu0 0.0
  %1000 = vmatpush1.msra.mxu0 0.0
  %1001 = vmatprep.subr.mxu0 0.0
  %1002 = vmatpush1.msra.mxu0 0.0
  %1003 = vmatprep.subr.mxu0 0.0
  %1004 = vmatpush1.msra.mxu0 0.0
  %1005 = vmatprep.subr.mxu0 0.0
  %1006 = vmatpush1.msra.mxu0 0.0
  %1007 = vmatprep.subr.mxu0 0.0
  %1008 = vmatpush1.msra.mxu0 0.0
  %1009 = vmatprep.subr.mxu0 0.0
  %1010 = vmatpush1.msra.mxu0 0.0
  %1011 = vmatprep.subr.mxu0 0.0
  %1012 = vmatpush1.msra.mxu0 0.0
  %1013 = vmatprep.subr.mxu0 0.0
  %1014 = vmatpush1.msra.mxu0 0.0
  %1015 = vmatprep.subr.mxu0 0.0
  %1016 = vmatpush1.msra.mxu0 0.0
  %1017 = vmatprep.subr.mxu0 0.0
  %1018 = vmatpush1.msra.mxu0 0.0
  %1019 = vmatprep.subr.mxu0 0.0
  %1020 = vmatpush1.msra.mxu0 0.0
  %1021 = vmatprep.subr.mxu0 0.0
  %1022 = vmatpush1.msra.mxu0 0.0
  %1023 = vmatprep.subr.mxu0 0.0
  %1024 = vmatpush1.msra.mxu0 0.0
  %1025 = vmatprep.subr.mxu0 0.0
  %1026 = vmatpush1.msra.mxu0 0.0
  %1027 = vmatprep.mubr.f32.mxu0 0.0
  %1028 = vmatmul.mubr.f32.gmra.mrb[0].mxu0 %v916
  %v1029 = vpop.f32.mrb[0].mxu0
  %v1030 = vadd.f32 %v57, %v1029
  %v1031 = vpop.f32.mrb[0].mxu0
  %1032 = vmatprep.mubr.f32.mxu0 0.0
  %1033 = vmatmul.mubr.f32.gmra.mrb[0].mxu0 %v919
  %v1034 = vpop.f32.mrb[0].mxu0
  %v1035 = vadd.f32 %v57, %v1034
  %v1036 = vpop.f32.mrb[0].mxu0
  %1037 = vmatprep.mubr.f32.mxu0 0.0
  %1038 = vmatmul.mubr.f32.gmra.mrb[0].mxu0 %v922
  %v1039 = vpop.f32.mrb[0].mxu0
  %v1040 = vadd.f32 %v57, %v1039
  %v1041 = vpop.f32.mrb[0].mxu0
  %1042 = vmatprep.mubr.f32.mxu0 0.0
  %1043 = vmatmul.mubr.f32.gmra.mrb[0].mxu0 %v925
  %v1044 = vpop.f32.mrb[0].mxu0
  %v1045 = vadd.f32 %v57, %v1044
  %v1046 = vpop.f32.mrb[0].mxu0
  %1047 = vmatprep.mubr.f32.mxu0 0.0
  %1048 = vmatmul.mubr.f32.gmra.mrb[0].mxu0 %v928
  %v1049 = vpop.f32.mrb[0].mxu0
  %v1050 = vadd.f32 %v57, %v1049
  %v1051 = vpop.f32.mrb[0].mxu0
  %1052 = vmatprep.mubr.f32.mxu0 0.0
  %1053 = vmatmul.mubr.f32.gmra.mrb[0].mxu0 %v931
  %v1054 = vpop.f32.mrb[0].mxu0
  %v1055 = vadd.f32 %v57, %v1054
  %v1056 = vpop.f32.mrb[0].mxu0
  %1057 = vmatprep.mubr.f32.mxu0 0.0
  %1058 = vmatmul.mubr.f32.gmra.mrb[0].mxu0 %v934
  %v1059 = vpop.f32.mrb[0].mxu0
  %v1060 = vadd.f32 %v57, %v1059
  %v1061 = vpop.f32.mrb[0].mxu0
  %1062 = vmatprep.mubr.f32.mxu0 0.0
  %1063 = vmatmul.mubr.f32.gmra.mrb[0].mxu0 %v937
  %v1064 = vpop.f32.mrb[0].mxu0
  %v1065 = vadd.f32 %v57, %v1064
  %v1066 = vpop.f32.mrb[0].mxu0
  %1067 = vmatprep.mubr.f32.mxu0 0.0
  %1068 = vmatmul.mubr.f32.gmra.mrb[0].mxu0 %v940
  %v1069 = vpop.f32.mrb[0].mxu0
  %v1070 = vadd.f32 %v57, %v1069
  %v1071 = vpop.f32.mrb[0].mxu0
  %1072 = vmatprep.mubr.f32.mxu0 0.0
  %1073 = vmatmul.mubr.f32.gmra.mrb[0].mxu0 %v943
  %v1074 = vpop.f32.mrb[0].mxu0
  %v1075 = vadd.f32 %v57, %v1074
  %v1076 = vpop.f32.mrb[0].mxu0
  %1077 = vmatprep.mubr.f32.mxu0 0.0
  %1078 = vmatmul.mubr.f32.gmra.mrb[0].mxu0 %v946
  %v1079 = vpop.f32.mrb[0].mxu0
  %v1080 = vadd.f32 %v57, %v1079
  %v1081 = vpop.f32.mrb[0].mxu0
  %1082 = vmatprep.mubr.f32.mxu0 0.0
  %1083 = vmatmul.mubr.f32.gmra.mrb[0].mxu0 %v949
  %v1084 = vpop.f32.mrb[0].mxu0
  %v1085 = vadd.f32 %v57, %v1084
  %v1086 = vpop.f32.mrb[0].mxu0
  %1087 = vmatprep.mubr.f32.mxu0 0.0
  %1088 = vmatmul.mubr.f32.gmra.mrb[0].mxu0 %v952
  %v1089 = vpop.f32.mrb[0].mxu0
  %v1090 = vadd.f32 %v57, %v1089
  %v1091 = vpop.f32.mrb[0].mxu0
  %1092 = vmatprep.mubr.f32.mxu0 0.0
  %1093 = vmatmul.mubr.f32.gmra.mrb[0].mxu0 %v955
  %v1094 = vpop.f32.mrb[0].mxu0
  %v1095 = vadd.f32 %v57, %v1094
  %v1096 = vpop.f32.mrb[0].mxu0
  %1097 = vmatprep.mubr.f32.mxu0 0.0
  %1098 = vmatmul.mubr.f32.gmra.mrb[0].mxu0 %v958
  %v1099 = vpop.f32.mrb[0].mxu0
  %v1100 = vadd.f32 %v57, %v1099
  %v1101 = vpop.f32.mrb[0].mxu0
  %1102 = vmatprep.mubr.f32.mxu0 0.0
  %1103 = vmatmul.mubr.f32.gmra.mrb[0].mxu0 %v961
  %v1104 = vpop.f32.mrb[0].mxu0
  %v1105 = vadd.f32 %v57, %v1104
  %v1106 = vpop.f32.mrb[0].mxu0
  %1107 = vdwg.mxu0
  %v1108 = vmax.f32 %v1030, 0.0
  %v1109 = vmax.f32 %v1035, 0.0
  %v1110 = vmax.f32 %v1040, 0.0
  %v1111 = vmax.f32 %v1045, 0.0
  %v1112 = vmax.f32 %v1050, 0.0
  %v1113 = vmax.f32 %v1055, 0.0
  %v1114 = vmax.f32 %v1060, 0.0
  %v1115 = vmax.f32 %v1065, 0.0
  %v1116 = vmax.f32 %v1070, 0.0
  %v1117 = vmax.f32 %v1075, 0.0
  %v1118 = vmax.f32 %v1080, 0.0
  %v1119 = vmax.f32 %v1085, 0.0
  %v1120 = vmax.f32 %v1090, 0.0
  %v1121 = vmax.f32 %v1095, 0.0
  %v1122 = vmax.f32 %v1100, 0.0
  %v1123 = vmax.f32 %v1105, 0.0
  %s1124 = scalar_lea.vmem %s3, 32
  %v1125 = vld [vmem:[%s1124] sm:$0xff]
  %v1126 = vld [vmem:[%s1124 + $0x8] sm:$0x3]
  %v1128 = vsel %vm504, %v1108, 0
  %v1131 = vsel %vm504, %v1109, 0
  %v1134 = vsel %vm504, %v1110, 0
  %v1137 = vsel %vm504, %v1111, 0
  %v1140 = vsel %vm504, %v1112, 0
  %v1143 = vsel %vm504, %v1113, 0
  %v1146 = vsel %vm504, %v1114, 0
  %v1149 = vsel %vm504, %v1115, 0
  %v1152 = vsel %vm504, %v1116, 0
  %v1155 = vsel %vm504, %v1117, 0
  %v1158 = vsel %vm504, %v1118, 0
  %v1161 = vsel %vm504, %v1119, 0
  %v1164 = vsel %vm504, %v1120, 0
  %v1167 = vsel %vm504, %v1121, 0
  %v1170 = vsel %vm504, %v1122, 0
  %v1173 = vsel %vm504, %v1123, 0
  %v1176 = vsel %vm553, %v1126, 0
  %1178 = vmatprep.subr.mxu0 0.0
  %1179 = vmatpush1.msra.mxu0 %v1125
  %1180 = vmatprep.subr.mxu0 0.0
  %1181 = vmatpush1.msra.mxu0 %v1176
  %1182 = vmatprep.subr.mxu0 0.0
  %1183 = vmatpush1.msra.mxu0 0.0
  %1184 = vmatprep.subr.mxu0 0.0
  %1185 = vmatpush1.msra.mxu0 0.0
  %1186 = vmatprep.subr.mxu0 0.0
  %1187 = vmatpush1.msra.mxu0 0.0
  %1188 = vmatprep.subr.mxu0 0.0
  %1189 = vmatpush1.msra.mxu0 0.0
  %1190 = vmatprep.subr.mxu0 0.0
  %1191 = vmatpush1.msra.mxu0 0.0
  %1192 = vmatprep.subr.mxu0 0.0
  %1193 = vmatpush1.msra.mxu0 0.0
  %1194 = vmatprep.subr.mxu0 0.0
  %1195 = vmatpush1.msra.mxu0 0.0
  %1196 = vmatprep.subr.mxu0 0.0
  %1197 = vmatpush1.msra.mxu0 0.0
  %1198 = vmatprep.subr.mxu0 0.0
  %1199 = vmatpush1.msra.mxu0 0.0
  %1200 = vmatprep.subr.mxu0 0.0
  %1201 = vmatpush1.msra.mxu0 0.0
  %1202 = vmatprep.subr.mxu0 0.0
  %1203 = vmatpush1.msra.mxu0 0.0
  %1204 = vmatprep.subr.mxu0 0.0
  %1205 = vmatpush1.msra.mxu0 0.0
  %1206 = vmatprep.subr.mxu0 0.0
  %1207 = vmatpush1.msra.mxu0 0.0
  %1208 = vmatprep.subr.mxu0 0.0
  %1209 = vmatpush1.msra.mxu0 0.0
  %1210 = vmatprep.subr.mxu0 0.0
  %1211 = vmatpush1.msra.mxu0 0.0
  %1212 = vmatprep.subr.mxu0 0.0
  %1213 = vmatpush1.msra.mxu0 0.0
  %1214 = vmatprep.subr.mxu0 0.0
  %1215 = vmatpush1.msra.mxu0 0.0
  %1216 = vmatprep.subr.mxu0 0.0
  %1217 = vmatpush1.msra.mxu0 0.0
  %1218 = vmatprep.subr.mxu0 0.0
  %1219 = vmatpush1.msra.mxu0 0.0
  %1220 = vmatprep.subr.mxu0 0.0
  %1221 = vmatpush1.msra.mxu0 0.0
  %1222 = vmatprep.subr.mxu0 0.0
  %1223 = vmatpush1.msra.mxu0 0.0
  %1224 = vmatprep.subr.mxu0 0.0
  %1225 = vmatpush1.msra.mxu0 0.0
  %1226 = vmatprep.subr.mxu0 0.0
  %1227 = vmatpush1.msra.mxu0 0.0
  %1228 = vmatprep.subr.mxu0 0.0
  %1229 = vmatpush1.msra.mxu0 0.0
  %1230 = vmatprep.subr.mxu0 0.0
  %1231 = vmatpush1.msra.mxu0 0.0
  %1232 = vmatprep.subr.mxu0 0.0
  %1233 = vmatpush1.msra.mxu0 0.0
  %1234 = vmatprep.subr.mxu0 0.0
  %1235 = vmatpush1.msra.mxu0 0.0
  %1236 = vmatprep.subr.mxu0 0.0
  %1237 = vmatpush1.msra.mxu0 0.0
  %1238 = vmatprep.subr.mxu0 0.0
  %1239 = vmatpush1.msra.mxu0 0.0
  %1240 = vmatprep.subr.mxu0 0.0
  %1241 = vmatpush1.msra.mxu0 0.0
  %1242 = vmatprep.mubr.f32.mxu0 0.0
  %1243 = vmatmul.mubr.f32.gmra.mrb[0].mxu0 %v1128
  %v1244 = vpop.f32.mrb[0].mxu0
  %v1245 = vadd.f32 0.0, %v1244
  %v1246 = vpop.f32.mrb[0].mxu0
  %1247 = vmatprep.mubr.f32.mxu0 0.0
  %1248 = vmatmul.mubr.f32.gmra.mrb[0].mxu0 %v1131
  %v1249 = vpop.f32.mrb[0].mxu0
  %v1250 = vadd.f32 0.0, %v1249
  %v1251 = vpop.f32.mrb[0].mxu0
  %1252 = vmatprep.mubr.f32.mxu0 0.0
  %1253 = vmatmul.mubr.f32.gmra.mrb[0].mxu0 %v1134
  %v1254 = vpop.f32.mrb[0].mxu0
  %v1255 = vadd.f32 0.0, %v1254
  %v1256 = vpop.f32.mrb[0].mxu0
  %1257 = vmatprep.mubr.f32.mxu0 0.0
  %1258 = vmatmul.mubr.f32.gmra.mrb[0].mxu0 %v1137
  %v1259 = vpop.f32.mrb[0].mxu0
  %v1260 = vadd.f32 0.0, %v1259
  %v1261 = vpop.f32.mrb[0].mxu0
  %1262 = vmatprep.mubr.f32.mxu0 0.0
  %1263 = vmatmul.mubr.f32.gmra.mrb[0].mxu0 %v1140
  %v1264 = vpop.f32.mrb[0].mxu0
  %v1265 = vadd.f32 0.0, %v1264
  %v1266 = vpop.f32.mrb[0].mxu0
  %1267 = vmatprep.mubr.f32.mxu0 0.0
  %1268 = vmatmul.mubr.f32.gmra.mrb[0].mxu0 %v1143
  %v1269 = vpop.f32.mrb[0].mxu0
  %v1270 = vadd.f32 0.0, %v1269
  %v1271 = vpop.f32.mrb[0].mxu0
  %1272 = vmatprep.mubr.f32.mxu0 0.0
  %1273 = vmatmul.mubr.f32.gmra.mrb[0].mxu0 %v1146
  %v1274 = vpop.f32.mrb[0].mxu0
  %v1275 = vadd.f32 0.0, %v1274
  %v1276 = vpop.f32.mrb[0].mxu0
  %1277 = vmatprep.mubr.f32.mxu0 0.0
  %1278 = vmatmul.mubr.f32.gmra.mrb[0].mxu0 %v1149
  %v1279 = vpop.f32.mrb[0].mxu0
  %v1280 = vadd.f32 0.0, %v1279
  %v1281 = vpop.f32.mrb[0].mxu0
  %1282 = vmatprep.mubr.f32.mxu0 0.0
  %1283 = vmatmul.mubr.f32.gmra.mrb[0].mxu0 %v1152
  %v1284 = vpop.f32.mrb[0].mxu0
  %v1285 = vadd.f32 0.0, %v1284
  %v1286 = vpop.f32.mrb[0].mxu0
  %1287 = vmatprep.mubr.f32.mxu0 0.0
  %1288 = vmatmul.mubr.f32.gmra.mrb[0].mxu0 %v1155
  %v1289 = vpop.f32.mrb[0].mxu0
  %v1290 = vadd.f32 0.0, %v1289
  %v1291 = vpop.f32.mrb[0].mxu0
  %1292 = vmatprep.mubr.f32.mxu0 0.0
  %1293 = vmatmul.mubr.f32.gmra.mrb[0].mxu0 %v1158
  %v1294 = vpop.f32.mrb[0].mxu0
  %v1295 = vadd.f32 0.0, %v1294
  %v1296 = vpop.f32.mrb[0].mxu0
  %1297 = vmatprep.mubr.f32.mxu0 0.0
  %1298 = vmatmul.mubr.f32.gmra.mrb[0].mxu0 %v1161
  %v1299 = vpop.f32.mrb[0].mxu0
  %v1300 = vadd.f32 0.0, %v1299
  %v1301 = vpop.f32.mrb[0].mxu0
  %1302 = vmatprep.mubr.f32.mxu0 0.0
  %1303 = vmatmul.mubr.f32.gmra.mrb[0].mxu0 %v1164
  %v1304 = vpop.f32.mrb[0].mxu0
  %v1305 = vadd.f32 0.0, %v1304
  %v1306 = vpop.f32.mrb[0].mxu0
  %1307 = vmatprep.mubr.f32.mxu0 0.0
  %1308 = vmatmul.mubr.f32.gmra.mrb[0].mxu0 %v1167
  %v1309 = vpop.f32.mrb[0].mxu0
  %v1310 = vadd.f32 0.0, %v1309
  %v1311 = vpop.f32.mrb[0].mxu0
  %1312 = vmatprep.mubr.f32.mxu0 0.0
  %1313 = vmatmul.mubr.f32.gmra.mrb[0].mxu0 %v1170
  %v1314 = vpop.f32.mrb[0].mxu0
  %v1315 = vadd.f32 0.0, %v1314
  %v1316 = vpop.f32.mrb[0].mxu0
  %1317 = vmatprep.mubr.f32.mxu0 0.0
  %1318 = vmatmul.mubr.f32.gmra.mrb[0].mxu0 %v1173
  %v1319 = vpop.f32.mrb[0].mxu0
  %v1320 = vadd.f32 0.0, %v1319
  %v1321 = vpop.f32.mrb[0].mxu0
  %1322 = vdwg.mxu0
  %v1323 = vadd.f32 %v820, %v1245
  %v1324 = vadd.f32 %v825, %v1250
  %v1325 = vadd.f32 %v830, %v1255
  %v1326 = vadd.f32 %v835, %v1260
  %v1327 = vadd.f32 %v840, %v1265
  %v1328 = vadd.f32 %v845, %v1270
  %v1329 = vadd.f32 %v850, %v1275
  %v1330 = vadd.f32 %v855, %v1280
  %v1331 = vadd.f32 %v860, %v1285
  %v1332 = vadd.f32 %v865, %v1290
  %v1333 = vadd.f32 %v870, %v1295
  %v1334 = vadd.f32 %v875, %v1300
  %v1335 = vadd.f32 %v880, %v1305
  %v1336 = vadd.f32 %v885, %v1310
  %v1337 = vadd.f32 %v890, %v1315
  %v1338 = vadd.f32 %v895, %v1320
  %s1339 = scalar_lea.vmem %s0, 384
  %v1340 = vld [vmem:[%s1339] sm:$0xff]
  %v1341 = vld [vmem:[%s1339 + $0x8] sm:$0xff]
  %v1342 = vld [vmem:[%s1339 + $0x10] sm:$0xff]
  %v1343 = vld [vmem:[%s1339 + $0x18] sm:$0xff]
  %v1344 = vld [vmem:[%s1339 + $0x20] sm:$0xff]
  %v1345 = vld [vmem:[%s1339 + $0x28] sm:$0xff]
  %v1346 = vld [vmem:[%s1339 + $0x30] sm:$0xff]
  %v1347 = vld [vmem:[%s1339 + $0x38] sm:$0xff]
  %v1348 = vld [vmem:[%s1339 + $0x40] sm:$0xff]
  %v1349 = vld [vmem:[%s1339 + $0x48] sm:$0xff]
  %v1350 = vld [vmem:[%s1339 + $0x50] sm:$0xff]
  %v1351 = vld [vmem:[%s1339 + $0x58] sm:$0xff]
  %v1352 = vld [vmem:[%s1339 + $0x60] sm:$0xff]
  %v1353 = vld [vmem:[%s1339 + $0x68] sm:$0xff]
  %v1354 = vld [vmem:[%s1339 + $0x70] sm:$0xff]
  %v1355 = vld [vmem:[%s1339 + $0x78] sm:$0xff]
  %v1357 = vsel %vm59, %v1340, 0
  %v1360 = vsel %vm59, %v1341, 0
  %v1363 = vsel %vm59, %v1342, 0
  %v1366 = vsel %vm59, %v1343, 0
  %v1369 = vsel %vm59, %v1344, 0
  %v1372 = vsel %vm59, %v1345, 0
  %v1375 = vsel %vm59, %v1346, 0
  %v1378 = vsel %vm59, %v1347, 0
  %v1381 = vsel %vm59, %v1348, 0
  %v1384 = vsel %vm59, %v1349, 0
  %v1387 = vsel %vm59, %v1350, 0
  %v1390 = vsel %vm59, %v1351, 0
  %v1393 = vsel %vm59, %v1352, 0
  %v1396 = vsel %vm59, %v1353, 0
  %v1399 = vsel %vm59, %v1354, 0
  %v1402 = vsel %vm59, %v1355, 0
  %1404 = vmatprep.subr.mxu0 0.0
  %1405 = vmatpush1.msra.mxu0 %v32
  %1406 = vmatprep.subr.mxu0 0.0
  %1407 = vmatpush1.msra.mxu0 %v33
  %1408 = vmatprep.subr.mxu0 0.0
  %1409 = vmatpush1.msra.mxu0 %v34
  %1410 = vmatprep.subr.mxu0 0.0
  %1411 = vmatpush1.msra.mxu0 %v110
  %1412 = vmatprep.subr.mxu0 0.0
  %1413 = vmatpush1.msra.mxu0 0.0
  %1414 = vmatprep.subr.mxu0 0.0
  %1415 = vmatpush1.msra.mxu0 0.0
  %1416 = vmatprep.subr.mxu0 0.0
  %1417 = vmatpush1.msra.mxu0 0.0
  %1418 = vmatprep.subr.mxu0 0.0
  %1419 = vmatpush1.msra.mxu0 0.0
  %1420 = vmatprep.subr.mxu0 0.0
  %1421 = vmatpush1.msra.mxu0 0.0
  %1422 = vmatprep.subr.mxu0 0.0
  %1423 = vmatpush1.msra.mxu0 0.0
  %1424 = vmatprep.subr.mxu0 0.0
  %1425 = vmatpush1.msra.mxu0 0.0
  %1426 = vmatprep.subr.mxu0 0.0
  %1427 = vmatpush1.msra.mxu0 0.0
  %1428 = vmatprep.subr.mxu0 0.0
  %1429 = vmatpush1.msra.mxu0 0.0
  %1430 = vmatprep.subr.mxu0 0.0
  %1431 = vmatpush1.msra.mxu0 0.0
  %1432 = vmatprep.subr.mxu0 0.0
  %1433 = vmatpush1.msra.mxu0 0.0
  %1434 = vmatprep.subr.mxu0 0.0
  %1435 = vmatpush1.msra.mxu0 0.0
  %1436 = vmatprep.subr.mxu0 0.0
  %1437 = vmatpush1.msra.mxu0 0.0
  %1438 = vmatprep.subr.mxu0 0.0
  %1439 = vmatpush1.msra.mxu0 0.0
  %1440 = vmatprep.subr.mxu0 0.0
  %1441 = vmatpush1.msra.mxu0 0.0
  %1442 = vmatprep.subr.mxu0 0.0
  %1443 = vmatpush1.msra.mxu0 0.0
  %1444 = vmatprep.subr.mxu0 0.0
  %1445 = vmatpush1.msra.mxu0 0.0
  %1446 = vmatprep.subr.mxu0 0.0
  %1447 = vmatpush1.msra.mxu0 0.0
  %1448 = vmatprep.subr.mxu0 0.0
  %1449 = vmatpush1.msra.mxu0 0.0
  %1450 = vmatprep.subr.mxu0 0.0
  %1451 = vmatpush1.msra.mxu0 0.0
  %1452 = vmatprep.subr.mxu0 0.0
  %1453 = vmatpush1.msra.mxu0 0.0
  %1454 = vmatprep.subr.mxu0 0.0
  %1455 = vmatpush1.msra.mxu0 0.0
  %1456 = vmatprep.subr.mxu0 0.0
  %1457 = vmatpush1.msra.mxu0 0.0
  %1458 = vmatprep.subr.mxu0 0.0
  %1459 = vmatpush1.msra.mxu0 0.0
  %1460 = vmatprep.subr.mxu0 0.0
  %1461 = vmatpush1.msra.mxu0 0.0
  %1462 = vmatprep.subr.mxu0 0.0
  %1463 = vmatpush1.msra.mxu0 0.0
  %1464 = vmatprep.subr.mxu0 0.0
  %1465 = vmatpush1.msra.mxu0 0.0
  %1466 = vmatprep.subr.mxu0 0.0
  %1467 = vmatpush1.msra.mxu0 0.0
  %1468 = vmatprep.mubr.f32.mxu0 0.0
  %1469 = vmatmul.mubr.f32.gmra.mrb[0].mxu0 %v1357
  %v1470 = vpop.f32.mrb[0].mxu0
  %v1471 = vadd.f32 %v57, %v1470
  %v1472 = vpop.f32.mrb[0].mxu0
  %1473 = vmatprep.mubr.f32.mxu0 0.0
  %1474 = vmatmul.mubr.f32.gmra.mrb[0].mxu0 %v1360
  %v1475 = vpop.f32.mrb[0].mxu0
  %v1476 = vadd.f32 %v57, %v1475
  %v1477 = vpop.f32.mrb[0].mxu0
  %1478 = vmatprep.mubr.f32.mxu0 0.0
  %1479 = vmatmul.mubr.f32.gmra.mrb[0].mxu0 %v1363
  %v1480 = vpop.f32.mrb[0].mxu0
  %v1481 = vadd.f32 %v57, %v1480
  %v1482 = vpop.f32.mrb[0].mxu0
  %1483 = vmatprep.mubr.f32.mxu0 0.0
  %1484 = vmatmul.mubr.f32.gmra.mrb[0].mxu0 %v1366
  %v1485 = vpop.f32.mrb[0].mxu0
  %v1486 = vadd.f32 %v57, %v1485
  %v1487 = vpop.f32.mrb[0].mxu0
  %1488 = vmatprep.mubr.f32.mxu0 0.0
  %1489 = vmatmul.mubr.f32.gmra.mrb[0].mxu0 %v1369
  %v1490 = vpop.f32.mrb[0].mxu0
  %v1491 = vadd.f32 %v57, %v1490
  %v1492 = vpop.f32.mrb[0].mxu0
  %1493 = vmatprep.mubr.f32.mxu0 0.0
  %1494 = vmatmul.mubr.f32.gmra.mrb[0].mxu0 %v1372
  %v1495 = vpop.f32.mrb[0].mxu0
  %v1496 = vadd.f32 %v57, %v1495
  %v1497 = vpop.f32.mrb[0].mxu0
  %1498 = vmatprep.mubr.f32.mxu0 0.0
  %1499 = vmatmul.mubr.f32.gmra.mrb[0].mxu0 %v1375
  %v1500 = vpop.f32.mrb[0].mxu0
  %v1501 = vadd.f32 %v57, %v1500
  %v1502 = vpop.f32.mrb[0].mxu0
  %1503 = vmatprep.mubr.f32.mxu0 0.0
  %1504 = vmatmul.mubr.f32.gmra.mrb[0].mxu0 %v1378
  %v1505 = vpop.f32.mrb[0].mxu0
  %v1506 = vadd.f32 %v57, %v1505
  %v1507 = vpop.f32.mrb[0].mxu0
  %1508 = vmatprep.mubr.f32.mxu0 0.0
  %1509 = vmatmul.mubr.f32.gmra.mrb[0].mxu0 %v1381
  %v1510 = vpop.f32.mrb[0].mxu0
  %v1511 = vadd.f32 %v57, %v1510
  %v1512 = vpop.f32.mrb[0].mxu0
  %1513 = vmatprep.mubr.f32.mxu0 0.0
  %1514 = vmatmul.mubr.f32.gmra.mrb[0].mxu0 %v1384
  %v1515 = vpop.f32.mrb[0].mxu0
  %v1516 = vadd.f32 %v57, %v1515
  %v1517 = vpop.f32.mrb[0].mxu0
  %1518 = vmatprep.mubr.f32.mxu0 0.0
  %1519 = vmatmul.mubr.f32.gmra.mrb[0].mxu0 %v1387
  %v1520 = vpop.f32.mrb[0].mxu0
  %v1521 = vadd.f32 %v57, %v1520
  %v1522 = vpop.f32.mrb[0].mxu0
  %1523 = vmatprep.mubr.f32.mxu0 0.0
  %1524 = vmatmul.mubr.f32.gmra.mrb[0].mxu0 %v1390
  %v1525 = vpop.f32.mrb[0].mxu0
  %v1526 = vadd.f32 %v57, %v1525
  %v1527 = vpop.f32.mrb[0].mxu0
  %1528 = vmatprep.mubr.f32.mxu0 0.0
  %1529 = vmatmul.mubr.f32.gmra.mrb[0].mxu0 %v1393
  %v1530 = vpop.f32.mrb[0].mxu0
  %v1531 = vadd.f32 %v57, %v1530
  %v1532 = vpop.f32.mrb[0].mxu0
  %1533 = vmatprep.mubr.f32.mxu0 0.0
  %1534 = vmatmul.mubr.f32.gmra.mrb[0].mxu0 %v1396
  %v1535 = vpop.f32.mrb[0].mxu0
  %v1536 = vadd.f32 %v57, %v1535
  %v1537 = vpop.f32.mrb[0].mxu0
  %1538 = vmatprep.mubr.f32.mxu0 0.0
  %1539 = vmatmul.mubr.f32.gmra.mrb[0].mxu0 %v1399
  %v1540 = vpop.f32.mrb[0].mxu0
  %v1541 = vadd.f32 %v57, %v1540
  %v1542 = vpop.f32.mrb[0].mxu0
  %1543 = vmatprep.mubr.f32.mxu0 0.0
  %1544 = vmatmul.mubr.f32.gmra.mrb[0].mxu0 %v1402
  %v1545 = vpop.f32.mrb[0].mxu0
  %v1546 = vadd.f32 %v57, %v1545
  %v1547 = vpop.f32.mrb[0].mxu0
  %1548 = vdwg.mxu0
  %v1549 = vmax.f32 %v1471, 0.0
  %v1550 = vmax.f32 %v1476, 0.0
  %v1551 = vmax.f32 %v1481, 0.0
  %v1552 = vmax.f32 %v1486, 0.0
  %v1553 = vmax.f32 %v1491, 0.0
  %v1554 = vmax.f32 %v1496, 0.0
  %v1555 = vmax.f32 %v1501, 0.0
  %v1556 = vmax.f32 %v1506, 0.0
  %v1557 = vmax.f32 %v1511, 0.0
  %v1558 = vmax.f32 %v1516, 0.0
  %v1559 = vmax.f32 %v1521, 0.0
  %v1560 = vmax.f32 %v1526, 0.0
  %v1561 = vmax.f32 %v1531, 0.0
  %v1562 = vmax.f32 %v1536, 0.0
  %v1563 = vmax.f32 %v1541, 0.0
  %v1564 = vmax.f32 %v1546, 0.0
  %s1565 = scalar_lea.vmem %s3, 48
  %v1566 = vld [vmem:[%s1565] sm:$0xff]
  %v1567 = vld [vmem:[%s1565 + $0x8] sm:$0x3]
  %v1569 = vsel %vm504, %v1549, 0
  %v1572 = vsel %vm504, %v1550, 0
  %v1575 = vsel %vm504, %v1551, 0
  %v1578 = vsel %vm504, %v1552, 0
  %v1581 = vsel %vm504, %v1553, 0
  %v1584 = vsel %vm504, %v1554, 0
  %v1587 = vsel %vm504, %v1555, 0
  %v1590 = vsel %vm504, %v1556, 0
  %v1593 = vsel %vm504, %v1557, 0
  %v1596 = vsel %vm504, %v1558, 0
  %v1599 = vsel %vm504, %v1559, 0
  %v1602 = vsel %vm504, %v1560, 0
  %v1605 = vsel %vm504, %v1561, 0
  %v1608 = vsel %vm504, %v1562, 0
  %v1611 = vsel %vm504, %v1563, 0
  %v1614 = vsel %vm504, %v1564, 0
  %v1617 = vsel %vm553, %v1567, 0
  %1619 = vmatprep.subr.mxu0 0.0
  %1620 = vmatpush1.msra.mxu0 %v1566
  %1621 = vmatprep.subr.mxu0 0.0
  %1622 = vmatpush1.msra.mxu0 %v1617
  %1623 = vmatprep.subr.mxu0 0.0
  %1624 = vmatpush1.msra.mxu0 0.0
  %1625 = vmatprep.subr.mxu0 0.0
  %1626 = vmatpush1.msra.mxu0 0.0
  %1627 = vmatprep.subr.mxu0 0.0
  %1628 = vmatpush1.msra.mxu0 0.0
  %1629 = vmatprep.subr.mxu0 0.0
  %1630 = vmatpush1.msra.mxu0 0.0
  %1631 = vmatprep.subr.mxu0 0.0
  %1632 = vmatpush1.msra.mxu0 0.0
  %1633 = vmatprep.subr.mxu0 0.0
  %1634 = vmatpush1.msra.mxu0 0.0
  %1635 = vmatprep.subr.mxu0 0.0
  %1636 = vmatpush1.msra.mxu0 0.0
  %1637 = vmatprep.subr.mxu0 0.0
  %1638 = vmatpush1.msra.mxu0 0.0
  %1639 = vmatprep.subr.mxu0 0.0
  %1640 = vmatpush1.msra.mxu0 0.0
  %1641 = vmatprep.subr.mxu0 0.0
  %1642 = vmatpush1.msra.mxu0 0.0
  %1643 = vmatprep.subr.mxu0 0.0
  %1644 = vmatpush1.msra.mxu0 0.0
  %1645 = vmatprep.subr.mxu0 0.0
  %1646 = vmatpush1.msra.mxu0 0.0
  %1647 = vmatprep.subr.mxu0 0.0
  %1648 = vmatpush1.msra.mxu0 0.0
  %1649 = vmatprep.subr.mxu0 0.0
  %1650 = vmatpush1.msra.mxu0 0.0
  %1651 = vmatprep.subr.mxu0 0.0
  %1652 = vmatpush1.msra.mxu0 0.0
  %1653 = vmatprep.subr.mxu0 0.0
  %1654 = vmatpush1.msra.mxu0 0.0
  %1655 = vmatprep.subr.mxu0 0.0
  %1656 = vmatpush1.msra.mxu0 0.0
  %1657 = vmatprep.subr.mxu0 0.0
  %1658 = vmatpush1.msra.mxu0 0.0
  %1659 = vmatprep.subr.mxu0 0.0
  %1660 = vmatpush1.msra.mxu0 0.0
  %1661 = vmatprep.subr.mxu0 0.0
  %1662 = vmatpush1.msra.mxu0 0.0
  %1663 = vmatprep.subr.mxu0 0.0
  %1664 = vmatpush1.msra.mxu0 0.0
  %1665 = vmatprep.subr.mxu0 0.0
  %1666 = vmatpush1.msra.mxu0 0.0
  %1667 = vmatprep.subr.mxu0 0.0
  %1668 = vmatpush1.msra.mxu0 0.0
  %1669 = vmatprep.subr.mxu0 0.0
  %1670 = vmatpush1.msra.mxu0 0.0
  %1671 = vmatprep.subr.mxu0 0.0
  %1672 = vmatpush1.msra.mxu0 0.0
  %1673 = vmatprep.subr.mxu0 0.0
  %1674 = vmatpush1.msra.mxu0 0.0
  %1675 = vmatprep.subr.mxu0 0.0
  %1676 = vmatpush1.msra.mxu0 0.0
  %1677 = vmatprep.subr.mxu0 0.0
  %1678 = vmatpush1.msra.mxu0 0.0
  %1679 = vmatprep.subr.mxu0 0.0
  %1680 = vmatpush1.msra.mxu0 0.0
  %1681 = vmatprep.subr.mxu0 0.0
  %1682 = vmatpush1.msra.mxu0 0.0
  %1683 = vmatprep.mubr.f32.mxu0 0.0
  %1684 = vmatmul.mubr.f32.gmra.mrb[0].mxu0 %v1569
  %v1685 = vpop.f32.mrb[0].mxu0
  %v1686 = vadd.f32 0.0, %v1685
  %v1687 = vpop.f32.mrb[0].mxu0
  %1688 = vmatprep.mubr.f32.mxu0 0.0
  %1689 = vmatmul.mubr.f32.gmra.mrb[0].mxu0 %v1572
  %v1690 = vpop.f32.mrb[0].mxu0
  %v1691 = vadd.f32 0.0, %v1690
  %v1692 = vpop.f32.mrb[0].mxu0
  %1693 = vmatprep.mubr.f32.mxu0 0.0
  %1694 = vmatmul.mubr.f32.gmra.mrb[0].mxu0 %v1575
  %v1695 = vpop.f32.mrb[0].mxu0
  %v1696 = vadd.f32 0.0, %v1695
  %v1697 = vpop.f32.mrb[0].mxu0
  %1698 = vmatprep.mubr.f32.mxu0 0.0
  %1699 = vmatmul.mubr.f32.gmra.mrb[0].mxu0 %v1578
  %v1700 = vpop.f32.mrb[0].mxu0
  %v1701 = vadd.f32 0.0, %v1700
  %v1702 = vpop.f32.mrb[0].mxu0
  %1703 = vmatprep.mubr.f32.mxu0 0.0
  %1704 = vmatmul.mubr.f32.gmra.mrb[0].mxu0 %v1581
  %v1705 = vpop.f32.mrb[0].mxu0
  %v1706 = vadd.f32 0.0, %v1705
  %v1707 = vpop.f32.mrb[0].mxu0
  %1708 = vmatprep.mubr.f32.mxu0 0.0
  %1709 = vmatmul.mubr.f32.gmra.mrb[0].mxu0 %v1584
  %v1710 = vpop.f32.mrb[0].mxu0
  %v1711 = vadd.f32 0.0, %v1710
  %v1712 = vpop.f32.mrb[0].mxu0
  %1713 = vmatprep.mubr.f32.mxu0 0.0
  %1714 = vmatmul.mubr.f32.gmra.mrb[0].mxu0 %v1587
  %v1715 = vpop.f32.mrb[0].mxu0
  %v1716 = vadd.f32 0.0, %v1715
  %v1717 = vpop.f32.mrb[0].mxu0
  %1718 = vmatprep.mubr.f32.mxu0 0.0
  %1719 = vmatmul.mubr.f32.gmra.mrb[0].mxu0 %v1590
  %v1720 = vpop.f32.mrb[0].mxu0
  %v1721 = vadd.f32 0.0, %v1720
  %v1722 = vpop.f32.mrb[0].mxu0
  %1723 = vmatprep.mubr.f32.mxu0 0.0
  %1724 = vmatmul.mubr.f32.gmra.mrb[0].mxu0 %v1593
  %v1725 = vpop.f32.mrb[0].mxu0
  %v1726 = vadd.f32 0.0, %v1725
  %v1727 = vpop.f32.mrb[0].mxu0
  %1728 = vmatprep.mubr.f32.mxu0 0.0
  %1729 = vmatmul.mubr.f32.gmra.mrb[0].mxu0 %v1596
  %v1730 = vpop.f32.mrb[0].mxu0
  %v1731 = vadd.f32 0.0, %v1730
  %v1732 = vpop.f32.mrb[0].mxu0
  %1733 = vmatprep.mubr.f32.mxu0 0.0
  %1734 = vmatmul.mubr.f32.gmra.mrb[0].mxu0 %v1599
  %v1735 = vpop.f32.mrb[0].mxu0
  %v1736 = vadd.f32 0.0, %v1735
  %v1737 = vpop.f32.mrb[0].mxu0
  %1738 = vmatprep.mubr.f32.mxu0 0.0
  %1739 = vmatmul.mubr.f32.gmra.mrb[0].mxu0 %v1602
  %v1740 = vpop.f32.mrb[0].mxu0
  %v1741 = vadd.f32 0.0, %v1740
  %v1742 = vpop.f32.mrb[0].mxu0
  %1743 = vmatprep.mubr.f32.mxu0 0.0
  %1744 = vmatmul.mubr.f32.gmra.mrb[0].mxu0 %v1605
  %v1745 = vpop.f32.mrb[0].mxu0
  %v1746 = vadd.f32 0.0, %v1745
  %v1747 = vpop.f32.mrb[0].mxu0
  %1748 = vmatprep.mubr.f32.mxu0 0.0
  %1749 = vmatmul.mubr.f32.gmra.mrb[0].mxu0 %v1608
  %v1750 = vpop.f32.mrb[0].mxu0
  %v1751 = vadd.f32 0.0, %v1750
  %v1752 = vpop.f32.mrb[0].mxu0
  %1753 = vmatprep.mubr.f32.mxu0 0.0
  %1754 = vmatmul.mubr.f32.gmra.mrb[0].mxu0 %v1611
  %v1755 = vpop.f32.mrb[0].mxu0
  %v1756 = vadd.f32 0.0, %v1755
  %v1757 = vpop.f32.mrb[0].mxu0
  %1758 = vmatprep.mubr.f32.mxu0 0.0
  %1759 = vmatmul.mubr.f32.gmra.mrb[0].mxu0 %v1614
  %v1760 = vpop.f32.mrb[0].mxu0
  %v1761 = vadd.f32 0.0, %v1760
  %v1762 = vpop.f32.mrb[0].mxu0
  %1763 = vdwg.mxu0
  %v1764 = vadd.f32 %v1323, %v1686
  %v1765 = vadd.f32 %v1324, %v1691
  %v1766 = vadd.f32 %v1325, %v1696
  %v1767 = vadd.f32 %v1326, %v1701
  %v1768 = vadd.f32 %v1327, %v1706
  %v1769 = vadd.f32 %v1328, %v1711
  %v1770 = vadd.f32 %v1329, %v1716
  %v1771 = vadd.f32 %v1330, %v1721
  %v1772 = vadd.f32 %v1331, %v1726
  %v1773 = vadd.f32 %v1332, %v1731
  %v1774 = vadd.f32 %v1333, %v1736
  %v1775 = vadd.f32 %v1334, %v1741
  %v1776 = vadd.f32 %v1335, %v1746
  %v1777 = vadd.f32 %v1336, %v1751
  %v1778 = vadd.f32 %v1337, %v1756
  %v1779 = vadd.f32 %v1338, %v1761
  %s1780 = scalar_lea.vmem %s0, 512
  %v1781 = vld [vmem:[%s1780] sm:$0xff]
  %v1782 = vld [vmem:[%s1780 + $0x8] sm:$0xff]
  %v1783 = vld [vmem:[%s1780 + $0x10] sm:$0xff]
  %v1784 = vld [vmem:[%s1780 + $0x18] sm:$0xff]
  %v1785 = vld [vmem:[%s1780 + $0x20] sm:$0xff]
  %v1786 = vld [vmem:[%s1780 + $0x28] sm:$0xff]
  %v1787 = vld [vmem:[%s1780 + $0x30] sm:$0xff]
  %v1788 = vld [vmem:[%s1780 + $0x38] sm:$0xff]
  %v1789 = vld [vmem:[%s1780 + $0x40] sm:$0xff]
  %v1790 = vld [vmem:[%s1780 + $0x48] sm:$0xff]
  %v1791 = vld [vmem:[%s1780 + $0x50] sm:$0xff]
  %v1792 = vld [vmem:[%s1780 + $0x58] sm:$0xff]
  %v1793 = vld [vmem:[%s1780 + $0x60] sm:$0xff]
  %v1794 = vld [vmem:[%s1780 + $0x68] sm:$0xff]
  %v1795 = vld [vmem:[%s1780 + $0x70] sm:$0xff]
  %v1796 = vld [vmem:[%s1780 + $0x78] sm:$0xff]
  %v1798 = vsel %vm59, %v1781, 0
  %v1801 = vsel %vm59, %v1782, 0
  %v1804 = vsel %vm59, %v1783, 0
  %v1807 = vsel %vm59, %v1784, 0
  %v1810 = vsel %vm59, %v1785, 0
  %v1813 = vsel %vm59, %v1786, 0
  %v1816 = vsel %vm59, %v1787, 0
  %v1819 = vsel %vm59, %v1788, 0
  %v1822 = vsel %vm59, %v1789, 0
  %v1825 = vsel %vm59, %v1790, 0
  %v1828 = vsel %vm59, %v1791, 0
  %v1831 = vsel %vm59, %v1792, 0
  %v1834 = vsel %vm59, %v1793, 0
  %v1837 = vsel %vm59, %v1794, 0
  %v1840 = vsel %vm59, %v1795, 0
  %v1843 = vsel %vm59, %v1796, 0
  %1845 = vmatprep.subr.mxu0 0.0
  %1846 = vmatpush1.msra.mxu0 %v32
  %1847 = vmatprep.subr.mxu0 0.0
  %1848 = vmatpush1.msra.mxu0 %v33
  %1849 = vmatprep.subr.mxu0 0.0
  %1850 = vmatpush1.msra.mxu0 %v34
  %1851 = vmatprep.subr.mxu0 0.0
  %1852 = vmatpush1.msra.mxu0 %v110
  %1853 = vmatprep.subr.mxu0 0.0
  %1854 = vmatpush1.msra.mxu0 0.0
  %1855 = vmatprep.subr.mxu0 0.0
  %1856 = vmatpush1.msra.mxu0 0.0
  %1857 = vmatprep.subr.mxu0 0.0
  %1858 = vmatpush1.msra.mxu0 0.0
  %1859 = vmatprep.subr.mxu0 0.0
  %1860 = vmatpush1.msra.mxu0 0.0
  %1861 = vmatprep.subr.mxu0 0.0
  %1862 = vmatpush1.msra.mxu0 0.0
  %1863 = vmatprep.subr.mxu0 0.0
  %1864 = vmatpush1.msra.mxu0 0.0
  %1865 = vmatprep.subr.mxu0 0.0
  %1866 = vmatpush1.msra.mxu0 0.0
  %1867 = vmatprep.subr.mxu0 0.0
  %1868 = vmatpush1.msra.mxu0 0.0
  %1869 = vmatprep.subr.mxu0 0.0
  %1870 = vmatpush1.msra.mxu0 0.0
  %1871 = vmatprep.subr.mxu0 0.0
  %1872 = vmatpush1.msra.mxu0 0.0
  %1873 = vmatprep.subr.mxu0 0.0
  %1874 = vmatpush1.msra.mxu0 0.0
  %1875 = vmatprep.subr.mxu0 0.0
  %1876 = vmatpush1.msra.mxu0 0.0
  %1877 = vmatprep.subr.mxu0 0.0
  %1878 = vmatpush1.msra.mxu0 0.0
  %1879 = vmatprep.subr.mxu0 0.0
  %1880 = vmatpush1.msra.mxu0 0.0
  %1881 = vmatprep.subr.mxu0 0.0
  %1882 = vmatpush1.msra.mxu0 0.0
  %1883 = vmatprep.subr.mxu0 0.0
  %1884 = vmatpush1.msra.mxu0 0.0
  %1885 = vmatprep.subr.mxu0 0.0
  %1886 = vmatpush1.msra.mxu0 0.0
  %1887 = vmatprep.subr.mxu0 0.0
  %1888 = vmatpush1.msra.mxu0 0.0
  %1889 = vmatprep.subr.mxu0 0.0
  %1890 = vmatpush1.msra.mxu0 0.0
  %1891 = vmatprep.subr.mxu0 0.0
  %1892 = vmatpush1.msra.mxu0 0.0
  %1893 = vmatprep.subr.mxu0 0.0
  %1894 = vmatpush1.msra.mxu0 0.0
  %1895 = vmatprep.subr.mxu0 0.0
  %1896 = vmatpush1.msra.mxu0 0.0
  %1897 = vmatprep.subr.mxu0 0.0
  %1898 = vmatpush1.msra.mxu0 0.0
  %1899 = vmatprep.subr.mxu0 0.0
  %1900 = vmatpush1.msra.mxu0 0.0
  %1901 = vmatprep.subr.mxu0 0.0
  %1902 = vmatpush1.msra.mxu0 0.0
  %1903 = vmatprep.subr.mxu0 0.0
  %1904 = vmatpush1.msra.mxu0 0.0
  %1905 = vmatprep.subr.mxu0 0.0
  %1906 = vmatpush1.msra.mxu0 0.0
  %1907 = vmatprep.subr.mxu0 0.0
  %1908 = vmatpush1.msra.mxu0 0.0
  %1909 = vmatprep.mubr.f32.mxu0 0.0
  %1910 = vmatmul.mubr.f32.gmra.mrb[0].mxu0 %v1798
  %v1911 = vpop.f32.mrb[0].mxu0
  %v1912 = vadd.f32 %v57, %v1911
  %v1913 = vpop.f32.mrb[0].mxu0
  %1914 = vmatprep.mubr.f32.mxu0 0.0
  %1915 = vmatmul.mubr.f32.gmra.mrb[0].mxu0 %v1801
  %v1916 = vpop.f32.mrb[0].mxu0
  %v1917 = vadd.f32 %v57, %v1916
  %v1918 = vpop.f32.mrb[0].mxu0
  %1919 = vmatprep.mubr.f32.mxu0 0.0
  %1920 = vmatmul.mubr.f32.gmra.mrb[0].mxu0 %v1804
  %v1921 = vpop.f32.mrb[0].mxu0
  %v1922 = vadd.f32 %v57, %v1921
  %v1923 = vpop.f32.mrb[0].mxu0
  %1924 = vmatprep.mubr.f32.mxu0 0.0
  %1925 = vmatmul.mubr.f32.gmra.mrb[0].mxu0 %v1807
  %v1926 = vpop.f32.mrb[0].mxu0
  %v1927 = vadd.f32 %v57, %v1926
  %v1928 = vpop.f32.mrb[0].mxu0
  %1929 = vmatprep.mubr.f32.mxu0 0.0
  %1930 = vmatmul.mubr.f32.gmra.mrb[0].mxu0 %v1810
  %v1931 = vpop.f32.mrb[0].mxu0
  %v1932 = vadd.f32 %v57, %v1931
  %v1933 = vpop.f32.mrb[0].mxu0
  %1934 = vmatprep.mubr.f32.mxu0 0.0
  %1935 = vmatmul.mubr.f32.gmra.mrb[0].mxu0 %v1813
  %v1936 = vpop.f32.mrb[0].mxu0
  %v1937 = vadd.f32 %v57, %v1936
  %v1938 = vpop.f32.mrb[0].mxu0
  %1939 = vmatprep.mubr.f32.mxu0 0.0
  %1940 = vmatmul.mubr.f32.gmra.mrb[0].mxu0 %v1816
  %v1941 = vpop.f32.mrb[0].mxu0
  %v1942 = vadd.f32 %v57, %v1941
  %v1943 = vpop.f32.mrb[0].mxu0
  %1944 = vmatprep.mubr.f32.mxu0 0.0
  %1945 = vmatmul.mubr.f32.gmra.mrb[0].mxu0 %v1819
  %v1946 = vpop.f32.mrb[0].mxu0
  %v1947 = vadd.f32 %v57, %v1946
  %v1948 = vpop.f32.mrb[0].mxu0
  %1949 = vmatprep.mubr.f32.mxu0 0.0
  %1950 = vmatmul.mubr.f32.gmra.mrb[0].mxu0 %v1822
  %v1951 = vpop.f32.mrb[0].mxu0
  %v1952 = vadd.f32 %v57, %v1951
  %v1953 = vpop.f32.mrb[0].mxu0
  %1954 = vmatprep.mubr.f32.mxu0 0.0
  %1955 = vmatmul.mubr.f32.gmra.mrb[0].mxu0 %v1825
  %v1956 = vpop.f32.mrb[0].mxu0
  %v1957 = vadd.f32 %v57, %v1956
  %v1958 = vpop.f32.mrb[0].mxu0
  %1959 = vmatprep.mubr.f32.mxu0 0.0
  %1960 = vmatmul.mubr.f32.gmra.mrb[0].mxu0 %v1828
  %v1961 = vpop.f32.mrb[0].mxu0
  %v1962 = vadd.f32 %v57, %v1961
  %v1963 = vpop.f32.mrb[0].mxu0
  %1964 = vmatprep.mubr.f32.mxu0 0.0
  %1965 = vmatmul.mubr.f32.gmra.mrb[0].mxu0 %v1831
  %v1966 = vpop.f32.mrb[0].mxu0
  %v1967 = vadd.f32 %v57, %v1966
  %v1968 = vpop.f32.mrb[0].mxu0
  %1969 = vmatprep.mubr.f32.mxu0 0.0
  %1970 = vmatmul.mubr.f32.gmra.mrb[0].mxu0 %v1834
  %v1971 = vpop.f32.mrb[0].mxu0
  %v1972 = vadd.f32 %v57, %v1971
  %v1973 = vpop.f32.mrb[0].mxu0
  %1974 = vmatprep.mubr.f32.mxu0 0.0
  %1975 = vmatmul.mubr.f32.gmra.mrb[0].mxu0 %v1837
  %v1976 = vpop.f32.mrb[0].mxu0
  %v1977 = vadd.f32 %v57, %v1976
  %v1978 = vpop.f32.mrb[0].mxu0
  %1979 = vmatprep.mubr.f32.mxu0 0.0
  %1980 = vmatmul.mubr.f32.gmra.mrb[0].mxu0 %v1840
  %v1981 = vpop.f32.mrb[0].mxu0
  %v1982 = vadd.f32 %v57, %v1981
  %v1983 = vpop.f32.mrb[0].mxu0
  %1984 = vmatprep.mubr.f32.mxu0 0.0
  %1985 = vmatmul.mubr.f32.gmra.mrb[0].mxu0 %v1843
  %v1986 = vpop.f32.mrb[0].mxu0
  %v1987 = vadd.f32 %v57, %v1986
  %v1988 = vpop.f32.mrb[0].mxu0
  %1989 = vdwg.mxu0
  %v1990 = vmax.f32 %v1912, 0.0
  %v1991 = vmax.f32 %v1917, 0.0
  %v1992 = vmax.f32 %v1922, 0.0
  %v1993 = vmax.f32 %v1927, 0.0
  %v1994 = vmax.f32 %v1932, 0.0
  %v1995 = vmax.f32 %v1937, 0.0
  %v1996 = vmax.f32 %v1942, 0.0
  %v1997 = vmax.f32 %v1947, 0.0
  %v1998 = vmax.f32 %v1952, 0.0
  %v1999 = vmax.f32 %v1957, 0.0
  %v2000 = vmax.f32 %v1962, 0.0
  %v2001 = vmax.f32 %v1967, 0.0
  %v2002 = vmax.f32 %v1972, 0.0
  %v2003 = vmax.f32 %v1977, 0.0
  %v2004 = vmax.f32 %v1982, 0.0
  %v2005 = vmax.f32 %v1987, 0.0
  %s2006 = scalar_lea.vmem %s3, 64
  %v2007 = vld [vmem:[%s2006] sm:$0xff]
  %v2008 = vld [vmem:[%s2006 + $0x8] sm:$0x3]
  %v2010 = vsel %vm504, %v1990, 0
  %v2013 = vsel %vm504, %v1991, 0
  %v2016 = vsel %vm504, %v1992, 0
  %v2019 = vsel %vm504, %v1993, 0
  %v2022 = vsel %vm504, %v1994, 0
  %v2025 = vsel %vm504, %v1995, 0
  %v2028 = vsel %vm504, %v1996, 0
  %v2031 = vsel %vm504, %v1997, 0
  %v2034 = vsel %vm504, %v1998, 0
  %v2037 = vsel %vm504, %v1999, 0
  %v2040 = vsel %vm504, %v2000, 0
  %v2043 = vsel %vm504, %v2001, 0
  %v2046 = vsel %vm504, %v2002, 0
  %v2049 = vsel %vm504, %v2003, 0
  %v2052 = vsel %vm504, %v2004, 0
  %v2055 = vsel %vm504, %v2005, 0
  %v2058 = vsel %vm553, %v2008, 0
  %2060 = vmatprep.subr.mxu0 0.0
  %2061 = vmatpush1.msra.mxu0 %v2007
  %2062 = vmatprep.subr.mxu0 0.0
  %2063 = vmatpush1.msra.mxu0 %v2058
  %2064 = vmatprep.subr.mxu0 0.0
  %2065 = vmatpush1.msra.mxu0 0.0
  %2066 = vmatprep.subr.mxu0 0.0
  %2067 = vmatpush1.msra.mxu0 0.0
  %2068 = vmatprep.subr.mxu0 0.0
  %2069 = vmatpush1.msra.mxu0 0.0
  %2070 = vmatprep.subr.mxu0 0.0
  %2071 = vmatpush1.msra.mxu0 0.0
  %2072 = vmatprep.subr.mxu0 0.0
  %2073 = vmatpush1.msra.mxu0 0.0
  %2074 = vmatprep.subr.mxu0 0.0
  %2075 = vmatpush1.msra.mxu0 0.0
  %2076 = vmatprep.subr.mxu0 0.0
  %2077 = vmatpush1.msra.mxu0 0.0
  %2078 = vmatprep.subr.mxu0 0.0
  %2079 = vmatpush1.msra.mxu0 0.0
  %2080 = vmatprep.subr.mxu0 0.0
  %2081 = vmatpush1.msra.mxu0 0.0
  %2082 = vmatprep.subr.mxu0 0.0
  %2083 = vmatpush1.msra.mxu0 0.0
  %2084 = vmatprep.subr.mxu0 0.0
  %2085 = vmatpush1.msra.mxu0 0.0
  %2086 = vmatprep.subr.mxu0 0.0
  %2087 = vmatpush1.msra.mxu0 0.0
  %2088 = vmatprep.subr.mxu0 0.0
  %2089 = vmatpush1.msra.mxu0 0.0
  %2090 = vmatprep.subr.mxu0 0.0
  %2091 = vmatpush1.msra.mxu0 0.0
  %2092 = vmatprep.subr.mxu0 0.0
  %2093 = vmatpush1.msra.mxu0 0.0
  %2094 = vmatprep.subr.mxu0 0.0
  %2095 = vmatpush1.msra.mxu0 0.0
  %2096 = vmatprep.subr.mxu0 0.0
  %2097 = vmatpush1.msra.mxu0 0.0
  %2098 = vmatprep.subr.mxu0 0.0
  %2099 = vmatpush1.msra.mxu0 0.0
  %2100 = vmatprep.subr.mxu0 0.0
  %2101 = vmatpush1.msra.mxu0 0.0
  %2102 = vmatprep.subr.mxu0 0.0
  %2103 = vmatpush1.msra.mxu0 0.0
  %2104 = vmatprep.subr.mxu0 0.0
  %2105 = vmatpush1.msra.mxu0 0.0
  %2106 = vmatprep.subr.mxu0 0.0
  %2107 = vmatpush1.msra.mxu0 0.0
  %2108 = vmatprep.subr.mxu0 0.0
  %2109 = vmatpush1.msra.mxu0 0.0
  %2110 = vmatprep.subr.mxu0 0.0
  %2111 = vmatpush1.msra.mxu0 0.0
  %2112 = vmatprep.subr.mxu0 0.0
  %2113 = vmatpush1.msra.mxu0 0.0
  %2114 = vmatprep.subr.mxu0 0.0
  %2115 = vmatpush1.msra.mxu0 0.0
  %2116 = vmatprep.subr.mxu0 0.0
  %2117 = vmatpush1.msra.mxu0 0.0
  %2118 = vmatprep.subr.mxu0 0.0
  %2119 = vmatpush1.msra.mxu0 0.0
  %2120 = vmatprep.subr.mxu0 0.0
  %2121 = vmatpush1.msra.mxu0 0.0
  %2122 = vmatprep.subr.mxu0 0.0
  %2123 = vmatpush1.msra.mxu0 0.0
  %2124 = vmatprep.mubr.f32.mxu0 0.0
  %2125 = vmatmul.mubr.f32.gmra.mrb[0].mxu0 %v2010
  %v2126 = vpop.f32.mrb[0].mxu0
  %v2127 = vadd.f32 0.0, %v2126
  %v2128 = vpop.f32.mrb[0].mxu0
  %2129 = vmatprep.mubr.f32.mxu0 0.0
  %2130 = vmatmul.mubr.f32.gmra.mrb[0].mxu0 %v2013
  %v2131 = vpop.f32.mrb[0].mxu0
  %v2132 = vadd.f32 0.0, %v2131
  %v2133 = vpop.f32.mrb[0].mxu0
  %2134 = vmatprep.mubr.f32.mxu0 0.0
  %2135 = vmatmul.mubr.f32.gmra.mrb[0].mxu0 %v2016
  %v2136 = vpop.f32.mrb[0].mxu0
  %v2137 = vadd.f32 0.0, %v2136
  %v2138 = vpop.f32.mrb[0].mxu0
  %2139 = vmatprep.mubr.f32.mxu0 0.0
  %2140 = vmatmul.mubr.f32.gmra.mrb[0].mxu0 %v2019
  %v2141 = vpop.f32.mrb[0].mxu0
  %v2142 = vadd.f32 0.0, %v2141
  %v2143 = vpop.f32.mrb[0].mxu0
  %2144 = vmatprep.mubr.f32.mxu0 0.0
  %2145 = vmatmul.mubr.f32.gmra.mrb[0].mxu0 %v2022
  %v2146 = vpop.f32.mrb[0].mxu0
  %v2147 = vadd.f32 0.0, %v2146
  %v2148 = vpop.f32.mrb[0].mxu0
  %2149 = vmatprep.mubr.f32.mxu0 0.0
  %2150 = vmatmul.mubr.f32.gmra.mrb[0].mxu0 %v2025
  %v2151 = vpop.f32.mrb[0].mxu0
  %v2152 = vadd.f32 0.0, %v2151
  %v2153 = vpop.f32.mrb[0].mxu0
  %2154 = vmatprep.mubr.f32.mxu0 0.0
  %2155 = vmatmul.mubr.f32.gmra.mrb[0].mxu0 %v2028
  %v2156 = vpop.f32.mrb[0].mxu0
  %v2157 = vadd.f32 0.0, %v2156
  %v2158 = vpop.f32.mrb[0].mxu0
  %2159 = vmatprep.mubr.f32.mxu0 0.0
  %2160 = vmatmul.mubr.f32.gmra.mrb[0].mxu0 %v2031
  %v2161 = vpop.f32.mrb[0].mxu0
  %v2162 = vadd.f32 0.0, %v2161
  %v2163 = vpop.f32.mrb[0].mxu0
  %2164 = vmatprep.mubr.f32.mxu0 0.0
  %2165 = vmatmul.mubr.f32.gmra.mrb[0].mxu0 %v2034
  %v2166 = vpop.f32.mrb[0].mxu0
  %v2167 = vadd.f32 0.0, %v2166
  %v2168 = vpop.f32.mrb[0].mxu0
  %2169 = vmatprep.mubr.f32.mxu0 0.0
  %2170 = vmatmul.mubr.f32.gmra.mrb[0].mxu0 %v2037
  %v2171 = vpop.f32.mrb[0].mxu0
  %v2172 = vadd.f32 0.0, %v2171
  %v2173 = vpop.f32.mrb[0].mxu0
  %2174 = vmatprep.mubr.f32.mxu0 0.0
  %2175 = vmatmul.mubr.f32.gmra.mrb[0].mxu0 %v2040
  %v2176 = vpop.f32.mrb[0].mxu0
  %v2177 = vadd.f32 0.0, %v2176
  %v2178 = vpop.f32.mrb[0].mxu0
  %2179 = vmatprep.mubr.f32.mxu0 0.0
  %2180 = vmatmul.mubr.f32.gmra.mrb[0].mxu0 %v2043
  %v2181 = vpop.f32.mrb[0].mxu0
  %v2182 = vadd.f32 0.0, %v2181
  %v2183 = vpop.f32.mrb[0].mxu0
  %2184 = vmatprep.mubr.f32.mxu0 0.0
  %2185 = vmatmul.mubr.f32.gmra.mrb[0].mxu0 %v2046
  %v2186 = vpop.f32.mrb[0].mxu0
  %v2187 = vadd.f32 0.0, %v2186
  %v2188 = vpop.f32.mrb[0].mxu0
  %2189 = vmatprep.mubr.f32.mxu0 0.0
  %2190 = vmatmul.mubr.f32.gmra.mrb[0].mxu0 %v2049
  %v2191 = vpop.f32.mrb[0].mxu0
  %v2192 = vadd.f32 0.0, %v2191
  %v2193 = vpop.f32.mrb[0].mxu0
  %2194 = vmatprep.mubr.f32.mxu0 0.0
  %2195 = vmatmul.mubr.f32.gmra.mrb[0].mxu0 %v2052
  %v2196 = vpop.f32.mrb[0].mxu0
  %v2197 = vadd.f32 0.0, %v2196
  %v2198 = vpop.f32.mrb[0].mxu0
  %2199 = vmatprep.mubr.f32.mxu0 0.0
  %2200 = vmatmul.mubr.f32.gmra.mrb[0].mxu0 %v2055
  %v2201 = vpop.f32.mrb[0].mxu0
  %v2202 = vadd.f32 0.0, %v2201
  %v2203 = vpop.f32.mrb[0].mxu0
  %2204 = vdwg.mxu0
  %v2205 = vadd.f32 %v1764, %v2127
  %v2206 = vadd.f32 %v1765, %v2132
  %v2207 = vadd.f32 %v1766, %v2137
  %v2208 = vadd.f32 %v1767, %v2142
  %v2209 = vadd.f32 %v1768, %v2147
  %v2210 = vadd.f32 %v1769, %v2152
  %v2211 = vadd.f32 %v1770, %v2157
  %v2212 = vadd.f32 %v1771, %v2162
  %v2213 = vadd.f32 %v1772, %v2167
  %v2214 = vadd.f32 %v1773, %v2172
  %v2215 = vadd.f32 %v1774, %v2177
  %v2216 = vadd.f32 %v1775, %v2182
  %v2217 = vadd.f32 %v1776, %v2187
  %v2218 = vadd.f32 %v1777, %v2192
  %v2219 = vadd.f32 %v1778, %v2197
  %v2220 = vadd.f32 %v1779, %v2202
  %s2221 = scalar_lea.vmem %s0, 640
  %v2222 = vld [vmem:[%s2221] sm:$0xff]
  %v2223 = vld [vmem:[%s2221 + $0x8] sm:$0xff]
  %v2224 = vld [vmem:[%s2221 + $0x10] sm:$0xff]
  %v2225 = vld [vmem:[%s2221 + $0x18] sm:$0xff]
  %v2226 = vld [vmem:[%s2221 + $0x20] sm:$0xff]
  %v2227 = vld [vmem:[%s2221 + $0x28] sm:$0xff]
  %v2228 = vld [vmem:[%s2221 + $0x30] sm:$0xff]
  %v2229 = vld [vmem:[%s2221 + $0x38] sm:$0xff]
  %v2230 = vld [vmem:[%s2221 + $0x40] sm:$0xff]
  %v2231 = vld [vmem:[%s2221 + $0x48] sm:$0xff]
  %v2232 = vld [vmem:[%s2221 + $0x50] sm:$0xff]
  %v2233 = vld [vmem:[%s2221 + $0x58] sm:$0xff]
  %v2234 = vld [vmem:[%s2221 + $0x60] sm:$0xff]
  %v2235 = vld [vmem:[%s2221 + $0x68] sm:$0xff]
  %v2236 = vld [vmem:[%s2221 + $0x70] sm:$0xff]
  %v2237 = vld [vmem:[%s2221 + $0x78] sm:$0xff]
  %v2239 = vsel %vm59, %v2222, 0
  %v2242 = vsel %vm59, %v2223, 0
  %v2245 = vsel %vm59, %v2224, 0
  %v2248 = vsel %vm59, %v2225, 0
  %v2251 = vsel %vm59, %v2226, 0
  %v2254 = vsel %vm59, %v2227, 0
  %v2257 = vsel %vm59, %v2228, 0
  %v2260 = vsel %vm59, %v2229, 0
  %v2263 = vsel %vm59, %v2230, 0
  %v2266 = vsel %vm59, %v2231, 0
  %v2269 = vsel %vm59, %v2232, 0
  %v2272 = vsel %vm59, %v2233, 0
  %v2275 = vsel %vm59, %v2234, 0
  %v2278 = vsel %vm59, %v2235, 0
  %v2281 = vsel %vm59, %v2236, 0
  %v2284 = vsel %vm59, %v2237, 0
  %2286 = vmatprep.subr.mxu0 0.0
  %2287 = vmatpush1.msra.mxu0 %v32
  %2288 = vmatprep.subr.mxu0 0.0
  %2289 = vmatpush1.msra.mxu0 %v33
  %2290 = vmatprep.subr.mxu0 0.0
  %2291 = vmatpush1.msra.mxu0 %v34
  %2292 = vmatprep.subr.mxu0 0.0
  %2293 = vmatpush1.msra.mxu0 %v110
  %2294 = vmatprep.subr.mxu0 0.0
  %2295 = vmatpush1.msra.mxu0 0.0
  %2296 = vmatprep.subr.mxu0 0.0
  %2297 = vmatpush1.msra.mxu0 0.0
  %2298 = vmatprep.subr.mxu0 0.0
  %2299 = vmatpush1.msra.mxu0 0.0
  %2300 = vmatprep.subr.mxu0 0.0
  %2301 = vmatpush1.msra.mxu0 0.0
  %2302 = vmatprep.subr.mxu0 0.0
  %2303 = vmatpush1.msra.mxu0 0.0
  %2304 = vmatprep.subr.mxu0 0.0
  %2305 = vmatpush1.msra.mxu0 0.0
  %2306 = vmatprep.subr.mxu0 0.0
  %2307 = vmatpush1.msra.mxu0 0.0
  %2308 = vmatprep.subr.mxu0 0.0
  %2309 = vmatpush1.msra.mxu0 0.0
  %2310 = vmatprep.subr.mxu0 0.0
  %2311 = vmatpush1.msra.mxu0 0.0
  %2312 = vmatprep.subr.mxu0 0.0
  %2313 = vmatpush1.msra.mxu0 0.0
  %2314 = vmatprep.subr.mxu0 0.0
  %2315 = vmatpush1.msra.mxu0 0.0
  %2316 = vmatprep.subr.mxu0 0.0
  %2317 = vmatpush1.msra.mxu0 0.0
  %2318 = vmatprep.subr.mxu0 0.0
  %2319 = vmatpush1.msra.mxu0 0.0
  %2320 = vmatprep.subr.mxu0 0.0
  %2321 = vmatpush1.msra.mxu0 0.0
  %2322 = vmatprep.subr.mxu0 0.0
  %2323 = vmatpush1.msra.mxu0 0.0
  %2324 = vmatprep.subr.mxu0 0.0
  %2325 = vmatpush1.msra.mxu0 0.0
  %2326 = vmatprep.subr.mxu0 0.0
  %2327 = vmatpush1.msra.mxu0 0.0
  %2328 = vmatprep.subr.mxu0 0.0
  %2329 = vmatpush1.msra.mxu0 0.0
  %2330 = vmatprep.subr.mxu0 0.0
  %2331 = vmatpush1.msra.mxu0 0.0
  %2332 = vmatprep.subr.mxu0 0.0
  %2333 = vmatpush1.msra.mxu0 0.0
  %2334 = vmatprep.subr.mxu0 0.0
  %2335 = vmatpush1.msra.mxu0 0.0
  %2336 = vmatprep.subr.mxu0 0.0
  %2337 = vmatpush1.msra.mxu0 0.0
  %2338 = vmatprep.subr.mxu0 0.0
  %2339 = vmatpush1.msra.mxu0 0.0
  %2340 = vmatprep.subr.mxu0 0.0
  %2341 = vmatpush1.msra.mxu0 0.0
  %2342 = vmatprep.subr.mxu0 0.0
  %2343 = vmatpush1.msra.mxu0 0.0
  %2344 = vmatprep.subr.mxu0 0.0
  %2345 = vmatpush1.msra.mxu0 0.0
  %2346 = vmatprep.subr.mxu0 0.0
  %2347 = vmatpush1.msra.mxu0 0.0
  %2348 = vmatprep.subr.mxu0 0.0
  %2349 = vmatpush1.msra.mxu0 0.0
  %2350 = vmatprep.mubr.f32.mxu0 0.0
  %2351 = vmatmul.mubr.f32.gmra.mrb[0].mxu0 %v2239
  %v2352 = vpop.f32.mrb[0].mxu0
  %v2353 = vadd.f32 %v57, %v2352
  %v2354 = vpop.f32.mrb[0].mxu0
  %2355 = vmatprep.mubr.f32.mxu0 0.0
  %2356 = vmatmul.mubr.f32.gmra.mrb[0].mxu0 %v2242
  %v2357 = vpop.f32.mrb[0].mxu0
  %v2358 = vadd.f32 %v57, %v2357
  %v2359 = vpop.f32.mrb[0].mxu0
  %2360 = vmatprep.mubr.f32.mxu0 0.0
  %2361 = vmatmul.mubr.f32.gmra.mrb[0].mxu0 %v2245
  %v2362 = vpop.f32.mrb[0].mxu0
  %v2363 = vadd.f32 %v57, %v2362
  %v2364 = vpop.f32.mrb[0].mxu0
  %2365 = vmatprep.mubr.f32.mxu0 0.0
  %2366 = vmatmul.mubr.f32.gmra.mrb[0].mxu0 %v2248
  %v2367 = vpop.f32.mrb[0].mxu0
  %v2368 = vadd.f32 %v57, %v2367
  %v2369 = vpop.f32.mrb[0].mxu0
  %2370 = vmatprep.mubr.f32.mxu0 0.0
  %2371 = vmatmul.mubr.f32.gmra.mrb[0].mxu0 %v2251
  %v2372 = vpop.f32.mrb[0].mxu0
  %v2373 = vadd.f32 %v57, %v2372
  %v2374 = vpop.f32.mrb[0].mxu0
  %2375 = vmatprep.mubr.f32.mxu0 0.0
  %2376 = vmatmul.mubr.f32.gmra.mrb[0].mxu0 %v2254
  %v2377 = vpop.f32.mrb[0].mxu0
  %v2378 = vadd.f32 %v57, %v2377
  %v2379 = vpop.f32.mrb[0].mxu0
  %2380 = vmatprep.mubr.f32.mxu0 0.0
  %2381 = vmatmul.mubr.f32.gmra.mrb[0].mxu0 %v2257
  %v2382 = vpop.f32.mrb[0].mxu0
  %v2383 = vadd.f32 %v57, %v2382
  %v2384 = vpop.f32.mrb[0].mxu0
  %2385 = vmatprep.mubr.f32.mxu0 0.0
  %2386 = vmatmul.mubr.f32.gmra.mrb[0].mxu0 %v2260
  %v2387 = vpop.f32.mrb[0].mxu0
  %v2388 = vadd.f32 %v57, %v2387
  %v2389 = vpop.f32.mrb[0].mxu0
  %2390 = vmatprep.mubr.f32.mxu0 0.0
  %2391 = vmatmul.mubr.f32.gmra.mrb[0].mxu0 %v2263
  %v2392 = vpop.f32.mrb[0].mxu0
  %v2393 = vadd.f32 %v57, %v2392
  %v2394 = vpop.f32.mrb[0].mxu0
  %2395 = vmatprep.mubr.f32.mxu0 0.0
  %2396 = vmatmul.mubr.f32.gmra.mrb[0].mxu0 %v2266
  %v2397 = vpop.f32.mrb[0].mxu0
  %v2398 = vadd.f32 %v57, %v2397
  %v2399 = vpop.f32.mrb[0].mxu0
  %2400 = vmatprep.mubr.f32.mxu0 0.0
  %2401 = vmatmul.mubr.f32.gmra.mrb[0].mxu0 %v2269
  %v2402 = vpop.f32.mrb[0].mxu0
  %v2403 = vadd.f32 %v57, %v2402
  %v2404 = vpop.f32.mrb[0].mxu0
  %2405 = vmatprep.mubr.f32.mxu0 0.0
  %2406 = vmatmul.mubr.f32.gmra.mrb[0].mxu0 %v2272
  %v2407 = vpop.f32.mrb[0].mxu0
  %v2408 = vadd.f32 %v57, %v2407
  %v2409 = vpop.f32.mrb[0].mxu0
  %2410 = vmatprep.mubr.f32.mxu0 0.0
  %2411 = vmatmul.mubr.f32.gmra.mrb[0].mxu0 %v2275
  %v2412 = vpop.f32.mrb[0].mxu0
  %v2413 = vadd.f32 %v57, %v2412
  %v2414 = vpop.f32.mrb[0].mxu0
  %2415 = vmatprep.mubr.f32.mxu0 0.0
  %2416 = vmatmul.mubr.f32.gmra.mrb[0].mxu0 %v2278
  %v2417 = vpop.f32.mrb[0].mxu0
  %v2418 = vadd.f32 %v57, %v2417
  %v2419 = vpop.f32.mrb[0].mxu0
  %2420 = vmatprep.mubr.f32.mxu0 0.0
  %2421 = vmatmul.mubr.f32.gmra.mrb[0].mxu0 %v2281
  %v2422 = vpop.f32.mrb[0].mxu0
  %v2423 = vadd.f32 %v57, %v2422
  %v2424 = vpop.f32.mrb[0].mxu0
  %2425 = vmatprep.mubr.f32.mxu0 0.0
  %2426 = vmatmul.mubr.f32.gmra.mrb[0].mxu0 %v2284
  %v2427 = vpop.f32.mrb[0].mxu0
  %v2428 = vadd.f32 %v57, %v2427
  %v2429 = vpop.f32.mrb[0].mxu0
  %2430 = vdwg.mxu0
  %v2431 = vmax.f32 %v2353, 0.0
  %v2432 = vmax.f32 %v2358, 0.0
  %v2433 = vmax.f32 %v2363, 0.0
  %v2434 = vmax.f32 %v2368, 0.0
  %v2435 = vmax.f32 %v2373, 0.0
  %v2436 = vmax.f32 %v2378, 0.0
  %v2437 = vmax.f32 %v2383, 0.0
  %v2438 = vmax.f32 %v2388, 0.0
  %v2439 = vmax.f32 %v2393, 0.0
  %v2440 = vmax.f32 %v2398, 0.0
  %v2441 = vmax.f32 %v2403, 0.0
  %v2442 = vmax.f32 %v2408, 0.0
  %v2443 = vmax.f32 %v2413, 0.0
  %v2444 = vmax.f32 %v2418, 0.0
  %v2445 = vmax.f32 %v2423, 0.0
  %v2446 = vmax.f32 %v2428, 0.0
  %s2447 = scalar_lea.vmem %s3, 80
  %v2448 = vld [vmem:[%s2447] sm:$0xff]
  %v2449 = vld [vmem:[%s2447 + $0x8] sm:$0x3]
  %v2451 = vsel %vm504, %v2431, 0
  %v2454 = vsel %vm504, %v2432, 0
  %v2457 = vsel %vm504, %v2433, 0
  %v2460 = vsel %vm504, %v2434, 0
  %v2463 = vsel %vm504, %v2435, 0
  %v2466 = vsel %vm504, %v2436, 0
  %v2469 = vsel %vm504, %v2437, 0
  %v2472 = vsel %vm504, %v2438, 0
  %v2475 = vsel %vm504, %v2439, 0
  %v2478 = vsel %vm504, %v2440, 0
  %v2481 = vsel %vm504, %v2441, 0
  %v2484 = vsel %vm504, %v2442, 0
  %v2487 = vsel %vm504, %v2443, 0
  %v2490 = vsel %vm504, %v2444, 0
  %v2493 = vsel %vm504, %v2445, 0
  %v2496 = vsel %vm504, %v2446, 0
  %v2499 = vsel %vm553, %v2449, 0
  %2501 = vmatprep.subr.mxu0 0.0
  %2502 = vmatpush1.msra.mxu0 %v2448
  %2503 = vmatprep.subr.mxu0 0.0
  %2504 = vmatpush1.msra.mxu0 %v2499
  %2505 = vmatprep.subr.mxu0 0.0
  %2506 = vmatpush1.msra.mxu0 0.0
  %2507 = vmatprep.subr.mxu0 0.0
  %2508 = vmatpush1.msra.mxu0 0.0
  %2509 = vmatprep.subr.mxu0 0.0
  %2510 = vmatpush1.msra.mxu0 0.0
  %2511 = vmatprep.subr.mxu0 0.0
  %2512 = vmatpush1.msra.mxu0 0.0
  %2513 = vmatprep.subr.mxu0 0.0
  %2514 = vmatpush1.msra.mxu0 0.0
  %2515 = vmatprep.subr.mxu0 0.0
  %2516 = vmatpush1.msra.mxu0 0.0
  %2517 = vmatprep.subr.mxu0 0.0
  %2518 = vmatpush1.msra.mxu0 0.0
  %2519 = vmatprep.subr.mxu0 0.0
  %2520 = vmatpush1.msra.mxu0 0.0
  %2521 = vmatprep.subr.mxu0 0.0
  %2522 = vmatpush1.msra.mxu0 0.0
  %2523 = vmatprep.subr.mxu0 0.0
  %2524 = vmatpush1.msra.mxu0 0.0
  %2525 = vmatprep.subr.mxu0 0.0
  %2526 = vmatpush1.msra.mxu0 0.0
  %2527 = vmatprep.subr.mxu0 0.0
  %2528 = vmatpush1.msra.mxu0 0.0
  %2529 = vmatprep.subr.mxu0 0.0
  %2530 = vmatpush1.msra.mxu0 0.0
  %2531 = vmatprep.subr.mxu0 0.0
  %2532 = vmatpush1.msra.mxu0 0.0
  %2533 = vmatprep.subr.mxu0 0.0
  %2534 = vmatpush1.msra.mxu0 0.0
  %2535 = vmatprep.subr.mxu0 0.0
  %2536 = vmatpush1.msra.mxu0 0.0
  %2537 = vmatprep.subr.mxu0 0.0
  %2538 = vmatpush1.msra.mxu0 0.0
  %2539 = vmatprep.subr.mxu0 0.0
  %2540 = vmatpush1.msra.mxu0 0.0
  %2541 = vmatprep.subr.mxu0 0.0
  %2542 = vmatpush1.msra.mxu0 0.0
  %2543 = vmatprep.subr.mxu0 0.0
  %2544 = vmatpush1.msra.mxu0 0.0
  %2545 = vmatprep.subr.mxu0 0.0
  %2546 = vmatpush1.msra.mxu0 0.0
  %2547 = vmatprep.subr.mxu0 0.0
  %2548 = vmatpush1.msra.mxu0 0.0
  %2549 = vmatprep.subr.mxu0 0.0
  %2550 = vmatpush1.msra.mxu0 0.0
  %2551 = vmatprep.subr.mxu0 0.0
  %2552 = vmatpush1.msra.mxu0 0.0
  %2553 = vmatprep.subr.mxu0 0.0
  %2554 = vmatpush1.msra.mxu0 0.0
  %2555 = vmatprep.subr.mxu0 0.0
  %2556 = vmatpush1.msra.mxu0 0.0
  %2557 = vmatprep.subr.mxu0 0.0
  %2558 = vmatpush1.msra.mxu0 0.0
  %2559 = vmatprep.subr.mxu0 0.0
  %2560 = vmatpush1.msra.mxu0 0.0
  %2561 = vmatprep.subr.mxu0 0.0
  %2562 = vmatpush1.msra.mxu0 0.0
  %2563 = vmatprep.subr.mxu0 0.0
  %2564 = vmatpush1.msra.mxu0 0.0
  %2565 = vmatprep.mubr.f32.mxu0 0.0
  %2566 = vmatmul.mubr.f32.gmra.mrb[0].mxu0 %v2451
  %v2567 = vpop.f32.mrb[0].mxu0
  %v2568 = vadd.f32 0.0, %v2567
  %v2569 = vpop.f32.mrb[0].mxu0
  %2570 = vmatprep.mubr.f32.mxu0 0.0
  %2571 = vmatmul.mubr.f32.gmra.mrb[0].mxu0 %v2454
  %v2572 = vpop.f32.mrb[0].mxu0
  %v2573 = vadd.f32 0.0, %v2572
  %v2574 = vpop.f32.mrb[0].mxu0
  %2575 = vmatprep.mubr.f32.mxu0 0.0
  %2576 = vmatmul.mubr.f32.gmra.mrb[0].mxu0 %v2457
  %v2577 = vpop.f32.mrb[0].mxu0
  %v2578 = vadd.f32 0.0, %v2577
  %v2579 = vpop.f32.mrb[0].mxu0
  %2580 = vmatprep.mubr.f32.mxu0 0.0
  %2581 = vmatmul.mubr.f32.gmra.mrb[0].mxu0 %v2460
  %v2582 = vpop.f32.mrb[0].mxu0
  %v2583 = vadd.f32 0.0, %v2582
  %v2584 = vpop.f32.mrb[0].mxu0
  %2585 = vmatprep.mubr.f32.mxu0 0.0
  %2586 = vmatmul.mubr.f32.gmra.mrb[0].mxu0 %v2463
  %v2587 = vpop.f32.mrb[0].mxu0
  %v2588 = vadd.f32 0.0, %v2587
  %v2589 = vpop.f32.mrb[0].mxu0
  %2590 = vmatprep.mubr.f32.mxu0 0.0
  %2591 = vmatmul.mubr.f32.gmra.mrb[0].mxu0 %v2466
  %v2592 = vpop.f32.mrb[0].mxu0
  %v2593 = vadd.f32 0.0, %v2592
  %v2594 = vpop.f32.mrb[0].mxu0
  %2595 = vmatprep.mubr.f32.mxu0 0.0
  %2596 = vmatmul.mubr.f32.gmra.mrb[0].mxu0 %v2469
  %v2597 = vpop.f32.mrb[0].mxu0
  %v2598 = vadd.f32 0.0, %v2597
  %v2599 = vpop.f32.mrb[0].mxu0
  %2600 = vmatprep.mubr.f32.mxu0 0.0
  %2601 = vmatmul.mubr.f32.gmra.mrb[0].mxu0 %v2472
  %v2602 = vpop.f32.mrb[0].mxu0
  %v2603 = vadd.f32 0.0, %v2602
  %v2604 = vpop.f32.mrb[0].mxu0
  %2605 = vmatprep.mubr.f32.mxu0 0.0
  %2606 = vmatmul.mubr.f32.gmra.mrb[0].mxu0 %v2475
  %v2607 = vpop.f32.mrb[0].mxu0
  %v2608 = vadd.f32 0.0, %v2607
  %v2609 = vpop.f32.mrb[0].mxu0
  %2610 = vmatprep.mubr.f32.mxu0 0.0
  %2611 = vmatmul.mubr.f32.gmra.mrb[0].mxu0 %v2478
  %v2612 = vpop.f32.mrb[0].mxu0
  %v2613 = vadd.f32 0.0, %v2612
  %v2614 = vpop.f32.mrb[0].mxu0
  %2615 = vmatprep.mubr.f32.mxu0 0.0
  %2616 = vmatmul.mubr.f32.gmra.mrb[0].mxu0 %v2481
  %v2617 = vpop.f32.mrb[0].mxu0
  %v2618 = vadd.f32 0.0, %v2617
  %v2619 = vpop.f32.mrb[0].mxu0
  %2620 = vmatprep.mubr.f32.mxu0 0.0
  %2621 = vmatmul.mubr.f32.gmra.mrb[0].mxu0 %v2484
  %v2622 = vpop.f32.mrb[0].mxu0
  %v2623 = vadd.f32 0.0, %v2622
  %v2624 = vpop.f32.mrb[0].mxu0
  %2625 = vmatprep.mubr.f32.mxu0 0.0
  %2626 = vmatmul.mubr.f32.gmra.mrb[0].mxu0 %v2487
  %v2627 = vpop.f32.mrb[0].mxu0
  %v2628 = vadd.f32 0.0, %v2627
  %v2629 = vpop.f32.mrb[0].mxu0
  %2630 = vmatprep.mubr.f32.mxu0 0.0
  %2631 = vmatmul.mubr.f32.gmra.mrb[0].mxu0 %v2490
  %v2632 = vpop.f32.mrb[0].mxu0
  %v2633 = vadd.f32 0.0, %v2632
  %v2634 = vpop.f32.mrb[0].mxu0
  %2635 = vmatprep.mubr.f32.mxu0 0.0
  %2636 = vmatmul.mubr.f32.gmra.mrb[0].mxu0 %v2493
  %v2637 = vpop.f32.mrb[0].mxu0
  %v2638 = vadd.f32 0.0, %v2637
  %v2639 = vpop.f32.mrb[0].mxu0
  %2640 = vmatprep.mubr.f32.mxu0 0.0
  %2641 = vmatmul.mubr.f32.gmra.mrb[0].mxu0 %v2496
  %v2642 = vpop.f32.mrb[0].mxu0
  %v2643 = vadd.f32 0.0, %v2642
  %v2644 = vpop.f32.mrb[0].mxu0
  %2645 = vdwg.mxu0
  %v2646 = vadd.f32 %v2205, %v2568
  %v2647 = vadd.f32 %v2206, %v2573
  %v2648 = vadd.f32 %v2207, %v2578
  %v2649 = vadd.f32 %v2208, %v2583
  %v2650 = vadd.f32 %v2209, %v2588
  %v2651 = vadd.f32 %v2210, %v2593
  %v2652 = vadd.f32 %v2211, %v2598
  %v2653 = vadd.f32 %v2212, %v2603
  %v2654 = vadd.f32 %v2213, %v2608
  %v2655 = vadd.f32 %v2214, %v2613
  %v2656 = vadd.f32 %v2215, %v2618
  %v2657 = vadd.f32 %v2216, %v2623
  %v2658 = vadd.f32 %v2217, %v2628
  %v2659 = vadd.f32 %v2218, %v2633
  %v2660 = vadd.f32 %v2219, %v2638
  %v2661 = vadd.f32 %v2220, %v2643
  %s2662 = scalar_lea.vmem %s0, 768
  %v2663 = vld [vmem:[%s2662] sm:$0xff]
  %v2664 = vld [vmem:[%s2662 + $0x8] sm:$0xff]
  %v2665 = vld [vmem:[%s2662 + $0x10] sm:$0xff]
  %v2666 = vld [vmem:[%s2662 + $0x18] sm:$0xff]
  %v2667 = vld [vmem:[%s2662 + $0x20] sm:$0xff]
  %v2668 = vld [vmem:[%s2662 + $0x28] sm:$0xff]
  %v2669 = vld [vmem:[%s2662 + $0x30] sm:$0xff]
  %v2670 = vld [vmem:[%s2662 + $0x38] sm:$0xff]
  %v2671 = vld [vmem:[%s2662 + $0x40] sm:$0xff]
  %v2672 = vld [vmem:[%s2662 + $0x48] sm:$0xff]
  %v2673 = vld [vmem:[%s2662 + $0x50] sm:$0xff]
  %v2674 = vld [vmem:[%s2662 + $0x58] sm:$0xff]
  %v2675 = vld [vmem:[%s2662 + $0x60] sm:$0xff]
  %v2676 = vld [vmem:[%s2662 + $0x68] sm:$0xff]
  %v2677 = vld [vmem:[%s2662 + $0x70] sm:$0xff]
  %v2678 = vld [vmem:[%s2662 + $0x78] sm:$0xff]
  %v2680 = vsel %vm59, %v2663, 0
  %v2683 = vsel %vm59, %v2664, 0
  %v2686 = vsel %vm59, %v2665, 0
  %v2689 = vsel %vm59, %v2666, 0
  %v2692 = vsel %vm59, %v2667, 0
  %v2695 = vsel %vm59, %v2668, 0
  %v2698 = vsel %vm59, %v2669, 0
  %v2701 = vsel %vm59, %v2670, 0
  %v2704 = vsel %vm59, %v2671, 0
  %v2707 = vsel %vm59, %v2672, 0
  %v2710 = vsel %vm59, %v2673, 0
  %v2713 = vsel %vm59, %v2674, 0
  %v2716 = vsel %vm59, %v2675, 0
  %v2719 = vsel %vm59, %v2676, 0
  %v2722 = vsel %vm59, %v2677, 0
  %v2725 = vsel %vm59, %v2678, 0
  %2727 = vmatprep.subr.mxu0 0.0
  %2728 = vmatpush1.msra.mxu0 %v32
  %2729 = vmatprep.subr.mxu0 0.0
  %2730 = vmatpush1.msra.mxu0 %v33
  %2731 = vmatprep.subr.mxu0 0.0
  %2732 = vmatpush1.msra.mxu0 %v34
  %2733 = vmatprep.subr.mxu0 0.0
  %2734 = vmatpush1.msra.mxu0 %v110
  %2735 = vmatprep.subr.mxu0 0.0
  %2736 = vmatpush1.msra.mxu0 0.0
  %2737 = vmatprep.subr.mxu0 0.0
  %2738 = vmatpush1.msra.mxu0 0.0
  %2739 = vmatprep.subr.mxu0 0.0
  %2740 = vmatpush1.msra.mxu0 0.0
  %2741 = vmatprep.subr.mxu0 0.0
  %2742 = vmatpush1.msra.mxu0 0.0
  %2743 = vmatprep.subr.mxu0 0.0
  %2744 = vmatpush1.msra.mxu0 0.0
  %2745 = vmatprep.subr.mxu0 0.0
  %2746 = vmatpush1.msra.mxu0 0.0
  %2747 = vmatprep.subr.mxu0 0.0
  %2748 = vmatpush1.msra.mxu0 0.0
  %2749 = vmatprep.subr.mxu0 0.0
  %2750 = vmatpush1.msra.mxu0 0.0
  %2751 = vmatprep.subr.mxu0 0.0
  %2752 = vmatpush1.msra.mxu0 0.0
  %2753 = vmatprep.subr.mxu0 0.0
  %2754 = vmatpush1.msra.mxu0 0.0
  %2755 = vmatprep.subr.mxu0 0.0
  %2756 = vmatpush1.msra.mxu0 0.0
  %2757 = vmatprep.subr.mxu0 0.0
  %2758 = vmatpush1.msra.mxu0 0.0
  %2759 = vmatprep.subr.mxu0 0.0
  %2760 = vmatpush1.msra.mxu0 0.0
  %2761 = vmatprep.subr.mxu0 0.0
  %2762 = vmatpush1.msra.mxu0 0.0
  %2763 = vmatprep.subr.mxu0 0.0
  %2764 = vmatpush1.msra.mxu0 0.0
  %2765 = vmatprep.subr.mxu0 0.0
  %2766 = vmatpush1.msra.mxu0 0.0
  %2767 = vmatprep.subr.mxu0 0.0
  %2768 = vmatpush1.msra.mxu0 0.0
  %2769 = vmatprep.subr.mxu0 0.0
  %2770 = vmatpush1.msra.mxu0 0.0
  %2771 = vmatprep.subr.mxu0 0.0
  %2772 = vmatpush1.msra.mxu0 0.0
  %2773 = vmatprep.subr.mxu0 0.0
  %2774 = vmatpush1.msra.mxu0 0.0
  %2775 = vmatprep.subr.mxu0 0.0
  %2776 = vmatpush1.msra.mxu0 0.0
  %2777 = vmatprep.subr.mxu0 0.0
  %2778 = vmatpush1.msra.mxu0 0.0
  %2779 = vmatprep.subr.mxu0 0.0
  %2780 = vmatpush1.msra.mxu0 0.0
  %2781 = vmatprep.subr.mxu0 0.0
  %2782 = vmatpush1.msra.mxu0 0.0
  %2783 = vmatprep.subr.mxu0 0.0
  %2784 = vmatpush1.msra.mxu0 0.0
  %2785 = vmatprep.subr.mxu0 0.0
  %2786 = vmatpush1.msra.mxu0 0.0
  %2787 = vmatprep.subr.mxu0 0.0
  %2788 = vmatpush1.msra.mxu0 0.0
  %2789 = vmatprep.subr.mxu0 0.0
  %2790 = vmatpush1.msra.mxu0 0.0
  %2791 = vmatprep.mubr.f32.mxu0 0.0
  %2792 = vmatmul.mubr.f32.gmra.mrb[0].mxu0 %v2680
  %v2793 = vpop.f32.mrb[0].mxu0
  %v2794 = vadd.f32 %v57, %v2793
  %v2795 = vpop.f32.mrb[0].mxu0
  %2796 = vmatprep.mubr.f32.mxu0 0.0
  %2797 = vmatmul.mubr.f32.gmra.mrb[0].mxu0 %v2683
  %v2798 = vpop.f32.mrb[0].mxu0
  %v2799 = vadd.f32 %v57, %v2798
  %v2800 = vpop.f32.mrb[0].mxu0
  %2801 = vmatprep.mubr.f32.mxu0 0.0
  %2802 = vmatmul.mubr.f32.gmra.mrb[0].mxu0 %v2686
  %v2803 = vpop.f32.mrb[0].mxu0
  %v2804 = vadd.f32 %v57, %v2803
  %v2805 = vpop.f32.mrb[0].mxu0
  %2806 = vmatprep.mubr.f32.mxu0 0.0
  %2807 = vmatmul.mubr.f32.gmra.mrb[0].mxu0 %v2689
  %v2808 = vpop.f32.mrb[0].mxu0
  %v2809 = vadd.f32 %v57, %v2808
  %v2810 = vpop.f32.mrb[0].mxu0
  %2811 = vmatprep.mubr.f32.mxu0 0.0
  %2812 = vmatmul.mubr.f32.gmra.mrb[0].mxu0 %v2692
  %v2813 = vpop.f32.mrb[0].mxu0
  %v2814 = vadd.f32 %v57, %v2813
  %v2815 = vpop.f32.mrb[0].mxu0
  %2816 = vmatprep.mubr.f32.mxu0 0.0
  %2817 = vmatmul.mubr.f32.gmra.mrb[0].mxu0 %v2695
  %v2818 = vpop.f32.mrb[0].mxu0
  %v2819 = vadd.f32 %v57, %v2818
  %v2820 = vpop.f32.mrb[0].mxu0
  %2821 = vmatprep.mubr.f32.mxu0 0.0
  %2822 = vmatmul.mubr.f32.gmra.mrb[0].mxu0 %v2698
  %v2823 = vpop.f32.mrb[0].mxu0
  %v2824 = vadd.f32 %v57, %v2823
  %v2825 = vpop.f32.mrb[0].mxu0
  %2826 = vmatprep.mubr.f32.mxu0 0.0
  %2827 = vmatmul.mubr.f32.gmra.mrb[0].mxu0 %v2701
  %v2828 = vpop.f32.mrb[0].mxu0
  %v2829 = vadd.f32 %v57, %v2828
  %v2830 = vpop.f32.mrb[0].mxu0
  %2831 = vmatprep.mubr.f32.mxu0 0.0
  %2832 = vmatmul.mubr.f32.gmra.mrb[0].mxu0 %v2704
  %v2833 = vpop.f32.mrb[0].mxu0
  %v2834 = vadd.f32 %v57, %v2833
  %v2835 = vpop.f32.mrb[0].mxu0
  %2836 = vmatprep.mubr.f32.mxu0 0.0
  %2837 = vmatmul.mubr.f32.gmra.mrb[0].mxu0 %v2707
  %v2838 = vpop.f32.mrb[0].mxu0
  %v2839 = vadd.f32 %v57, %v2838
  %v2840 = vpop.f32.mrb[0].mxu0
  %2841 = vmatprep.mubr.f32.mxu0 0.0
  %2842 = vmatmul.mubr.f32.gmra.mrb[0].mxu0 %v2710
  %v2843 = vpop.f32.mrb[0].mxu0
  %v2844 = vadd.f32 %v57, %v2843
  %v2845 = vpop.f32.mrb[0].mxu0
  %2846 = vmatprep.mubr.f32.mxu0 0.0
  %2847 = vmatmul.mubr.f32.gmra.mrb[0].mxu0 %v2713
  %v2848 = vpop.f32.mrb[0].mxu0
  %v2849 = vadd.f32 %v57, %v2848
  %v2850 = vpop.f32.mrb[0].mxu0
  %2851 = vmatprep.mubr.f32.mxu0 0.0
  %2852 = vmatmul.mubr.f32.gmra.mrb[0].mxu0 %v2716
  %v2853 = vpop.f32.mrb[0].mxu0
  %v2854 = vadd.f32 %v57, %v2853
  %v2855 = vpop.f32.mrb[0].mxu0
  %2856 = vmatprep.mubr.f32.mxu0 0.0
  %2857 = vmatmul.mubr.f32.gmra.mrb[0].mxu0 %v2719
  %v2858 = vpop.f32.mrb[0].mxu0
  %v2859 = vadd.f32 %v57, %v2858
  %v2860 = vpop.f32.mrb[0].mxu0
  %2861 = vmatprep.mubr.f32.mxu0 0.0
  %2862 = vmatmul.mubr.f32.gmra.mrb[0].mxu0 %v2722
  %v2863 = vpop.f32.mrb[0].mxu0
  %v2864 = vadd.f32 %v57, %v2863
  %v2865 = vpop.f32.mrb[0].mxu0
  %2866 = vmatprep.mubr.f32.mxu0 0.0
  %2867 = vmatmul.mubr.f32.gmra.mrb[0].mxu0 %v2725
  %v2868 = vpop.f32.mrb[0].mxu0
  %v2869 = vadd.f32 %v57, %v2868
  %v2870 = vpop.f32.mrb[0].mxu0
  %2871 = vdwg.mxu0
  %v2872 = vmax.f32 %v2794, 0.0
  %v2873 = vmax.f32 %v2799, 0.0
  %v2874 = vmax.f32 %v2804, 0.0
  %v2875 = vmax.f32 %v2809, 0.0
  %v2876 = vmax.f32 %v2814, 0.0
  %v2877 = vmax.f32 %v2819, 0.0
  %v2878 = vmax.f32 %v2824, 0.0
  %v2879 = vmax.f32 %v2829, 0.0
  %v2880 = vmax.f32 %v2834, 0.0
  %v2881 = vmax.f32 %v2839, 0.0
  %v2882 = vmax.f32 %v2844, 0.0
  %v2883 = vmax.f32 %v2849, 0.0
  %v2884 = vmax.f32 %v2854, 0.0
  %v2885 = vmax.f32 %v2859, 0.0
  %v2886 = vmax.f32 %v2864, 0.0
  %v2887 = vmax.f32 %v2869, 0.0
  %s2888 = scalar_lea.vmem %s3, 96
  %v2889 = vld [vmem:[%s2888] sm:$0xff]
  %v2890 = vld [vmem:[%s2888 + $0x8] sm:$0x3]
  %v2892 = vsel %vm504, %v2872, 0
  %v2895 = vsel %vm504, %v2873, 0
  %v2898 = vsel %vm504, %v2874, 0
  %v2901 = vsel %vm504, %v2875, 0
  %v2904 = vsel %vm504, %v2876, 0
  %v2907 = vsel %vm504, %v2877, 0
  %v2910 = vsel %vm504, %v2878, 0
  %v2913 = vsel %vm504, %v2879, 0
  %v2916 = vsel %vm504, %v2880, 0
  %v2919 = vsel %vm504, %v2881, 0
  %v2922 = vsel %vm504, %v2882, 0
  %v2925 = vsel %vm504, %v2883, 0
  %v2928 = vsel %vm504, %v2884, 0
  %v2931 = vsel %vm504, %v2885, 0
  %v2934 = vsel %vm504, %v2886, 0
  %v2937 = vsel %vm504, %v2887, 0
  %v2940 = vsel %vm553, %v2890, 0
  %2942 = vmatprep.subr.mxu0 0.0
  %2943 = vmatpush1.msra.mxu0 %v2889
  %2944 = vmatprep.subr.mxu0 0.0
  %2945 = vmatpush1.msra.mxu0 %v2940
  %2946 = vmatprep.subr.mxu0 0.0
  %2947 = vmatpush1.msra.mxu0 0.0
  %2948 = vmatprep.subr.mxu0 0.0
  %2949 = vmatpush1.msra.mxu0 0.0
  %2950 = vmatprep.subr.mxu0 0.0
  %2951 = vmatpush1.msra.mxu0 0.0
  %2952 = vmatprep.subr.mxu0 0.0
  %2953 = vmatpush1.msra.mxu0 0.0
  %2954 = vmatprep.subr.mxu0 0.0
  %2955 = vmatpush1.msra.mxu0 0.0
  %2956 = vmatprep.subr.mxu0 0.0
  %2957 = vmatpush1.msra.mxu0 0.0
  %2958 = vmatprep.subr.mxu0 0.0
  %2959 = vmatpush1.msra.mxu0 0.0
  %2960 = vmatprep.subr.mxu0 0.0
  %2961 = vmatpush1.msra.mxu0 0.0
  %2962 = vmatprep.subr.mxu0 0.0
  %2963 = vmatpush1.msra.mxu0 0.0
  %2964 = vmatprep.subr.mxu0 0.0
  %2965 = vmatpush1.msra.mxu0 0.0
  %2966 = vmatprep.subr.mxu0 0.0
  %2967 = vmatpush1.msra.mxu0 0.0
  %2968 = vmatprep.subr.mxu0 0.0
  %2969 = vmatpush1.msra.mxu0 0.0
  %2970 = vmatprep.subr.mxu0 0.0
  %2971 = vmatpush1.msra.mxu0 0.0
  %2972 = vmatprep.subr.mxu0 0.0
  %2973 = vmatpush1.msra.mxu0 0.0
  %2974 = vmatprep.subr.mxu0 0.0
  %2975 = vmatpush1.msra.mxu0 0.0
  %2976 = vmatprep.subr.mxu0 0.0
  %2977 = vmatpush1.msra.mxu0 0.0
  %2978 = vmatprep.subr.mxu0 0.0
  %2979 = vmatpush1.msra.mxu0 0.0
  %2980 = vmatprep.subr.mxu0 0.0
  %2981 = vmatpush1.msra.mxu0 0.0
  %2982 = vmatprep.subr.mxu0 0.0
  %2983 = vmatpush1.msra.mxu0 0.0
  %2984 = vmatprep.subr.mxu0 0.0
  %2985 = vmatpush1.msra.mxu0 0.0
  %2986 = vmatprep.subr.mxu0 0.0
  %2987 = vmatpush1.msra.mxu0 0.0
  %2988 = vmatprep.subr.mxu0 0.0
  %2989 = vmatpush1.msra.mxu0 0.0
  %2990 = vmatprep.subr.mxu0 0.0
  %2991 = vmatpush1.msra.mxu0 0.0
  %2992 = vmatprep.subr.mxu0 0.0
  %2993 = vmatpush1.msra.mxu0 0.0
  %2994 = vmatprep.subr.mxu0 0.0
  %2995 = vmatpush1.msra.mxu0 0.0
  %2996 = vmatprep.subr.mxu0 0.0
  %2997 = vmatpush1.msra.mxu0 0.0
  %2998 = vmatprep.subr.mxu0 0.0
  %2999 = vmatpush1.msra.mxu0 0.0
  %3000 = vmatprep.subr.mxu0 0.0
  %3001 = vmatpush1.msra.mxu0 0.0
  %3002 = vmatprep.subr.mxu0 0.0
  %3003 = vmatpush1.msra.mxu0 0.0
  %3004 = vmatprep.subr.mxu0 0.0
  %3005 = vmatpush1.msra.mxu0 0.0
  %3006 = vmatprep.mubr.f32.mxu0 0.0
  %3007 = vmatmul.mubr.f32.gmra.mrb[0].mxu0 %v2892
  %v3008 = vpop.f32.mrb[0].mxu0
  %v3009 = vadd.f32 0.0, %v3008
  %v3010 = vpop.f32.mrb[0].mxu0
  %3011 = vmatprep.mubr.f32.mxu0 0.0
  %3012 = vmatmul.mubr.f32.gmra.mrb[0].mxu0 %v2895
  %v3013 = vpop.f32.mrb[0].mxu0
  %v3014 = vadd.f32 0.0, %v3013
  %v3015 = vpop.f32.mrb[0].mxu0
  %3016 = vmatprep.mubr.f32.mxu0 0.0
  %3017 = vmatmul.mubr.f32.gmra.mrb[0].mxu0 %v2898
  %v3018 = vpop.f32.mrb[0].mxu0
  %v3019 = vadd.f32 0.0, %v3018
  %v3020 = vpop.f32.mrb[0].mxu0
  %3021 = vmatprep.mubr.f32.mxu0 0.0
  %3022 = vmatmul.mubr.f32.gmra.mrb[0].mxu0 %v2901
  %v3023 = vpop.f32.mrb[0].mxu0
  %v3024 = vadd.f32 0.0, %v3023
  %v3025 = vpop.f32.mrb[0].mxu0
  %3026 = vmatprep.mubr.f32.mxu0 0.0
  %3027 = vmatmul.mubr.f32.gmra.mrb[0].mxu0 %v2904
  %v3028 = vpop.f32.mrb[0].mxu0
  %v3029 = vadd.f32 0.0, %v3028
  %v3030 = vpop.f32.mrb[0].mxu0
  %3031 = vmatprep.mubr.f32.mxu0 0.0
  %3032 = vmatmul.mubr.f32.gmra.mrb[0].mxu0 %v2907
  %v3033 = vpop.f32.mrb[0].mxu0
  %v3034 = vadd.f32 0.0, %v3033
  %v3035 = vpop.f32.mrb[0].mxu0
  %3036 = vmatprep.mubr.f32.mxu0 0.0
  %3037 = vmatmul.mubr.f32.gmra.mrb[0].mxu0 %v2910
  %v3038 = vpop.f32.mrb[0].mxu0
  %v3039 = vadd.f32 0.0, %v3038
  %v3040 = vpop.f32.mrb[0].mxu0
  %3041 = vmatprep.mubr.f32.mxu0 0.0
  %3042 = vmatmul.mubr.f32.gmra.mrb[0].mxu0 %v2913
  %v3043 = vpop.f32.mrb[0].mxu0
  %v3044 = vadd.f32 0.0, %v3043
  %v3045 = vpop.f32.mrb[0].mxu0
  %3046 = vmatprep.mubr.f32.mxu0 0.0
  %3047 = vmatmul.mubr.f32.gmra.mrb[0].mxu0 %v2916
  %v3048 = vpop.f32.mrb[0].mxu0
  %v3049 = vadd.f32 0.0, %v3048
  %v3050 = vpop.f32.mrb[0].mxu0
  %3051 = vmatprep.mubr.f32.mxu0 0.0
  %3052 = vmatmul.mubr.f32.gmra.mrb[0].mxu0 %v2919
  %v3053 = vpop.f32.mrb[0].mxu0
  %v3054 = vadd.f32 0.0, %v3053
  %v3055 = vpop.f32.mrb[0].mxu0
  %3056 = vmatprep.mubr.f32.mxu0 0.0
  %3057 = vmatmul.mubr.f32.gmra.mrb[0].mxu0 %v2922
  %v3058 = vpop.f32.mrb[0].mxu0
  %v3059 = vadd.f32 0.0, %v3058
  %v3060 = vpop.f32.mrb[0].mxu0
  %3061 = vmatprep.mubr.f32.mxu0 0.0
  %3062 = vmatmul.mubr.f32.gmra.mrb[0].mxu0 %v2925
  %v3063 = vpop.f32.mrb[0].mxu0
  %v3064 = vadd.f32 0.0, %v3063
  %v3065 = vpop.f32.mrb[0].mxu0
  %3066 = vmatprep.mubr.f32.mxu0 0.0
  %3067 = vmatmul.mubr.f32.gmra.mrb[0].mxu0 %v2928
  %v3068 = vpop.f32.mrb[0].mxu0
  %v3069 = vadd.f32 0.0, %v3068
  %v3070 = vpop.f32.mrb[0].mxu0
  %3071 = vmatprep.mubr.f32.mxu0 0.0
  %3072 = vmatmul.mubr.f32.gmra.mrb[0].mxu0 %v2931
  %v3073 = vpop.f32.mrb[0].mxu0
  %v3074 = vadd.f32 0.0, %v3073
  %v3075 = vpop.f32.mrb[0].mxu0
  %3076 = vmatprep.mubr.f32.mxu0 0.0
  %3077 = vmatmul.mubr.f32.gmra.mrb[0].mxu0 %v2934
  %v3078 = vpop.f32.mrb[0].mxu0
  %v3079 = vadd.f32 0.0, %v3078
  %v3080 = vpop.f32.mrb[0].mxu0
  %3081 = vmatprep.mubr.f32.mxu0 0.0
  %3082 = vmatmul.mubr.f32.gmra.mrb[0].mxu0 %v2937
  %v3083 = vpop.f32.mrb[0].mxu0
  %v3084 = vadd.f32 0.0, %v3083
  %v3085 = vpop.f32.mrb[0].mxu0
  %3086 = vdwg.mxu0
  %v3087 = vadd.f32 %v2646, %v3009
  %v3088 = vadd.f32 %v2647, %v3014
  %v3089 = vadd.f32 %v2648, %v3019
  %v3090 = vadd.f32 %v2649, %v3024
  %v3091 = vadd.f32 %v2650, %v3029
  %v3092 = vadd.f32 %v2651, %v3034
  %v3093 = vadd.f32 %v2652, %v3039
  %v3094 = vadd.f32 %v2653, %v3044
  %v3095 = vadd.f32 %v2654, %v3049
  %v3096 = vadd.f32 %v2655, %v3054
  %v3097 = vadd.f32 %v2656, %v3059
  %v3098 = vadd.f32 %v2657, %v3064
  %v3099 = vadd.f32 %v2658, %v3069
  %v3100 = vadd.f32 %v2659, %v3074
  %v3101 = vadd.f32 %v2660, %v3079
  %v3102 = vadd.f32 %v2661, %v3084
  %s3103 = scalar_lea.vmem %s0, 896
  %v3104 = vld [vmem:[%s3103] sm:$0xff]
  %v3105 = vld [vmem:[%s3103 + $0x8] sm:$0xff]
  %v3106 = vld [vmem:[%s3103 + $0x10] sm:$0xff]
  %v3107 = vld [vmem:[%s3103 + $0x18] sm:$0xff]
  %v3108 = vld [vmem:[%s3103 + $0x20] sm:$0xff]
  %v3109 = vld [vmem:[%s3103 + $0x28] sm:$0xff]
  %v3110 = vld [vmem:[%s3103 + $0x30] sm:$0xff]
  %v3111 = vld [vmem:[%s3103 + $0x38] sm:$0xff]
  %v3112 = vld [vmem:[%s3103 + $0x40] sm:$0xff]
  %v3113 = vld [vmem:[%s3103 + $0x48] sm:$0xff]
  %v3114 = vld [vmem:[%s3103 + $0x50] sm:$0xff]
  %v3115 = vld [vmem:[%s3103 + $0x58] sm:$0xff]
  %v3116 = vld [vmem:[%s3103 + $0x60] sm:$0xff]
  %v3117 = vld [vmem:[%s3103 + $0x68] sm:$0xff]
  %v3118 = vld [vmem:[%s3103 + $0x70] sm:$0xff]
  %v3119 = vld [vmem:[%s3103 + $0x78] sm:$0xff]
  %v3121 = vsel %vm59, %v3104, 0
  %v3124 = vsel %vm59, %v3105, 0
  %v3127 = vsel %vm59, %v3106, 0
  %v3130 = vsel %vm59, %v3107, 0
  %v3133 = vsel %vm59, %v3108, 0
  %v3136 = vsel %vm59, %v3109, 0
  %v3139 = vsel %vm59, %v3110, 0
  %v3142 = vsel %vm59, %v3111, 0
  %v3145 = vsel %vm59, %v3112, 0
  %v3148 = vsel %vm59, %v3113, 0
  %v3151 = vsel %vm59, %v3114, 0
  %v3154 = vsel %vm59, %v3115, 0
  %v3157 = vsel %vm59, %v3116, 0
  %v3160 = vsel %vm59, %v3117, 0
  %v3163 = vsel %vm59, %v3118, 0
  %v3166 = vsel %vm59, %v3119, 0
  %3168 = vmatprep.subr.mxu0 0.0
  %3169 = vmatpush1.msra.mxu0 %v32
  %3170 = vmatprep.subr.mxu0 0.0
  %3171 = vmatpush1.msra.mxu0 %v33
  %3172 = vmatprep.subr.mxu0 0.0
  %3173 = vmatpush1.msra.mxu0 %v34
  %3174 = vmatprep.subr.mxu0 0.0
  %3175 = vmatpush1.msra.mxu0 %v110
  %3176 = vmatprep.subr.mxu0 0.0
  %3177 = vmatpush1.msra.mxu0 0.0
  %3178 = vmatprep.subr.mxu0 0.0
  %3179 = vmatpush1.msra.mxu0 0.0
  %3180 = vmatprep.subr.mxu0 0.0
  %3181 = vmatpush1.msra.mxu0 0.0
  %3182 = vmatprep.subr.mxu0 0.0
  %3183 = vmatpush1.msra.mxu0 0.0
  %3184 = vmatprep.subr.mxu0 0.0
  %3185 = vmatpush1.msra.mxu0 0.0
  %3186 = vmatprep.subr.mxu0 0.0
  %3187 = vmatpush1.msra.mxu0 0.0
  %3188 = vmatprep.subr.mxu0 0.0
  %3189 = vmatpush1.msra.mxu0 0.0
  %3190 = vmatprep.subr.mxu0 0.0
  %3191 = vmatpush1.msra.mxu0 0.0
  %3192 = vmatprep.subr.mxu0 0.0
  %3193 = vmatpush1.msra.mxu0 0.0
  %3194 = vmatprep.subr.mxu0 0.0
  %3195 = vmatpush1.msra.mxu0 0.0
  %3196 = vmatprep.subr.mxu0 0.0
  %3197 = vmatpush1.msra.mxu0 0.0
  %3198 = vmatprep.subr.mxu0 0.0
  %3199 = vmatpush1.msra.mxu0 0.0
  %3200 = vmatprep.subr.mxu0 0.0
  %3201 = vmatpush1.msra.mxu0 0.0
  %3202 = vmatprep.subr.mxu0 0.0
  %3203 = vmatpush1.msra.mxu0 0.0
  %3204 = vmatprep.subr.mxu0 0.0
  %3205 = vmatpush1.msra.mxu0 0.0
  %3206 = vmatprep.subr.mxu0 0.0
  %3207 = vmatpush1.msra.mxu0 0.0
  %3208 = vmatprep.subr.mxu0 0.0
  %3209 = vmatpush1.msra.mxu0 0.0
  %3210 = vmatprep.subr.mxu0 0.0
  %3211 = vmatpush1.msra.mxu0 0.0
  %3212 = vmatprep.subr.mxu0 0.0
  %3213 = vmatpush1.msra.mxu0 0.0
  %3214 = vmatprep.subr.mxu0 0.0
  %3215 = vmatpush1.msra.mxu0 0.0
  %3216 = vmatprep.subr.mxu0 0.0
  %3217 = vmatpush1.msra.mxu0 0.0
  %3218 = vmatprep.subr.mxu0 0.0
  %3219 = vmatpush1.msra.mxu0 0.0
  %3220 = vmatprep.subr.mxu0 0.0
  %3221 = vmatpush1.msra.mxu0 0.0
  %3222 = vmatprep.subr.mxu0 0.0
  %3223 = vmatpush1.msra.mxu0 0.0
  %3224 = vmatprep.subr.mxu0 0.0
  %3225 = vmatpush1.msra.mxu0 0.0
  %3226 = vmatprep.subr.mxu0 0.0
  %3227 = vmatpush1.msra.mxu0 0.0
  %3228 = vmatprep.subr.mxu0 0.0
  %3229 = vmatpush1.msra.mxu0 0.0
  %3230 = vmatprep.subr.mxu0 0.0
  %3231 = vmatpush1.msra.mxu0 0.0
  %3232 = vmatprep.mubr.f32.mxu0 0.0
  %3233 = vmatmul.mubr.f32.gmra.mrb[0].mxu0 %v3121
  %v3234 = vpop.f32.mrb[0].mxu0
  %v3235 = vadd.f32 %v57, %v3234
  %v3236 = vpop.f32.mrb[0].mxu0
  %3237 = vmatprep.mubr.f32.mxu0 0.0
  %3238 = vmatmul.mubr.f32.gmra.mrb[0].mxu0 %v3124
  %v3239 = vpop.f32.mrb[0].mxu0
  %v3240 = vadd.f32 %v57, %v3239
  %v3241 = vpop.f32.mrb[0].mxu0
  %3242 = vmatprep.mubr.f32.mxu0 0.0
  %3243 = vmatmul.mubr.f32.gmra.mrb[0].mxu0 %v3127
  %v3244 = vpop.f32.mrb[0].mxu0
  %v3245 = vadd.f32 %v57, %v3244
  %v3246 = vpop.f32.mrb[0].mxu0
  %3247 = vmatprep.mubr.f32.mxu0 0.0
  %3248 = vmatmul.mubr.f32.gmra.mrb[0].mxu0 %v3130
  %v3249 = vpop.f32.mrb[0].mxu0
  %v3250 = vadd.f32 %v57, %v3249
  %v3251 = vpop.f32.mrb[0].mxu0
  %3252 = vmatprep.mubr.f32.mxu0 0.0
  %3253 = vmatmul.mubr.f32.gmra.mrb[0].mxu0 %v3133
  %v3254 = vpop.f32.mrb[0].mxu0
  %v3255 = vadd.f32 %v57, %v3254
  %v3256 = vpop.f32.mrb[0].mxu0
  %3257 = vmatprep.mubr.f32.mxu0 0.0
  %3258 = vmatmul.mubr.f32.gmra.mrb[0].mxu0 %v3136
  %v3259 = vpop.f32.mrb[0].mxu0
  %v3260 = vadd.f32 %v57, %v3259
  %v3261 = vpop.f32.mrb[0].mxu0
  %3262 = vmatprep.mubr.f32.mxu0 0.0
  %3263 = vmatmul.mubr.f32.gmra.mrb[0].mxu0 %v3139
  %v3264 = vpop.f32.mrb[0].mxu0
  %v3265 = vadd.f32 %v57, %v3264
  %v3266 = vpop.f32.mrb[0].mxu0
  %3267 = vmatprep.mubr.f32.mxu0 0.0
  %3268 = vmatmul.mubr.f32.gmra.mrb[0].mxu0 %v3142
  %v3269 = vpop.f32.mrb[0].mxu0
  %v3270 = vadd.f32 %v57, %v3269
  %v3271 = vpop.f32.mrb[0].mxu0
  %3272 = vmatprep.mubr.f32.mxu0 0.0
  %3273 = vmatmul.mubr.f32.gmra.mrb[0].mxu0 %v3145
  %v3274 = vpop.f32.mrb[0].mxu0
  %v3275 = vadd.f32 %v57, %v3274
  %v3276 = vpop.f32.mrb[0].mxu0
  %3277 = vmatprep.mubr.f32.mxu0 0.0
  %3278 = vmatmul.mubr.f32.gmra.mrb[0].mxu0 %v3148
  %v3279 = vpop.f32.mrb[0].mxu0
  %v3280 = vadd.f32 %v57, %v3279
  %v3281 = vpop.f32.mrb[0].mxu0
  %3282 = vmatprep.mubr.f32.mxu0 0.0
  %3283 = vmatmul.mubr.f32.gmra.mrb[0].mxu0 %v3151
  %v3284 = vpop.f32.mrb[0].mxu0
  %v3285 = vadd.f32 %v57, %v3284
  %v3286 = vpop.f32.mrb[0].mxu0
  %3287 = vmatprep.mubr.f32.mxu0 0.0
  %3288 = vmatmul.mubr.f32.gmra.mrb[0].mxu0 %v3154
  %v3289 = vpop.f32.mrb[0].mxu0
  %v3290 = vadd.f32 %v57, %v3289
  %v3291 = vpop.f32.mrb[0].mxu0
  %3292 = vmatprep.mubr.f32.mxu0 0.0
  %3293 = vmatmul.mubr.f32.gmra.mrb[0].mxu0 %v3157
  %v3294 = vpop.f32.mrb[0].mxu0
  %v3295 = vadd.f32 %v57, %v3294
  %v3296 = vpop.f32.mrb[0].mxu0
  %3297 = vmatprep.mubr.f32.mxu0 0.0
  %3298 = vmatmul.mubr.f32.gmra.mrb[0].mxu0 %v3160
  %v3299 = vpop.f32.mrb[0].mxu0
  %v3300 = vadd.f32 %v57, %v3299
  %v3301 = vpop.f32.mrb[0].mxu0
  %3302 = vmatprep.mubr.f32.mxu0 0.0
  %3303 = vmatmul.mubr.f32.gmra.mrb[0].mxu0 %v3163
  %v3304 = vpop.f32.mrb[0].mxu0
  %v3305 = vadd.f32 %v57, %v3304
  %v3306 = vpop.f32.mrb[0].mxu0
  %3307 = vmatprep.mubr.f32.mxu0 0.0
  %3308 = vmatmul.mubr.f32.gmra.mrb[0].mxu0 %v3166
  %v3309 = vpop.f32.mrb[0].mxu0
  %v3310 = vadd.f32 %v57, %v3309
  %v3311 = vpop.f32.mrb[0].mxu0
  %3312 = vdwg.mxu0
  %v3313 = vmax.f32 %v3235, 0.0
  %v3314 = vmax.f32 %v3240, 0.0
  %v3315 = vmax.f32 %v3245, 0.0
  %v3316 = vmax.f32 %v3250, 0.0
  %v3317 = vmax.f32 %v3255, 0.0
  %v3318 = vmax.f32 %v3260, 0.0
  %v3319 = vmax.f32 %v3265, 0.0
  %v3320 = vmax.f32 %v3270, 0.0
  %v3321 = vmax.f32 %v3275, 0.0
  %v3322 = vmax.f32 %v3280, 0.0
  %v3323 = vmax.f32 %v3285, 0.0
  %v3324 = vmax.f32 %v3290, 0.0
  %v3325 = vmax.f32 %v3295, 0.0
  %v3326 = vmax.f32 %v3300, 0.0
  %v3327 = vmax.f32 %v3305, 0.0
  %v3328 = vmax.f32 %v3310, 0.0
  %s3329 = scalar_lea.vmem %s3, 112
  %v3330 = vld [vmem:[%s3329] sm:$0xff]
  %v3331 = vld [vmem:[%s3329 + $0x8] sm:$0x3]
  %v3333 = vsel %vm504, %v3313, 0
  %v3336 = vsel %vm504, %v3314, 0
  %v3339 = vsel %vm504, %v3315, 0
  %v3342 = vsel %vm504, %v3316, 0
  %v3345 = vsel %vm504, %v3317, 0
  %v3348 = vsel %vm504, %v3318, 0
  %v3351 = vsel %vm504, %v3319, 0
  %v3354 = vsel %vm504, %v3320, 0
  %v3357 = vsel %vm504, %v3321, 0
  %v3360 = vsel %vm504, %v3322, 0
  %v3363 = vsel %vm504, %v3323, 0
  %v3366 = vsel %vm504, %v3324, 0
  %v3369 = vsel %vm504, %v3325, 0
  %v3372 = vsel %vm504, %v3326, 0
  %v3375 = vsel %vm504, %v3327, 0
  %v3378 = vsel %vm504, %v3328, 0
  %v3381 = vsel %vm553, %v3331, 0
  %3383 = vmatprep.subr.mxu0 0.0
  %3384 = vmatpush1.msra.mxu0 %v3330
  %3385 = vmatprep.subr.mxu0 0.0
  %3386 = vmatpush1.msra.mxu0 %v3381
  %3387 = vmatprep.subr.mxu0 0.0
  %3388 = vmatpush1.msra.mxu0 0.0
  %3389 = vmatprep.subr.mxu0 0.0
  %3390 = vmatpush1.msra.mxu0 0.0
  %3391 = vmatprep.subr.mxu0 0.0
  %3392 = vmatpush1.msra.mxu0 0.0
  %3393 = vmatprep.subr.mxu0 0.0
  %3394 = vmatpush1.msra.mxu0 0.0
  %3395 = vmatprep.subr.mxu0 0.0
  %3396 = vmatpush1.msra.mxu0 0.0
  %3397 = vmatprep.subr.mxu0 0.0
  %3398 = vmatpush1.msra.mxu0 0.0
  %3399 = vmatprep.subr.mxu0 0.0
  %3400 = vmatpush1.msra.mxu0 0.0
  %3401 = vmatprep.subr.mxu0 0.0
  %3402 = vmatpush1.msra.mxu0 0.0
  %3403 = vmatprep.subr.mxu0 0.0
  %3404 = vmatpush1.msra.mxu0 0.0
  %3405 = vmatprep.subr.mxu0 0.0
  %3406 = vmatpush1.msra.mxu0 0.0
  %3407 = vmatprep.subr.mxu0 0.0
  %3408 = vmatpush1.msra.mxu0 0.0
  %3409 = vmatprep.subr.mxu0 0.0
  %3410 = vmatpush1.msra.mxu0 0.0
  %3411 = vmatprep.subr.mxu0 0.0
  %3412 = vmatpush1.msra.mxu0 0.0
  %3413 = vmatprep.subr.mxu0 0.0
  %3414 = vmatpush1.msra.mxu0 0.0
  %3415 = vmatprep.subr.mxu0 0.0
  %3416 = vmatpush1.msra.mxu0 0.0
  %3417 = vmatprep.subr.mxu0 0.0
  %3418 = vmatpush1.msra.mxu0 0.0
  %3419 = vmatprep.subr.mxu0 0.0
  %3420 = vmatpush1.msra.mxu0 0.0
  %3421 = vmatprep.subr.mxu0 0.0
  %3422 = vmatpush1.msra.mxu0 0.0
  %3423 = vmatprep.subr.mxu0 0.0
  %3424 = vmatpush1.msra.mxu0 0.0
  %3425 = vmatprep.subr.mxu0 0.0
  %3426 = vmatpush1.msra.mxu0 0.0
  %3427 = vmatprep.subr.mxu0 0.0
  %3428 = vmatpush1.msra.mxu0 0.0
  %3429 = vmatprep.subr.mxu0 0.0
  %3430 = vmatpush1.msra.mxu0 0.0
  %3431 = vmatprep.subr.mxu0 0.0
  %3432 = vmatpush1.msra.mxu0 0.0
  %3433 = vmatprep.subr.mxu0 0.0
  %3434 = vmatpush1.msra.mxu0 0.0
  %3435 = vmatprep.subr.mxu0 0.0
  %3436 = vmatpush1.msra.mxu0 0.0
  %3437 = vmatprep.subr.mxu0 0.0
  %3438 = vmatpush1.msra.mxu0 0.0
  %3439 = vmatprep.subr.mxu0 0.0
  %3440 = vmatpush1.msra.mxu0 0.0
  %3441 = vmatprep.subr.mxu0 0.0
  %3442 = vmatpush1.msra.mxu0 0.0
  %3443 = vmatprep.subr.mxu0 0.0
  %3444 = vmatpush1.msra.mxu0 0.0
  %3445 = vmatprep.subr.mxu0 0.0
  %3446 = vmatpush1.msra.mxu0 0.0
  %3447 = vmatprep.mubr.f32.mxu0 0.0
  %3448 = vmatmul.mubr.f32.gmra.mrb[0].mxu0 %v3333
  %v3449 = vpop.f32.mrb[0].mxu0
  %v3450 = vadd.f32 0.0, %v3449
  %v3451 = vpop.f32.mrb[0].mxu0
  %3452 = vmatprep.mubr.f32.mxu0 0.0
  %3453 = vmatmul.mubr.f32.gmra.mrb[0].mxu0 %v3336
  %v3454 = vpop.f32.mrb[0].mxu0
  %v3455 = vadd.f32 0.0, %v3454
  %v3456 = vpop.f32.mrb[0].mxu0
  %3457 = vmatprep.mubr.f32.mxu0 0.0
  %3458 = vmatmul.mubr.f32.gmra.mrb[0].mxu0 %v3339
  %v3459 = vpop.f32.mrb[0].mxu0
  %v3460 = vadd.f32 0.0, %v3459
  %v3461 = vpop.f32.mrb[0].mxu0
  %3462 = vmatprep.mubr.f32.mxu0 0.0
  %3463 = vmatmul.mubr.f32.gmra.mrb[0].mxu0 %v3342
  %v3464 = vpop.f32.mrb[0].mxu0
  %v3465 = vadd.f32 0.0, %v3464
  %v3466 = vpop.f32.mrb[0].mxu0
  %3467 = vmatprep.mubr.f32.mxu0 0.0
  %3468 = vmatmul.mubr.f32.gmra.mrb[0].mxu0 %v3345
  %v3469 = vpop.f32.mrb[0].mxu0
  %v3470 = vadd.f32 0.0, %v3469
  %v3471 = vpop.f32.mrb[0].mxu0
  %3472 = vmatprep.mubr.f32.mxu0 0.0
  %3473 = vmatmul.mubr.f32.gmra.mrb[0].mxu0 %v3348
  %v3474 = vpop.f32.mrb[0].mxu0
  %v3475 = vadd.f32 0.0, %v3474
  %v3476 = vpop.f32.mrb[0].mxu0
  %3477 = vmatprep.mubr.f32.mxu0 0.0
  %3478 = vmatmul.mubr.f32.gmra.mrb[0].mxu0 %v3351
  %v3479 = vpop.f32.mrb[0].mxu0
  %v3480 = vadd.f32 0.0, %v3479
  %v3481 = vpop.f32.mrb[0].mxu0
  %3482 = vmatprep.mubr.f32.mxu0 0.0
  %3483 = vmatmul.mubr.f32.gmra.mrb[0].mxu0 %v3354
  %v3484 = vpop.f32.mrb[0].mxu0
  %v3485 = vadd.f32 0.0, %v3484
  %v3486 = vpop.f32.mrb[0].mxu0
  %3487 = vmatprep.mubr.f32.mxu0 0.0
  %3488 = vmatmul.mubr.f32.gmra.mrb[0].mxu0 %v3357
  %v3489 = vpop.f32.mrb[0].mxu0
  %v3490 = vadd.f32 0.0, %v3489
  %v3491 = vpop.f32.mrb[0].mxu0
  %3492 = vmatprep.mubr.f32.mxu0 0.0
  %3493 = vmatmul.mubr.f32.gmra.mrb[0].mxu0 %v3360
  %v3494 = vpop.f32.mrb[0].mxu0
  %v3495 = vadd.f32 0.0, %v3494
  %v3496 = vpop.f32.mrb[0].mxu0
  %3497 = vmatprep.mubr.f32.mxu0 0.0
  %3498 = vmatmul.mubr.f32.gmra.mrb[0].mxu0 %v3363
  %v3499 = vpop.f32.mrb[0].mxu0
  %v3500 = vadd.f32 0.0, %v3499
  %v3501 = vpop.f32.mrb[0].mxu0
  %3502 = vmatprep.mubr.f32.mxu0 0.0
  %3503 = vmatmul.mubr.f32.gmra.mrb[0].mxu0 %v3366
  %v3504 = vpop.f32.mrb[0].mxu0
  %v3505 = vadd.f32 0.0, %v3504
  %v3506 = vpop.f32.mrb[0].mxu0
  %3507 = vmatprep.mubr.f32.mxu0 0.0
  %3508 = vmatmul.mubr.f32.gmra.mrb[0].mxu0 %v3369
  %v3509 = vpop.f32.mrb[0].mxu0
  %v3510 = vadd.f32 0.0, %v3509
  %v3511 = vpop.f32.mrb[0].mxu0
  %3512 = vmatprep.mubr.f32.mxu0 0.0
  %3513 = vmatmul.mubr.f32.gmra.mrb[0].mxu0 %v3372
  %v3514 = vpop.f32.mrb[0].mxu0
  %v3515 = vadd.f32 0.0, %v3514
  %v3516 = vpop.f32.mrb[0].mxu0
  %3517 = vmatprep.mubr.f32.mxu0 0.0
  %3518 = vmatmul.mubr.f32.gmra.mrb[0].mxu0 %v3375
  %v3519 = vpop.f32.mrb[0].mxu0
  %v3520 = vadd.f32 0.0, %v3519
  %v3521 = vpop.f32.mrb[0].mxu0
  %3522 = vmatprep.mubr.f32.mxu0 0.0
  %3523 = vmatmul.mubr.f32.gmra.mrb[0].mxu0 %v3378
  %v3524 = vpop.f32.mrb[0].mxu0
  %v3525 = vadd.f32 0.0, %v3524
  %v3526 = vpop.f32.mrb[0].mxu0
  %3527 = vdwg.mxu0
  %v3528 = vadd.f32 %v3087, %v3450
  %v3529 = vadd.f32 %v3088, %v3455
  %v3530 = vadd.f32 %v3089, %v3460
  %v3531 = vadd.f32 %v3090, %v3465
  %v3532 = vadd.f32 %v3091, %v3470
  %v3533 = vadd.f32 %v3092, %v3475
  %v3534 = vadd.f32 %v3093, %v3480
  %v3535 = vadd.f32 %v3094, %v3485
  %v3536 = vadd.f32 %v3095, %v3490
  %v3537 = vadd.f32 %v3096, %v3495
  %v3538 = vadd.f32 %v3097, %v3500
  %v3539 = vadd.f32 %v3098, %v3505
  %v3540 = vadd.f32 %v3099, %v3510
  %v3541 = vadd.f32 %v3100, %v3515
  %v3542 = vadd.f32 %v3101, %v3520
  %v3543 = vadd.f32 %v3102, %v3525
  %s3544 = scalar_lea.vmem %s0, 1024
  %v3545 = vld [vmem:[%s3544] sm:$0xff]
  %v3546 = vld [vmem:[%s3544 + $0x8] sm:$0xff]
  %v3547 = vld [vmem:[%s3544 + $0x10] sm:$0xff]
  %v3548 = vld [vmem:[%s3544 + $0x18] sm:$0xff]
  %v3549 = vld [vmem:[%s3544 + $0x20] sm:$0xff]
  %v3550 = vld [vmem:[%s3544 + $0x28] sm:$0xff]
  %v3551 = vld [vmem:[%s3544 + $0x30] sm:$0xff]
  %v3552 = vld [vmem:[%s3544 + $0x38] sm:$0xff]
  %v3553 = vld [vmem:[%s3544 + $0x40] sm:$0xff]
  %v3554 = vld [vmem:[%s3544 + $0x48] sm:$0xff]
  %v3555 = vld [vmem:[%s3544 + $0x50] sm:$0xff]
  %v3556 = vld [vmem:[%s3544 + $0x58] sm:$0xff]
  %v3557 = vld [vmem:[%s3544 + $0x60] sm:$0xff]
  %v3558 = vld [vmem:[%s3544 + $0x68] sm:$0xff]
  %v3559 = vld [vmem:[%s3544 + $0x70] sm:$0xff]
  %v3560 = vld [vmem:[%s3544 + $0x78] sm:$0xff]
  %v3562 = vsel %vm59, %v3545, 0
  %v3565 = vsel %vm59, %v3546, 0
  %v3568 = vsel %vm59, %v3547, 0
  %v3571 = vsel %vm59, %v3548, 0
  %v3574 = vsel %vm59, %v3549, 0
  %v3577 = vsel %vm59, %v3550, 0
  %v3580 = vsel %vm59, %v3551, 0
  %v3583 = vsel %vm59, %v3552, 0
  %v3586 = vsel %vm59, %v3553, 0
  %v3589 = vsel %vm59, %v3554, 0
  %v3592 = vsel %vm59, %v3555, 0
  %v3595 = vsel %vm59, %v3556, 0
  %v3598 = vsel %vm59, %v3557, 0
  %v3601 = vsel %vm59, %v3558, 0
  %v3604 = vsel %vm59, %v3559, 0
  %v3607 = vsel %vm59, %v3560, 0
  %3609 = vmatprep.subr.mxu0 0.0
  %3610 = vmatpush1.msra.mxu0 %v32
  %3611 = vmatprep.subr.mxu0 0.0
  %3612 = vmatpush1.msra.mxu0 %v33
  %3613 = vmatprep.subr.mxu0 0.0
  %3614 = vmatpush1.msra.mxu0 %v34
  %3615 = vmatprep.subr.mxu0 0.0
  %3616 = vmatpush1.msra.mxu0 %v110
  %3617 = vmatprep.subr.mxu0 0.0
  %3618 = vmatpush1.msra.mxu0 0.0
  %3619 = vmatprep.subr.mxu0 0.0
  %3620 = vmatpush1.msra.mxu0 0.0
  %3621 = vmatprep.subr.mxu0 0.0
  %3622 = vmatpush1.msra.mxu0 0.0
  %3623 = vmatprep.subr.mxu0 0.0
  %3624 = vmatpush1.msra.mxu0 0.0
  %3625 = vmatprep.subr.mxu0 0.0
  %3626 = vmatpush1.msra.mxu0 0.0
  %3627 = vmatprep.subr.mxu0 0.0
  %3628 = vmatpush1.msra.mxu0 0.0
  %3629 = vmatprep.subr.mxu0 0.0
  %3630 = vmatpush1.msra.mxu0 0.0
  %3631 = vmatprep.subr.mxu0 0.0
  %3632 = vmatpush1.msra.mxu0 0.0
  %3633 = vmatprep.subr.mxu0 0.0
  %3634 = vmatpush1.msra.mxu0 0.0
  %3635 = vmatprep.subr.mxu0 0.0
  %3636 = vmatpush1.msra.mxu0 0.0
  %3637 = vmatprep.subr.mxu0 0.0
  %3638 = vmatpush1.msra.mxu0 0.0
  %3639 = vmatprep.subr.mxu0 0.0
  %3640 = vmatpush1.msra.mxu0 0.0
  %3641 = vmatprep.subr.mxu0 0.0
  %3642 = vmatpush1.msra.mxu0 0.0
  %3643 = vmatprep.subr.mxu0 0.0
  %3644 = vmatpush1.msra.mxu0 0.0
  %3645 = vmatprep.subr.mxu0 0.0
  %3646 = vmatpush1.msra.mxu0 0.0
  %3647 = vmatprep.subr.mxu0 0.0
  %3648 = vmatpush1.msra.mxu0 0.0
  %3649 = vmatprep.subr.mxu0 0.0
  %3650 = vmatpush1.msra.mxu0 0.0
  %3651 = vmatprep.subr.mxu0 0.0
  %3652 = vmatpush1.msra.mxu0 0.0
  %3653 = vmatprep.subr.mxu0 0.0
  %3654 = vmatpush1.msra.mxu0 0.0
  %3655 = vmatprep.subr.mxu0 0.0
  %3656 = vmatpush1.msra.mxu0 0.0
  %3657 = vmatprep.subr.mxu0 0.0
  %3658 = vmatpush1.msra.mxu0 0.0
  %3659 = vmatprep.subr.mxu0 0.0
  %3660 = vmatpush1.msra.mxu0 0.0
  %3661 = vmatprep.subr.mxu0 0.0
  %3662 = vmatpush1.msra.mxu0 0.0
  %3663 = vmatprep.subr.mxu0 0.0
  %3664 = vmatpush1.msra.mxu0 0.0
  %3665 = vmatprep.subr.mxu0 0.0
  %3666 = vmatpush1.msra.mxu0 0.0
  %3667 = vmatprep.subr.mxu0 0.0
  %3668 = vmatpush1.msra.mxu0 0.0
  %3669 = vmatprep.subr.mxu0 0.0
  %3670 = vmatpush1.msra.mxu0 0.0
  %3671 = vmatprep.subr.mxu0 0.0
  %3672 = vmatpush1.msra.mxu0 0.0
  %3673 = vmatprep.mubr.f32.mxu0 0.0
  %3674 = vmatmul.mubr.f32.gmra.mrb[0].mxu0 %v3562
  %v3675 = vpop.f32.mrb[0].mxu0
  %v3676 = vadd.f32 %v57, %v3675
  %v3677 = vpop.f32.mrb[0].mxu0
  %3678 = vmatprep.mubr.f32.mxu0 0.0
  %3679 = vmatmul.mubr.f32.gmra.mrb[0].mxu0 %v3565
  %v3680 = vpop.f32.mrb[0].mxu0
  %v3681 = vadd.f32 %v57, %v3680
  %v3682 = vpop.f32.mrb[0].mxu0
  %3683 = vmatprep.mubr.f32.mxu0 0.0
  %3684 = vmatmul.mubr.f32.gmra.mrb[0].mxu0 %v3568
  %v3685 = vpop.f32.mrb[0].mxu0
  %v3686 = vadd.f32 %v57, %v3685
  %v3687 = vpop.f32.mrb[0].mxu0
  %3688 = vmatprep.mubr.f32.mxu0 0.0
  %3689 = vmatmul.mubr.f32.gmra.mrb[0].mxu0 %v3571
  %v3690 = vpop.f32.mrb[0].mxu0
  %v3691 = vadd.f32 %v57, %v3690
  %v3692 = vpop.f32.mrb[0].mxu0
  %3693 = vmatprep.mubr.f32.mxu0 0.0
  %3694 = vmatmul.mubr.f32.gmra.mrb[0].mxu0 %v3574
  %v3695 = vpop.f32.mrb[0].mxu0
  %v3696 = vadd.f32 %v57, %v3695
  %v3697 = vpop.f32.mrb[0].mxu0
  %3698 = vmatprep.mubr.f32.mxu0 0.0
  %3699 = vmatmul.mubr.f32.gmra.mrb[0].mxu0 %v3577
  %v3700 = vpop.f32.mrb[0].mxu0
  %v3701 = vadd.f32 %v57, %v3700
  %v3702 = vpop.f32.mrb[0].mxu0
  %3703 = vmatprep.mubr.f32.mxu0 0.0
  %3704 = vmatmul.mubr.f32.gmra.mrb[0].mxu0 %v3580
  %v3705 = vpop.f32.mrb[0].mxu0
  %v3706 = vadd.f32 %v57, %v3705
  %v3707 = vpop.f32.mrb[0].mxu0
  %3708 = vmatprep.mubr.f32.mxu0 0.0
  %3709 = vmatmul.mubr.f32.gmra.mrb[0].mxu0 %v3583
  %v3710 = vpop.f32.mrb[0].mxu0
  %v3711 = vadd.f32 %v57, %v3710
  %v3712 = vpop.f32.mrb[0].mxu0
  %3713 = vmatprep.mubr.f32.mxu0 0.0
  %3714 = vmatmul.mubr.f32.gmra.mrb[0].mxu0 %v3586
  %v3715 = vpop.f32.mrb[0].mxu0
  %v3716 = vadd.f32 %v57, %v3715
  %v3717 = vpop.f32.mrb[0].mxu0
  %3718 = vmatprep.mubr.f32.mxu0 0.0
  %3719 = vmatmul.mubr.f32.gmra.mrb[0].mxu0 %v3589
  %v3720 = vpop.f32.mrb[0].mxu0
  %v3721 = vadd.f32 %v57, %v3720
  %v3722 = vpop.f32.mrb[0].mxu0
  %3723 = vmatprep.mubr.f32.mxu0 0.0
  %3724 = vmatmul.mubr.f32.gmra.mrb[0].mxu0 %v3592
  %v3725 = vpop.f32.mrb[0].mxu0
  %v3726 = vadd.f32 %v57, %v3725
  %v3727 = vpop.f32.mrb[0].mxu0
  %3728 = vmatprep.mubr.f32.mxu0 0.0
  %3729 = vmatmul.mubr.f32.gmra.mrb[0].mxu0 %v3595
  %v3730 = vpop.f32.mrb[0].mxu0
  %v3731 = vadd.f32 %v57, %v3730
  %v3732 = vpop.f32.mrb[0].mxu0
  %3733 = vmatprep.mubr.f32.mxu0 0.0
  %3734 = vmatmul.mubr.f32.gmra.mrb[0].mxu0 %v3598
  %v3735 = vpop.f32.mrb[0].mxu0
  %v3736 = vadd.f32 %v57, %v3735
  %v3737 = vpop.f32.mrb[0].mxu0
  %3738 = vmatprep.mubr.f32.mxu0 0.0
  %3739 = vmatmul.mubr.f32.gmra.mrb[0].mxu0 %v3601
  %v3740 = vpop.f32.mrb[0].mxu0
  %v3741 = vadd.f32 %v57, %v3740
  %v3742 = vpop.f32.mrb[0].mxu0
  %3743 = vmatprep.mubr.f32.mxu0 0.0
  %3744 = vmatmul.mubr.f32.gmra.mrb[0].mxu0 %v3604
  %v3745 = vpop.f32.mrb[0].mxu0
  %v3746 = vadd.f32 %v57, %v3745
  %v3747 = vpop.f32.mrb[0].mxu0
  %3748 = vmatprep.mubr.f32.mxu0 0.0
  %3749 = vmatmul.mubr.f32.gmra.mrb[0].mxu0 %v3607
  %v3750 = vpop.f32.mrb[0].mxu0
  %v3751 = vadd.f32 %v57, %v3750
  %v3752 = vpop.f32.mrb[0].mxu0
  %3753 = vdwg.mxu0
  %v3754 = vmax.f32 %v3676, 0.0
  %v3755 = vmax.f32 %v3681, 0.0
  %v3756 = vmax.f32 %v3686, 0.0
  %v3757 = vmax.f32 %v3691, 0.0
  %v3758 = vmax.f32 %v3696, 0.0
  %v3759 = vmax.f32 %v3701, 0.0
  %v3760 = vmax.f32 %v3706, 0.0
  %v3761 = vmax.f32 %v3711, 0.0
  %v3762 = vmax.f32 %v3716, 0.0
  %v3763 = vmax.f32 %v3721, 0.0
  %v3764 = vmax.f32 %v3726, 0.0
  %v3765 = vmax.f32 %v3731, 0.0
  %v3766 = vmax.f32 %v3736, 0.0
  %v3767 = vmax.f32 %v3741, 0.0
  %v3768 = vmax.f32 %v3746, 0.0
  %v3769 = vmax.f32 %v3751, 0.0
  %s3770 = scalar_lea.vmem %s3, 128
  %v3771 = vld [vmem:[%s3770] sm:$0xff]
  %v3772 = vld [vmem:[%s3770 + $0x8] sm:$0x3]
  %v3774 = vsel %vm504, %v3754, 0
  %v3777 = vsel %vm504, %v3755, 0
  %v3780 = vsel %vm504, %v3756, 0
  %v3783 = vsel %vm504, %v3757, 0
  %v3786 = vsel %vm504, %v3758, 0
  %v3789 = vsel %vm504, %v3759, 0
  %v3792 = vsel %vm504, %v3760, 0
  %v3795 = vsel %vm504, %v3761, 0
  %v3798 = vsel %vm504, %v3762, 0
  %v3801 = vsel %vm504, %v3763, 0
  %v3804 = vsel %vm504, %v3764, 0
  %v3807 = vsel %vm504, %v3765, 0
  %v3810 = vsel %vm504, %v3766, 0
  %v3813 = vsel %vm504, %v3767, 0
  %v3816 = vsel %vm504, %v3768, 0
  %v3819 = vsel %vm504, %v3769, 0
  %v3822 = vsel %vm553, %v3772, 0
  %3824 = vmatprep.subr.mxu0 0.0
  %3825 = vmatpush1.msra.mxu0 %v3771
  %3826 = vmatprep.subr.mxu0 0.0
  %3827 = vmatpush1.msra.mxu0 %v3822
  %3828 = vmatprep.subr.mxu0 0.0
  %3829 = vmatpush1.msra.mxu0 0.0
  %3830 = vmatprep.subr.mxu0 0.0
  %3831 = vmatpush1.msra.mxu0 0.0
  %3832 = vmatprep.subr.mxu0 0.0
  %3833 = vmatpush1.msra.mxu0 0.0
  %3834 = vmatprep.subr.mxu0 0.0
  %3835 = vmatpush1.msra.mxu0 0.0
  %3836 = vmatprep.subr.mxu0 0.0
  %3837 = vmatpush1.msra.mxu0 0.0
  %3838 = vmatprep.subr.mxu0 0.0
  %3839 = vmatpush1.msra.mxu0 0.0
  %3840 = vmatprep.subr.mxu0 0.0
  %3841 = vmatpush1.msra.mxu0 0.0
  %3842 = vmatprep.subr.mxu0 0.0
  %3843 = vmatpush1.msra.mxu0 0.0
  %3844 = vmatprep.subr.mxu0 0.0
  %3845 = vmatpush1.msra.mxu0 0.0
  %3846 = vmatprep.subr.mxu0 0.0
  %3847 = vmatpush1.msra.mxu0 0.0
  %3848 = vmatprep.subr.mxu0 0.0
  %3849 = vmatpush1.msra.mxu0 0.0
  %3850 = vmatprep.subr.mxu0 0.0
  %3851 = vmatpush1.msra.mxu0 0.0
  %3852 = vmatprep.subr.mxu0 0.0
  %3853 = vmatpush1.msra.mxu0 0.0
  %3854 = vmatprep.subr.mxu0 0.0
  %3855 = vmatpush1.msra.mxu0 0.0
  %3856 = vmatprep.subr.mxu0 0.0
  %3857 = vmatpush1.msra.mxu0 0.0
  %3858 = vmatprep.subr.mxu0 0.0
  %3859 = vmatpush1.msra.mxu0 0.0
  %3860 = vmatprep.subr.mxu0 0.0
  %3861 = vmatpush1.msra.mxu0 0.0
  %3862 = vmatprep.subr.mxu0 0.0
  %3863 = vmatpush1.msra.mxu0 0.0
  %3864 = vmatprep.subr.mxu0 0.0
  %3865 = vmatpush1.msra.mxu0 0.0
  %3866 = vmatprep.subr.mxu0 0.0
  %3867 = vmatpush1.msra.mxu0 0.0
  %3868 = vmatprep.subr.mxu0 0.0
  %3869 = vmatpush1.msra.mxu0 0.0
  %3870 = vmatprep.subr.mxu0 0.0
  %3871 = vmatpush1.msra.mxu0 0.0
  %3872 = vmatprep.subr.mxu0 0.0
  %3873 = vmatpush1.msra.mxu0 0.0
  %3874 = vmatprep.subr.mxu0 0.0
  %3875 = vmatpush1.msra.mxu0 0.0
  %3876 = vmatprep.subr.mxu0 0.0
  %3877 = vmatpush1.msra.mxu0 0.0
  %3878 = vmatprep.subr.mxu0 0.0
  %3879 = vmatpush1.msra.mxu0 0.0
  %3880 = vmatprep.subr.mxu0 0.0
  %3881 = vmatpush1.msra.mxu0 0.0
  %3882 = vmatprep.subr.mxu0 0.0
  %3883 = vmatpush1.msra.mxu0 0.0
  %3884 = vmatprep.subr.mxu0 0.0
  %3885 = vmatpush1.msra.mxu0 0.0
  %3886 = vmatprep.subr.mxu0 0.0
  %3887 = vmatpush1.msra.mxu0 0.0
  %3888 = vmatprep.mubr.f32.mxu0 0.0
  %3889 = vmatmul.mubr.f32.gmra.mrb[0].mxu0 %v3774
  %v3890 = vpop.f32.mrb[0].mxu0
  %v3891 = vadd.f32 0.0, %v3890
  %v3892 = vpop.f32.mrb[0].mxu0
  %3893 = vmatprep.mubr.f32.mxu0 0.0
  %3894 = vmatmul.mubr.f32.gmra.mrb[0].mxu0 %v3777
  %v3895 = vpop.f32.mrb[0].mxu0
  %v3896 = vadd.f32 0.0, %v3895
  %v3897 = vpop.f32.mrb[0].mxu0
  %3898 = vmatprep.mubr.f32.mxu0 0.0
  %3899 = vmatmul.mubr.f32.gmra.mrb[0].mxu0 %v3780
  %v3900 = vpop.f32.mrb[0].mxu0
  %v3901 = vadd.f32 0.0, %v3900
  %v3902 = vpop.f32.mrb[0].mxu0
  %3903 = vmatprep.mubr.f32.mxu0 0.0
  %3904 = vmatmul.mubr.f32.gmra.mrb[0].mxu0 %v3783
  %v3905 = vpop.f32.mrb[0].mxu0
  %v3906 = vadd.f32 0.0, %v3905
  %v3907 = vpop.f32.mrb[0].mxu0
  %3908 = vmatprep.mubr.f32.mxu0 0.0
  %3909 = vmatmul.mubr.f32.gmra.mrb[0].mxu0 %v3786
  %v3910 = vpop.f32.mrb[0].mxu0
  %v3911 = vadd.f32 0.0, %v3910
  %v3912 = vpop.f32.mrb[0].mxu0
  %3913 = vmatprep.mubr.f32.mxu0 0.0
  %3914 = vmatmul.mubr.f32.gmra.mrb[0].mxu0 %v3789
  %v3915 = vpop.f32.mrb[0].mxu0
  %v3916 = vadd.f32 0.0, %v3915
  %v3917 = vpop.f32.mrb[0].mxu0
  %3918 = vmatprep.mubr.f32.mxu0 0.0
  %3919 = vmatmul.mubr.f32.gmra.mrb[0].mxu0 %v3792
  %v3920 = vpop.f32.mrb[0].mxu0
  %v3921 = vadd.f32 0.0, %v3920
  %v3922 = vpop.f32.mrb[0].mxu0
  %3923 = vmatprep.mubr.f32.mxu0 0.0
  %3924 = vmatmul.mubr.f32.gmra.mrb[0].mxu0 %v3795
  %v3925 = vpop.f32.mrb[0].mxu0
  %v3926 = vadd.f32 0.0, %v3925
  %v3927 = vpop.f32.mrb[0].mxu0
  %3928 = vmatprep.mubr.f32.mxu0 0.0
  %3929 = vmatmul.mubr.f32.gmra.mrb[0].mxu0 %v3798
  %v3930 = vpop.f32.mrb[0].mxu0
  %v3931 = vadd.f32 0.0, %v3930
  %v3932 = vpop.f32.mrb[0].mxu0
  %3933 = vmatprep.mubr.f32.mxu0 0.0
  %3934 = vmatmul.mubr.f32.gmra.mrb[0].mxu0 %v3801
  %v3935 = vpop.f32.mrb[0].mxu0
  %v3936 = vadd.f32 0.0, %v3935
  %v3937 = vpop.f32.mrb[0].mxu0
  %3938 = vmatprep.mubr.f32.mxu0 0.0
  %3939 = vmatmul.mubr.f32.gmra.mrb[0].mxu0 %v3804
  %v3940 = vpop.f32.mrb[0].mxu0
  %v3941 = vadd.f32 0.0, %v3940
  %v3942 = vpop.f32.mrb[0].mxu0
  %3943 = vmatprep.mubr.f32.mxu0 0.0
  %3944 = vmatmul.mubr.f32.gmra.mrb[0].mxu0 %v3807
  %v3945 = vpop.f32.mrb[0].mxu0
  %v3946 = vadd.f32 0.0, %v3945
  %v3947 = vpop.f32.mrb[0].mxu0
  %3948 = vmatprep.mubr.f32.mxu0 0.0
  %3949 = vmatmul.mubr.f32.gmra.mrb[0].mxu0 %v3810
  %v3950 = vpop.f32.mrb[0].mxu0
  %v3951 = vadd.f32 0.0, %v3950
  %v3952 = vpop.f32.mrb[0].mxu0
  %3953 = vmatprep.mubr.f32.mxu0 0.0
  %3954 = vmatmul.mubr.f32.gmra.mrb[0].mxu0 %v3813
  %v3955 = vpop.f32.mrb[0].mxu0
  %v3956 = vadd.f32 0.0, %v3955
  %v3957 = vpop.f32.mrb[0].mxu0
  %3958 = vmatprep.mubr.f32.mxu0 0.0
  %3959 = vmatmul.mubr.f32.gmra.mrb[0].mxu0 %v3816
  %v3960 = vpop.f32.mrb[0].mxu0
  %v3961 = vadd.f32 0.0, %v3960
  %v3962 = vpop.f32.mrb[0].mxu0
  %3963 = vmatprep.mubr.f32.mxu0 0.0
  %3964 = vmatmul.mubr.f32.gmra.mrb[0].mxu0 %v3819
  %v3965 = vpop.f32.mrb[0].mxu0
  %v3966 = vadd.f32 0.0, %v3965
  %v3967 = vpop.f32.mrb[0].mxu0
  %3968 = vdwg.mxu0
  %v3969 = vadd.f32 %v3528, %v3891
  %v3970 = vadd.f32 %v3529, %v3896
  %v3971 = vadd.f32 %v3530, %v3901
  %v3972 = vadd.f32 %v3531, %v3906
  %v3973 = vadd.f32 %v3532, %v3911
  %v3974 = vadd.f32 %v3533, %v3916
  %v3975 = vadd.f32 %v3534, %v3921
  %v3976 = vadd.f32 %v3535, %v3926
  %v3977 = vadd.f32 %v3536, %v3931
  %v3978 = vadd.f32 %v3537, %v3936
  %v3979 = vadd.f32 %v3538, %v3941
  %v3980 = vadd.f32 %v3539, %v3946
  %v3981 = vadd.f32 %v3540, %v3951
  %v3982 = vadd.f32 %v3541, %v3956
  %v3983 = vadd.f32 %v3542, %v3961
  %v3984 = vadd.f32 %v3543, %v3966
  %s3985 = scalar_lea.vmem %s0, 1152
  %v3986 = vld [vmem:[%s3985] sm:$0xff]
  %v3987 = vld [vmem:[%s3985 + $0x8] sm:$0xff]
  %v3988 = vld [vmem:[%s3985 + $0x10] sm:$0xff]
  %v3989 = vld [vmem:[%s3985 + $0x18] sm:$0xff]
  %v3990 = vld [vmem:[%s3985 + $0x20] sm:$0xff]
  %v3991 = vld [vmem:[%s3985 + $0x28] sm:$0xff]
  %v3992 = vld [vmem:[%s3985 + $0x30] sm:$0xff]
  %v3993 = vld [vmem:[%s3985 + $0x38] sm:$0xff]
  %v3994 = vld [vmem:[%s3985 + $0x40] sm:$0xff]
  %v3995 = vld [vmem:[%s3985 + $0x48] sm:$0xff]
  %v3996 = vld [vmem:[%s3985 + $0x50] sm:$0xff]
  %v3997 = vld [vmem:[%s3985 + $0x58] sm:$0xff]
  %v3998 = vld [vmem:[%s3985 + $0x60] sm:$0xff]
  %v3999 = vld [vmem:[%s3985 + $0x68] sm:$0xff]
  %v4000 = vld [vmem:[%s3985 + $0x70] sm:$0xff]
  %v4001 = vld [vmem:[%s3985 + $0x78] sm:$0xff]
  %v4003 = vsel %vm59, %v3986, 0
  %v4006 = vsel %vm59, %v3987, 0
  %v4009 = vsel %vm59, %v3988, 0
  %v4012 = vsel %vm59, %v3989, 0
  %v4015 = vsel %vm59, %v3990, 0
  %v4018 = vsel %vm59, %v3991, 0
  %v4021 = vsel %vm59, %v3992, 0
  %v4024 = vsel %vm59, %v3993, 0
  %v4027 = vsel %vm59, %v3994, 0
  %v4030 = vsel %vm59, %v3995, 0
  %v4033 = vsel %vm59, %v3996, 0
  %v4036 = vsel %vm59, %v3997, 0
  %v4039 = vsel %vm59, %v3998, 0
  %v4042 = vsel %vm59, %v3999, 0
  %v4045 = vsel %vm59, %v4000, 0
  %v4048 = vsel %vm59, %v4001, 0
  %4050 = vmatprep.subr.mxu0 0.0
  %4051 = vmatpush1.msra.mxu0 %v32
  %4052 = vmatprep.subr.mxu0 0.0
  %4053 = vmatpush1.msra.mxu0 %v33
  %4054 = vmatprep.subr.mxu0 0.0
  %4055 = vmatpush1.msra.mxu0 %v34
  %4056 = vmatprep.subr.mxu0 0.0
  %4057 = vmatpush1.msra.mxu0 %v110
  %4058 = vmatprep.subr.mxu0 0.0
  %4059 = vmatpush1.msra.mxu0 0.0
  %4060 = vmatprep.subr.mxu0 0.0
  %4061 = vmatpush1.msra.mxu0 0.0
  %4062 = vmatprep.subr.mxu0 0.0
  %4063 = vmatpush1.msra.mxu0 0.0
  %4064 = vmatprep.subr.mxu0 0.0
  %4065 = vmatpush1.msra.mxu0 0.0
  %4066 = vmatprep.subr.mxu0 0.0
  %4067 = vmatpush1.msra.mxu0 0.0
  %4068 = vmatprep.subr.mxu0 0.0
  %4069 = vmatpush1.msra.mxu0 0.0
  %4070 = vmatprep.subr.mxu0 0.0
  %4071 = vmatpush1.msra.mxu0 0.0
  %4072 = vmatprep.subr.mxu0 0.0
  %4073 = vmatpush1.msra.mxu0 0.0
  %4074 = vmatprep.subr.mxu0 0.0
  %4075 = vmatpush1.msra.mxu0 0.0
  %4076 = vmatprep.subr.mxu0 0.0
  %4077 = vmatpush1.msra.mxu0 0.0
  %4078 = vmatprep.subr.mxu0 0.0
  %4079 = vmatpush1.msra.mxu0 0.0
  %4080 = vmatprep.subr.mxu0 0.0
  %4081 = vmatpush1.msra.mxu0 0.0
  %4082 = vmatprep.subr.mxu0 0.0
  %4083 = vmatpush1.msra.mxu0 0.0
  %4084 = vmatprep.subr.mxu0 0.0
  %4085 = vmatpush1.msra.mxu0 0.0
  %4086 = vmatprep.subr.mxu0 0.0
  %4087 = vmatpush1.msra.mxu0 0.0
  %4088 = vmatprep.subr.mxu0 0.0
  %4089 = vmatpush1.msra.mxu0 0.0
  %4090 = vmatprep.subr.mxu0 0.0
  %4091 = vmatpush1.msra.mxu0 0.0
  %4092 = vmatprep.subr.mxu0 0.0
  %4093 = vmatpush1.msra.mxu0 0.0
  %4094 = vmatprep.subr.mxu0 0.0
  %4095 = vmatpush1.msra.mxu0 0.0
  %4096 = vmatprep.subr.mxu0 0.0
  %4097 = vmatpush1.msra.mxu0 0.0
  %4098 = vmatprep.subr.mxu0 0.0
  %4099 = vmatpush1.msra.mxu0 0.0
  %4100 = vmatprep.subr.mxu0 0.0
  %4101 = vmatpush1.msra.mxu0 0.0
  %4102 = vmatprep.subr.mxu0 0.0
  %4103 = vmatpush1.msra.mxu0 0.0
  %4104 = vmatprep.subr.mxu0 0.0
  %4105 = vmatpush1.msra.mxu0 0.0
  %4106 = vmatprep.subr.mxu0 0.0
  %4107 = vmatpush1.msra.mxu0 0.0
  %4108 = vmatprep.subr.mxu0 0.0
  %4109 = vmatpush1.msra.mxu0 0.0
  %4110 = vmatprep.subr.mxu0 0.0
  %4111 = vmatpush1.msra.mxu0 0.0
  %4112 = vmatprep.subr.mxu0 0.0
  %4113 = vmatpush1.msra.mxu0 0.0
  %4114 = vmatprep.mubr.f32.mxu0 0.0
  %4115 = vmatmul.mubr.f32.gmra.mrb[0].mxu0 %v4003
  %v4116 = vpop.f32.mrb[0].mxu0
  %v4117 = vadd.f32 %v57, %v4116
  %v4118 = vpop.f32.mrb[0].mxu0
  %4119 = vmatprep.mubr.f32.mxu0 0.0
  %4120 = vmatmul.mubr.f32.gmra.mrb[0].mxu0 %v4006
  %v4121 = vpop.f32.mrb[0].mxu0
  %v4122 = vadd.f32 %v57, %v4121
  %v4123 = vpop.f32.mrb[0].mxu0
  %4124 = vmatprep.mubr.f32.mxu0 0.0
  %4125 = vmatmul.mubr.f32.gmra.mrb[0].mxu0 %v4009
  %v4126 = vpop.f32.mrb[0].mxu0
  %v4127 = vadd.f32 %v57, %v4126
  %v4128 = vpop.f32.mrb[0].mxu0
  %4129 = vmatprep.mubr.f32.mxu0 0.0
  %4130 = vmatmul.mubr.f32.gmra.mrb[0].mxu0 %v4012
  %v4131 = vpop.f32.mrb[0].mxu0
  %v4132 = vadd.f32 %v57, %v4131
  %v4133 = vpop.f32.mrb[0].mxu0
  %4134 = vmatprep.mubr.f32.mxu0 0.0
  %4135 = vmatmul.mubr.f32.gmra.mrb[0].mxu0 %v4015
  %v4136 = vpop.f32.mrb[0].mxu0
  %v4137 = vadd.f32 %v57, %v4136
  %v4138 = vpop.f32.mrb[0].mxu0
  %4139 = vmatprep.mubr.f32.mxu0 0.0
  %4140 = vmatmul.mubr.f32.gmra.mrb[0].mxu0 %v4018
  %v4141 = vpop.f32.mrb[0].mxu0
  %v4142 = vadd.f32 %v57, %v4141
  %v4143 = vpop.f32.mrb[0].mxu0
  %4144 = vmatprep.mubr.f32.mxu0 0.0
  %4145 = vmatmul.mubr.f32.gmra.mrb[0].mxu0 %v4021
  %v4146 = vpop.f32.mrb[0].mxu0
  %v4147 = vadd.f32 %v57, %v4146
  %v4148 = vpop.f32.mrb[0].mxu0
  %4149 = vmatprep.mubr.f32.mxu0 0.0
  %4150 = vmatmul.mubr.f32.gmra.mrb[0].mxu0 %v4024
  %v4151 = vpop.f32.mrb[0].mxu0
  %v4152 = vadd.f32 %v57, %v4151
  %v4153 = vpop.f32.mrb[0].mxu0
  %4154 = vmatprep.mubr.f32.mxu0 0.0
  %4155 = vmatmul.mubr.f32.gmra.mrb[0].mxu0 %v4027
  %v4156 = vpop.f32.mrb[0].mxu0
  %v4157 = vadd.f32 %v57, %v4156
  %v4158 = vpop.f32.mrb[0].mxu0
  %4159 = vmatprep.mubr.f32.mxu0 0.0
  %4160 = vmatmul.mubr.f32.gmra.mrb[0].mxu0 %v4030
  %v4161 = vpop.f32.mrb[0].mxu0
  %v4162 = vadd.f32 %v57, %v4161
  %v4163 = vpop.f32.mrb[0].mxu0
  %4164 = vmatprep.mubr.f32.mxu0 0.0
  %4165 = vmatmul.mubr.f32.gmra.mrb[0].mxu0 %v4033
  %v4166 = vpop.f32.mrb[0].mxu0
  %v4167 = vadd.f32 %v57, %v4166
  %v4168 = vpop.f32.mrb[0].mxu0
  %4169 = vmatprep.mubr.f32.mxu0 0.0
  %4170 = vmatmul.mubr.f32.gmra.mrb[0].mxu0 %v4036
  %v4171 = vpop.f32.mrb[0].mxu0
  %v4172 = vadd.f32 %v57, %v4171
  %v4173 = vpop.f32.mrb[0].mxu0
  %4174 = vmatprep.mubr.f32.mxu0 0.0
  %4175 = vmatmul.mubr.f32.gmra.mrb[0].mxu0 %v4039
  %v4176 = vpop.f32.mrb[0].mxu0
  %v4177 = vadd.f32 %v57, %v4176
  %v4178 = vpop.f32.mrb[0].mxu0
  %4179 = vmatprep.mubr.f32.mxu0 0.0
  %4180 = vmatmul.mubr.f32.gmra.mrb[0].mxu0 %v4042
  %v4181 = vpop.f32.mrb[0].mxu0
  %v4182 = vadd.f32 %v57, %v4181
  %v4183 = vpop.f32.mrb[0].mxu0
  %4184 = vmatprep.mubr.f32.mxu0 0.0
  %4185 = vmatmul.mubr.f32.gmra.mrb[0].mxu0 %v4045
  %v4186 = vpop.f32.mrb[0].mxu0
  %v4187 = vadd.f32 %v57, %v4186
  %v4188 = vpop.f32.mrb[0].mxu0
  %4189 = vmatprep.mubr.f32.mxu0 0.0
  %4190 = vmatmul.mubr.f32.gmra.mrb[0].mxu0 %v4048
  %v4191 = vpop.f32.mrb[0].mxu0
  %v4192 = vadd.f32 %v57, %v4191
  %v4193 = vpop.f32.mrb[0].mxu0
  %4194 = vdwg.mxu0
  %v4195 = vmax.f32 %v4117, 0.0
  %v4196 = vmax.f32 %v4122, 0.0
  %v4197 = vmax.f32 %v4127, 0.0
  %v4198 = vmax.f32 %v4132, 0.0
  %v4199 = vmax.f32 %v4137, 0.0
  %v4200 = vmax.f32 %v4142, 0.0
  %v4201 = vmax.f32 %v4147, 0.0
  %v4202 = vmax.f32 %v4152, 0.0
  %v4203 = vmax.f32 %v4157, 0.0
  %v4204 = vmax.f32 %v4162, 0.0
  %v4205 = vmax.f32 %v4167, 0.0
  %v4206 = vmax.f32 %v4172, 0.0
  %v4207 = vmax.f32 %v4177, 0.0
  %v4208 = vmax.f32 %v4182, 0.0
  %v4209 = vmax.f32 %v4187, 0.0
  %v4210 = vmax.f32 %v4192, 0.0
  %s4211 = scalar_lea.vmem %s3, 144
  %v4212 = vld [vmem:[%s4211] sm:$0xff]
  %v4213 = vld [vmem:[%s4211 + $0x8] sm:$0x3]
  %v4215 = vsel %vm504, %v4195, 0
  %v4218 = vsel %vm504, %v4196, 0
  %v4221 = vsel %vm504, %v4197, 0
  %v4224 = vsel %vm504, %v4198, 0
  %v4227 = vsel %vm504, %v4199, 0
  %v4230 = vsel %vm504, %v4200, 0
  %v4233 = vsel %vm504, %v4201, 0
  %v4236 = vsel %vm504, %v4202, 0
  %v4239 = vsel %vm504, %v4203, 0
  %v4242 = vsel %vm504, %v4204, 0
  %v4245 = vsel %vm504, %v4205, 0
  %v4248 = vsel %vm504, %v4206, 0
  %v4251 = vsel %vm504, %v4207, 0
  %v4254 = vsel %vm504, %v4208, 0
  %v4257 = vsel %vm504, %v4209, 0
  %v4260 = vsel %vm504, %v4210, 0
  %v4263 = vsel %vm553, %v4213, 0
  %4265 = vmatprep.subr.mxu0 0.0
  %4266 = vmatpush1.msra.mxu0 %v4212
  %4267 = vmatprep.subr.mxu0 0.0
  %4268 = vmatpush1.msra.mxu0 %v4263
  %4269 = vmatprep.subr.mxu0 0.0
  %4270 = vmatpush1.msra.mxu0 0.0
  %4271 = vmatprep.subr.mxu0 0.0
  %4272 = vmatpush1.msra.mxu0 0.0
  %4273 = vmatprep.subr.mxu0 0.0
  %4274 = vmatpush1.msra.mxu0 0.0
  %4275 = vmatprep.subr.mxu0 0.0
  %4276 = vmatpush1.msra.mxu0 0.0
  %4277 = vmatprep.subr.mxu0 0.0
  %4278 = vmatpush1.msra.mxu0 0.0
  %4279 = vmatprep.subr.mxu0 0.0
  %4280 = vmatpush1.msra.mxu0 0.0
  %4281 = vmatprep.subr.mxu0 0.0
  %4282 = vmatpush1.msra.mxu0 0.0
  %4283 = vmatprep.subr.mxu0 0.0
  %4284 = vmatpush1.msra.mxu0 0.0
  %4285 = vmatprep.subr.mxu0 0.0
  %4286 = vmatpush1.msra.mxu0 0.0
  %4287 = vmatprep.subr.mxu0 0.0
  %4288 = vmatpush1.msra.mxu0 0.0
  %4289 = vmatprep.subr.mxu0 0.0
  %4290 = vmatpush1.msra.mxu0 0.0
  %4291 = vmatprep.subr.mxu0 0.0
  %4292 = vmatpush1.msra.mxu0 0.0
  %4293 = vmatprep.subr.mxu0 0.0
  %4294 = vmatpush1.msra.mxu0 0.0
  %4295 = vmatprep.subr.mxu0 0.0
  %4296 = vmatpush1.msra.mxu0 0.0
  %4297 = vmatprep.subr.mxu0 0.0
  %4298 = vmatpush1.msra.mxu0 0.0
  %4299 = vmatprep.subr.mxu0 0.0
  %4300 = vmatpush1.msra.mxu0 0.0
  %4301 = vmatprep.subr.mxu0 0.0
  %4302 = vmatpush1.msra.mxu0 0.0
  %4303 = vmatprep.subr.mxu0 0.0
  %4304 = vmatpush1.msra.mxu0 0.0
  %4305 = vmatprep.subr.mxu0 0.0
  %4306 = vmatpush1.msra.mxu0 0.0
  %4307 = vmatprep.subr.mxu0 0.0
  %4308 = vmatpush1.msra.mxu0 0.0
  %4309 = vmatprep.subr.mxu0 0.0
  %4310 = vmatpush1.msra.mxu0 0.0
  %4311 = vmatprep.subr.mxu0 0.0
  %4312 = vmatpush1.msra.mxu0 0.0
  %4313 = vmatprep.subr.mxu0 0.0
  %4314 = vmatpush1.msra.mxu0 0.0
  %4315 = vmatprep.subr.mxu0 0.0
  %4316 = vmatpush1.msra.mxu0 0.0
  %4317 = vmatprep.subr.mxu0 0.0
  %4318 = vmatpush1.msra.mxu0 0.0
  %4319 = vmatprep.subr.mxu0 0.0
  %4320 = vmatpush1.msra.mxu0 0.0
  %4321 = vmatprep.subr.mxu0 0.0
  %4322 = vmatpush1.msra.mxu0 0.0
  %4323 = vmatprep.subr.mxu0 0.0
  %4324 = vmatpush1.msra.mxu0 0.0
  %4325 = vmatprep.subr.mxu0 0.0
  %4326 = vmatpush1.msra.mxu0 0.0
  %4327 = vmatprep.subr.mxu0 0.0
  %4328 = vmatpush1.msra.mxu0 0.0
  %4329 = vmatprep.mubr.f32.mxu0 0.0
  %4330 = vmatmul.mubr.f32.gmra.mrb[0].mxu0 %v4215
  %v4331 = vpop.f32.mrb[0].mxu0
  %v4332 = vadd.f32 0.0, %v4331
  %v4333 = vpop.f32.mrb[0].mxu0
  %4334 = vmatprep.mubr.f32.mxu0 0.0
  %4335 = vmatmul.mubr.f32.gmra.mrb[0].mxu0 %v4218
  %v4336 = vpop.f32.mrb[0].mxu0
  %v4337 = vadd.f32 0.0, %v4336
  %v4338 = vpop.f32.mrb[0].mxu0
  %4339 = vmatprep.mubr.f32.mxu0 0.0
  %4340 = vmatmul.mubr.f32.gmra.mrb[0].mxu0 %v4221
  %v4341 = vpop.f32.mrb[0].mxu0
  %v4342 = vadd.f32 0.0, %v4341
  %v4343 = vpop.f32.mrb[0].mxu0
  %4344 = vmatprep.mubr.f32.mxu0 0.0
  %4345 = vmatmul.mubr.f32.gmra.mrb[0].mxu0 %v4224
  %v4346 = vpop.f32.mrb[0].mxu0
  %v4347 = vadd.f32 0.0, %v4346
  %v4348 = vpop.f32.mrb[0].mxu0
  %4349 = vmatprep.mubr.f32.mxu0 0.0
  %4350 = vmatmul.mubr.f32.gmra.mrb[0].mxu0 %v4227
  %v4351 = vpop.f32.mrb[0].mxu0
  %v4352 = vadd.f32 0.0, %v4351
  %v4353 = vpop.f32.mrb[0].mxu0
  %4354 = vmatprep.mubr.f32.mxu0 0.0
  %4355 = vmatmul.mubr.f32.gmra.mrb[0].mxu0 %v4230
  %v4356 = vpop.f32.mrb[0].mxu0
  %v4357 = vadd.f32 0.0, %v4356
  %v4358 = vpop.f32.mrb[0].mxu0
  %4359 = vmatprep.mubr.f32.mxu0 0.0
  %4360 = vmatmul.mubr.f32.gmra.mrb[0].mxu0 %v4233
  %v4361 = vpop.f32.mrb[0].mxu0
  %v4362 = vadd.f32 0.0, %v4361
  %v4363 = vpop.f32.mrb[0].mxu0
  %4364 = vmatprep.mubr.f32.mxu0 0.0
  %4365 = vmatmul.mubr.f32.gmra.mrb[0].mxu0 %v4236
  %v4366 = vpop.f32.mrb[0].mxu0
  %v4367 = vadd.f32 0.0, %v4366
  %v4368 = vpop.f32.mrb[0].mxu0
  %4369 = vmatprep.mubr.f32.mxu0 0.0
  %4370 = vmatmul.mubr.f32.gmra.mrb[0].mxu0 %v4239
  %v4371 = vpop.f32.mrb[0].mxu0
  %v4372 = vadd.f32 0.0, %v4371
  %v4373 = vpop.f32.mrb[0].mxu0
  %4374 = vmatprep.mubr.f32.mxu0 0.0
  %4375 = vmatmul.mubr.f32.gmra.mrb[0].mxu0 %v4242
  %v4376 = vpop.f32.mrb[0].mxu0
  %v4377 = vadd.f32 0.0, %v4376
  %v4378 = vpop.f32.mrb[0].mxu0
  %4379 = vmatprep.mubr.f32.mxu0 0.0
  %4380 = vmatmul.mubr.f32.gmra.mrb[0].mxu0 %v4245
  %v4381 = vpop.f32.mrb[0].mxu0
  %v4382 = vadd.f32 0.0, %v4381
  %v4383 = vpop.f32.mrb[0].mxu0
  %4384 = vmatprep.mubr.f32.mxu0 0.0
  %4385 = vmatmul.mubr.f32.gmra.mrb[0].mxu0 %v4248
  %v4386 = vpop.f32.mrb[0].mxu0
  %v4387 = vadd.f32 0.0, %v4386
  %v4388 = vpop.f32.mrb[0].mxu0
  %4389 = vmatprep.mubr.f32.mxu0 0.0
  %4390 = vmatmul.mubr.f32.gmra.mrb[0].mxu0 %v4251
  %v4391 = vpop.f32.mrb[0].mxu0
  %v4392 = vadd.f32 0.0, %v4391
  %v4393 = vpop.f32.mrb[0].mxu0
  %4394 = vmatprep.mubr.f32.mxu0 0.0
  %4395 = vmatmul.mubr.f32.gmra.mrb[0].mxu0 %v4254
  %v4396 = vpop.f32.mrb[0].mxu0
  %v4397 = vadd.f32 0.0, %v4396
  %v4398 = vpop.f32.mrb[0].mxu0
  %4399 = vmatprep.mubr.f32.mxu0 0.0
  %4400 = vmatmul.mubr.f32.gmra.mrb[0].mxu0 %v4257
  %v4401 = vpop.f32.mrb[0].mxu0
  %v4402 = vadd.f32 0.0, %v4401
  %v4403 = vpop.f32.mrb[0].mxu0
  %4404 = vmatprep.mubr.f32.mxu0 0.0
  %4405 = vmatmul.mubr.f32.gmra.mrb[0].mxu0 %v4260
  %v4406 = vpop.f32.mrb[0].mxu0
  %v4407 = vadd.f32 0.0, %v4406
  %v4408 = vpop.f32.mrb[0].mxu0
  %4409 = vdwg.mxu0
  %v4410 = vadd.f32 %v3969, %v4332
  %v4411 = vadd.f32 %v3970, %v4337
  %v4412 = vadd.f32 %v3971, %v4342
  %v4413 = vadd.f32 %v3972, %v4347
  %v4414 = vadd.f32 %v3973, %v4352
  %v4415 = vadd.f32 %v3974, %v4357
  %v4416 = vadd.f32 %v3975, %v4362
  %v4417 = vadd.f32 %v3976, %v4367
  %v4418 = vadd.f32 %v3977, %v4372
  %v4419 = vadd.f32 %v3978, %v4377
  %v4420 = vadd.f32 %v3979, %v4382
  %v4421 = vadd.f32 %v3980, %v4387
  %v4422 = vadd.f32 %v3981, %v4392
  %v4423 = vadd.f32 %v3982, %v4397
  %v4424 = vadd.f32 %v3983, %v4402
  %v4425 = vadd.f32 %v3984, %v4407
  %s4426 = scalar_lea.vmem %s0, 1280
  %v4427 = vld [vmem:[%s4426] sm:$0xff]
  %v4428 = vld [vmem:[%s4426 + $0x8] sm:$0xff]
  %v4429 = vld [vmem:[%s4426 + $0x10] sm:$0xff]
  %v4430 = vld [vmem:[%s4426 + $0x18] sm:$0xff]
  %v4431 = vld [vmem:[%s4426 + $0x20] sm:$0xff]
  %v4432 = vld [vmem:[%s4426 + $0x28] sm:$0xff]
  %v4433 = vld [vmem:[%s4426 + $0x30] sm:$0xff]
  %v4434 = vld [vmem:[%s4426 + $0x38] sm:$0xff]
  %v4435 = vld [vmem:[%s4426 + $0x40] sm:$0xff]
  %v4436 = vld [vmem:[%s4426 + $0x48] sm:$0xff]
  %v4437 = vld [vmem:[%s4426 + $0x50] sm:$0xff]
  %v4438 = vld [vmem:[%s4426 + $0x58] sm:$0xff]
  %v4439 = vld [vmem:[%s4426 + $0x60] sm:$0xff]
  %v4440 = vld [vmem:[%s4426 + $0x68] sm:$0xff]
  %v4441 = vld [vmem:[%s4426 + $0x70] sm:$0xff]
  %v4442 = vld [vmem:[%s4426 + $0x78] sm:$0xff]
  %v4444 = vsel %vm59, %v4427, 0
  %v4447 = vsel %vm59, %v4428, 0
  %v4450 = vsel %vm59, %v4429, 0
  %v4453 = vsel %vm59, %v4430, 0
  %v4456 = vsel %vm59, %v4431, 0
  %v4459 = vsel %vm59, %v4432, 0
  %v4462 = vsel %vm59, %v4433, 0
  %v4465 = vsel %vm59, %v4434, 0
  %v4468 = vsel %vm59, %v4435, 0
  %v4471 = vsel %vm59, %v4436, 0
  %v4474 = vsel %vm59, %v4437, 0
  %v4477 = vsel %vm59, %v4438, 0
  %v4480 = vsel %vm59, %v4439, 0
  %v4483 = vsel %vm59, %v4440, 0
  %v4486 = vsel %vm59, %v4441, 0
  %v4489 = vsel %vm59, %v4442, 0
  %4491 = vmatprep.subr.mxu0 0.0
  %4492 = vmatpush1.msra.mxu0 %v32
  %4493 = vmatprep.subr.mxu0 0.0
  %4494 = vmatpush1.msra.mxu0 %v33
  %4495 = vmatprep.subr.mxu0 0.0
  %4496 = vmatpush1.msra.mxu0 %v34
  %4497 = vmatprep.subr.mxu0 0.0
  %4498 = vmatpush1.msra.mxu0 %v110
  %4499 = vmatprep.subr.mxu0 0.0
  %4500 = vmatpush1.msra.mxu0 0.0
  %4501 = vmatprep.subr.mxu0 0.0
  %4502 = vmatpush1.msra.mxu0 0.0
  %4503 = vmatprep.subr.mxu0 0.0
  %4504 = vmatpush1.msra.mxu0 0.0
  %4505 = vmatprep.subr.mxu0 0.0
  %4506 = vmatpush1.msra.mxu0 0.0
  %4507 = vmatprep.subr.mxu0 0.0
  %4508 = vmatpush1.msra.mxu0 0.0
  %4509 = vmatprep.subr.mxu0 0.0
  %4510 = vmatpush1.msra.mxu0 0.0
  %4511 = vmatprep.subr.mxu0 0.0
  %4512 = vmatpush1.msra.mxu0 0.0
  %4513 = vmatprep.subr.mxu0 0.0
  %4514 = vmatpush1.msra.mxu0 0.0
  %4515 = vmatprep.subr.mxu0 0.0
  %4516 = vmatpush1.msra.mxu0 0.0
  %4517 = vmatprep.subr.mxu0 0.0
  %4518 = vmatpush1.msra.mxu0 0.0
  %4519 = vmatprep.subr.mxu0 0.0
  %4520 = vmatpush1.msra.mxu0 0.0
  %4521 = vmatprep.subr.mxu0 0.0
  %4522 = vmatpush1.msra.mxu0 0.0
  %4523 = vmatprep.subr.mxu0 0.0
  %4524 = vmatpush1.msra.mxu0 0.0
  %4525 = vmatprep.subr.mxu0 0.0
  %4526 = vmatpush1.msra.mxu0 0.0
  %4527 = vmatprep.subr.mxu0 0.0
  %4528 = vmatpush1.msra.mxu0 0.0
  %4529 = vmatprep.subr.mxu0 0.0
  %4530 = vmatpush1.msra.mxu0 0.0
  %4531 = vmatprep.subr.mxu0 0.0
  %4532 = vmatpush1.msra.mxu0 0.0
  %4533 = vmatprep.subr.mxu0 0.0
  %4534 = vmatpush1.msra.mxu0 0.0
  %4535 = vmatprep.subr.mxu0 0.0
  %4536 = vmatpush1.msra.mxu0 0.0
  %4537 = vmatprep.subr.mxu0 0.0
  %4538 = vmatpush1.msra.mxu0 0.0
  %4539 = vmatprep.subr.mxu0 0.0
  %4540 = vmatpush1.msra.mxu0 0.0
  %4541 = vmatprep.subr.mxu0 0.0
  %4542 = vmatpush1.msra.mxu0 0.0
  %4543 = vmatprep.subr.mxu0 0.0
  %4544 = vmatpush1.msra.mxu0 0.0
  %4545 = vmatprep.subr.mxu0 0.0
  %4546 = vmatpush1.msra.mxu0 0.0
  %4547 = vmatprep.subr.mxu0 0.0
  %4548 = vmatpush1.msra.mxu0 0.0
  %4549 = vmatprep.subr.mxu0 0.0
  %4550 = vmatpush1.msra.mxu0 0.0
  %4551 = vmatprep.subr.mxu0 0.0
  %4552 = vmatpush1.msra.mxu0 0.0
  %4553 = vmatprep.subr.mxu0 0.0
  %4554 = vmatpush1.msra.mxu0 0.0
  %4555 = vmatprep.mubr.f32.mxu0 0.0
  %4556 = vmatmul.mubr.f32.gmra.mrb[0].mxu0 %v4444
  %v4557 = vpop.f32.mrb[0].mxu0
  %v4558 = vadd.f32 %v57, %v4557
  %v4559 = vpop.f32.mrb[0].mxu0
  %4560 = vmatprep.mubr.f32.mxu0 0.0
  %4561 = vmatmul.mubr.f32.gmra.mrb[0].mxu0 %v4447
  %v4562 = vpop.f32.mrb[0].mxu0
  %v4563 = vadd.f32 %v57, %v4562
  %v4564 = vpop.f32.mrb[0].mxu0
  %4565 = vmatprep.mubr.f32.mxu0 0.0
  %4566 = vmatmul.mubr.f32.gmra.mrb[0].mxu0 %v4450
  %v4567 = vpop.f32.mrb[0].mxu0
  %v4568 = vadd.f32 %v57, %v4567
  %v4569 = vpop.f32.mrb[0].mxu0
  %4570 = vmatprep.mubr.f32.mxu0 0.0
  %4571 = vmatmul.mubr.f32.gmra.mrb[0].mxu0 %v4453
  %v4572 = vpop.f32.mrb[0].mxu0
  %v4573 = vadd.f32 %v57, %v4572
  %v4574 = vpop.f32.mrb[0].mxu0
  %4575 = vmatprep.mubr.f32.mxu0 0.0
  %4576 = vmatmul.mubr.f32.gmra.mrb[0].mxu0 %v4456
  %v4577 = vpop.f32.mrb[0].mxu0
  %v4578 = vadd.f32 %v57, %v4577
  %v4579 = vpop.f32.mrb[0].mxu0
  %4580 = vmatprep.mubr.f32.mxu0 0.0
  %4581 = vmatmul.mubr.f32.gmra.mrb[0].mxu0 %v4459
  %v4582 = vpop.f32.mrb[0].mxu0
  %v4583 = vadd.f32 %v57, %v4582
  %v4584 = vpop.f32.mrb[0].mxu0
  %4585 = vmatprep.mubr.f32.mxu0 0.0
  %4586 = vmatmul.mubr.f32.gmra.mrb[0].mxu0 %v4462
  %v4587 = vpop.f32.mrb[0].mxu0
  %v4588 = vadd.f32 %v57, %v4587
  %v4589 = vpop.f32.mrb[0].mxu0
  %4590 = vmatprep.mubr.f32.mxu0 0.0
  %4591 = vmatmul.mubr.f32.gmra.mrb[0].mxu0 %v4465
  %v4592 = vpop.f32.mrb[0].mxu0
  %v4593 = vadd.f32 %v57, %v4592
  %v4594 = vpop.f32.mrb[0].mxu0
  %4595 = vmatprep.mubr.f32.mxu0 0.0
  %4596 = vmatmul.mubr.f32.gmra.mrb[0].mxu0 %v4468
  %v4597 = vpop.f32.mrb[0].mxu0
  %v4598 = vadd.f32 %v57, %v4597
  %v4599 = vpop.f32.mrb[0].mxu0
  %4600 = vmatprep.mubr.f32.mxu0 0.0
  %4601 = vmatmul.mubr.f32.gmra.mrb[0].mxu0 %v4471
  %v4602 = vpop.f32.mrb[0].mxu0
  %v4603 = vadd.f32 %v57, %v4602
  %v4604 = vpop.f32.mrb[0].mxu0
  %4605 = vmatprep.mubr.f32.mxu0 0.0
  %4606 = vmatmul.mubr.f32.gmra.mrb[0].mxu0 %v4474
  %v4607 = vpop.f32.mrb[0].mxu0
  %v4608 = vadd.f32 %v57, %v4607
  %v4609 = vpop.f32.mrb[0].mxu0
  %4610 = vmatprep.mubr.f32.mxu0 0.0
  %4611 = vmatmul.mubr.f32.gmra.mrb[0].mxu0 %v4477
  %v4612 = vpop.f32.mrb[0].mxu0
  %v4613 = vadd.f32 %v57, %v4612
  %v4614 = vpop.f32.mrb[0].mxu0
  %4615 = vmatprep.mubr.f32.mxu0 0.0
  %4616 = vmatmul.mubr.f32.gmra.mrb[0].mxu0 %v4480
  %v4617 = vpop.f32.mrb[0].mxu0
  %v4618 = vadd.f32 %v57, %v4617
  %v4619 = vpop.f32.mrb[0].mxu0
  %4620 = vmatprep.mubr.f32.mxu0 0.0
  %4621 = vmatmul.mubr.f32.gmra.mrb[0].mxu0 %v4483
  %v4622 = vpop.f32.mrb[0].mxu0
  %v4623 = vadd.f32 %v57, %v4622
  %v4624 = vpop.f32.mrb[0].mxu0
  %4625 = vmatprep.mubr.f32.mxu0 0.0
  %4626 = vmatmul.mubr.f32.gmra.mrb[0].mxu0 %v4486
  %v4627 = vpop.f32.mrb[0].mxu0
  %v4628 = vadd.f32 %v57, %v4627
  %v4629 = vpop.f32.mrb[0].mxu0
  %4630 = vmatprep.mubr.f32.mxu0 0.0
  %4631 = vmatmul.mubr.f32.gmra.mrb[0].mxu0 %v4489
  %v4632 = vpop.f32.mrb[0].mxu0
  %v4633 = vadd.f32 %v57, %v4632
  %v4634 = vpop.f32.mrb[0].mxu0
  %4635 = vdwg.mxu0
  %v4636 = vmax.f32 %v4558, 0.0
  %v4637 = vmax.f32 %v4563, 0.0
  %v4638 = vmax.f32 %v4568, 0.0
  %v4639 = vmax.f32 %v4573, 0.0
  %v4640 = vmax.f32 %v4578, 0.0
  %v4641 = vmax.f32 %v4583, 0.0
  %v4642 = vmax.f32 %v4588, 0.0
  %v4643 = vmax.f32 %v4593, 0.0
  %v4644 = vmax.f32 %v4598, 0.0
  %v4645 = vmax.f32 %v4603, 0.0
  %v4646 = vmax.f32 %v4608, 0.0
  %v4647 = vmax.f32 %v4613, 0.0
  %v4648 = vmax.f32 %v4618, 0.0
  %v4649 = vmax.f32 %v4623, 0.0
  %v4650 = vmax.f32 %v4628, 0.0
  %v4651 = vmax.f32 %v4633, 0.0
  %s4652 = scalar_lea.vmem %s3, 160
  %v4653 = vld [vmem:[%s4652] sm:$0xff]
  %v4654 = vld [vmem:[%s4652 + $0x8] sm:$0x3]
  %v4656 = vsel %vm504, %v4636, 0
  %v4659 = vsel %vm504, %v4637, 0
  %v4662 = vsel %vm504, %v4638, 0
  %v4665 = vsel %vm504, %v4639, 0
  %v4668 = vsel %vm504, %v4640, 0
  %v4671 = vsel %vm504, %v4641, 0
  %v4674 = vsel %vm504, %v4642, 0
  %v4677 = vsel %vm504, %v4643, 0
  %v4680 = vsel %vm504, %v4644, 0
  %v4683 = vsel %vm504, %v4645, 0
  %v4686 = vsel %vm504, %v4646, 0
  %v4689 = vsel %vm504, %v4647, 0
  %v4692 = vsel %vm504, %v4648, 0
  %v4695 = vsel %vm504, %v4649, 0
  %v4698 = vsel %vm504, %v4650, 0
  %v4701 = vsel %vm504, %v4651, 0
  %v4704 = vsel %vm553, %v4654, 0
  %4706 = vmatprep.subr.mxu0 0.0
  %4707 = vmatpush1.msra.mxu0 %v4653
  %4708 = vmatprep.subr.mxu0 0.0
  %4709 = vmatpush1.msra.mxu0 %v4704
  %4710 = vmatprep.subr.mxu0 0.0
  %4711 = vmatpush1.msra.mxu0 0.0
  %4712 = vmatprep.subr.mxu0 0.0
  %4713 = vmatpush1.msra.mxu0 0.0
  %4714 = vmatprep.subr.mxu0 0.0
  %4715 = vmatpush1.msra.mxu0 0.0
  %4716 = vmatprep.subr.mxu0 0.0
  %4717 = vmatpush1.msra.mxu0 0.0
  %4718 = vmatprep.subr.mxu0 0.0
  %4719 = vmatpush1.msra.mxu0 0.0
  %4720 = vmatprep.subr.mxu0 0.0
  %4721 = vmatpush1.msra.mxu0 0.0
  %4722 = vmatprep.subr.mxu0 0.0
  %4723 = vmatpush1.msra.mxu0 0.0
  %4724 = vmatprep.subr.mxu0 0.0
  %4725 = vmatpush1.msra.mxu0 0.0
  %4726 = vmatprep.subr.mxu0 0.0
  %4727 = vmatpush1.msra.mxu0 0.0
  %4728 = vmatprep.subr.mxu0 0.0
  %4729 = vmatpush1.msra.mxu0 0.0
  %4730 = vmatprep.subr.mxu0 0.0
  %4731 = vmatpush1.msra.mxu0 0.0
  %4732 = vmatprep.subr.mxu0 0.0
  %4733 = vmatpush1.msra.mxu0 0.0
  %4734 = vmatprep.subr.mxu0 0.0
  %4735 = vmatpush1.msra.mxu0 0.0
  %4736 = vmatprep.subr.mxu0 0.0
  %4737 = vmatpush1.msra.mxu0 0.0
  %4738 = vmatprep.subr.mxu0 0.0
  %4739 = vmatpush1.msra.mxu0 0.0
  %4740 = vmatprep.subr.mxu0 0.0
  %4741 = vmatpush1.msra.mxu0 0.0
  %4742 = vmatprep.subr.mxu0 0.0
  %4743 = vmatpush1.msra.mxu0 0.0
  %4744 = vmatprep.subr.mxu0 0.0
  %4745 = vmatpush1.msra.mxu0 0.0
  %4746 = vmatprep.subr.mxu0 0.0
  %4747 = vmatpush1.msra.mxu0 0.0
  %4748 = vmatprep.subr.mxu0 0.0
  %4749 = vmatpush1.msra.mxu0 0.0
  %4750 = vmatprep.subr.mxu0 0.0
  %4751 = vmatpush1.msra.mxu0 0.0
  %4752 = vmatprep.subr.mxu0 0.0
  %4753 = vmatpush1.msra.mxu0 0.0
  %4754 = vmatprep.subr.mxu0 0.0
  %4755 = vmatpush1.msra.mxu0 0.0
  %4756 = vmatprep.subr.mxu0 0.0
  %4757 = vmatpush1.msra.mxu0 0.0
  %4758 = vmatprep.subr.mxu0 0.0
  %4759 = vmatpush1.msra.mxu0 0.0
  %4760 = vmatprep.subr.mxu0 0.0
  %4761 = vmatpush1.msra.mxu0 0.0
  %4762 = vmatprep.subr.mxu0 0.0
  %4763 = vmatpush1.msra.mxu0 0.0
  %4764 = vmatprep.subr.mxu0 0.0
  %4765 = vmatpush1.msra.mxu0 0.0
  %4766 = vmatprep.subr.mxu0 0.0
  %4767 = vmatpush1.msra.mxu0 0.0
  %4768 = vmatprep.subr.mxu0 0.0
  %4769 = vmatpush1.msra.mxu0 0.0
  %4770 = vmatprep.mubr.f32.mxu0 0.0
  %4771 = vmatmul.mubr.f32.gmra.mrb[0].mxu0 %v4656
  %v4772 = vpop.f32.mrb[0].mxu0
  %v4773 = vadd.f32 0.0, %v4772
  %v4774 = vpop.f32.mrb[0].mxu0
  %4775 = vmatprep.mubr.f32.mxu0 0.0
  %4776 = vmatmul.mubr.f32.gmra.mrb[0].mxu0 %v4659
  %v4777 = vpop.f32.mrb[0].mxu0
  %v4778 = vadd.f32 0.0, %v4777
  %v4779 = vpop.f32.mrb[0].mxu0
  %4780 = vmatprep.mubr.f32.mxu0 0.0
  %4781 = vmatmul.mubr.f32.gmra.mrb[0].mxu0 %v4662
  %v4782 = vpop.f32.mrb[0].mxu0
  %v4783 = vadd.f32 0.0, %v4782
  %v4784 = vpop.f32.mrb[0].mxu0
  %4785 = vmatprep.mubr.f32.mxu0 0.0
  %4786 = vmatmul.mubr.f32.gmra.mrb[0].mxu0 %v4665
  %v4787 = vpop.f32.mrb[0].mxu0
  %v4788 = vadd.f32 0.0, %v4787
  %v4789 = vpop.f32.mrb[0].mxu0
  %4790 = vmatprep.mubr.f32.mxu0 0.0
  %4791 = vmatmul.mubr.f32.gmra.mrb[0].mxu0 %v4668
  %v4792 = vpop.f32.mrb[0].mxu0
  %v4793 = vadd.f32 0.0, %v4792
  %v4794 = vpop.f32.mrb[0].mxu0
  %4795 = vmatprep.mubr.f32.mxu0 0.0
  %4796 = vmatmul.mubr.f32.gmra.mrb[0].mxu0 %v4671
  %v4797 = vpop.f32.mrb[0].mxu0
  %v4798 = vadd.f32 0.0, %v4797
  %v4799 = vpop.f32.mrb[0].mxu0
  %4800 = vmatprep.mubr.f32.mxu0 0.0
  %4801 = vmatmul.mubr.f32.gmra.mrb[0].mxu0 %v4674
  %v4802 = vpop.f32.mrb[0].mxu0
  %v4803 = vadd.f32 0.0, %v4802
  %v4804 = vpop.f32.mrb[0].mxu0
  %4805 = vmatprep.mubr.f32.mxu0 0.0
  %4806 = vmatmul.mubr.f32.gmra.mrb[0].mxu0 %v4677
  %v4807 = vpop.f32.mrb[0].mxu0
  %v4808 = vadd.f32 0.0, %v4807
  %v4809 = vpop.f32.mrb[0].mxu0
  %4810 = vmatprep.mubr.f32.mxu0 0.0
  %4811 = vmatmul.mubr.f32.gmra.mrb[0].mxu0 %v4680
  %v4812 = vpop.f32.mrb[0].mxu0
  %v4813 = vadd.f32 0.0, %v4812
  %v4814 = vpop.f32.mrb[0].mxu0
  %4815 = vmatprep.mubr.f32.mxu0 0.0
  %4816 = vmatmul.mubr.f32.gmra.mrb[0].mxu0 %v4683
  %v4817 = vpop.f32.mrb[0].mxu0
  %v4818 = vadd.f32 0.0, %v4817
  %v4819 = vpop.f32.mrb[0].mxu0
  %4820 = vmatprep.mubr.f32.mxu0 0.0
  %4821 = vmatmul.mubr.f32.gmra.mrb[0].mxu0 %v4686
  %v4822 = vpop.f32.mrb[0].mxu0
  %v4823 = vadd.f32 0.0, %v4822
  %v4824 = vpop.f32.mrb[0].mxu0
  %4825 = vmatprep.mubr.f32.mxu0 0.0
  %4826 = vmatmul.mubr.f32.gmra.mrb[0].mxu0 %v4689
  %v4827 = vpop.f32.mrb[0].mxu0
  %v4828 = vadd.f32 0.0, %v4827
  %v4829 = vpop.f32.mrb[0].mxu0
  %4830 = vmatprep.mubr.f32.mxu0 0.0
  %4831 = vmatmul.mubr.f32.gmra.mrb[0].mxu0 %v4692
  %v4832 = vpop.f32.mrb[0].mxu0
  %v4833 = vadd.f32 0.0, %v4832
  %v4834 = vpop.f32.mrb[0].mxu0
  %4835 = vmatprep.mubr.f32.mxu0 0.0
  %4836 = vmatmul.mubr.f32.gmra.mrb[0].mxu0 %v4695
  %v4837 = vpop.f32.mrb[0].mxu0
  %v4838 = vadd.f32 0.0, %v4837
  %v4839 = vpop.f32.mrb[0].mxu0
  %4840 = vmatprep.mubr.f32.mxu0 0.0
  %4841 = vmatmul.mubr.f32.gmra.mrb[0].mxu0 %v4698
  %v4842 = vpop.f32.mrb[0].mxu0
  %v4843 = vadd.f32 0.0, %v4842
  %v4844 = vpop.f32.mrb[0].mxu0
  %4845 = vmatprep.mubr.f32.mxu0 0.0
  %4846 = vmatmul.mubr.f32.gmra.mrb[0].mxu0 %v4701
  %v4847 = vpop.f32.mrb[0].mxu0
  %v4848 = vadd.f32 0.0, %v4847
  %v4849 = vpop.f32.mrb[0].mxu0
  %4850 = vdwg.mxu0
  %v4851 = vadd.f32 %v4410, %v4773
  %v4852 = vadd.f32 %v4411, %v4778
  %v4853 = vadd.f32 %v4412, %v4783
  %v4854 = vadd.f32 %v4413, %v4788
  %v4855 = vadd.f32 %v4414, %v4793
  %v4856 = vadd.f32 %v4415, %v4798
  %v4857 = vadd.f32 %v4416, %v4803
  %v4858 = vadd.f32 %v4417, %v4808
  %v4859 = vadd.f32 %v4418, %v4813
  %v4860 = vadd.f32 %v4419, %v4818
  %v4861 = vadd.f32 %v4420, %v4823
  %v4862 = vadd.f32 %v4421, %v4828
  %v4863 = vadd.f32 %v4422, %v4833
  %v4864 = vadd.f32 %v4423, %v4838
  %v4865 = vadd.f32 %v4424, %v4843
  %v4866 = vadd.f32 %v4425, %v4848
  %s4867 = scalar_lea.vmem %s0, 1408
  %v4868 = vld [vmem:[%s4867] sm:$0xff]
  %v4869 = vld [vmem:[%s4867 + $0x8] sm:$0xff]
  %v4870 = vld [vmem:[%s4867 + $0x10] sm:$0xff]
  %v4871 = vld [vmem:[%s4867 + $0x18] sm:$0xff]
  %v4872 = vld [vmem:[%s4867 + $0x20] sm:$0xff]
  %v4873 = vld [vmem:[%s4867 + $0x28] sm:$0xff]
  %v4874 = vld [vmem:[%s4867 + $0x30] sm:$0xff]
  %v4875 = vld [vmem:[%s4867 + $0x38] sm:$0xff]
  %v4876 = vld [vmem:[%s4867 + $0x40] sm:$0xff]
  %v4877 = vld [vmem:[%s4867 + $0x48] sm:$0xff]
  %v4878 = vld [vmem:[%s4867 + $0x50] sm:$0xff]
  %v4879 = vld [vmem:[%s4867 + $0x58] sm:$0xff]
  %v4880 = vld [vmem:[%s4867 + $0x60] sm:$0xff]
  %v4881 = vld [vmem:[%s4867 + $0x68] sm:$0xff]
  %v4882 = vld [vmem:[%s4867 + $0x70] sm:$0xff]
  %v4883 = vld [vmem:[%s4867 + $0x78] sm:$0xff]
  %v4885 = vsel %vm59, %v4868, 0
  %v4888 = vsel %vm59, %v4869, 0
  %v4891 = vsel %vm59, %v4870, 0
  %v4894 = vsel %vm59, %v4871, 0
  %v4897 = vsel %vm59, %v4872, 0
  %v4900 = vsel %vm59, %v4873, 0
  %v4903 = vsel %vm59, %v4874, 0
  %v4906 = vsel %vm59, %v4875, 0
  %v4909 = vsel %vm59, %v4876, 0
  %v4912 = vsel %vm59, %v4877, 0
  %v4915 = vsel %vm59, %v4878, 0
  %v4918 = vsel %vm59, %v4879, 0
  %v4921 = vsel %vm59, %v4880, 0
  %v4924 = vsel %vm59, %v4881, 0
  %v4927 = vsel %vm59, %v4882, 0
  %v4930 = vsel %vm59, %v4883, 0
  %4932 = vmatprep.subr.mxu0 0.0
  %4933 = vmatpush1.msra.mxu0 %v32
  %4934 = vmatprep.subr.mxu0 0.0
  %4935 = vmatpush1.msra.mxu0 %v33
  %4936 = vmatprep.subr.mxu0 0.0
  %4937 = vmatpush1.msra.mxu0 %v34
  %4938 = vmatprep.subr.mxu0 0.0
  %4939 = vmatpush1.msra.mxu0 %v110
  %4940 = vmatprep.subr.mxu0 0.0
  %4941 = vmatpush1.msra.mxu0 0.0
  %4942 = vmatprep.subr.mxu0 0.0
  %4943 = vmatpush1.msra.mxu0 0.0
  %4944 = vmatprep.subr.mxu0 0.0
  %4945 = vmatpush1.msra.mxu0 0.0
  %4946 = vmatprep.subr.mxu0 0.0
  %4947 = vmatpush1.msra.mxu0 0.0
  %4948 = vmatprep.subr.mxu0 0.0
  %4949 = vmatpush1.msra.mxu0 0.0
  %4950 = vmatprep.subr.mxu0 0.0
  %4951 = vmatpush1.msra.mxu0 0.0
  %4952 = vmatprep.subr.mxu0 0.0
  %4953 = vmatpush1.msra.mxu0 0.0
  %4954 = vmatprep.subr.mxu0 0.0
  %4955 = vmatpush1.msra.mxu0 0.0
  %4956 = vmatprep.subr.mxu0 0.0
  %4957 = vmatpush1.msra.mxu0 0.0
  %4958 = vmatprep.subr.mxu0 0.0
  %4959 = vmatpush1.msra.mxu0 0.0
  %4960 = vmatprep.subr.mxu0 0.0
  %4961 = vmatpush1.msra.mxu0 0.0
  %4962 = vmatprep.subr.mxu0 0.0
  %4963 = vmatpush1.msra.mxu0 0.0
  %4964 = vmatprep.subr.mxu0 0.0
  %4965 = vmatpush1.msra.mxu0 0.0
  %4966 = vmatprep.subr.mxu0 0.0
  %4967 = vmatpush1.msra.mxu0 0.0
  %4968 = vmatprep.subr.mxu0 0.0
  %4969 = vmatpush1.msra.mxu0 0.0
  %4970 = vmatprep.subr.mxu0 0.0
  %4971 = vmatpush1.msra.mxu0 0.0
  %4972 = vmatprep.subr.mxu0 0.0
  %4973 = vmatpush1.msra.mxu0 0.0
  %4974 = vmatprep.subr.mxu0 0.0
  %4975 = vmatpush1.msra.mxu0 0.0
  %4976 = vmatprep.subr.mxu0 0.0
  %4977 = vmatpush1.msra.mxu0 0.0
  %4978 = vmatprep.subr.mxu0 0.0
  %4979 = vmatpush1.msra.mxu0 0.0
  %4980 = vmatprep.subr.mxu0 0.0
  %4981 = vmatpush1.msra.mxu0 0.0
  %4982 = vmatprep.subr.mxu0 0.0
  %4983 = vmatpush1.msra.mxu0 0.0
  %4984 = vmatprep.subr.mxu0 0.0
  %4985 = vmatpush1.msra.mxu0 0.0
  %4986 = vmatprep.subr.mxu0 0.0
  %4987 = vmatpush1.msra.mxu0 0.0
  %4988 = vmatprep.subr.mxu0 0.0
  %4989 = vmatpush1.msra.mxu0 0.0
  %4990 = vmatprep.subr.mxu0 0.0
  %4991 = vmatpush1.msra.mxu0 0.0
  %4992 = vmatprep.subr.mxu0 0.0
  %4993 = vmatpush1.msra.mxu0 0.0
  %4994 = vmatprep.subr.mxu0 0.0
  %4995 = vmatpush1.msra.mxu0 0.0
  %4996 = vmatprep.mubr.f32.mxu0 0.0
  %4997 = vmatmul.mubr.f32.gmra.mrb[0].mxu0 %v4885
  %v4998 = vpop.f32.mrb[0].mxu0
  %v4999 = vadd.f32 %v57, %v4998
  %v5000 = vpop.f32.mrb[0].mxu0
  %5001 = vmatprep.mubr.f32.mxu0 0.0
  %5002 = vmatmul.mubr.f32.gmra.mrb[0].mxu0 %v4888
  %v5003 = vpop.f32.mrb[0].mxu0
  %v5004 = vadd.f32 %v57, %v5003
  %v5005 = vpop.f32.mrb[0].mxu0
  %5006 = vmatprep.mubr.f32.mxu0 0.0
  %5007 = vmatmul.mubr.f32.gmra.mrb[0].mxu0 %v4891
  %v5008 = vpop.f32.mrb[0].mxu0
  %v5009 = vadd.f32 %v57, %v5008
  %v5010 = vpop.f32.mrb[0].mxu0
  %5011 = vmatprep.mubr.f32.mxu0 0.0
  %5012 = vmatmul.mubr.f32.gmra.mrb[0].mxu0 %v4894
  %v5013 = vpop.f32.mrb[0].mxu0
  %v5014 = vadd.f32 %v57, %v5013
  %v5015 = vpop.f32.mrb[0].mxu0
  %5016 = vmatprep.mubr.f32.mxu0 0.0
  %5017 = vmatmul.mubr.f32.gmra.mrb[0].mxu0 %v4897
  %v5018 = vpop.f32.mrb[0].mxu0
  %v5019 = vadd.f32 %v57, %v5018
  %v5020 = vpop.f32.mrb[0].mxu0
  %5021 = vmatprep.mubr.f32.mxu0 0.0
  %5022 = vmatmul.mubr.f32.gmra.mrb[0].mxu0 %v4900
  %v5023 = vpop.f32.mrb[0].mxu0
  %v5024 = vadd.f32 %v57, %v5023
  %v5025 = vpop.f32.mrb[0].mxu0
  %5026 = vmatprep.mubr.f32.mxu0 0.0
  %5027 = vmatmul.mubr.f32.gmra.mrb[0].mxu0 %v4903
  %v5028 = vpop.f32.mrb[0].mxu0
  %v5029 = vadd.f32 %v57, %v5028
  %v5030 = vpop.f32.mrb[0].mxu0
  %5031 = vmatprep.mubr.f32.mxu0 0.0
  %5032 = vmatmul.mubr.f32.gmra.mrb[0].mxu0 %v4906
  %v5033 = vpop.f32.mrb[0].mxu0
  %v5034 = vadd.f32 %v57, %v5033
  %v5035 = vpop.f32.mrb[0].mxu0
  %5036 = vmatprep.mubr.f32.mxu0 0.0
  %5037 = vmatmul.mubr.f32.gmra.mrb[0].mxu0 %v4909
  %v5038 = vpop.f32.mrb[0].mxu0
  %v5039 = vadd.f32 %v57, %v5038
  %v5040 = vpop.f32.mrb[0].mxu0
  %5041 = vmatprep.mubr.f32.mxu0 0.0
  %5042 = vmatmul.mubr.f32.gmra.mrb[0].mxu0 %v4912
  %v5043 = vpop.f32.mrb[0].mxu0
  %v5044 = vadd.f32 %v57, %v5043
  %v5045 = vpop.f32.mrb[0].mxu0
  %5046 = vmatprep.mubr.f32.mxu0 0.0
  %5047 = vmatmul.mubr.f32.gmra.mrb[0].mxu0 %v4915
  %v5048 = vpop.f32.mrb[0].mxu0
  %v5049 = vadd.f32 %v57, %v5048
  %v5050 = vpop.f32.mrb[0].mxu0
  %5051 = vmatprep.mubr.f32.mxu0 0.0
  %5052 = vmatmul.mubr.f32.gmra.mrb[0].mxu0 %v4918
  %v5053 = vpop.f32.mrb[0].mxu0
  %v5054 = vadd.f32 %v57, %v5053
  %v5055 = vpop.f32.mrb[0].mxu0
  %5056 = vmatprep.mubr.f32.mxu0 0.0
  %5057 = vmatmul.mubr.f32.gmra.mrb[0].mxu0 %v4921
  %v5058 = vpop.f32.mrb[0].mxu0
  %v5059 = vadd.f32 %v57, %v5058
  %v5060 = vpop.f32.mrb[0].mxu0
  %5061 = vmatprep.mubr.f32.mxu0 0.0
  %5062 = vmatmul.mubr.f32.gmra.mrb[0].mxu0 %v4924
  %v5063 = vpop.f32.mrb[0].mxu0
  %v5064 = vadd.f32 %v57, %v5063
  %v5065 = vpop.f32.mrb[0].mxu0
  %5066 = vmatprep.mubr.f32.mxu0 0.0
  %5067 = vmatmul.mubr.f32.gmra.mrb[0].mxu0 %v4927
  %v5068 = vpop.f32.mrb[0].mxu0
  %v5069 = vadd.f32 %v57, %v5068
  %v5070 = vpop.f32.mrb[0].mxu0
  %5071 = vmatprep.mubr.f32.mxu0 0.0
  %5072 = vmatmul.mubr.f32.gmra.mrb[0].mxu0 %v4930
  %v5073 = vpop.f32.mrb[0].mxu0
  %v5074 = vadd.f32 %v57, %v5073
  %v5075 = vpop.f32.mrb[0].mxu0
  %5076 = vdwg.mxu0
  %v5077 = vmax.f32 %v4999, 0.0
  %v5078 = vmax.f32 %v5004, 0.0
  %v5079 = vmax.f32 %v5009, 0.0
  %v5080 = vmax.f32 %v5014, 0.0
  %v5081 = vmax.f32 %v5019, 0.0
  %v5082 = vmax.f32 %v5024, 0.0
  %v5083 = vmax.f32 %v5029, 0.0
  %v5084 = vmax.f32 %v5034, 0.0
  %v5085 = vmax.f32 %v5039, 0.0
  %v5086 = vmax.f32 %v5044, 0.0
  %v5087 = vmax.f32 %v5049, 0.0
  %v5088 = vmax.f32 %v5054, 0.0
  %v5089 = vmax.f32 %v5059, 0.0
  %v5090 = vmax.f32 %v5064, 0.0
  %v5091 = vmax.f32 %v5069, 0.0
  %v5092 = vmax.f32 %v5074, 0.0
  %s5093 = scalar_lea.vmem %s3, 176
  %v5094 = vld [vmem:[%s5093] sm:$0xff]
  %v5095 = vld [vmem:[%s5093 + $0x8] sm:$0x3]
  %v5097 = vsel %vm504, %v5077, 0
  %v5100 = vsel %vm504, %v5078, 0
  %v5103 = vsel %vm504, %v5079, 0
  %v5106 = vsel %vm504, %v5080, 0
  %v5109 = vsel %vm504, %v5081, 0
  %v5112 = vsel %vm504, %v5082, 0
  %v5115 = vsel %vm504, %v5083, 0
  %v5118 = vsel %vm504, %v5084, 0
  %v5121 = vsel %vm504, %v5085, 0
  %v5124 = vsel %vm504, %v5086, 0
  %v5127 = vsel %vm504, %v5087, 0
  %v5130 = vsel %vm504, %v5088, 0
  %v5133 = vsel %vm504, %v5089, 0
  %v5136 = vsel %vm504, %v5090, 0
  %v5139 = vsel %vm504, %v5091, 0
  %v5142 = vsel %vm504, %v5092, 0
  %v5145 = vsel %vm553, %v5095, 0
  %5147 = vmatprep.subr.mxu0 0.0
  %5148 = vmatpush1.msra.mxu0 %v5094
  %5149 = vmatprep.subr.mxu0 0.0
  %5150 = vmatpush1.msra.mxu0 %v5145
  %5151 = vmatprep.subr.mxu0 0.0
  %5152 = vmatpush1.msra.mxu0 0.0
  %5153 = vmatprep.subr.mxu0 0.0
  %5154 = vmatpush1.msra.mxu0 0.0
  %5155 = vmatprep.subr.mxu0 0.0
  %5156 = vmatpush1.msra.mxu0 0.0
  %5157 = vmatprep.subr.mxu0 0.0
  %5158 = vmatpush1.msra.mxu0 0.0
  %5159 = vmatprep.subr.mxu0 0.0
  %5160 = vmatpush1.msra.mxu0 0.0
  %5161 = vmatprep.subr.mxu0 0.0
  %5162 = vmatpush1.msra.mxu0 0.0
  %5163 = vmatprep.subr.mxu0 0.0
  %5164 = vmatpush1.msra.mxu0 0.0
  %5165 = vmatprep.subr.mxu0 0.0
  %5166 = vmatpush1.msra.mxu0 0.0
  %5167 = vmatprep.subr.mxu0 0.0
  %5168 = vmatpush1.msra.mxu0 0.0
  %5169 = vmatprep.subr.mxu0 0.0
  %5170 = vmatpush1.msra.mxu0 0.0
  %5171 = vmatprep.subr.mxu0 0.0
  %5172 = vmatpush1.msra.mxu0 0.0
  %5173 = vmatprep.subr.mxu0 0.0
  %5174 = vmatpush1.msra.mxu0 0.0
  %5175 = vmatprep.subr.mxu0 0.0
  %5176 = vmatpush1.msra.mxu0 0.0
  %5177 = vmatprep.subr.mxu0 0.0
  %5178 = vmatpush1.msra.mxu0 0.0
  %5179 = vmatprep.subr.mxu0 0.0
  %5180 = vmatpush1.msra.mxu0 0.0
  %5181 = vmatprep.subr.mxu0 0.0
  %5182 = vmatpush1.msra.mxu0 0.0
  %5183 = vmatprep.subr.mxu0 0.0
  %5184 = vmatpush1.msra.mxu0 0.0
  %5185 = vmatprep.subr.mxu0 0.0
  %5186 = vmatpush1.msra.mxu0 0.0
  %5187 = vmatprep.subr.mxu0 0.0
  %5188 = vmatpush1.msra.mxu0 0.0
  %5189 = vmatprep.subr.mxu0 0.0
  %5190 = vmatpush1.msra.mxu0 0.0
  %5191 = vmatprep.subr.mxu0 0.0
  %5192 = vmatpush1.msra.mxu0 0.0
  %5193 = vmatprep.subr.mxu0 0.0
  %5194 = vmatpush1.msra.mxu0 0.0
  %5195 = vmatprep.subr.mxu0 0.0
  %5196 = vmatpush1.msra.mxu0 0.0
  %5197 = vmatprep.subr.mxu0 0.0
  %5198 = vmatpush1.msra.mxu0 0.0
  %5199 = vmatprep.subr.mxu0 0.0
  %5200 = vmatpush1.msra.mxu0 0.0
  %5201 = vmatprep.subr.mxu0 0.0
  %5202 = vmatpush1.msra.mxu0 0.0
  %5203 = vmatprep.subr.mxu0 0.0
  %5204 = vmatpush1.msra.mxu0 0.0
  %5205 = vmatprep.subr.mxu0 0.0
  %5206 = vmatpush1.msra.mxu0 0.0
  %5207 = vmatprep.subr.mxu0 0.0
  %5208 = vmatpush1.msra.mxu0 0.0
  %5209 = vmatprep.subr.mxu0 0.0
  %5210 = vmatpush1.msra.mxu0 0.0
  %5211 = vmatprep.mubr.f32.mxu0 0.0
  %5212 = vmatmul.mubr.f32.gmra.mrb[0].mxu0 %v5097
  %v5213 = vpop.f32.mrb[0].mxu0
  %v5214 = vadd.f32 0.0, %v5213
  %v5215 = vpop.f32.mrb[0].mxu0
  %5216 = vmatprep.mubr.f32.mxu0 0.0
  %5217 = vmatmul.mubr.f32.gmra.mrb[0].mxu0 %v5100
  %v5218 = vpop.f32.mrb[0].mxu0
  %v5219 = vadd.f32 0.0, %v5218
  %v5220 = vpop.f32.mrb[0].mxu0
  %5221 = vmatprep.mubr.f32.mxu0 0.0
  %5222 = vmatmul.mubr.f32.gmra.mrb[0].mxu0 %v5103
  %v5223 = vpop.f32.mrb[0].mxu0
  %v5224 = vadd.f32 0.0, %v5223
  %v5225 = vpop.f32.mrb[0].mxu0
  %5226 = vmatprep.mubr.f32.mxu0 0.0
  %5227 = vmatmul.mubr.f32.gmra.mrb[0].mxu0 %v5106
  %v5228 = vpop.f32.mrb[0].mxu0
  %v5229 = vadd.f32 0.0, %v5228
  %v5230 = vpop.f32.mrb[0].mxu0
  %5231 = vmatprep.mubr.f32.mxu0 0.0
  %5232 = vmatmul.mubr.f32.gmra.mrb[0].mxu0 %v5109
  %v5233 = vpop.f32.mrb[0].mxu0
  %v5234 = vadd.f32 0.0, %v5233
  %v5235 = vpop.f32.mrb[0].mxu0
  %5236 = vmatprep.mubr.f32.mxu0 0.0
  %5237 = vmatmul.mubr.f32.gmra.mrb[0].mxu0 %v5112
  %v5238 = vpop.f32.mrb[0].mxu0
  %v5239 = vadd.f32 0.0, %v5238
  %v5240 = vpop.f32.mrb[0].mxu0
  %5241 = vmatprep.mubr.f32.mxu0 0.0
  %5242 = vmatmul.mubr.f32.gmra.mrb[0].mxu0 %v5115
  %v5243 = vpop.f32.mrb[0].mxu0
  %v5244 = vadd.f32 0.0, %v5243
  %v5245 = vpop.f32.mrb[0].mxu0
  %5246 = vmatprep.mubr.f32.mxu0 0.0
  %5247 = vmatmul.mubr.f32.gmra.mrb[0].mxu0 %v5118
  %v5248 = vpop.f32.mrb[0].mxu0
  %v5249 = vadd.f32 0.0, %v5248
  %v5250 = vpop.f32.mrb[0].mxu0
  %5251 = vmatprep.mubr.f32.mxu0 0.0
  %5252 = vmatmul.mubr.f32.gmra.mrb[0].mxu0 %v5121
  %v5253 = vpop.f32.mrb[0].mxu0
  %v5254 = vadd.f32 0.0, %v5253
  %v5255 = vpop.f32.mrb[0].mxu0
  %5256 = vmatprep.mubr.f32.mxu0 0.0
  %5257 = vmatmul.mubr.f32.gmra.mrb[0].mxu0 %v5124
  %v5258 = vpop.f32.mrb[0].mxu0
  %v5259 = vadd.f32 0.0, %v5258
  %v5260 = vpop.f32.mrb[0].mxu0
  %5261 = vmatprep.mubr.f32.mxu0 0.0
  %5262 = vmatmul.mubr.f32.gmra.mrb[0].mxu0 %v5127
  %v5263 = vpop.f32.mrb[0].mxu0
  %v5264 = vadd.f32 0.0, %v5263
  %v5265 = vpop.f32.mrb[0].mxu0
  %5266 = vmatprep.mubr.f32.mxu0 0.0
  %5267 = vmatmul.mubr.f32.gmra.mrb[0].mxu0 %v5130
  %v5268 = vpop.f32.mrb[0].mxu0
  %v5269 = vadd.f32 0.0, %v5268
  %v5270 = vpop.f32.mrb[0].mxu0
  %5271 = vmatprep.mubr.f32.mxu0 0.0
  %5272 = vmatmul.mubr.f32.gmra.mrb[0].mxu0 %v5133
  %v5273 = vpop.f32.mrb[0].mxu0
  %v5274 = vadd.f32 0.0, %v5273
  %v5275 = vpop.f32.mrb[0].mxu0
  %5276 = vmatprep.mubr.f32.mxu0 0.0
  %5277 = vmatmul.mubr.f32.gmra.mrb[0].mxu0 %v5136
  %v5278 = vpop.f32.mrb[0].mxu0
  %v5279 = vadd.f32 0.0, %v5278
  %v5280 = vpop.f32.mrb[0].mxu0
  %5281 = vmatprep.mubr.f32.mxu0 0.0
  %5282 = vmatmul.mubr.f32.gmra.mrb[0].mxu0 %v5139
  %v5283 = vpop.f32.mrb[0].mxu0
  %v5284 = vadd.f32 0.0, %v5283
  %v5285 = vpop.f32.mrb[0].mxu0
  %5286 = vmatprep.mubr.f32.mxu0 0.0
  %5287 = vmatmul.mubr.f32.gmra.mrb[0].mxu0 %v5142
  %v5288 = vpop.f32.mrb[0].mxu0
  %v5289 = vadd.f32 0.0, %v5288
  %v5290 = vpop.f32.mrb[0].mxu0
  %5291 = vdwg.mxu0
  %v5292 = vadd.f32 %v4851, %v5214
  %v5293 = vadd.f32 %v4852, %v5219
  %v5294 = vadd.f32 %v4853, %v5224
  %v5295 = vadd.f32 %v4854, %v5229
  %v5296 = vadd.f32 %v4855, %v5234
  %v5297 = vadd.f32 %v4856, %v5239
  %v5298 = vadd.f32 %v4857, %v5244
  %v5299 = vadd.f32 %v4858, %v5249
  %v5300 = vadd.f32 %v4859, %v5254
  %v5301 = vadd.f32 %v4860, %v5259
  %v5302 = vadd.f32 %v4861, %v5264
  %v5303 = vadd.f32 %v4862, %v5269
  %v5304 = vadd.f32 %v4863, %v5274
  %v5305 = vadd.f32 %v4864, %v5279
  %v5306 = vadd.f32 %v4865, %v5284
  %v5307 = vadd.f32 %v4866, %v5289
  %s5308 = scalar_lea.vmem %s0, 1536
  %v5309 = vld [vmem:[%s5308] sm:$0xff]
  %v5310 = vld [vmem:[%s5308 + $0x8] sm:$0xff]
  %v5311 = vld [vmem:[%s5308 + $0x10] sm:$0xff]
  %v5312 = vld [vmem:[%s5308 + $0x18] sm:$0xff]
  %v5313 = vld [vmem:[%s5308 + $0x20] sm:$0xff]
  %v5314 = vld [vmem:[%s5308 + $0x28] sm:$0xff]
  %v5315 = vld [vmem:[%s5308 + $0x30] sm:$0xff]
  %v5316 = vld [vmem:[%s5308 + $0x38] sm:$0xff]
  %v5317 = vld [vmem:[%s5308 + $0x40] sm:$0xff]
  %v5318 = vld [vmem:[%s5308 + $0x48] sm:$0xff]
  %v5319 = vld [vmem:[%s5308 + $0x50] sm:$0xff]
  %v5320 = vld [vmem:[%s5308 + $0x58] sm:$0xff]
  %v5321 = vld [vmem:[%s5308 + $0x60] sm:$0xff]
  %v5322 = vld [vmem:[%s5308 + $0x68] sm:$0xff]
  %v5323 = vld [vmem:[%s5308 + $0x70] sm:$0xff]
  %v5324 = vld [vmem:[%s5308 + $0x78] sm:$0xff]
  %v5326 = vsel %vm59, %v5309, 0
  %v5329 = vsel %vm59, %v5310, 0
  %v5332 = vsel %vm59, %v5311, 0
  %v5335 = vsel %vm59, %v5312, 0
  %v5338 = vsel %vm59, %v5313, 0
  %v5341 = vsel %vm59, %v5314, 0
  %v5344 = vsel %vm59, %v5315, 0
  %v5347 = vsel %vm59, %v5316, 0
  %v5350 = vsel %vm59, %v5317, 0
  %v5353 = vsel %vm59, %v5318, 0
  %v5356 = vsel %vm59, %v5319, 0
  %v5359 = vsel %vm59, %v5320, 0
  %v5362 = vsel %vm59, %v5321, 0
  %v5365 = vsel %vm59, %v5322, 0
  %v5368 = vsel %vm59, %v5323, 0
  %v5371 = vsel %vm59, %v5324, 0
  %5373 = vmatprep.subr.mxu0 0.0
  %5374 = vmatpush1.msra.mxu0 %v32
  %5375 = vmatprep.subr.mxu0 0.0
  %5376 = vmatpush1.msra.mxu0 %v33
  %5377 = vmatprep.subr.mxu0 0.0
  %5378 = vmatpush1.msra.mxu0 %v34
  %5379 = vmatprep.subr.mxu0 0.0
  %5380 = vmatpush1.msra.mxu0 %v110
  %5381 = vmatprep.subr.mxu0 0.0
  %5382 = vmatpush1.msra.mxu0 0.0
  %5383 = vmatprep.subr.mxu0 0.0
  %5384 = vmatpush1.msra.mxu0 0.0
  %5385 = vmatprep.subr.mxu0 0.0
  %5386 = vmatpush1.msra.mxu0 0.0
  %5387 = vmatprep.subr.mxu0 0.0
  %5388 = vmatpush1.msra.mxu0 0.0
  %5389 = vmatprep.subr.mxu0 0.0
  %5390 = vmatpush1.msra.mxu0 0.0
  %5391 = vmatprep.subr.mxu0 0.0
  %5392 = vmatpush1.msra.mxu0 0.0
  %5393 = vmatprep.subr.mxu0 0.0
  %5394 = vmatpush1.msra.mxu0 0.0
  %5395 = vmatprep.subr.mxu0 0.0
  %5396 = vmatpush1.msra.mxu0 0.0
  %5397 = vmatprep.subr.mxu0 0.0
  %5398 = vmatpush1.msra.mxu0 0.0
  %5399 = vmatprep.subr.mxu0 0.0
  %5400 = vmatpush1.msra.mxu0 0.0
  %5401 = vmatprep.subr.mxu0 0.0
  %5402 = vmatpush1.msra.mxu0 0.0
  %5403 = vmatprep.subr.mxu0 0.0
  %5404 = vmatpush1.msra.mxu0 0.0
  %5405 = vmatprep.subr.mxu0 0.0
  %5406 = vmatpush1.msra.mxu0 0.0
  %5407 = vmatprep.subr.mxu0 0.0
  %5408 = vmatpush1.msra.mxu0 0.0
  %5409 = vmatprep.subr.mxu0 0.0
  %5410 = vmatpush1.msra.mxu0 0.0
  %5411 = vmatprep.subr.mxu0 0.0
  %5412 = vmatpush1.msra.mxu0 0.0
  %5413 = vmatprep.subr.mxu0 0.0
  %5414 = vmatpush1.msra.mxu0 0.0
  %5415 = vmatprep.subr.mxu0 0.0
  %5416 = vmatpush1.msra.mxu0 0.0
  %5417 = vmatprep.subr.mxu0 0.0
  %5418 = vmatpush1.msra.mxu0 0.0
  %5419 = vmatprep.subr.mxu0 0.0
  %5420 = vmatpush1.msra.mxu0 0.0
  %5421 = vmatprep.subr.mxu0 0.0
  %5422 = vmatpush1.msra.mxu0 0.0
  %5423 = vmatprep.subr.mxu0 0.0
  %5424 = vmatpush1.msra.mxu0 0.0
  %5425 = vmatprep.subr.mxu0 0.0
  %5426 = vmatpush1.msra.mxu0 0.0
  %5427 = vmatprep.subr.mxu0 0.0
  %5428 = vmatpush1.msra.mxu0 0.0
  %5429 = vmatprep.subr.mxu0 0.0
  %5430 = vmatpush1.msra.mxu0 0.0
  %5431 = vmatprep.subr.mxu0 0.0
  %5432 = vmatpush1.msra.mxu0 0.0
  %5433 = vmatprep.subr.mxu0 0.0
  %5434 = vmatpush1.msra.mxu0 0.0
  %5435 = vmatprep.subr.mxu0 0.0
  %5436 = vmatpush1.msra.mxu0 0.0
  %5437 = vmatprep.mubr.f32.mxu0 0.0
  %5438 = vmatmul.mubr.f32.gmra.mrb[0].mxu0 %v5326
  %v5439 = vpop.f32.mrb[0].mxu0
  %v5440 = vadd.f32 %v57, %v5439
  %v5441 = vpop.f32.mrb[0].mxu0
  %5442 = vmatprep.mubr.f32.mxu0 0.0
  %5443 = vmatmul.mubr.f32.gmra.mrb[0].mxu0 %v5329
  %v5444 = vpop.f32.mrb[0].mxu0
  %v5445 = vadd.f32 %v57, %v5444
  %v5446 = vpop.f32.mrb[0].mxu0
  %5447 = vmatprep.mubr.f32.mxu0 0.0
  %5448 = vmatmul.mubr.f32.gmra.mrb[0].mxu0 %v5332
  %v5449 = vpop.f32.mrb[0].mxu0
  %v5450 = vadd.f32 %v57, %v5449
  %v5451 = vpop.f32.mrb[0].mxu0
  %5452 = vmatprep.mubr.f32.mxu0 0.0
  %5453 = vmatmul.mubr.f32.gmra.mrb[0].mxu0 %v5335
  %v5454 = vpop.f32.mrb[0].mxu0
  %v5455 = vadd.f32 %v57, %v5454
  %v5456 = vpop.f32.mrb[0].mxu0
  %5457 = vmatprep.mubr.f32.mxu0 0.0
  %5458 = vmatmul.mubr.f32.gmra.mrb[0].mxu0 %v5338
  %v5459 = vpop.f32.mrb[0].mxu0
  %v5460 = vadd.f32 %v57, %v5459
  %v5461 = vpop.f32.mrb[0].mxu0
  %5462 = vmatprep.mubr.f32.mxu0 0.0
  %5463 = vmatmul.mubr.f32.gmra.mrb[0].mxu0 %v5341
  %v5464 = vpop.f32.mrb[0].mxu0
  %v5465 = vadd.f32 %v57, %v5464
  %v5466 = vpop.f32.mrb[0].mxu0
  %5467 = vmatprep.mubr.f32.mxu0 0.0
  %5468 = vmatmul.mubr.f32.gmra.mrb[0].mxu0 %v5344
  %v5469 = vpop.f32.mrb[0].mxu0
  %v5470 = vadd.f32 %v57, %v5469
  %v5471 = vpop.f32.mrb[0].mxu0
  %5472 = vmatprep.mubr.f32.mxu0 0.0
  %5473 = vmatmul.mubr.f32.gmra.mrb[0].mxu0 %v5347
  %v5474 = vpop.f32.mrb[0].mxu0
  %v5475 = vadd.f32 %v57, %v5474
  %v5476 = vpop.f32.mrb[0].mxu0
  %5477 = vmatprep.mubr.f32.mxu0 0.0
  %5478 = vmatmul.mubr.f32.gmra.mrb[0].mxu0 %v5350
  %v5479 = vpop.f32.mrb[0].mxu0
  %v5480 = vadd.f32 %v57, %v5479
  %v5481 = vpop.f32.mrb[0].mxu0
  %5482 = vmatprep.mubr.f32.mxu0 0.0
  %5483 = vmatmul.mubr.f32.gmra.mrb[0].mxu0 %v5353
  %v5484 = vpop.f32.mrb[0].mxu0
  %v5485 = vadd.f32 %v57, %v5484
  %v5486 = vpop.f32.mrb[0].mxu0
  %5487 = vmatprep.mubr.f32.mxu0 0.0
  %5488 = vmatmul.mubr.f32.gmra.mrb[0].mxu0 %v5356
  %v5489 = vpop.f32.mrb[0].mxu0
  %v5490 = vadd.f32 %v57, %v5489
  %v5491 = vpop.f32.mrb[0].mxu0
  %5492 = vmatprep.mubr.f32.mxu0 0.0
  %5493 = vmatmul.mubr.f32.gmra.mrb[0].mxu0 %v5359
  %v5494 = vpop.f32.mrb[0].mxu0
  %v5495 = vadd.f32 %v57, %v5494
  %v5496 = vpop.f32.mrb[0].mxu0
  %5497 = vmatprep.mubr.f32.mxu0 0.0
  %5498 = vmatmul.mubr.f32.gmra.mrb[0].mxu0 %v5362
  %v5499 = vpop.f32.mrb[0].mxu0
  %v5500 = vadd.f32 %v57, %v5499
  %v5501 = vpop.f32.mrb[0].mxu0
  %5502 = vmatprep.mubr.f32.mxu0 0.0
  %5503 = vmatmul.mubr.f32.gmra.mrb[0].mxu0 %v5365
  %v5504 = vpop.f32.mrb[0].mxu0
  %v5505 = vadd.f32 %v57, %v5504
  %v5506 = vpop.f32.mrb[0].mxu0
  %5507 = vmatprep.mubr.f32.mxu0 0.0
  %5508 = vmatmul.mubr.f32.gmra.mrb[0].mxu0 %v5368
  %v5509 = vpop.f32.mrb[0].mxu0
  %v5510 = vadd.f32 %v57, %v5509
  %v5511 = vpop.f32.mrb[0].mxu0
  %5512 = vmatprep.mubr.f32.mxu0 0.0
  %5513 = vmatmul.mubr.f32.gmra.mrb[0].mxu0 %v5371
  %v5514 = vpop.f32.mrb[0].mxu0
  %v5515 = vadd.f32 %v57, %v5514
  %v5516 = vpop.f32.mrb[0].mxu0
  %5517 = vdwg.mxu0
  %v5518 = vmax.f32 %v5440, 0.0
  %v5519 = vmax.f32 %v5445, 0.0
  %v5520 = vmax.f32 %v5450, 0.0
  %v5521 = vmax.f32 %v5455, 0.0
  %v5522 = vmax.f32 %v5460, 0.0
  %v5523 = vmax.f32 %v5465, 0.0
  %v5524 = vmax.f32 %v5470, 0.0
  %v5525 = vmax.f32 %v5475, 0.0
  %v5526 = vmax.f32 %v5480, 0.0
  %v5527 = vmax.f32 %v5485, 0.0
  %v5528 = vmax.f32 %v5490, 0.0
  %v5529 = vmax.f32 %v5495, 0.0
  %v5530 = vmax.f32 %v5500, 0.0
  %v5531 = vmax.f32 %v5505, 0.0
  %v5532 = vmax.f32 %v5510, 0.0
  %v5533 = vmax.f32 %v5515, 0.0
  %s5534 = scalar_lea.vmem %s3, 192
  %v5535 = vld [vmem:[%s5534] sm:$0xff]
  %v5536 = vld [vmem:[%s5534 + $0x8] sm:$0x3]
  %v5538 = vsel %vm504, %v5518, 0
  %v5541 = vsel %vm504, %v5519, 0
  %v5544 = vsel %vm504, %v5520, 0
  %v5547 = vsel %vm504, %v5521, 0
  %v5550 = vsel %vm504, %v5522, 0
  %v5553 = vsel %vm504, %v5523, 0
  %v5556 = vsel %vm504, %v5524, 0
  %v5559 = vsel %vm504, %v5525, 0
  %v5562 = vsel %vm504, %v5526, 0
  %v5565 = vsel %vm504, %v5527, 0
  %v5568 = vsel %vm504, %v5528, 0
  %v5571 = vsel %vm504, %v5529, 0
  %v5574 = vsel %vm504, %v5530, 0
  %v5577 = vsel %vm504, %v5531, 0
  %v5580 = vsel %vm504, %v5532, 0
  %v5583 = vsel %vm504, %v5533, 0
  %v5586 = vsel %vm553, %v5536, 0
  %5588 = vmatprep.subr.mxu0 0.0
  %5589 = vmatpush1.msra.mxu0 %v5535
  %5590 = vmatprep.subr.mxu0 0.0
  %5591 = vmatpush1.msra.mxu0 %v5586
  %5592 = vmatprep.subr.mxu0 0.0
  %5593 = vmatpush1.msra.mxu0 0.0
  %5594 = vmatprep.subr.mxu0 0.0
  %5595 = vmatpush1.msra.mxu0 0.0
  %5596 = vmatprep.subr.mxu0 0.0
  %5597 = vmatpush1.msra.mxu0 0.0
  %5598 = vmatprep.subr.mxu0 0.0
  %5599 = vmatpush1.msra.mxu0 0.0
  %5600 = vmatprep.subr.mxu0 0.0
  %5601 = vmatpush1.msra.mxu0 0.0
  %5602 = vmatprep.subr.mxu0 0.0
  %5603 = vmatpush1.msra.mxu0 0.0
  %5604 = vmatprep.subr.mxu0 0.0
  %5605 = vmatpush1.msra.mxu0 0.0
  %5606 = vmatprep.subr.mxu0 0.0
  %5607 = vmatpush1.msra.mxu0 0.0
  %5608 = vmatprep.subr.mxu0 0.0
  %5609 = vmatpush1.msra.mxu0 0.0
  %5610 = vmatprep.subr.mxu0 0.0
  %5611 = vmatpush1.msra.mxu0 0.0
  %5612 = vmatprep.subr.mxu0 0.0
  %5613 = vmatpush1.msra.mxu0 0.0
  %5614 = vmatprep.subr.mxu0 0.0
  %5615 = vmatpush1.msra.mxu0 0.0
  %5616 = vmatprep.subr.mxu0 0.0
  %5617 = vmatpush1.msra.mxu0 0.0
  %5618 = vmatprep.subr.mxu0 0.0
  %5619 = vmatpush1.msra.mxu0 0.0
  %5620 = vmatprep.subr.mxu0 0.0
  %5621 = vmatpush1.msra.mxu0 0.0
  %5622 = vmatprep.subr.mxu0 0.0
  %5623 = vmatpush1.msra.mxu0 0.0
  %5624 = vmatprep.subr.mxu0 0.0
  %5625 = vmatpush1.msra.mxu0 0.0
  %5626 = vmatprep.subr.mxu0 0.0
  %5627 = vmatpush1.msra.mxu0 0.0
  %5628 = vmatprep.subr.mxu0 0.0
  %5629 = vmatpush1.msra.mxu0 0.0
  %5630 = vmatprep.subr.mxu0 0.0
  %5631 = vmatpush1.msra.mxu0 0.0
  %5632 = vmatprep.subr.mxu0 0.0
  %5633 = vmatpush1.msra.mxu0 0.0
  %5634 = vmatprep.subr.mxu0 0.0
  %5635 = vmatpush1.msra.mxu0 0.0
  %5636 = vmatprep.subr.mxu0 0.0
  %5637 = vmatpush1.msra.mxu0 0.0
  %5638 = vmatprep.subr.mxu0 0.0
  %5639 = vmatpush1.msra.mxu0 0.0
  %5640 = vmatprep.subr.mxu0 0.0
  %5641 = vmatpush1.msra.mxu0 0.0
  %5642 = vmatprep.subr.mxu0 0.0
  %5643 = vmatpush1.msra.mxu0 0.0
  %5644 = vmatprep.subr.mxu0 0.0
  %5645 = vmatpush1.msra.mxu0 0.0
  %5646 = vmatprep.subr.mxu0 0.0
  %5647 = vmatpush1.msra.mxu0 0.0
  %5648 = vmatprep.subr.mxu0 0.0
  %5649 = vmatpush1.msra.mxu0 0.0
  %5650 = vmatprep.subr.mxu0 0.0
  %5651 = vmatpush1.msra.mxu0 0.0
  %5652 = vmatprep.mubr.f32.mxu0 0.0
  %5653 = vmatmul.mubr.f32.gmra.mrb[0].mxu0 %v5538
  %v5654 = vpop.f32.mrb[0].mxu0
  %v5655 = vadd.f32 0.0, %v5654
  %v5656 = vpop.f32.mrb[0].mxu0
  %5657 = vmatprep.mubr.f32.mxu0 0.0
  %5658 = vmatmul.mubr.f32.gmra.mrb[0].mxu0 %v5541
  %v5659 = vpop.f32.mrb[0].mxu0
  %v5660 = vadd.f32 0.0, %v5659
  %v5661 = vpop.f32.mrb[0].mxu0
  %5662 = vmatprep.mubr.f32.mxu0 0.0
  %5663 = vmatmul.mubr.f32.gmra.mrb[0].mxu0 %v5544
  %v5664 = vpop.f32.mrb[0].mxu0
  %v5665 = vadd.f32 0.0, %v5664
  %v5666 = vpop.f32.mrb[0].mxu0
  %5667 = vmatprep.mubr.f32.mxu0 0.0
  %5668 = vmatmul.mubr.f32.gmra.mrb[0].mxu0 %v5547
  %v5669 = vpop.f32.mrb[0].mxu0
  %v5670 = vadd.f32 0.0, %v5669
  %v5671 = vpop.f32.mrb[0].mxu0
  %5672 = vmatprep.mubr.f32.mxu0 0.0
  %5673 = vmatmul.mubr.f32.gmra.mrb[0].mxu0 %v5550
  %v5674 = vpop.f32.mrb[0].mxu0
  %v5675 = vadd.f32 0.0, %v5674
  %v5676 = vpop.f32.mrb[0].mxu0
  %5677 = vmatprep.mubr.f32.mxu0 0.0
  %5678 = vmatmul.mubr.f32.gmra.mrb[0].mxu0 %v5553
  %v5679 = vpop.f32.mrb[0].mxu0
  %v5680 = vadd.f32 0.0, %v5679
  %v5681 = vpop.f32.mrb[0].mxu0
  %5682 = vmatprep.mubr.f32.mxu0 0.0
  %5683 = vmatmul.mubr.f32.gmra.mrb[0].mxu0 %v5556
  %v5684 = vpop.f32.mrb[0].mxu0
  %v5685 = vadd.f32 0.0, %v5684
  %v5686 = vpop.f32.mrb[0].mxu0
  %5687 = vmatprep.mubr.f32.mxu0 0.0
  %5688 = vmatmul.mubr.f32.gmra.mrb[0].mxu0 %v5559
  %v5689 = vpop.f32.mrb[0].mxu0
  %v5690 = vadd.f32 0.0, %v5689
  %v5691 = vpop.f32.mrb[0].mxu0
  %5692 = vmatprep.mubr.f32.mxu0 0.0
  %5693 = vmatmul.mubr.f32.gmra.mrb[0].mxu0 %v5562
  %v5694 = vpop.f32.mrb[0].mxu0
  %v5695 = vadd.f32 0.0, %v5694
  %v5696 = vpop.f32.mrb[0].mxu0
  %5697 = vmatprep.mubr.f32.mxu0 0.0
  %5698 = vmatmul.mubr.f32.gmra.mrb[0].mxu0 %v5565
  %v5699 = vpop.f32.mrb[0].mxu0
  %v5700 = vadd.f32 0.0, %v5699
  %v5701 = vpop.f32.mrb[0].mxu0
  %5702 = vmatprep.mubr.f32.mxu0 0.0
  %5703 = vmatmul.mubr.f32.gmra.mrb[0].mxu0 %v5568
  %v5704 = vpop.f32.mrb[0].mxu0
  %v5705 = vadd.f32 0.0, %v5704
  %v5706 = vpop.f32.mrb[0].mxu0
  %5707 = vmatprep.mubr.f32.mxu0 0.0
  %5708 = vmatmul.mubr.f32.gmra.mrb[0].mxu0 %v5571
  %v5709 = vpop.f32.mrb[0].mxu0
  %v5710 = vadd.f32 0.0, %v5709
  %v5711 = vpop.f32.mrb[0].mxu0
  %5712 = vmatprep.mubr.f32.mxu0 0.0
  %5713 = vmatmul.mubr.f32.gmra.mrb[0].mxu0 %v5574
  %v5714 = vpop.f32.mrb[0].mxu0
  %v5715 = vadd.f32 0.0, %v5714
  %v5716 = vpop.f32.mrb[0].mxu0
  %5717 = vmatprep.mubr.f32.mxu0 0.0
  %5718 = vmatmul.mubr.f32.gmra.mrb[0].mxu0 %v5577
  %v5719 = vpop.f32.mrb[0].mxu0
  %v5720 = vadd.f32 0.0, %v5719
  %v5721 = vpop.f32.mrb[0].mxu0
  %5722 = vmatprep.mubr.f32.mxu0 0.0
  %5723 = vmatmul.mubr.f32.gmra.mrb[0].mxu0 %v5580
  %v5724 = vpop.f32.mrb[0].mxu0
  %v5725 = vadd.f32 0.0, %v5724
  %v5726 = vpop.f32.mrb[0].mxu0
  %5727 = vmatprep.mubr.f32.mxu0 0.0
  %5728 = vmatmul.mubr.f32.gmra.mrb[0].mxu0 %v5583
  %v5729 = vpop.f32.mrb[0].mxu0
  %v5730 = vadd.f32 0.0, %v5729
  %v5731 = vpop.f32.mrb[0].mxu0
  %5732 = vdwg.mxu0
  %v5733 = vadd.f32 %v5292, %v5655
  %v5734 = vadd.f32 %v5293, %v5660
  %v5735 = vadd.f32 %v5294, %v5665
  %v5736 = vadd.f32 %v5295, %v5670
  %v5737 = vadd.f32 %v5296, %v5675
  %v5738 = vadd.f32 %v5297, %v5680
  %v5739 = vadd.f32 %v5298, %v5685
  %v5740 = vadd.f32 %v5299, %v5690
  %v5741 = vadd.f32 %v5300, %v5695
  %v5742 = vadd.f32 %v5301, %v5700
  %v5743 = vadd.f32 %v5302, %v5705
  %v5744 = vadd.f32 %v5303, %v5710
  %v5745 = vadd.f32 %v5304, %v5715
  %v5746 = vadd.f32 %v5305, %v5720
  %v5747 = vadd.f32 %v5306, %v5725
  %v5748 = vadd.f32 %v5307, %v5730
  %s5749 = scalar_lea.vmem %s0, 1664
  %v5750 = vld [vmem:[%s5749] sm:$0xff]
  %v5751 = vld [vmem:[%s5749 + $0x8] sm:$0xff]
  %v5752 = vld [vmem:[%s5749 + $0x10] sm:$0xff]
  %v5753 = vld [vmem:[%s5749 + $0x18] sm:$0xff]
  %v5754 = vld [vmem:[%s5749 + $0x20] sm:$0xff]
  %v5755 = vld [vmem:[%s5749 + $0x28] sm:$0xff]
  %v5756 = vld [vmem:[%s5749 + $0x30] sm:$0xff]
  %v5757 = vld [vmem:[%s5749 + $0x38] sm:$0xff]
  %v5758 = vld [vmem:[%s5749 + $0x40] sm:$0xff]
  %v5759 = vld [vmem:[%s5749 + $0x48] sm:$0xff]
  %v5760 = vld [vmem:[%s5749 + $0x50] sm:$0xff]
  %v5761 = vld [vmem:[%s5749 + $0x58] sm:$0xff]
  %v5762 = vld [vmem:[%s5749 + $0x60] sm:$0xff]
  %v5763 = vld [vmem:[%s5749 + $0x68] sm:$0xff]
  %v5764 = vld [vmem:[%s5749 + $0x70] sm:$0xff]
  %v5765 = vld [vmem:[%s5749 + $0x78] sm:$0xff]
  %v5767 = vsel %vm59, %v5750, 0
  %v5770 = vsel %vm59, %v5751, 0
  %v5773 = vsel %vm59, %v5752, 0
  %v5776 = vsel %vm59, %v5753, 0
  %v5779 = vsel %vm59, %v5754, 0
  %v5782 = vsel %vm59, %v5755, 0
  %v5785 = vsel %vm59, %v5756, 0
  %v5788 = vsel %vm59, %v5757, 0
  %v5791 = vsel %vm59, %v5758, 0
  %v5794 = vsel %vm59, %v5759, 0
  %v5797 = vsel %vm59, %v5760, 0
  %v5800 = vsel %vm59, %v5761, 0
  %v5803 = vsel %vm59, %v5762, 0
  %v5806 = vsel %vm59, %v5763, 0
  %v5809 = vsel %vm59, %v5764, 0
  %v5812 = vsel %vm59, %v5765, 0
  %5814 = vmatprep.subr.mxu0 0.0
  %5815 = vmatpush1.msra.mxu0 %v32
  %5816 = vmatprep.subr.mxu0 0.0
  %5817 = vmatpush1.msra.mxu0 %v33
  %5818 = vmatprep.subr.mxu0 0.0
  %5819 = vmatpush1.msra.mxu0 %v34
  %5820 = vmatprep.subr.mxu0 0.0
  %5821 = vmatpush1.msra.mxu0 %v110
  %5822 = vmatprep.subr.mxu0 0.0
  %5823 = vmatpush1.msra.mxu0 0.0
  %5824 = vmatprep.subr.mxu0 0.0
  %5825 = vmatpush1.msra.mxu0 0.0
  %5826 = vmatprep.subr.mxu0 0.0
  %5827 = vmatpush1.msra.mxu0 0.0
  %5828 = vmatprep.subr.mxu0 0.0
  %5829 = vmatpush1.msra.mxu0 0.0
  %5830 = vmatprep.subr.mxu0 0.0
  %5831 = vmatpush1.msra.mxu0 0.0
  %5832 = vmatprep.subr.mxu0 0.0
  %5833 = vmatpush1.msra.mxu0 0.0
  %5834 = vmatprep.subr.mxu0 0.0
  %5835 = vmatpush1.msra.mxu0 0.0
  %5836 = vmatprep.subr.mxu0 0.0
  %5837 = vmatpush1.msra.mxu0 0.0
  %5838 = vmatprep.subr.mxu0 0.0
  %5839 = vmatpush1.msra.mxu0 0.0
  %5840 = vmatprep.subr.mxu0 0.0
  %5841 = vmatpush1.msra.mxu0 0.0
  %5842 = vmatprep.subr.mxu0 0.0
  %5843 = vmatpush1.msra.mxu0 0.0
  %5844 = vmatprep.subr.mxu0 0.0
  %5845 = vmatpush1.msra.mxu0 0.0
  %5846 = vmatprep.subr.mxu0 0.0
  %5847 = vmatpush1.msra.mxu0 0.0
  %5848 = vmatprep.subr.mxu0 0.0
  %5849 = vmatpush1.msra.mxu0 0.0
  %5850 = vmatprep.subr.mxu0 0.0
  %5851 = vmatpush1.msra.mxu0 0.0
  %5852 = vmatprep.subr.mxu0 0.0
  %5853 = vmatpush1.msra.mxu0 0.0
  %5854 = vmatprep.subr.mxu0 0.0
  %5855 = vmatpush1.msra.mxu0 0.0
  %5856 = vmatprep.subr.mxu0 0.0
  %5857 = vmatpush1.msra.mxu0 0.0
  %5858 = vmatprep.subr.mxu0 0.0
  %5859 = vmatpush1.msra.mxu0 0.0
  %5860 = vmatprep.subr.mxu0 0.0
  %5861 = vmatpush1.msra.mxu0 0.0
  %5862 = vmatprep.subr.mxu0 0.0
  %5863 = vmatpush1.msra.mxu0 0.0
  %5864 = vmatprep.subr.mxu0 0.0
  %5865 = vmatpush1.msra.mxu0 0.0
  %5866 = vmatprep.subr.mxu0 0.0
  %5867 = vmatpush1.msra.mxu0 0.0
  %5868 = vmatprep.subr.mxu0 0.0
  %5869 = vmatpush1.msra.mxu0 0.0
  %5870 = vmatprep.subr.mxu0 0.0
  %5871 = vmatpush1.msra.mxu0 0.0
  %5872 = vmatprep.subr.mxu0 0.0
  %5873 = vmatpush1.msra.mxu0 0.0
  %5874 = vmatprep.subr.mxu0 0.0
  %5875 = vmatpush1.msra.mxu0 0.0
  %5876 = vmatprep.subr.mxu0 0.0
  %5877 = vmatpush1.msra.mxu0 0.0
  %5878 = vmatprep.mubr.f32.mxu0 0.0
  %5879 = vmatmul.mubr.f32.gmra.mrb[0].mxu0 %v5767
  %v5880 = vpop.f32.mrb[0].mxu0
  %v5881 = vadd.f32 %v57, %v5880
  %v5882 = vpop.f32.mrb[0].mxu0
  %5883 = vmatprep.mubr.f32.mxu0 0.0
  %5884 = vmatmul.mubr.f32.gmra.mrb[0].mxu0 %v5770
  %v5885 = vpop.f32.mrb[0].mxu0
  %v5886 = vadd.f32 %v57, %v5885
  %v5887 = vpop.f32.mrb[0].mxu0
  %5888 = vmatprep.mubr.f32.mxu0 0.0
  %5889 = vmatmul.mubr.f32.gmra.mrb[0].mxu0 %v5773
  %v5890 = vpop.f32.mrb[0].mxu0
  %v5891 = vadd.f32 %v57, %v5890
  %v5892 = vpop.f32.mrb[0].mxu0
  %5893 = vmatprep.mubr.f32.mxu0 0.0
  %5894 = vmatmul.mubr.f32.gmra.mrb[0].mxu0 %v5776
  %v5895 = vpop.f32.mrb[0].mxu0
  %v5896 = vadd.f32 %v57, %v5895
  %v5897 = vpop.f32.mrb[0].mxu0
  %5898 = vmatprep.mubr.f32.mxu0 0.0
  %5899 = vmatmul.mubr.f32.gmra.mrb[0].mxu0 %v5779
  %v5900 = vpop.f32.mrb[0].mxu0
  %v5901 = vadd.f32 %v57, %v5900
  %v5902 = vpop.f32.mrb[0].mxu0
  %5903 = vmatprep.mubr.f32.mxu0 0.0
  %5904 = vmatmul.mubr.f32.gmra.mrb[0].mxu0 %v5782
  %v5905 = vpop.f32.mrb[0].mxu0
  %v5906 = vadd.f32 %v57, %v5905
  %v5907 = vpop.f32.mrb[0].mxu0
  %5908 = vmatprep.mubr.f32.mxu0 0.0
  %5909 = vmatmul.mubr.f32.gmra.mrb[0].mxu0 %v5785
  %v5910 = vpop.f32.mrb[0].mxu0
  %v5911 = vadd.f32 %v57, %v5910
  %v5912 = vpop.f32.mrb[0].mxu0
  %5913 = vmatprep.mubr.f32.mxu0 0.0
  %5914 = vmatmul.mubr.f32.gmra.mrb[0].mxu0 %v5788
  %v5915 = vpop.f32.mrb[0].mxu0
  %v5916 = vadd.f32 %v57, %v5915
  %v5917 = vpop.f32.mrb[0].mxu0
  %5918 = vmatprep.mubr.f32.mxu0 0.0
  %5919 = vmatmul.mubr.f32.gmra.mrb[0].mxu0 %v5791
  %v5920 = vpop.f32.mrb[0].mxu0
  %v5921 = vadd.f32 %v57, %v5920
  %v5922 = vpop.f32.mrb[0].mxu0
  %5923 = vmatprep.mubr.f32.mxu0 0.0
  %5924 = vmatmul.mubr.f32.gmra.mrb[0].mxu0 %v5794
  %v5925 = vpop.f32.mrb[0].mxu0
  %v5926 = vadd.f32 %v57, %v5925
  %v5927 = vpop.f32.mrb[0].mxu0
  %5928 = vmatprep.mubr.f32.mxu0 0.0
  %5929 = vmatmul.mubr.f32.gmra.mrb[0].mxu0 %v5797
  %v5930 = vpop.f32.mrb[0].mxu0
  %v5931 = vadd.f32 %v57, %v5930
  %v5932 = vpop.f32.mrb[0].mxu0
  %5933 = vmatprep.mubr.f32.mxu0 0.0
  %5934 = vmatmul.mubr.f32.gmra.mrb[0].mxu0 %v5800
  %v5935 = vpop.f32.mrb[0].mxu0
  %v5936 = vadd.f32 %v57, %v5935
  %v5937 = vpop.f32.mrb[0].mxu0
  %5938 = vmatprep.mubr.f32.mxu0 0.0
  %5939 = vmatmul.mubr.f32.gmra.mrb[0].mxu0 %v5803
  %v5940 = vpop.f32.mrb[0].mxu0
  %v5941 = vadd.f32 %v57, %v5940
  %v5942 = vpop.f32.mrb[0].mxu0
  %5943 = vmatprep.mubr.f32.mxu0 0.0
  %5944 = vmatmul.mubr.f32.gmra.mrb[0].mxu0 %v5806
  %v5945 = vpop.f32.mrb[0].mxu0
  %v5946 = vadd.f32 %v57, %v5945
  %v5947 = vpop.f32.mrb[0].mxu0
  %5948 = vmatprep.mubr.f32.mxu0 0.0
  %5949 = vmatmul.mubr.f32.gmra.mrb[0].mxu0 %v5809
  %v5950 = vpop.f32.mrb[0].mxu0
  %v5951 = vadd.f32 %v57, %v5950
  %v5952 = vpop.f32.mrb[0].mxu0
  %5953 = vmatprep.mubr.f32.mxu0 0.0
  %5954 = vmatmul.mubr.f32.gmra.mrb[0].mxu0 %v5812
  %v5955 = vpop.f32.mrb[0].mxu0
  %v5956 = vadd.f32 %v57, %v5955
  %v5957 = vpop.f32.mrb[0].mxu0
  %5958 = vdwg.mxu0
  %v5959 = vmax.f32 %v5881, 0.0
  %v5960 = vmax.f32 %v5886, 0.0
  %v5961 = vmax.f32 %v5891, 0.0
  %v5962 = vmax.f32 %v5896, 0.0
  %v5963 = vmax.f32 %v5901, 0.0
  %v5964 = vmax.f32 %v5906, 0.0
  %v5965 = vmax.f32 %v5911, 0.0
  %v5966 = vmax.f32 %v5916, 0.0
  %v5967 = vmax.f32 %v5921, 0.0
  %v5968 = vmax.f32 %v5926, 0.0
  %v5969 = vmax.f32 %v5931, 0.0
  %v5970 = vmax.f32 %v5936, 0.0
  %v5971 = vmax.f32 %v5941, 0.0
  %v5972 = vmax.f32 %v5946, 0.0
  %v5973 = vmax.f32 %v5951, 0.0
  %v5974 = vmax.f32 %v5956, 0.0
  %s5975 = scalar_lea.vmem %s3, 208
  %v5976 = vld [vmem:[%s5975] sm:$0xff]
  %v5977 = vld [vmem:[%s5975 + $0x8] sm:$0x3]
  %v5979 = vsel %vm504, %v5959, 0
  %v5982 = vsel %vm504, %v5960, 0
  %v5985 = vsel %vm504, %v5961, 0
  %v5988 = vsel %vm504, %v5962, 0
  %v5991 = vsel %vm504, %v5963, 0
  %v5994 = vsel %vm504, %v5964, 0
  %v5997 = vsel %vm504, %v5965, 0
  %v6000 = vsel %vm504, %v5966, 0
  %v6003 = vsel %vm504, %v5967, 0
  %v6006 = vsel %vm504, %v5968, 0
  %v6009 = vsel %vm504, %v5969, 0
  %v6012 = vsel %vm504, %v5970, 0
  %v6015 = vsel %vm504, %v5971, 0
  %v6018 = vsel %vm504, %v5972, 0
  %v6021 = vsel %vm504, %v5973, 0
  %v6024 = vsel %vm504, %v5974, 0
  %v6027 = vsel %vm553, %v5977, 0
  %6029 = vmatprep.subr.mxu0 0.0
  %6030 = vmatpush1.msra.mxu0 %v5976
  %6031 = vmatprep.subr.mxu0 0.0
  %6032 = vmatpush1.msra.mxu0 %v6027
  %6033 = vmatprep.subr.mxu0 0.0
  %6034 = vmatpush1.msra.mxu0 0.0
  %6035 = vmatprep.subr.mxu0 0.0
  %6036 = vmatpush1.msra.mxu0 0.0
  %6037 = vmatprep.subr.mxu0 0.0
  %6038 = vmatpush1.msra.mxu0 0.0
  %6039 = vmatprep.subr.mxu0 0.0
  %6040 = vmatpush1.msra.mxu0 0.0
  %6041 = vmatprep.subr.mxu0 0.0
  %6042 = vmatpush1.msra.mxu0 0.0
  %6043 = vmatprep.subr.mxu0 0.0
  %6044 = vmatpush1.msra.mxu0 0.0
  %6045 = vmatprep.subr.mxu0 0.0
  %6046 = vmatpush1.msra.mxu0 0.0
  %6047 = vmatprep.subr.mxu0 0.0
  %6048 = vmatpush1.msra.mxu0 0.0
  %6049 = vmatprep.subr.mxu0 0.0
  %6050 = vmatpush1.msra.mxu0 0.0
  %6051 = vmatprep.subr.mxu0 0.0
  %6052 = vmatpush1.msra.mxu0 0.0
  %6053 = vmatprep.subr.mxu0 0.0
  %6054 = vmatpush1.msra.mxu0 0.0
  %6055 = vmatprep.subr.mxu0 0.0
  %6056 = vmatpush1.msra.mxu0 0.0
  %6057 = vmatprep.subr.mxu0 0.0
  %6058 = vmatpush1.msra.mxu0 0.0
  %6059 = vmatprep.subr.mxu0 0.0
  %6060 = vmatpush1.msra.mxu0 0.0
  %6061 = vmatprep.subr.mxu0 0.0
  %6062 = vmatpush1.msra.mxu0 0.0
  %6063 = vmatprep.subr.mxu0 0.0
  %6064 = vmatpush1.msra.mxu0 0.0
  %6065 = vmatprep.subr.mxu0 0.0
  %6066 = vmatpush1.msra.mxu0 0.0
  %6067 = vmatprep.subr.mxu0 0.0
  %6068 = vmatpush1.msra.mxu0 0.0
  %6069 = vmatprep.subr.mxu0 0.0
  %6070 = vmatpush1.msra.mxu0 0.0
  %6071 = vmatprep.subr.mxu0 0.0
  %6072 = vmatpush1.msra.mxu0 0.0
  %6073 = vmatprep.subr.mxu0 0.0
  %6074 = vmatpush1.msra.mxu0 0.0
  %6075 = vmatprep.subr.mxu0 0.0
  %6076 = vmatpush1.msra.mxu0 0.0
  %6077 = vmatprep.subr.mxu0 0.0
  %6078 = vmatpush1.msra.mxu0 0.0
  %6079 = vmatprep.subr.mxu0 0.0
  %6080 = vmatpush1.msra.mxu0 0.0
  %6081 = vmatprep.subr.mxu0 0.0
  %6082 = vmatpush1.msra.mxu0 0.0
  %6083 = vmatprep.subr.mxu0 0.0
  %6084 = vmatpush1.msra.mxu0 0.0
  %6085 = vmatprep.subr.mxu0 0.0
  %6086 = vmatpush1.msra.mxu0 0.0
  %6087 = vmatprep.subr.mxu0 0.0
  %6088 = vmatpush1.msra.mxu0 0.0
  %6089 = vmatprep.subr.mxu0 0.0
  %6090 = vmatpush1.msra.mxu0 0.0
  %6091 = vmatprep.subr.mxu0 0.0
  %6092 = vmatpush1.msra.mxu0 0.0
  %6093 = vmatprep.mubr.f32.mxu0 0.0
  %6094 = vmatmul.mubr.f32.gmra.mrb[0].mxu0 %v5979
  %v6095 = vpop.f32.mrb[0].mxu0
  %v6096 = vadd.f32 0.0, %v6095
  %v6097 = vpop.f32.mrb[0].mxu0
  %6098 = vmatprep.mubr.f32.mxu0 0.0
  %6099 = vmatmul.mubr.f32.gmra.mrb[0].mxu0 %v5982
  %v6100 = vpop.f32.mrb[0].mxu0
  %v6101 = vadd.f32 0.0, %v6100
  %v6102 = vpop.f32.mrb[0].mxu0
  %6103 = vmatprep.mubr.f32.mxu0 0.0
  %6104 = vmatmul.mubr.f32.gmra.mrb[0].mxu0 %v5985
  %v6105 = vpop.f32.mrb[0].mxu0
  %v6106 = vadd.f32 0.0, %v6105
  %v6107 = vpop.f32.mrb[0].mxu0
  %6108 = vmatprep.mubr.f32.mxu0 0.0
  %6109 = vmatmul.mubr.f32.gmra.mrb[0].mxu0 %v5988
  %v6110 = vpop.f32.mrb[0].mxu0
  %v6111 = vadd.f32 0.0, %v6110
  %v6112 = vpop.f32.mrb[0].mxu0
  %6113 = vmatprep.mubr.f32.mxu0 0.0
  %6114 = vmatmul.mubr.f32.gmra.mrb[0].mxu0 %v5991
  %v6115 = vpop.f32.mrb[0].mxu0
  %v6116 = vadd.f32 0.0, %v6115
  %v6117 = vpop.f32.mrb[0].mxu0
  %6118 = vmatprep.mubr.f32.mxu0 0.0
  %6119 = vmatmul.mubr.f32.gmra.mrb[0].mxu0 %v5994
  %v6120 = vpop.f32.mrb[0].mxu0
  %v6121 = vadd.f32 0.0, %v6120
  %v6122 = vpop.f32.mrb[0].mxu0
  %6123 = vmatprep.mubr.f32.mxu0 0.0
  %6124 = vmatmul.mubr.f32.gmra.mrb[0].mxu0 %v5997
  %v6125 = vpop.f32.mrb[0].mxu0
  %v6126 = vadd.f32 0.0, %v6125
  %v6127 = vpop.f32.mrb[0].mxu0
  %6128 = vmatprep.mubr.f32.mxu0 0.0
  %6129 = vmatmul.mubr.f32.gmra.mrb[0].mxu0 %v6000
  %v6130 = vpop.f32.mrb[0].mxu0
  %v6131 = vadd.f32 0.0, %v6130
  %v6132 = vpop.f32.mrb[0].mxu0
  %6133 = vmatprep.mubr.f32.mxu0 0.0
  %6134 = vmatmul.mubr.f32.gmra.mrb[0].mxu0 %v6003
  %v6135 = vpop.f32.mrb[0].mxu0
  %v6136 = vadd.f32 0.0, %v6135
  %v6137 = vpop.f32.mrb[0].mxu0
  %6138 = vmatprep.mubr.f32.mxu0 0.0
  %6139 = vmatmul.mubr.f32.gmra.mrb[0].mxu0 %v6006
  %v6140 = vpop.f32.mrb[0].mxu0
  %v6141 = vadd.f32 0.0, %v6140
  %v6142 = vpop.f32.mrb[0].mxu0
  %6143 = vmatprep.mubr.f32.mxu0 0.0
  %6144 = vmatmul.mubr.f32.gmra.mrb[0].mxu0 %v6009
  %v6145 = vpop.f32.mrb[0].mxu0
  %v6146 = vadd.f32 0.0, %v6145
  %v6147 = vpop.f32.mrb[0].mxu0
  %6148 = vmatprep.mubr.f32.mxu0 0.0
  %6149 = vmatmul.mubr.f32.gmra.mrb[0].mxu0 %v6012
  %v6150 = vpop.f32.mrb[0].mxu0
  %v6151 = vadd.f32 0.0, %v6150
  %v6152 = vpop.f32.mrb[0].mxu0
  %6153 = vmatprep.mubr.f32.mxu0 0.0
  %6154 = vmatmul.mubr.f32.gmra.mrb[0].mxu0 %v6015
  %v6155 = vpop.f32.mrb[0].mxu0
  %v6156 = vadd.f32 0.0, %v6155
  %v6157 = vpop.f32.mrb[0].mxu0
  %6158 = vmatprep.mubr.f32.mxu0 0.0
  %6159 = vmatmul.mubr.f32.gmra.mrb[0].mxu0 %v6018
  %v6160 = vpop.f32.mrb[0].mxu0
  %v6161 = vadd.f32 0.0, %v6160
  %v6162 = vpop.f32.mrb[0].mxu0
  %6163 = vmatprep.mubr.f32.mxu0 0.0
  %6164 = vmatmul.mubr.f32.gmra.mrb[0].mxu0 %v6021
  %v6165 = vpop.f32.mrb[0].mxu0
  %v6166 = vadd.f32 0.0, %v6165
  %v6167 = vpop.f32.mrb[0].mxu0
  %6168 = vmatprep.mubr.f32.mxu0 0.0
  %6169 = vmatmul.mubr.f32.gmra.mrb[0].mxu0 %v6024
  %v6170 = vpop.f32.mrb[0].mxu0
  %v6171 = vadd.f32 0.0, %v6170
  %v6172 = vpop.f32.mrb[0].mxu0
  %6173 = vdwg.mxu0
  %v6174 = vadd.f32 %v5733, %v6096
  %v6175 = vadd.f32 %v5734, %v6101
  %v6176 = vadd.f32 %v5735, %v6106
  %v6177 = vadd.f32 %v5736, %v6111
  %v6178 = vadd.f32 %v5737, %v6116
  %v6179 = vadd.f32 %v5738, %v6121
  %v6180 = vadd.f32 %v5739, %v6126
  %v6181 = vadd.f32 %v5740, %v6131
  %v6182 = vadd.f32 %v5741, %v6136
  %v6183 = vadd.f32 %v5742, %v6141
  %v6184 = vadd.f32 %v5743, %v6146
  %v6185 = vadd.f32 %v5744, %v6151
  %v6186 = vadd.f32 %v5745, %v6156
  %v6187 = vadd.f32 %v5746, %v6161
  %v6188 = vadd.f32 %v5747, %v6166
  %v6189 = vadd.f32 %v5748, %v6171
  %s6190 = scalar_lea.vmem %s0, 1792
  %v6191 = vld [vmem:[%s6190] sm:$0xff]
  %v6192 = vld [vmem:[%s6190 + $0x8] sm:$0xff]
  %v6193 = vld [vmem:[%s6190 + $0x10] sm:$0xff]
  %v6194 = vld [vmem:[%s6190 + $0x18] sm:$0xff]
  %v6195 = vld [vmem:[%s6190 + $0x20] sm:$0xff]
  %v6196 = vld [vmem:[%s6190 + $0x28] sm:$0xff]
  %v6197 = vld [vmem:[%s6190 + $0x30] sm:$0xff]
  %v6198 = vld [vmem:[%s6190 + $0x38] sm:$0xff]
  %v6199 = vld [vmem:[%s6190 + $0x40] sm:$0xff]
  %v6200 = vld [vmem:[%s6190 + $0x48] sm:$0xff]
  %v6201 = vld [vmem:[%s6190 + $0x50] sm:$0xff]
  %v6202 = vld [vmem:[%s6190 + $0x58] sm:$0xff]
  %v6203 = vld [vmem:[%s6190 + $0x60] sm:$0xff]
  %v6204 = vld [vmem:[%s6190 + $0x68] sm:$0xff]
  %v6205 = vld [vmem:[%s6190 + $0x70] sm:$0xff]
  %v6206 = vld [vmem:[%s6190 + $0x78] sm:$0xff]
  %v6208 = vsel %vm59, %v6191, 0
  %v6211 = vsel %vm59, %v6192, 0
  %v6214 = vsel %vm59, %v6193, 0
  %v6217 = vsel %vm59, %v6194, 0
  %v6220 = vsel %vm59, %v6195, 0
  %v6223 = vsel %vm59, %v6196, 0
  %v6226 = vsel %vm59, %v6197, 0
  %v6229 = vsel %vm59, %v6198, 0
  %v6232 = vsel %vm59, %v6199, 0
  %v6235 = vsel %vm59, %v6200, 0
  %v6238 = vsel %vm59, %v6201, 0
  %v6241 = vsel %vm59, %v6202, 0
  %v6244 = vsel %vm59, %v6203, 0
  %v6247 = vsel %vm59, %v6204, 0
  %v6250 = vsel %vm59, %v6205, 0
  %v6253 = vsel %vm59, %v6206, 0
  %6255 = vmatprep.subr.mxu0 0.0
  %6256 = vmatpush1.msra.mxu0 %v32
  %6257 = vmatprep.subr.mxu0 0.0
  %6258 = vmatpush1.msra.mxu0 %v33
  %6259 = vmatprep.subr.mxu0 0.0
  %6260 = vmatpush1.msra.mxu0 %v34
  %6261 = vmatprep.subr.mxu0 0.0
  %6262 = vmatpush1.msra.mxu0 %v110
  %6263 = vmatprep.subr.mxu0 0.0
  %6264 = vmatpush1.msra.mxu0 0.0
  %6265 = vmatprep.subr.mxu0 0.0
  %6266 = vmatpush1.msra.mxu0 0.0
  %6267 = vmatprep.subr.mxu0 0.0
  %6268 = vmatpush1.msra.mxu0 0.0
  %6269 = vmatprep.subr.mxu0 0.0
  %6270 = vmatpush1.msra.mxu0 0.0
  %6271 = vmatprep.subr.mxu0 0.0
  %6272 = vmatpush1.msra.mxu0 0.0
  %6273 = vmatprep.subr.mxu0 0.0
  %6274 = vmatpush1.msra.mxu0 0.0
  %6275 = vmatprep.subr.mxu0 0.0
  %6276 = vmatpush1.msra.mxu0 0.0
  %6277 = vmatprep.subr.mxu0 0.0
  %6278 = vmatpush1.msra.mxu0 0.0
  %6279 = vmatprep.subr.mxu0 0.0
  %6280 = vmatpush1.msra.mxu0 0.0
  %6281 = vmatprep.subr.mxu0 0.0
  %6282 = vmatpush1.msra.mxu0 0.0
  %6283 = vmatprep.subr.mxu0 0.0
  %6284 = vmatpush1.msra.mxu0 0.0
  %6285 = vmatprep.subr.mxu0 0.0
  %6286 = vmatpush1.msra.mxu0 0.0
  %6287 = vmatprep.subr.mxu0 0.0
  %6288 = vmatpush1.msra.mxu0 0.0
  %6289 = vmatprep.subr.mxu0 0.0
  %6290 = vmatpush1.msra.mxu0 0.0
  %6291 = vmatprep.subr.mxu0 0.0
  %6292 = vmatpush1.msra.mxu0 0.0
  %6293 = vmatprep.subr.mxu0 0.0
  %6294 = vmatpush1.msra.mxu0 0.0
  %6295 = vmatprep.subr.mxu0 0.0
  %6296 = vmatpush1.msra.mxu0 0.0
  %6297 = vmatprep.subr.mxu0 0.0
  %6298 = vmatpush1.msra.mxu0 0.0
  %6299 = vmatprep.subr.mxu0 0.0
  %6300 = vmatpush1.msra.mxu0 0.0
  %6301 = vmatprep.subr.mxu0 0.0
  %6302 = vmatpush1.msra.mxu0 0.0
  %6303 = vmatprep.subr.mxu0 0.0
  %6304 = vmatpush1.msra.mxu0 0.0
  %6305 = vmatprep.subr.mxu0 0.0
  %6306 = vmatpush1.msra.mxu0 0.0
  %6307 = vmatprep.subr.mxu0 0.0
  %6308 = vmatpush1.msra.mxu0 0.0
  %6309 = vmatprep.subr.mxu0 0.0
  %6310 = vmatpush1.msra.mxu0 0.0
  %6311 = vmatprep.subr.mxu0 0.0
  %6312 = vmatpush1.msra.mxu0 0.0
  %6313 = vmatprep.subr.mxu0 0.0
  %6314 = vmatpush1.msra.mxu0 0.0
  %6315 = vmatprep.subr.mxu0 0.0
  %6316 = vmatpush1.msra.mxu0 0.0
  %6317 = vmatprep.subr.mxu0 0.0
  %6318 = vmatpush1.msra.mxu0 0.0
  %6319 = vmatprep.mubr.f32.mxu0 0.0
  %6320 = vmatmul.mubr.f32.gmra.mrb[0].mxu0 %v6208
  %v6321 = vpop.f32.mrb[0].mxu0
  %v6322 = vadd.f32 %v57, %v6321
  %v6323 = vpop.f32.mrb[0].mxu0
  %6324 = vmatprep.mubr.f32.mxu0 0.0
  %6325 = vmatmul.mubr.f32.gmra.mrb[0].mxu0 %v6211
  %v6326 = vpop.f32.mrb[0].mxu0
  %v6327 = vadd.f32 %v57, %v6326
  %v6328 = vpop.f32.mrb[0].mxu0
  %6329 = vmatprep.mubr.f32.mxu0 0.0
  %6330 = vmatmul.mubr.f32.gmra.mrb[0].mxu0 %v6214
  %v6331 = vpop.f32.mrb[0].mxu0
  %v6332 = vadd.f32 %v57, %v6331
  %v6333 = vpop.f32.mrb[0].mxu0
  %6334 = vmatprep.mubr.f32.mxu0 0.0
  %6335 = vmatmul.mubr.f32.gmra.mrb[0].mxu0 %v6217
  %v6336 = vpop.f32.mrb[0].mxu0
  %v6337 = vadd.f32 %v57, %v6336
  %v6338 = vpop.f32.mrb[0].mxu0
  %6339 = vmatprep.mubr.f32.mxu0 0.0
  %6340 = vmatmul.mubr.f32.gmra.mrb[0].mxu0 %v6220
  %v6341 = vpop.f32.mrb[0].mxu0
  %v6342 = vadd.f32 %v57, %v6341
  %v6343 = vpop.f32.mrb[0].mxu0
  %6344 = vmatprep.mubr.f32.mxu0 0.0
  %6345 = vmatmul.mubr.f32.gmra.mrb[0].mxu0 %v6223
  %v6346 = vpop.f32.mrb[0].mxu0
  %v6347 = vadd.f32 %v57, %v6346
  %v6348 = vpop.f32.mrb[0].mxu0
  %6349 = vmatprep.mubr.f32.mxu0 0.0
  %6350 = vmatmul.mubr.f32.gmra.mrb[0].mxu0 %v6226
  %v6351 = vpop.f32.mrb[0].mxu0
  %v6352 = vadd.f32 %v57, %v6351
  %v6353 = vpop.f32.mrb[0].mxu0
  %6354 = vmatprep.mubr.f32.mxu0 0.0
  %6355 = vmatmul.mubr.f32.gmra.mrb[0].mxu0 %v6229
  %v6356 = vpop.f32.mrb[0].mxu0
  %v6357 = vadd.f32 %v57, %v6356
  %v6358 = vpop.f32.mrb[0].mxu0
  %6359 = vmatprep.mubr.f32.mxu0 0.0
  %6360 = vmatmul.mubr.f32.gmra.mrb[0].mxu0 %v6232
  %v6361 = vpop.f32.mrb[0].mxu0
  %v6362 = vadd.f32 %v57, %v6361
  %v6363 = vpop.f32.mrb[0].mxu0
  %6364 = vmatprep.mubr.f32.mxu0 0.0
  %6365 = vmatmul.mubr.f32.gmra.mrb[0].mxu0 %v6235
  %v6366 = vpop.f32.mrb[0].mxu0
  %v6367 = vadd.f32 %v57, %v6366
  %v6368 = vpop.f32.mrb[0].mxu0
  %6369 = vmatprep.mubr.f32.mxu0 0.0
  %6370 = vmatmul.mubr.f32.gmra.mrb[0].mxu0 %v6238
  %v6371 = vpop.f32.mrb[0].mxu0
  %v6372 = vadd.f32 %v57, %v6371
  %v6373 = vpop.f32.mrb[0].mxu0
  %6374 = vmatprep.mubr.f32.mxu0 0.0
  %6375 = vmatmul.mubr.f32.gmra.mrb[0].mxu0 %v6241
  %v6376 = vpop.f32.mrb[0].mxu0
  %v6377 = vadd.f32 %v57, %v6376
  %v6378 = vpop.f32.mrb[0].mxu0
  %6379 = vmatprep.mubr.f32.mxu0 0.0
  %6380 = vmatmul.mubr.f32.gmra.mrb[0].mxu0 %v6244
  %v6381 = vpop.f32.mrb[0].mxu0
  %v6382 = vadd.f32 %v57, %v6381
  %v6383 = vpop.f32.mrb[0].mxu0
  %6384 = vmatprep.mubr.f32.mxu0 0.0
  %6385 = vmatmul.mubr.f32.gmra.mrb[0].mxu0 %v6247
  %v6386 = vpop.f32.mrb[0].mxu0
  %v6387 = vadd.f32 %v57, %v6386
  %v6388 = vpop.f32.mrb[0].mxu0
  %6389 = vmatprep.mubr.f32.mxu0 0.0
  %6390 = vmatmul.mubr.f32.gmra.mrb[0].mxu0 %v6250
  %v6391 = vpop.f32.mrb[0].mxu0
  %v6392 = vadd.f32 %v57, %v6391
  %v6393 = vpop.f32.mrb[0].mxu0
  %6394 = vmatprep.mubr.f32.mxu0 0.0
  %6395 = vmatmul.mubr.f32.gmra.mrb[0].mxu0 %v6253
  %v6396 = vpop.f32.mrb[0].mxu0
  %v6397 = vadd.f32 %v57, %v6396
  %v6398 = vpop.f32.mrb[0].mxu0
  %6399 = vdwg.mxu0
  %v6400 = vmax.f32 %v6322, 0.0
  %v6401 = vmax.f32 %v6327, 0.0
  %v6402 = vmax.f32 %v6332, 0.0
  %v6403 = vmax.f32 %v6337, 0.0
  %v6404 = vmax.f32 %v6342, 0.0
  %v6405 = vmax.f32 %v6347, 0.0
  %v6406 = vmax.f32 %v6352, 0.0
  %v6407 = vmax.f32 %v6357, 0.0
  %v6408 = vmax.f32 %v6362, 0.0
  %v6409 = vmax.f32 %v6367, 0.0
  %v6410 = vmax.f32 %v6372, 0.0
  %v6411 = vmax.f32 %v6377, 0.0
  %v6412 = vmax.f32 %v6382, 0.0
  %v6413 = vmax.f32 %v6387, 0.0
  %v6414 = vmax.f32 %v6392, 0.0
  %v6415 = vmax.f32 %v6397, 0.0
  %s6416 = scalar_lea.vmem %s3, 224
  %v6417 = vld [vmem:[%s6416] sm:$0xff]
  %v6418 = vld [vmem:[%s6416 + $0x8] sm:$0x3]
  %v6420 = vsel %vm504, %v6400, 0
  %v6423 = vsel %vm504, %v6401, 0
  %v6426 = vsel %vm504, %v6402, 0
  %v6429 = vsel %vm504, %v6403, 0
  %v6432 = vsel %vm504, %v6404, 0
  %v6435 = vsel %vm504, %v6405, 0
  %v6438 = vsel %vm504, %v6406, 0
  %v6441 = vsel %vm504, %v6407, 0
  %v6444 = vsel %vm504, %v6408, 0
  %v6447 = vsel %vm504, %v6409, 0
  %v6450 = vsel %vm504, %v6410, 0
  %v6453 = vsel %vm504, %v6411, 0
  %v6456 = vsel %vm504, %v6412, 0
  %v6459 = vsel %vm504, %v6413, 0
  %v6462 = vsel %vm504, %v6414, 0
  %v6465 = vsel %vm504, %v6415, 0
  %v6468 = vsel %vm553, %v6418, 0
  %6470 = vmatprep.subr.mxu0 0.0
  %6471 = vmatpush1.msra.mxu0 %v6417
  %6472 = vmatprep.subr.mxu0 0.0
  %6473 = vmatpush1.msra.mxu0 %v6468
  %6474 = vmatprep.subr.mxu0 0.0
  %6475 = vmatpush1.msra.mxu0 0.0
  %6476 = vmatprep.subr.mxu0 0.0
  %6477 = vmatpush1.msra.mxu0 0.0
  %6478 = vmatprep.subr.mxu0 0.0
  %6479 = vmatpush1.msra.mxu0 0.0
  %6480 = vmatprep.subr.mxu0 0.0
  %6481 = vmatpush1.msra.mxu0 0.0
  %6482 = vmatprep.subr.mxu0 0.0
  %6483 = vmatpush1.msra.mxu0 0.0
  %6484 = vmatprep.subr.mxu0 0.0
  %6485 = vmatpush1.msra.mxu0 0.0
  %6486 = vmatprep.subr.mxu0 0.0
  %6487 = vmatpush1.msra.mxu0 0.0
  %6488 = vmatprep.subr.mxu0 0.0
  %6489 = vmatpush1.msra.mxu0 0.0
  %6490 = vmatprep.subr.mxu0 0.0
  %6491 = vmatpush1.msra.mxu0 0.0
  %6492 = vmatprep.subr.mxu0 0.0
  %6493 = vmatpush1.msra.mxu0 0.0
  %6494 = vmatprep.subr.mxu0 0.0
  %6495 = vmatpush1.msra.mxu0 0.0
  %6496 = vmatprep.subr.mxu0 0.0
  %6497 = vmatpush1.msra.mxu0 0.0
  %6498 = vmatprep.subr.mxu0 0.0
  %6499 = vmatpush1.msra.mxu0 0.0
  %6500 = vmatprep.subr.mxu0 0.0
  %6501 = vmatpush1.msra.mxu0 0.0
  %6502 = vmatprep.subr.mxu0 0.0
  %6503 = vmatpush1.msra.mxu0 0.0
  %6504 = vmatprep.subr.mxu0 0.0
  %6505 = vmatpush1.msra.mxu0 0.0
  %6506 = vmatprep.subr.mxu0 0.0
  %6507 = vmatpush1.msra.mxu0 0.0
  %6508 = vmatprep.subr.mxu0 0.0
  %6509 = vmatpush1.msra.mxu0 0.0
  %6510 = vmatprep.subr.mxu0 0.0
  %6511 = vmatpush1.msra.mxu0 0.0
  %6512 = vmatprep.subr.mxu0 0.0
  %6513 = vmatpush1.msra.mxu0 0.0
  %6514 = vmatprep.subr.mxu0 0.0
  %6515 = vmatpush1.msra.mxu0 0.0
  %6516 = vmatprep.subr.mxu0 0.0
  %6517 = vmatpush1.msra.mxu0 0.0
  %6518 = vmatprep.subr.mxu0 0.0
  %6519 = vmatpush1.msra.mxu0 0.0
  %6520 = vmatprep.subr.mxu0 0.0
  %6521 = vmatpush1.msra.mxu0 0.0
  %6522 = vmatprep.subr.mxu0 0.0
  %6523 = vmatpush1.msra.mxu0 0.0
  %6524 = vmatprep.subr.mxu0 0.0
  %6525 = vmatpush1.msra.mxu0 0.0
  %6526 = vmatprep.subr.mxu0 0.0
  %6527 = vmatpush1.msra.mxu0 0.0
  %6528 = vmatprep.subr.mxu0 0.0
  %6529 = vmatpush1.msra.mxu0 0.0
  %6530 = vmatprep.subr.mxu0 0.0
  %6531 = vmatpush1.msra.mxu0 0.0
  %6532 = vmatprep.subr.mxu0 0.0
  %6533 = vmatpush1.msra.mxu0 0.0
  %6534 = vmatprep.mubr.f32.mxu0 0.0
  %6535 = vmatmul.mubr.f32.gmra.mrb[0].mxu0 %v6420
  %v6536 = vpop.f32.mrb[0].mxu0
  %v6537 = vadd.f32 0.0, %v6536
  %v6538 = vpop.f32.mrb[0].mxu0
  %6539 = vmatprep.mubr.f32.mxu0 0.0
  %6540 = vmatmul.mubr.f32.gmra.mrb[0].mxu0 %v6423
  %v6541 = vpop.f32.mrb[0].mxu0
  %v6542 = vadd.f32 0.0, %v6541
  %v6543 = vpop.f32.mrb[0].mxu0
  %6544 = vmatprep.mubr.f32.mxu0 0.0
  %6545 = vmatmul.mubr.f32.gmra.mrb[0].mxu0 %v6426
  %v6546 = vpop.f32.mrb[0].mxu0
  %v6547 = vadd.f32 0.0, %v6546
  %v6548 = vpop.f32.mrb[0].mxu0
  %6549 = vmatprep.mubr.f32.mxu0 0.0
  %6550 = vmatmul.mubr.f32.gmra.mrb[0].mxu0 %v6429
  %v6551 = vpop.f32.mrb[0].mxu0
  %v6552 = vadd.f32 0.0, %v6551
  %v6553 = vpop.f32.mrb[0].mxu0
  %6554 = vmatprep.mubr.f32.mxu0 0.0
  %6555 = vmatmul.mubr.f32.gmra.mrb[0].mxu0 %v6432
  %v6556 = vpop.f32.mrb[0].mxu0
  %v6557 = vadd.f32 0.0, %v6556
  %v6558 = vpop.f32.mrb[0].mxu0
  %6559 = vmatprep.mubr.f32.mxu0 0.0
  %6560 = vmatmul.mubr.f32.gmra.mrb[0].mxu0 %v6435
  %v6561 = vpop.f32.mrb[0].mxu0
  %v6562 = vadd.f32 0.0, %v6561
  %v6563 = vpop.f32.mrb[0].mxu0
  %6564 = vmatprep.mubr.f32.mxu0 0.0
  %6565 = vmatmul.mubr.f32.gmra.mrb[0].mxu0 %v6438
  %v6566 = vpop.f32.mrb[0].mxu0
  %v6567 = vadd.f32 0.0, %v6566
  %v6568 = vpop.f32.mrb[0].mxu0
  %6569 = vmatprep.mubr.f32.mxu0 0.0
  %6570 = vmatmul.mubr.f32.gmra.mrb[0].mxu0 %v6441
  %v6571 = vpop.f32.mrb[0].mxu0
  %v6572 = vadd.f32 0.0, %v6571
  %v6573 = vpop.f32.mrb[0].mxu0
  %6574 = vmatprep.mubr.f32.mxu0 0.0
  %6575 = vmatmul.mubr.f32.gmra.mrb[0].mxu0 %v6444
  %v6576 = vpop.f32.mrb[0].mxu0
  %v6577 = vadd.f32 0.0, %v6576
  %v6578 = vpop.f32.mrb[0].mxu0
  %6579 = vmatprep.mubr.f32.mxu0 0.0
  %6580 = vmatmul.mubr.f32.gmra.mrb[0].mxu0 %v6447
  %v6581 = vpop.f32.mrb[0].mxu0
  %v6582 = vadd.f32 0.0, %v6581
  %v6583 = vpop.f32.mrb[0].mxu0
  %6584 = vmatprep.mubr.f32.mxu0 0.0
  %6585 = vmatmul.mubr.f32.gmra.mrb[0].mxu0 %v6450
  %v6586 = vpop.f32.mrb[0].mxu0
  %v6587 = vadd.f32 0.0, %v6586
  %v6588 = vpop.f32.mrb[0].mxu0
  %6589 = vmatprep.mubr.f32.mxu0 0.0
  %6590 = vmatmul.mubr.f32.gmra.mrb[0].mxu0 %v6453
  %v6591 = vpop.f32.mrb[0].mxu0
  %v6592 = vadd.f32 0.0, %v6591
  %v6593 = vpop.f32.mrb[0].mxu0
  %6594 = vmatprep.mubr.f32.mxu0 0.0
  %6595 = vmatmul.mubr.f32.gmra.mrb[0].mxu0 %v6456
  %v6596 = vpop.f32.mrb[0].mxu0
  %v6597 = vadd.f32 0.0, %v6596
  %v6598 = vpop.f32.mrb[0].mxu0
  %6599 = vmatprep.mubr.f32.mxu0 0.0
  %6600 = vmatmul.mubr.f32.gmra.mrb[0].mxu0 %v6459
  %v6601 = vpop.f32.mrb[0].mxu0
  %v6602 = vadd.f32 0.0, %v6601
  %v6603 = vpop.f32.mrb[0].mxu0
  %6604 = vmatprep.mubr.f32.mxu0 0.0
  %6605 = vmatmul.mubr.f32.gmra.mrb[0].mxu0 %v6462
  %v6606 = vpop.f32.mrb[0].mxu0
  %v6607 = vadd.f32 0.0, %v6606
  %v6608 = vpop.f32.mrb[0].mxu0
  %6609 = vmatprep.mubr.f32.mxu0 0.0
  %6610 = vmatmul.mubr.f32.gmra.mrb[0].mxu0 %v6465
  %v6611 = vpop.f32.mrb[0].mxu0
  %v6612 = vadd.f32 0.0, %v6611
  %v6613 = vpop.f32.mrb[0].mxu0
  %6614 = vdwg.mxu0
  %v6615 = vadd.f32 %v6174, %v6537
  %v6616 = vadd.f32 %v6175, %v6542
  %v6617 = vadd.f32 %v6176, %v6547
  %v6618 = vadd.f32 %v6177, %v6552
  %v6619 = vadd.f32 %v6178, %v6557
  %v6620 = vadd.f32 %v6179, %v6562
  %v6621 = vadd.f32 %v6180, %v6567
  %v6622 = vadd.f32 %v6181, %v6572
  %v6623 = vadd.f32 %v6182, %v6577
  %v6624 = vadd.f32 %v6183, %v6582
  %v6625 = vadd.f32 %v6184, %v6587
  %v6626 = vadd.f32 %v6185, %v6592
  %v6627 = vadd.f32 %v6186, %v6597
  %v6628 = vadd.f32 %v6187, %v6602
  %v6629 = vadd.f32 %v6188, %v6607
  %v6630 = vadd.f32 %v6189, %v6612
  %s6631 = scalar_lea.vmem %s0, 1920
  %v6632 = vld [vmem:[%s6631] sm:$0xff]
  %v6633 = vld [vmem:[%s6631 + $0x8] sm:$0xff]
  %v6634 = vld [vmem:[%s6631 + $0x10] sm:$0xff]
  %v6635 = vld [vmem:[%s6631 + $0x18] sm:$0xff]
  %v6636 = vld [vmem:[%s6631 + $0x20] sm:$0xff]
  %v6637 = vld [vmem:[%s6631 + $0x28] sm:$0xff]
  %v6638 = vld [vmem:[%s6631 + $0x30] sm:$0xff]
  %v6639 = vld [vmem:[%s6631 + $0x38] sm:$0xff]
  %v6640 = vld [vmem:[%s6631 + $0x40] sm:$0xff]
  %v6641 = vld [vmem:[%s6631 + $0x48] sm:$0xff]
  %v6642 = vld [vmem:[%s6631 + $0x50] sm:$0xff]
  %v6643 = vld [vmem:[%s6631 + $0x58] sm:$0xff]
  %v6644 = vld [vmem:[%s6631 + $0x60] sm:$0xff]
  %v6645 = vld [vmem:[%s6631 + $0x68] sm:$0xff]
  %v6646 = vld [vmem:[%s6631 + $0x70] sm:$0xff]
  %v6647 = vld [vmem:[%s6631 + $0x78] sm:$0xff]
  %v6649 = vsel %vm59, %v6632, 0
  %v6652 = vsel %vm59, %v6633, 0
  %v6655 = vsel %vm59, %v6634, 0
  %v6658 = vsel %vm59, %v6635, 0
  %v6661 = vsel %vm59, %v6636, 0
  %v6664 = vsel %vm59, %v6637, 0
  %v6667 = vsel %vm59, %v6638, 0
  %v6670 = vsel %vm59, %v6639, 0
  %v6673 = vsel %vm59, %v6640, 0
  %v6676 = vsel %vm59, %v6641, 0
  %v6679 = vsel %vm59, %v6642, 0
  %v6682 = vsel %vm59, %v6643, 0
  %v6685 = vsel %vm59, %v6644, 0
  %v6688 = vsel %vm59, %v6645, 0
  %v6691 = vsel %vm59, %v6646, 0
  %v6694 = vsel %vm59, %v6647, 0
  %6696 = vmatprep.subr.mxu0 0.0
  %6697 = vmatpush1.msra.mxu0 %v32
  %6698 = vmatprep.subr.mxu0 0.0
  %6699 = vmatpush1.msra.mxu0 %v33
  %6700 = vmatprep.subr.mxu0 0.0
  %6701 = vmatpush1.msra.mxu0 %v34
  %6702 = vmatprep.subr.mxu0 0.0
  %6703 = vmatpush1.msra.mxu0 %v110
  %6704 = vmatprep.subr.mxu0 0.0
  %6705 = vmatpush1.msra.mxu0 0.0
  %6706 = vmatprep.subr.mxu0 0.0
  %6707 = vmatpush1.msra.mxu0 0.0
  %6708 = vmatprep.subr.mxu0 0.0
  %6709 = vmatpush1.msra.mxu0 0.0
  %6710 = vmatprep.subr.mxu0 0.0
  %6711 = vmatpush1.msra.mxu0 0.0
  %6712 = vmatprep.subr.mxu0 0.0
  %6713 = vmatpush1.msra.mxu0 0.0
  %6714 = vmatprep.subr.mxu0 0.0
  %6715 = vmatpush1.msra.mxu0 0.0
  %6716 = vmatprep.subr.mxu0 0.0
  %6717 = vmatpush1.msra.mxu0 0.0
  %6718 = vmatprep.subr.mxu0 0.0
  %6719 = vmatpush1.msra.mxu0 0.0
  %6720 = vmatprep.subr.mxu0 0.0
  %6721 = vmatpush1.msra.mxu0 0.0
  %6722 = vmatprep.subr.mxu0 0.0
  %6723 = vmatpush1.msra.mxu0 0.0
  %6724 = vmatprep.subr.mxu0 0.0
  %6725 = vmatpush1.msra.mxu0 0.0
  %6726 = vmatprep.subr.mxu0 0.0
  %6727 = vmatpush1.msra.mxu0 0.0
  %6728 = vmatprep.subr.mxu0 0.0
  %6729 = vmatpush1.msra.mxu0 0.0
  %6730 = vmatprep.subr.mxu0 0.0
  %6731 = vmatpush1.msra.mxu0 0.0
  %6732 = vmatprep.subr.mxu0 0.0
  %6733 = vmatpush1.msra.mxu0 0.0
  %6734 = vmatprep.subr.mxu0 0.0
  %6735 = vmatpush1.msra.mxu0 0.0
  %6736 = vmatprep.subr.mxu0 0.0
  %6737 = vmatpush1.msra.mxu0 0.0
  %6738 = vmatprep.subr.mxu0 0.0
  %6739 = vmatpush1.msra.mxu0 0.0
  %6740 = vmatprep.subr.mxu0 0.0
  %6741 = vmatpush1.msra.mxu0 0.0
  %6742 = vmatprep.subr.mxu0 0.0
  %6743 = vmatpush1.msra.mxu0 0.0
  %6744 = vmatprep.subr.mxu0 0.0
  %6745 = vmatpush1.msra.mxu0 0.0
  %6746 = vmatprep.subr.mxu0 0.0
  %6747 = vmatpush1.msra.mxu0 0.0
  %6748 = vmatprep.subr.mxu0 0.0
  %6749 = vmatpush1.msra.mxu0 0.0
  %6750 = vmatprep.subr.mxu0 0.0
  %6751 = vmatpush1.msra.mxu0 0.0
  %6752 = vmatprep.subr.mxu0 0.0
  %6753 = vmatpush1.msra.mxu0 0.0
  %6754 = vmatprep.subr.mxu0 0.0
  %6755 = vmatpush1.msra.mxu0 0.0
  %6756 = vmatprep.subr.mxu0 0.0
  %6757 = vmatpush1.msra.mxu0 0.0
  %6758 = vmatprep.subr.mxu0 0.0
  %6759 = vmatpush1.msra.mxu0 0.0
  %6760 = vmatprep.mubr.f32.mxu0 0.0
  %6761 = vmatmul.mubr.f32.gmra.mrb[0].mxu0 %v6649
  %v6762 = vpop.f32.mrb[0].mxu0
  %v6763 = vadd.f32 %v57, %v6762
  %v6764 = vpop.f32.mrb[0].mxu0
  %6765 = vmatprep.mubr.f32.mxu0 0.0
  %6766 = vmatmul.mubr.f32.gmra.mrb[0].mxu0 %v6652
  %v6767 = vpop.f32.mrb[0].mxu0
  %v6768 = vadd.f32 %v57, %v6767
  %v6769 = vpop.f32.mrb[0].mxu0
  %6770 = vmatprep.mubr.f32.mxu0 0.0
  %6771 = vmatmul.mubr.f32.gmra.mrb[0].mxu0 %v6655
  %v6772 = vpop.f32.mrb[0].mxu0
  %v6773 = vadd.f32 %v57, %v6772
  %v6774 = vpop.f32.mrb[0].mxu0
  %6775 = vmatprep.mubr.f32.mxu0 0.0
  %6776 = vmatmul.mubr.f32.gmra.mrb[0].mxu0 %v6658
  %v6777 = vpop.f32.mrb[0].mxu0
  %v6778 = vadd.f32 %v57, %v6777
  %v6779 = vpop.f32.mrb[0].mxu0
  %6780 = vmatprep.mubr.f32.mxu0 0.0
  %6781 = vmatmul.mubr.f32.gmra.mrb[0].mxu0 %v6661
  %v6782 = vpop.f32.mrb[0].mxu0
  %v6783 = vadd.f32 %v57, %v6782
  %v6784 = vpop.f32.mrb[0].mxu0
  %6785 = vmatprep.mubr.f32.mxu0 0.0
  %6786 = vmatmul.mubr.f32.gmra.mrb[0].mxu0 %v6664
  %v6787 = vpop.f32.mrb[0].mxu0
  %v6788 = vadd.f32 %v57, %v6787
  %v6789 = vpop.f32.mrb[0].mxu0
  %6790 = vmatprep.mubr.f32.mxu0 0.0
  %6791 = vmatmul.mubr.f32.gmra.mrb[0].mxu0 %v6667
  %v6792 = vpop.f32.mrb[0].mxu0
  %v6793 = vadd.f32 %v57, %v6792
  %v6794 = vpop.f32.mrb[0].mxu0
  %6795 = vmatprep.mubr.f32.mxu0 0.0
  %6796 = vmatmul.mubr.f32.gmra.mrb[0].mxu0 %v6670
  %v6797 = vpop.f32.mrb[0].mxu0
  %v6798 = vadd.f32 %v57, %v6797
  %v6799 = vpop.f32.mrb[0].mxu0
  %6800 = vmatprep.mubr.f32.mxu0 0.0
  %6801 = vmatmul.mubr.f32.gmra.mrb[0].mxu0 %v6673
  %v6802 = vpop.f32.mrb[0].mxu0
  %v6803 = vadd.f32 %v57, %v6802
  %v6804 = vpop.f32.mrb[0].mxu0
  %6805 = vmatprep.mubr.f32.mxu0 0.0
  %6806 = vmatmul.mubr.f32.gmra.mrb[0].mxu0 %v6676
  %v6807 = vpop.f32.mrb[0].mxu0
  %v6808 = vadd.f32 %v57, %v6807
  %v6809 = vpop.f32.mrb[0].mxu0
  %6810 = vmatprep.mubr.f32.mxu0 0.0
  %6811 = vmatmul.mubr.f32.gmra.mrb[0].mxu0 %v6679
  %v6812 = vpop.f32.mrb[0].mxu0
  %v6813 = vadd.f32 %v57, %v6812
  %v6814 = vpop.f32.mrb[0].mxu0
  %6815 = vmatprep.mubr.f32.mxu0 0.0
  %6816 = vmatmul.mubr.f32.gmra.mrb[0].mxu0 %v6682
  %v6817 = vpop.f32.mrb[0].mxu0
  %v6818 = vadd.f32 %v57, %v6817
  %v6819 = vpop.f32.mrb[0].mxu0
  %6820 = vmatprep.mubr.f32.mxu0 0.0
  %6821 = vmatmul.mubr.f32.gmra.mrb[0].mxu0 %v6685
  %v6822 = vpop.f32.mrb[0].mxu0
  %v6823 = vadd.f32 %v57, %v6822
  %v6824 = vpop.f32.mrb[0].mxu0
  %6825 = vmatprep.mubr.f32.mxu0 0.0
  %6826 = vmatmul.mubr.f32.gmra.mrb[0].mxu0 %v6688
  %v6827 = vpop.f32.mrb[0].mxu0
  %v6828 = vadd.f32 %v57, %v6827
  %v6829 = vpop.f32.mrb[0].mxu0
  %6830 = vmatprep.mubr.f32.mxu0 0.0
  %6831 = vmatmul.mubr.f32.gmra.mrb[0].mxu0 %v6691
  %v6832 = vpop.f32.mrb[0].mxu0
  %v6833 = vadd.f32 %v57, %v6832
  %v6834 = vpop.f32.mrb[0].mxu0
  %6835 = vmatprep.mubr.f32.mxu0 0.0
  %6836 = vmatmul.mubr.f32.gmra.mrb[0].mxu0 %v6694
  %v6837 = vpop.f32.mrb[0].mxu0
  %v6838 = vadd.f32 %v57, %v6837
  %v6839 = vpop.f32.mrb[0].mxu0
  %6840 = vdwg.mxu0
  %v6841 = vmax.f32 %v6763, 0.0
  %v6842 = vmax.f32 %v6768, 0.0
  %v6843 = vmax.f32 %v6773, 0.0
  %v6844 = vmax.f32 %v6778, 0.0
  %v6845 = vmax.f32 %v6783, 0.0
  %v6846 = vmax.f32 %v6788, 0.0
  %v6847 = vmax.f32 %v6793, 0.0
  %v6848 = vmax.f32 %v6798, 0.0
  %v6849 = vmax.f32 %v6803, 0.0
  %v6850 = vmax.f32 %v6808, 0.0
  %v6851 = vmax.f32 %v6813, 0.0
  %v6852 = vmax.f32 %v6818, 0.0
  %v6853 = vmax.f32 %v6823, 0.0
  %v6854 = vmax.f32 %v6828, 0.0
  %v6855 = vmax.f32 %v6833, 0.0
  %v6856 = vmax.f32 %v6838, 0.0
  %s6857 = scalar_lea.vmem %s3, 240
  %v6858 = vld [vmem:[%s6857] sm:$0xff]
  %v6859 = vld [vmem:[%s6857 + $0x8] sm:$0x3]
  %v6861 = vsel %vm504, %v6841, 0
  %v6864 = vsel %vm504, %v6842, 0
  %v6867 = vsel %vm504, %v6843, 0
  %v6870 = vsel %vm504, %v6844, 0
  %v6873 = vsel %vm504, %v6845, 0
  %v6876 = vsel %vm504, %v6846, 0
  %v6879 = vsel %vm504, %v6847, 0
  %v6882 = vsel %vm504, %v6848, 0
  %v6885 = vsel %vm504, %v6849, 0
  %v6888 = vsel %vm504, %v6850, 0
  %v6891 = vsel %vm504, %v6851, 0
  %v6894 = vsel %vm504, %v6852, 0
  %v6897 = vsel %vm504, %v6853, 0
  %v6900 = vsel %vm504, %v6854, 0
  %v6903 = vsel %vm504, %v6855, 0
  %v6906 = vsel %vm504, %v6856, 0
  %v6909 = vsel %vm553, %v6859, 0
  %6911 = vmatprep.subr.mxu0 0.0
  %6912 = vmatpush1.msra.mxu0 %v6858
  %6913 = vmatprep.subr.mxu0 0.0
  %6914 = vmatpush1.msra.mxu0 %v6909
  %6915 = vmatprep.subr.mxu0 0.0
  %6916 = vmatpush1.msra.mxu0 0.0
  %6917 = vmatprep.subr.mxu0 0.0
  %6918 = vmatpush1.msra.mxu0 0.0
  %6919 = vmatprep.subr.mxu0 0.0
  %6920 = vmatpush1.msra.mxu0 0.0
  %6921 = vmatprep.subr.mxu0 0.0
  %6922 = vmatpush1.msra.mxu0 0.0
  %6923 = vmatprep.subr.mxu0 0.0
  %6924 = vmatpush1.msra.mxu0 0.0
  %6925 = vmatprep.subr.mxu0 0.0
  %6926 = vmatpush1.msra.mxu0 0.0
  %6927 = vmatprep.subr.mxu0 0.0
  %6928 = vmatpush1.msra.mxu0 0.0
  %6929 = vmatprep.subr.mxu0 0.0
  %6930 = vmatpush1.msra.mxu0 0.0
  %6931 = vmatprep.subr.mxu0 0.0
  %6932 = vmatpush1.msra.mxu0 0.0
  %6933 = vmatprep.subr.mxu0 0.0
  %6934 = vmatpush1.msra.mxu0 0.0
  %6935 = vmatprep.subr.mxu0 0.0
  %6936 = vmatpush1.msra.mxu0 0.0
  %6937 = vmatprep.subr.mxu0 0.0
  %6938 = vmatpush1.msra.mxu0 0.0
  %6939 = vmatprep.subr.mxu0 0.0
  %6940 = vmatpush1.msra.mxu0 0.0
  %6941 = vmatprep.subr.mxu0 0.0
  %6942 = vmatpush1.msra.mxu0 0.0
  %6943 = vmatprep.subr.mxu0 0.0
  %6944 = vmatpush1.msra.mxu0 0.0
  %6945 = vmatprep.subr.mxu0 0.0
  %6946 = vmatpush1.msra.mxu0 0.0
  %6947 = vmatprep.subr.mxu0 0.0
  %6948 = vmatpush1.msra.mxu0 0.0
  %6949 = vmatprep.subr.mxu0 0.0
  %6950 = vmatpush1.msra.mxu0 0.0
  %6951 = vmatprep.subr.mxu0 0.0
  %6952 = vmatpush1.msra.mxu0 0.0
  %6953 = vmatprep.subr.mxu0 0.0
  %6954 = vmatpush1.msra.mxu0 0.0
  %6955 = vmatprep.subr.mxu0 0.0
  %6956 = vmatpush1.msra.mxu0 0.0
  %6957 = vmatprep.subr.mxu0 0.0
  %6958 = vmatpush1.msra.mxu0 0.0
  %6959 = vmatprep.subr.mxu0 0.0
  %6960 = vmatpush1.msra.mxu0 0.0
  %6961 = vmatprep.subr.mxu0 0.0
  %6962 = vmatpush1.msra.mxu0 0.0
  %6963 = vmatprep.subr.mxu0 0.0
  %6964 = vmatpush1.msra.mxu0 0.0
  %6965 = vmatprep.subr.mxu0 0.0
  %6966 = vmatpush1.msra.mxu0 0.0
  %6967 = vmatprep.subr.mxu0 0.0
  %6968 = vmatpush1.msra.mxu0 0.0
  %6969 = vmatprep.subr.mxu0 0.0
  %6970 = vmatpush1.msra.mxu0 0.0
  %6971 = vmatprep.subr.mxu0 0.0
  %6972 = vmatpush1.msra.mxu0 0.0
  %6973 = vmatprep.subr.mxu0 0.0
  %6974 = vmatpush1.msra.mxu0 0.0
  %6975 = vmatprep.mubr.f32.mxu0 0.0
  %6976 = vmatmul.mubr.f32.gmra.mrb[0].mxu0 %v6861
  %v6977 = vpop.f32.mrb[0].mxu0
  %v6978 = vadd.f32 0.0, %v6977
  %v6979 = vpop.f32.mrb[0].mxu0
  %6980 = vmatprep.mubr.f32.mxu0 0.0
  %6981 = vmatmul.mubr.f32.gmra.mrb[0].mxu0 %v6864
  %v6982 = vpop.f32.mrb[0].mxu0
  %v6983 = vadd.f32 0.0, %v6982
  %v6984 = vpop.f32.mrb[0].mxu0
  %6985 = vmatprep.mubr.f32.mxu0 0.0
  %6986 = vmatmul.mubr.f32.gmra.mrb[0].mxu0 %v6867
  %v6987 = vpop.f32.mrb[0].mxu0
  %v6988 = vadd.f32 0.0, %v6987
  %v6989 = vpop.f32.mrb[0].mxu0
  %6990 = vmatprep.mubr.f32.mxu0 0.0
  %6991 = vmatmul.mubr.f32.gmra.mrb[0].mxu0 %v6870
  %v6992 = vpop.f32.mrb[0].mxu0
  %v6993 = vadd.f32 0.0, %v6992
  %v6994 = vpop.f32.mrb[0].mxu0
  %6995 = vmatprep.mubr.f32.mxu0 0.0
  %6996 = vmatmul.mubr.f32.gmra.mrb[0].mxu0 %v6873
  %v6997 = vpop.f32.mrb[0].mxu0
  %v6998 = vadd.f32 0.0, %v6997
  %v6999 = vpop.f32.mrb[0].mxu0
  %7000 = vmatprep.mubr.f32.mxu0 0.0
  %7001 = vmatmul.mubr.f32.gmra.mrb[0].mxu0 %v6876
  %v7002 = vpop.f32.mrb[0].mxu0
  %v7003 = vadd.f32 0.0, %v7002
  %v7004 = vpop.f32.mrb[0].mxu0
  %7005 = vmatprep.mubr.f32.mxu0 0.0
  %7006 = vmatmul.mubr.f32.gmra.mrb[0].mxu0 %v6879
  %v7007 = vpop.f32.mrb[0].mxu0
  %v7008 = vadd.f32 0.0, %v7007
  %v7009 = vpop.f32.mrb[0].mxu0
  %7010 = vmatprep.mubr.f32.mxu0 0.0
  %7011 = vmatmul.mubr.f32.gmra.mrb[0].mxu0 %v6882
  %v7012 = vpop.f32.mrb[0].mxu0
  %v7013 = vadd.f32 0.0, %v7012
  %v7014 = vpop.f32.mrb[0].mxu0
  %7015 = vmatprep.mubr.f32.mxu0 0.0
  %7016 = vmatmul.mubr.f32.gmra.mrb[0].mxu0 %v6885
  %v7017 = vpop.f32.mrb[0].mxu0
  %v7018 = vadd.f32 0.0, %v7017
  %v7019 = vpop.f32.mrb[0].mxu0
  %7020 = vmatprep.mubr.f32.mxu0 0.0
  %7021 = vmatmul.mubr.f32.gmra.mrb[0].mxu0 %v6888
  %v7022 = vpop.f32.mrb[0].mxu0
  %v7023 = vadd.f32 0.0, %v7022
  %v7024 = vpop.f32.mrb[0].mxu0
  %7025 = vmatprep.mubr.f32.mxu0 0.0
  %7026 = vmatmul.mubr.f32.gmra.mrb[0].mxu0 %v6891
  %v7027 = vpop.f32.mrb[0].mxu0
  %v7028 = vadd.f32 0.0, %v7027
  %v7029 = vpop.f32.mrb[0].mxu0
  %7030 = vmatprep.mubr.f32.mxu0 0.0
  %7031 = vmatmul.mubr.f32.gmra.mrb[0].mxu0 %v6894
  %v7032 = vpop.f32.mrb[0].mxu0
  %v7033 = vadd.f32 0.0, %v7032
  %v7034 = vpop.f32.mrb[0].mxu0
  %7035 = vmatprep.mubr.f32.mxu0 0.0
  %7036 = vmatmul.mubr.f32.gmra.mrb[0].mxu0 %v6897
  %v7037 = vpop.f32.mrb[0].mxu0
  %v7038 = vadd.f32 0.0, %v7037
  %v7039 = vpop.f32.mrb[0].mxu0
  %7040 = vmatprep.mubr.f32.mxu0 0.0
  %7041 = vmatmul.mubr.f32.gmra.mrb[0].mxu0 %v6900
  %v7042 = vpop.f32.mrb[0].mxu0
  %v7043 = vadd.f32 0.0, %v7042
  %v7044 = vpop.f32.mrb[0].mxu0
  %7045 = vmatprep.mubr.f32.mxu0 0.0
  %7046 = vmatmul.mubr.f32.gmra.mrb[0].mxu0 %v6903
  %v7047 = vpop.f32.mrb[0].mxu0
  %v7048 = vadd.f32 0.0, %v7047
  %v7049 = vpop.f32.mrb[0].mxu0
  %7050 = vmatprep.mubr.f32.mxu0 0.0
  %7051 = vmatmul.mubr.f32.gmra.mrb[0].mxu0 %v6906
  %v7052 = vpop.f32.mrb[0].mxu0
  %v7053 = vadd.f32 0.0, %v7052
  %v7054 = vpop.f32.mrb[0].mxu0
  %7055 = vdwg.mxu0
  %v7056 = vadd.f32 %v6615, %v6978
  %v7057 = vadd.f32 %v6616, %v6983
  %v7058 = vadd.f32 %v6617, %v6988
  %v7059 = vadd.f32 %v6618, %v6993
  %v7060 = vadd.f32 %v6619, %v6998
  %v7061 = vadd.f32 %v6620, %v7003
  %v7062 = vadd.f32 %v6621, %v7008
  %v7063 = vadd.f32 %v6622, %v7013
  %v7064 = vadd.f32 %v6623, %v7018
  %v7065 = vadd.f32 %v6624, %v7023
  %v7066 = vadd.f32 %v6625, %v7028
  %v7067 = vadd.f32 %v6626, %v7033
  %v7068 = vadd.f32 %v6627, %v7038
  %v7069 = vadd.f32 %v6628, %v7043
  %v7070 = vadd.f32 %v6629, %v7048
  %v7071 = vadd.f32 %v6630, %v7053
  %s7072 = scalar_lea.vmem %s0, 2048
  %v7073 = vld [vmem:[%s7072] sm:$0xff]
  %v7074 = vld [vmem:[%s7072 + $0x8] sm:$0xff]
  %v7075 = vld [vmem:[%s7072 + $0x10] sm:$0xff]
  %v7076 = vld [vmem:[%s7072 + $0x18] sm:$0xff]
  %v7077 = vld [vmem:[%s7072 + $0x20] sm:$0xff]
  %v7078 = vld [vmem:[%s7072 + $0x28] sm:$0xff]
  %v7079 = vld [vmem:[%s7072 + $0x30] sm:$0xff]
  %v7080 = vld [vmem:[%s7072 + $0x38] sm:$0xff]
  %v7081 = vld [vmem:[%s7072 + $0x40] sm:$0xff]
  %v7082 = vld [vmem:[%s7072 + $0x48] sm:$0xff]
  %v7083 = vld [vmem:[%s7072 + $0x50] sm:$0xff]
  %v7084 = vld [vmem:[%s7072 + $0x58] sm:$0xff]
  %v7085 = vld [vmem:[%s7072 + $0x60] sm:$0xff]
  %v7086 = vld [vmem:[%s7072 + $0x68] sm:$0xff]
  %v7087 = vld [vmem:[%s7072 + $0x70] sm:$0xff]
  %v7088 = vld [vmem:[%s7072 + $0x78] sm:$0xff]
  %v7090 = vsel %vm59, %v7073, 0
  %v7093 = vsel %vm59, %v7074, 0
  %v7096 = vsel %vm59, %v7075, 0
  %v7099 = vsel %vm59, %v7076, 0
  %v7102 = vsel %vm59, %v7077, 0
  %v7105 = vsel %vm59, %v7078, 0
  %v7108 = vsel %vm59, %v7079, 0
  %v7111 = vsel %vm59, %v7080, 0
  %v7114 = vsel %vm59, %v7081, 0
  %v7117 = vsel %vm59, %v7082, 0
  %v7120 = vsel %vm59, %v7083, 0
  %v7123 = vsel %vm59, %v7084, 0
  %v7126 = vsel %vm59, %v7085, 0
  %v7129 = vsel %vm59, %v7086, 0
  %v7132 = vsel %vm59, %v7087, 0
  %v7135 = vsel %vm59, %v7088, 0
  %7137 = vmatprep.subr.mxu0 0.0
  %7138 = vmatpush1.msra.mxu0 %v32
  %7139 = vmatprep.subr.mxu0 0.0
  %7140 = vmatpush1.msra.mxu0 %v33
  %7141 = vmatprep.subr.mxu0 0.0
  %7142 = vmatpush1.msra.mxu0 %v34
  %7143 = vmatprep.subr.mxu0 0.0
  %7144 = vmatpush1.msra.mxu0 %v110
  %7145 = vmatprep.subr.mxu0 0.0
  %7146 = vmatpush1.msra.mxu0 0.0
  %7147 = vmatprep.subr.mxu0 0.0
  %7148 = vmatpush1.msra.mxu0 0.0
  %7149 = vmatprep.subr.mxu0 0.0
  %7150 = vmatpush1.msra.mxu0 0.0
  %7151 = vmatprep.subr.mxu0 0.0
  %7152 = vmatpush1.msra.mxu0 0.0
  %7153 = vmatprep.subr.mxu0 0.0
  %7154 = vmatpush1.msra.mxu0 0.0
  %7155 = vmatprep.subr.mxu0 0.0
  %7156 = vmatpush1.msra.mxu0 0.0
  %7157 = vmatprep.subr.mxu0 0.0
  %7158 = vmatpush1.msra.mxu0 0.0
  %7159 = vmatprep.subr.mxu0 0.0
  %7160 = vmatpush1.msra.mxu0 0.0
  %7161 = vmatprep.subr.mxu0 0.0
  %7162 = vmatpush1.msra.mxu0 0.0
  %7163 = vmatprep.subr.mxu0 0.0
  %7164 = vmatpush1.msra.mxu0 0.0
  %7165 = vmatprep.subr.mxu0 0.0
  %7166 = vmatpush1.msra.mxu0 0.0
  %7167 = vmatprep.subr.mxu0 0.0
  %7168 = vmatpush1.msra.mxu0 0.0
  %7169 = vmatprep.subr.mxu0 0.0
  %7170 = vmatpush1.msra.mxu0 0.0
  %7171 = vmatprep.subr.mxu0 0.0
  %7172 = vmatpush1.msra.mxu0 0.0
  %7173 = vmatprep.subr.mxu0 0.0
  %7174 = vmatpush1.msra.mxu0 0.0
  %7175 = vmatprep.subr.mxu0 0.0
  %7176 = vmatpush1.msra.mxu0 0.0
  %7177 = vmatprep.subr.mxu0 0.0
  %7178 = vmatpush1.msra.mxu0 0.0
  %7179 = vmatprep.subr.mxu0 0.0
  %7180 = vmatpush1.msra.mxu0 0.0
  %7181 = vmatprep.subr.mxu0 0.0
  %7182 = vmatpush1.msra.mxu0 0.0
  %7183 = vmatprep.subr.mxu0 0.0
  %7184 = vmatpush1.msra.mxu0 0.0
  %7185 = vmatprep.subr.mxu0 0.0
  %7186 = vmatpush1.msra.mxu0 0.0
  %7187 = vmatprep.subr.mxu0 0.0
  %7188 = vmatpush1.msra.mxu0 0.0
  %7189 = vmatprep.subr.mxu0 0.0
  %7190 = vmatpush1.msra.mxu0 0.0
  %7191 = vmatprep.subr.mxu0 0.0
  %7192 = vmatpush1.msra.mxu0 0.0
  %7193 = vmatprep.subr.mxu0 0.0
  %7194 = vmatpush1.msra.mxu0 0.0
  %7195 = vmatprep.subr.mxu0 0.0
  %7196 = vmatpush1.msra.mxu0 0.0
  %7197 = vmatprep.subr.mxu0 0.0
  %7198 = vmatpush1.msra.mxu0 0.0
  %7199 = vmatprep.subr.mxu0 0.0
  %7200 = vmatpush1.msra.mxu0 0.0
  %7201 = vmatprep.mubr.f32.mxu0 0.0
  %7202 = vmatmul.mubr.f32.gmra.mrb[0].mxu0 %v7090
  %v7203 = vpop.f32.mrb[0].mxu0
  %v7204 = vadd.f32 %v57, %v7203
  %v7205 = vpop.f32.mrb[0].mxu0
  %7206 = vmatprep.mubr.f32.mxu0 0.0
  %7207 = vmatmul.mubr.f32.gmra.mrb[0].mxu0 %v7093
  %v7208 = vpop.f32.mrb[0].mxu0
  %v7209 = vadd.f32 %v57, %v7208
  %v7210 = vpop.f32.mrb[0].mxu0
  %7211 = vmatprep.mubr.f32.mxu0 0.0
  %7212 = vmatmul.mubr.f32.gmra.mrb[0].mxu0 %v7096
  %v7213 = vpop.f32.mrb[0].mxu0
  %v7214 = vadd.f32 %v57, %v7213
  %v7215 = vpop.f32.mrb[0].mxu0
  %7216 = vmatprep.mubr.f32.mxu0 0.0
  %7217 = vmatmul.mubr.f32.gmra.mrb[0].mxu0 %v7099
  %v7218 = vpop.f32.mrb[0].mxu0
  %v7219 = vadd.f32 %v57, %v7218
  %v7220 = vpop.f32.mrb[0].mxu0
  %7221 = vmatprep.mubr.f32.mxu0 0.0
  %7222 = vmatmul.mubr.f32.gmra.mrb[0].mxu0 %v7102
  %v7223 = vpop.f32.mrb[0].mxu0
  %v7224 = vadd.f32 %v57, %v7223
  %v7225 = vpop.f32.mrb[0].mxu0
  %7226 = vmatprep.mubr.f32.mxu0 0.0
  %7227 = vmatmul.mubr.f32.gmra.mrb[0].mxu0 %v7105
  %v7228 = vpop.f32.mrb[0].mxu0
  %v7229 = vadd.f32 %v57, %v7228
  %v7230 = vpop.f32.mrb[0].mxu0
  %7231 = vmatprep.mubr.f32.mxu0 0.0
  %7232 = vmatmul.mubr.f32.gmra.mrb[0].mxu0 %v7108
  %v7233 = vpop.f32.mrb[0].mxu0
  %v7234 = vadd.f32 %v57, %v7233
  %v7235 = vpop.f32.mrb[0].mxu0
  %7236 = vmatprep.mubr.f32.mxu0 0.0
  %7237 = vmatmul.mubr.f32.gmra.mrb[0].mxu0 %v7111
  %v7238 = vpop.f32.mrb[0].mxu0
  %v7239 = vadd.f32 %v57, %v7238
  %v7240 = vpop.f32.mrb[0].mxu0
  %7241 = vmatprep.mubr.f32.mxu0 0.0
  %7242 = vmatmul.mubr.f32.gmra.mrb[0].mxu0 %v7114
  %v7243 = vpop.f32.mrb[0].mxu0
  %v7244 = vadd.f32 %v57, %v7243
  %v7245 = vpop.f32.mrb[0].mxu0
  %7246 = vmatprep.mubr.f32.mxu0 0.0
  %7247 = vmatmul.mubr.f32.gmra.mrb[0].mxu0 %v7117
  %v7248 = vpop.f32.mrb[0].mxu0
  %v7249 = vadd.f32 %v57, %v7248
  %v7250 = vpop.f32.mrb[0].mxu0
  %7251 = vmatprep.mubr.f32.mxu0 0.0
  %7252 = vmatmul.mubr.f32.gmra.mrb[0].mxu0 %v7120
  %v7253 = vpop.f32.mrb[0].mxu0
  %v7254 = vadd.f32 %v57, %v7253
  %v7255 = vpop.f32.mrb[0].mxu0
  %7256 = vmatprep.mubr.f32.mxu0 0.0
  %7257 = vmatmul.mubr.f32.gmra.mrb[0].mxu0 %v7123
  %v7258 = vpop.f32.mrb[0].mxu0
  %v7259 = vadd.f32 %v57, %v7258
  %v7260 = vpop.f32.mrb[0].mxu0
  %7261 = vmatprep.mubr.f32.mxu0 0.0
  %7262 = vmatmul.mubr.f32.gmra.mrb[0].mxu0 %v7126
  %v7263 = vpop.f32.mrb[0].mxu0
  %v7264 = vadd.f32 %v57, %v7263
  %v7265 = vpop.f32.mrb[0].mxu0
  %7266 = vmatprep.mubr.f32.mxu0 0.0
  %7267 = vmatmul.mubr.f32.gmra.mrb[0].mxu0 %v7129
  %v7268 = vpop.f32.mrb[0].mxu0
  %v7269 = vadd.f32 %v57, %v7268
  %v7270 = vpop.f32.mrb[0].mxu0
  %7271 = vmatprep.mubr.f32.mxu0 0.0
  %7272 = vmatmul.mubr.f32.gmra.mrb[0].mxu0 %v7132
  %v7273 = vpop.f32.mrb[0].mxu0
  %v7274 = vadd.f32 %v57, %v7273
  %v7275 = vpop.f32.mrb[0].mxu0
  %7276 = vmatprep.mubr.f32.mxu0 0.0
  %7277 = vmatmul.mubr.f32.gmra.mrb[0].mxu0 %v7135
  %v7278 = vpop.f32.mrb[0].mxu0
  %v7279 = vadd.f32 %v57, %v7278
  %v7280 = vpop.f32.mrb[0].mxu0
  %7281 = vdwg.mxu0
  %v7282 = vmax.f32 %v7204, 0.0
  %v7283 = vmax.f32 %v7209, 0.0
  %v7284 = vmax.f32 %v7214, 0.0
  %v7285 = vmax.f32 %v7219, 0.0
  %v7286 = vmax.f32 %v7224, 0.0
  %v7287 = vmax.f32 %v7229, 0.0
  %v7288 = vmax.f32 %v7234, 0.0
  %v7289 = vmax.f32 %v7239, 0.0
  %v7290 = vmax.f32 %v7244, 0.0
  %v7291 = vmax.f32 %v7249, 0.0
  %v7292 = vmax.f32 %v7254, 0.0
  %v7293 = vmax.f32 %v7259, 0.0
  %v7294 = vmax.f32 %v7264, 0.0
  %v7295 = vmax.f32 %v7269, 0.0
  %v7296 = vmax.f32 %v7274, 0.0
  %v7297 = vmax.f32 %v7279, 0.0
  %s7298 = scalar_lea.vmem %s3, 256
  %v7299 = vld [vmem:[%s7298] sm:$0xff]
  %v7300 = vld [vmem:[%s7298 + $0x8] sm:$0x3]
  %v7302 = vsel %vm504, %v7282, 0
  %v7305 = vsel %vm504, %v7283, 0
  %v7308 = vsel %vm504, %v7284, 0
  %v7311 = vsel %vm504, %v7285, 0
  %v7314 = vsel %vm504, %v7286, 0
  %v7317 = vsel %vm504, %v7287, 0
  %v7320 = vsel %vm504, %v7288, 0
  %v7323 = vsel %vm504, %v7289, 0
  %v7326 = vsel %vm504, %v7290, 0
  %v7329 = vsel %vm504, %v7291, 0
  %v7332 = vsel %vm504, %v7292, 0
  %v7335 = vsel %vm504, %v7293, 0
  %v7338 = vsel %vm504, %v7294, 0
  %v7341 = vsel %vm504, %v7295, 0
  %v7344 = vsel %vm504, %v7296, 0
  %v7347 = vsel %vm504, %v7297, 0
  %v7350 = vsel %vm553, %v7300, 0
  %7352 = vmatprep.subr.mxu0 0.0
  %7353 = vmatpush1.msra.mxu0 %v7299
  %7354 = vmatprep.subr.mxu0 0.0
  %7355 = vmatpush1.msra.mxu0 %v7350
  %7356 = vmatprep.subr.mxu0 0.0
  %7357 = vmatpush1.msra.mxu0 0.0
  %7358 = vmatprep.subr.mxu0 0.0
  %7359 = vmatpush1.msra.mxu0 0.0
  %7360 = vmatprep.subr.mxu0 0.0
  %7361 = vmatpush1.msra.mxu0 0.0
  %7362 = vmatprep.subr.mxu0 0.0
  %7363 = vmatpush1.msra.mxu0 0.0
  %7364 = vmatprep.subr.mxu0 0.0
  %7365 = vmatpush1.msra.mxu0 0.0
  %7366 = vmatprep.subr.mxu0 0.0
  %7367 = vmatpush1.msra.mxu0 0.0
  %7368 = vmatprep.subr.mxu0 0.0
  %7369 = vmatpush1.msra.mxu0 0.0
  %7370 = vmatprep.subr.mxu0 0.0
  %7371 = vmatpush1.msra.mxu0 0.0
  %7372 = vmatprep.subr.mxu0 0.0
  %7373 = vmatpush1.msra.mxu0 0.0
  %7374 = vmatprep.subr.mxu0 0.0
  %7375 = vmatpush1.msra.mxu0 0.0
  %7376 = vmatprep.subr.mxu0 0.0
  %7377 = vmatpush1.msra.mxu0 0.0
  %7378 = vmatprep.subr.mxu0 0.0
  %7379 = vmatpush1.msra.mxu0 0.0
  %7380 = vmatprep.subr.mxu0 0.0
  %7381 = vmatpush1.msra.mxu0 0.0
  %7382 = vmatprep.subr.mxu0 0.0
  %7383 = vmatpush1.msra.mxu0 0.0
  %7384 = vmatprep.subr.mxu0 0.0
  %7385 = vmatpush1.msra.mxu0 0.0
  %7386 = vmatprep.subr.mxu0 0.0
  %7387 = vmatpush1.msra.mxu0 0.0
  %7388 = vmatprep.subr.mxu0 0.0
  %7389 = vmatpush1.msra.mxu0 0.0
  %7390 = vmatprep.subr.mxu0 0.0
  %7391 = vmatpush1.msra.mxu0 0.0
  %7392 = vmatprep.subr.mxu0 0.0
  %7393 = vmatpush1.msra.mxu0 0.0
  %7394 = vmatprep.subr.mxu0 0.0
  %7395 = vmatpush1.msra.mxu0 0.0
  %7396 = vmatprep.subr.mxu0 0.0
  %7397 = vmatpush1.msra.mxu0 0.0
  %7398 = vmatprep.subr.mxu0 0.0
  %7399 = vmatpush1.msra.mxu0 0.0
  %7400 = vmatprep.subr.mxu0 0.0
  %7401 = vmatpush1.msra.mxu0 0.0
  %7402 = vmatprep.subr.mxu0 0.0
  %7403 = vmatpush1.msra.mxu0 0.0
  %7404 = vmatprep.subr.mxu0 0.0
  %7405 = vmatpush1.msra.mxu0 0.0
  %7406 = vmatprep.subr.mxu0 0.0
  %7407 = vmatpush1.msra.mxu0 0.0
  %7408 = vmatprep.subr.mxu0 0.0
  %7409 = vmatpush1.msra.mxu0 0.0
  %7410 = vmatprep.subr.mxu0 0.0
  %7411 = vmatpush1.msra.mxu0 0.0
  %7412 = vmatprep.subr.mxu0 0.0
  %7413 = vmatpush1.msra.mxu0 0.0
  %7414 = vmatprep.subr.mxu0 0.0
  %7415 = vmatpush1.msra.mxu0 0.0
  %7416 = vmatprep.mubr.f32.mxu0 0.0
  %7417 = vmatmul.mubr.f32.gmra.mrb[0].mxu0 %v7302
  %v7418 = vpop.f32.mrb[0].mxu0
  %v7419 = vadd.f32 0.0, %v7418
  %v7420 = vpop.f32.mrb[0].mxu0
  %7421 = vmatprep.mubr.f32.mxu0 0.0
  %7422 = vmatmul.mubr.f32.gmra.mrb[0].mxu0 %v7305
  %v7423 = vpop.f32.mrb[0].mxu0
  %v7424 = vadd.f32 0.0, %v7423
  %v7425 = vpop.f32.mrb[0].mxu0
  %7426 = vmatprep.mubr.f32.mxu0 0.0
  %7427 = vmatmul.mubr.f32.gmra.mrb[0].mxu0 %v7308
  %v7428 = vpop.f32.mrb[0].mxu0
  %v7429 = vadd.f32 0.0, %v7428
  %v7430 = vpop.f32.mrb[0].mxu0
  %7431 = vmatprep.mubr.f32.mxu0 0.0
  %7432 = vmatmul.mubr.f32.gmra.mrb[0].mxu0 %v7311
  %v7433 = vpop.f32.mrb[0].mxu0
  %v7434 = vadd.f32 0.0, %v7433
  %v7435 = vpop.f32.mrb[0].mxu0
  %7436 = vmatprep.mubr.f32.mxu0 0.0
  %7437 = vmatmul.mubr.f32.gmra.mrb[0].mxu0 %v7314
  %v7438 = vpop.f32.mrb[0].mxu0
  %v7439 = vadd.f32 0.0, %v7438
  %v7440 = vpop.f32.mrb[0].mxu0
  %7441 = vmatprep.mubr.f32.mxu0 0.0
  %7442 = vmatmul.mubr.f32.gmra.mrb[0].mxu0 %v7317
  %v7443 = vpop.f32.mrb[0].mxu0
  %v7444 = vadd.f32 0.0, %v7443
  %v7445 = vpop.f32.mrb[0].mxu0
  %7446 = vmatprep.mubr.f32.mxu0 0.0
  %7447 = vmatmul.mubr.f32.gmra.mrb[0].mxu0 %v7320
  %v7448 = vpop.f32.mrb[0].mxu0
  %v7449 = vadd.f32 0.0, %v7448
  %v7450 = vpop.f32.mrb[0].mxu0
  %7451 = vmatprep.mubr.f32.mxu0 0.0
  %7452 = vmatmul.mubr.f32.gmra.mrb[0].mxu0 %v7323
  %v7453 = vpop.f32.mrb[0].mxu0
  %v7454 = vadd.f32 0.0, %v7453
  %v7455 = vpop.f32.mrb[0].mxu0
  %7456 = vmatprep.mubr.f32.mxu0 0.0
  %7457 = vmatmul.mubr.f32.gmra.mrb[0].mxu0 %v7326
  %v7458 = vpop.f32.mrb[0].mxu0
  %v7459 = vadd.f32 0.0, %v7458
  %v7460 = vpop.f32.mrb[0].mxu0
  %7461 = vmatprep.mubr.f32.mxu0 0.0
  %7462 = vmatmul.mubr.f32.gmra.mrb[0].mxu0 %v7329
  %v7463 = vpop.f32.mrb[0].mxu0
  %v7464 = vadd.f32 0.0, %v7463
  %v7465 = vpop.f32.mrb[0].mxu0
  %7466 = vmatprep.mubr.f32.mxu0 0.0
  %7467 = vmatmul.mubr.f32.gmra.mrb[0].mxu0 %v7332
  %v7468 = vpop.f32.mrb[0].mxu0
  %v7469 = vadd.f32 0.0, %v7468
  %v7470 = vpop.f32.mrb[0].mxu0
  %7471 = vmatprep.mubr.f32.mxu0 0.0
  %7472 = vmatmul.mubr.f32.gmra.mrb[0].mxu0 %v7335
  %v7473 = vpop.f32.mrb[0].mxu0
  %v7474 = vadd.f32 0.0, %v7473
  %v7475 = vpop.f32.mrb[0].mxu0
  %7476 = vmatprep.mubr.f32.mxu0 0.0
  %7477 = vmatmul.mubr.f32.gmra.mrb[0].mxu0 %v7338
  %v7478 = vpop.f32.mrb[0].mxu0
  %v7479 = vadd.f32 0.0, %v7478
  %v7480 = vpop.f32.mrb[0].mxu0
  %7481 = vmatprep.mubr.f32.mxu0 0.0
  %7482 = vmatmul.mubr.f32.gmra.mrb[0].mxu0 %v7341
  %v7483 = vpop.f32.mrb[0].mxu0
  %v7484 = vadd.f32 0.0, %v7483
  %v7485 = vpop.f32.mrb[0].mxu0
  %7486 = vmatprep.mubr.f32.mxu0 0.0
  %7487 = vmatmul.mubr.f32.gmra.mrb[0].mxu0 %v7344
  %v7488 = vpop.f32.mrb[0].mxu0
  %v7489 = vadd.f32 0.0, %v7488
  %v7490 = vpop.f32.mrb[0].mxu0
  %7491 = vmatprep.mubr.f32.mxu0 0.0
  %7492 = vmatmul.mubr.f32.gmra.mrb[0].mxu0 %v7347
  %v7493 = vpop.f32.mrb[0].mxu0
  %v7494 = vadd.f32 0.0, %v7493
  %v7495 = vpop.f32.mrb[0].mxu0
  %7496 = vdwg.mxu0
  %v7497 = vadd.f32 %v7056, %v7419
  %v7498 = vadd.f32 %v7057, %v7424
  %v7499 = vadd.f32 %v7058, %v7429
  %v7500 = vadd.f32 %v7059, %v7434
  %v7501 = vadd.f32 %v7060, %v7439
  %v7502 = vadd.f32 %v7061, %v7444
  %v7503 = vadd.f32 %v7062, %v7449
  %v7504 = vadd.f32 %v7063, %v7454
  %v7505 = vadd.f32 %v7064, %v7459
  %v7506 = vadd.f32 %v7065, %v7464
  %v7507 = vadd.f32 %v7066, %v7469
  %v7508 = vadd.f32 %v7067, %v7474
  %v7509 = vadd.f32 %v7068, %v7479
  %v7510 = vadd.f32 %v7069, %v7484
  %v7511 = vadd.f32 %v7070, %v7489
  %v7512 = vadd.f32 %v7071, %v7494
  %s7513 = scalar_lea.vmem %s0, 2176
  %v7514 = vld [vmem:[%s7513] sm:$0xff]
  %v7515 = vld [vmem:[%s7513 + $0x8] sm:$0xff]
  %v7516 = vld [vmem:[%s7513 + $0x10] sm:$0xff]
  %v7517 = vld [vmem:[%s7513 + $0x18] sm:$0xff]
  %v7518 = vld [vmem:[%s7513 + $0x20] sm:$0xff]
  %v7519 = vld [vmem:[%s7513 + $0x28] sm:$0xff]
  %v7520 = vld [vmem:[%s7513 + $0x30] sm:$0xff]
  %v7521 = vld [vmem:[%s7513 + $0x38] sm:$0xff]
  %v7522 = vld [vmem:[%s7513 + $0x40] sm:$0xff]
  %v7523 = vld [vmem:[%s7513 + $0x48] sm:$0xff]
  %v7524 = vld [vmem:[%s7513 + $0x50] sm:$0xff]
  %v7525 = vld [vmem:[%s7513 + $0x58] sm:$0xff]
  %v7526 = vld [vmem:[%s7513 + $0x60] sm:$0xff]
  %v7527 = vld [vmem:[%s7513 + $0x68] sm:$0xff]
  %v7528 = vld [vmem:[%s7513 + $0x70] sm:$0xff]
  %v7529 = vld [vmem:[%s7513 + $0x78] sm:$0xff]
  %v7531 = vsel %vm59, %v7514, 0
  %v7534 = vsel %vm59, %v7515, 0
  %v7537 = vsel %vm59, %v7516, 0
  %v7540 = vsel %vm59, %v7517, 0
  %v7543 = vsel %vm59, %v7518, 0
  %v7546 = vsel %vm59, %v7519, 0
  %v7549 = vsel %vm59, %v7520, 0
  %v7552 = vsel %vm59, %v7521, 0
  %v7555 = vsel %vm59, %v7522, 0
  %v7558 = vsel %vm59, %v7523, 0
  %v7561 = vsel %vm59, %v7524, 0
  %v7564 = vsel %vm59, %v7525, 0
  %v7567 = vsel %vm59, %v7526, 0
  %v7570 = vsel %vm59, %v7527, 0
  %v7573 = vsel %vm59, %v7528, 0
  %v7576 = vsel %vm59, %v7529, 0
  %7578 = vmatprep.subr.mxu0 0.0
  %7579 = vmatpush1.msra.mxu0 %v32
  %7580 = vmatprep.subr.mxu0 0.0
  %7581 = vmatpush1.msra.mxu0 %v33
  %7582 = vmatprep.subr.mxu0 0.0
  %7583 = vmatpush1.msra.mxu0 %v34
  %7584 = vmatprep.subr.mxu0 0.0
  %7585 = vmatpush1.msra.mxu0 %v110
  %7586 = vmatprep.subr.mxu0 0.0
  %7587 = vmatpush1.msra.mxu0 0.0
  %7588 = vmatprep.subr.mxu0 0.0
  %7589 = vmatpush1.msra.mxu0 0.0
  %7590 = vmatprep.subr.mxu0 0.0
  %7591 = vmatpush1.msra.mxu0 0.0
  %7592 = vmatprep.subr.mxu0 0.0
  %7593 = vmatpush1.msra.mxu0 0.0
  %7594 = vmatprep.subr.mxu0 0.0
  %7595 = vmatpush1.msra.mxu0 0.0
  %7596 = vmatprep.subr.mxu0 0.0
  %7597 = vmatpush1.msra.mxu0 0.0
  %7598 = vmatprep.subr.mxu0 0.0
  %7599 = vmatpush1.msra.mxu0 0.0
  %7600 = vmatprep.subr.mxu0 0.0
  %7601 = vmatpush1.msra.mxu0 0.0
  %7602 = vmatprep.subr.mxu0 0.0
  %7603 = vmatpush1.msra.mxu0 0.0
  %7604 = vmatprep.subr.mxu0 0.0
  %7605 = vmatpush1.msra.mxu0 0.0
  %7606 = vmatprep.subr.mxu0 0.0
  %7607 = vmatpush1.msra.mxu0 0.0
  %7608 = vmatprep.subr.mxu0 0.0
  %7609 = vmatpush1.msra.mxu0 0.0
  %7610 = vmatprep.subr.mxu0 0.0
  %7611 = vmatpush1.msra.mxu0 0.0
  %7612 = vmatprep.subr.mxu0 0.0
  %7613 = vmatpush1.msra.mxu0 0.0
  %7614 = vmatprep.subr.mxu0 0.0
  %7615 = vmatpush1.msra.mxu0 0.0
  %7616 = vmatprep.subr.mxu0 0.0
  %7617 = vmatpush1.msra.mxu0 0.0
  %7618 = vmatprep.subr.mxu0 0.0
  %7619 = vmatpush1.msra.mxu0 0.0
  %7620 = vmatprep.subr.mxu0 0.0
  %7621 = vmatpush1.msra.mxu0 0.0
  %7622 = vmatprep.subr.mxu0 0.0
  %7623 = vmatpush1.msra.mxu0 0.0
  %7624 = vmatprep.subr.mxu0 0.0
  %7625 = vmatpush1.msra.mxu0 0.0
  %7626 = vmatprep.subr.mxu0 0.0
  %7627 = vmatpush1.msra.mxu0 0.0
  %7628 = vmatprep.subr.mxu0 0.0
  %7629 = vmatpush1.msra.mxu0 0.0
  %7630 = vmatprep.subr.mxu0 0.0
  %7631 = vmatpush1.msra.mxu0 0.0
  %7632 = vmatprep.subr.mxu0 0.0
  %7633 = vmatpush1.msra.mxu0 0.0
  %7634 = vmatprep.subr.mxu0 0.0
  %7635 = vmatpush1.msra.mxu0 0.0
  %7636 = vmatprep.subr.mxu0 0.0
  %7637 = vmatpush1.msra.mxu0 0.0
  %7638 = vmatprep.subr.mxu0 0.0
  %7639 = vmatpush1.msra.mxu0 0.0
  %7640 = vmatprep.subr.mxu0 0.0
  %7641 = vmatpush1.msra.mxu0 0.0
  %7642 = vmatprep.mubr.f32.mxu0 0.0
  %7643 = vmatmul.mubr.f32.gmra.mrb[0].mxu0 %v7531
  %v7644 = vpop.f32.mrb[0].mxu0
  %v7645 = vadd.f32 %v57, %v7644
  %v7646 = vpop.f32.mrb[0].mxu0
  %7647 = vmatprep.mubr.f32.mxu0 0.0
  %7648 = vmatmul.mubr.f32.gmra.mrb[0].mxu0 %v7534
  %v7649 = vpop.f32.mrb[0].mxu0
  %v7650 = vadd.f32 %v57, %v7649
  %v7651 = vpop.f32.mrb[0].mxu0
  %7652 = vmatprep.mubr.f32.mxu0 0.0
  %7653 = vmatmul.mubr.f32.gmra.mrb[0].mxu0 %v7537
  %v7654 = vpop.f32.mrb[0].mxu0
  %v7655 = vadd.f32 %v57, %v7654
  %v7656 = vpop.f32.mrb[0].mxu0
  %7657 = vmatprep.mubr.f32.mxu0 0.0
  %7658 = vmatmul.mubr.f32.gmra.mrb[0].mxu0 %v7540
  %v7659 = vpop.f32.mrb[0].mxu0
  %v7660 = vadd.f32 %v57, %v7659
  %v7661 = vpop.f32.mrb[0].mxu0
  %7662 = vmatprep.mubr.f32.mxu0 0.0
  %7663 = vmatmul.mubr.f32.gmra.mrb[0].mxu0 %v7543
  %v7664 = vpop.f32.mrb[0].mxu0
  %v7665 = vadd.f32 %v57, %v7664
  %v7666 = vpop.f32.mrb[0].mxu0
  %7667 = vmatprep.mubr.f32.mxu0 0.0
  %7668 = vmatmul.mubr.f32.gmra.mrb[0].mxu0 %v7546
  %v7669 = vpop.f32.mrb[0].mxu0
  %v7670 = vadd.f32 %v57, %v7669
  %v7671 = vpop.f32.mrb[0].mxu0
  %7672 = vmatprep.mubr.f32.mxu0 0.0
  %7673 = vmatmul.mubr.f32.gmra.mrb[0].mxu0 %v7549
  %v7674 = vpop.f32.mrb[0].mxu0
  %v7675 = vadd.f32 %v57, %v7674
  %v7676 = vpop.f32.mrb[0].mxu0
  %7677 = vmatprep.mubr.f32.mxu0 0.0
  %7678 = vmatmul.mubr.f32.gmra.mrb[0].mxu0 %v7552
  %v7679 = vpop.f32.mrb[0].mxu0
  %v7680 = vadd.f32 %v57, %v7679
  %v7681 = vpop.f32.mrb[0].mxu0
  %7682 = vmatprep.mubr.f32.mxu0 0.0
  %7683 = vmatmul.mubr.f32.gmra.mrb[0].mxu0 %v7555
  %v7684 = vpop.f32.mrb[0].mxu0
  %v7685 = vadd.f32 %v57, %v7684
  %v7686 = vpop.f32.mrb[0].mxu0
  %7687 = vmatprep.mubr.f32.mxu0 0.0
  %7688 = vmatmul.mubr.f32.gmra.mrb[0].mxu0 %v7558
  %v7689 = vpop.f32.mrb[0].mxu0
  %v7690 = vadd.f32 %v57, %v7689
  %v7691 = vpop.f32.mrb[0].mxu0
  %7692 = vmatprep.mubr.f32.mxu0 0.0
  %7693 = vmatmul.mubr.f32.gmra.mrb[0].mxu0 %v7561
  %v7694 = vpop.f32.mrb[0].mxu0
  %v7695 = vadd.f32 %v57, %v7694
  %v7696 = vpop.f32.mrb[0].mxu0
  %7697 = vmatprep.mubr.f32.mxu0 0.0
  %7698 = vmatmul.mubr.f32.gmra.mrb[0].mxu0 %v7564
  %v7699 = vpop.f32.mrb[0].mxu0
  %v7700 = vadd.f32 %v57, %v7699
  %v7701 = vpop.f32.mrb[0].mxu0
  %7702 = vmatprep.mubr.f32.mxu0 0.0
  %7703 = vmatmul.mubr.f32.gmra.mrb[0].mxu0 %v7567
  %v7704 = vpop.f32.mrb[0].mxu0
  %v7705 = vadd.f32 %v57, %v7704
  %v7706 = vpop.f32.mrb[0].mxu0
  %7707 = vmatprep.mubr.f32.mxu0 0.0
  %7708 = vmatmul.mubr.f32.gmra.mrb[0].mxu0 %v7570
  %v7709 = vpop.f32.mrb[0].mxu0
  %v7710 = vadd.f32 %v57, %v7709
  %v7711 = vpop.f32.mrb[0].mxu0
  %7712 = vmatprep.mubr.f32.mxu0 0.0
  %7713 = vmatmul.mubr.f32.gmra.mrb[0].mxu0 %v7573
  %v7714 = vpop.f32.mrb[0].mxu0
  %v7715 = vadd.f32 %v57, %v7714
  %v7716 = vpop.f32.mrb[0].mxu0
  %7717 = vmatprep.mubr.f32.mxu0 0.0
  %7718 = vmatmul.mubr.f32.gmra.mrb[0].mxu0 %v7576
  %v7719 = vpop.f32.mrb[0].mxu0
  %v7720 = vadd.f32 %v57, %v7719
  %v7721 = vpop.f32.mrb[0].mxu0
  %7722 = vdwg.mxu0
  %v7723 = vmax.f32 %v7645, 0.0
  %v7724 = vmax.f32 %v7650, 0.0
  %v7725 = vmax.f32 %v7655, 0.0
  %v7726 = vmax.f32 %v7660, 0.0
  %v7727 = vmax.f32 %v7665, 0.0
  %v7728 = vmax.f32 %v7670, 0.0
  %v7729 = vmax.f32 %v7675, 0.0
  %v7730 = vmax.f32 %v7680, 0.0
  %v7731 = vmax.f32 %v7685, 0.0
  %v7732 = vmax.f32 %v7690, 0.0
  %v7733 = vmax.f32 %v7695, 0.0
  %v7734 = vmax.f32 %v7700, 0.0
  %v7735 = vmax.f32 %v7705, 0.0
  %v7736 = vmax.f32 %v7710, 0.0
  %v7737 = vmax.f32 %v7715, 0.0
  %v7738 = vmax.f32 %v7720, 0.0
  %s7739 = scalar_lea.vmem %s3, 272
  %v7740 = vld [vmem:[%s7739] sm:$0xff]
  %v7741 = vld [vmem:[%s7739 + $0x8] sm:$0x3]
  %v7743 = vsel %vm504, %v7723, 0
  %v7746 = vsel %vm504, %v7724, 0
  %v7749 = vsel %vm504, %v7725, 0
  %v7752 = vsel %vm504, %v7726, 0
  %v7755 = vsel %vm504, %v7727, 0
  %v7758 = vsel %vm504, %v7728, 0
  %v7761 = vsel %vm504, %v7729, 0
  %v7764 = vsel %vm504, %v7730, 0
  %v7767 = vsel %vm504, %v7731, 0
  %v7770 = vsel %vm504, %v7732, 0
  %v7773 = vsel %vm504, %v7733, 0
  %v7776 = vsel %vm504, %v7734, 0
  %v7779 = vsel %vm504, %v7735, 0
  %v7782 = vsel %vm504, %v7736, 0
  %v7785 = vsel %vm504, %v7737, 0
  %v7788 = vsel %vm504, %v7738, 0
  %v7791 = vsel %vm553, %v7741, 0
  %7793 = vmatprep.subr.mxu0 0.0
  %7794 = vmatpush1.msra.mxu0 %v7740
  %7795 = vmatprep.subr.mxu0 0.0
  %7796 = vmatpush1.msra.mxu0 %v7791
  %7797 = vmatprep.subr.mxu0 0.0
  %7798 = vmatpush1.msra.mxu0 0.0
  %7799 = vmatprep.subr.mxu0 0.0
  %7800 = vmatpush1.msra.mxu0 0.0
  %7801 = vmatprep.subr.mxu0 0.0
  %7802 = vmatpush1.msra.mxu0 0.0
  %7803 = vmatprep.subr.mxu0 0.0
  %7804 = vmatpush1.msra.mxu0 0.0
  %7805 = vmatprep.subr.mxu0 0.0
  %7806 = vmatpush1.msra.mxu0 0.0
  %7807 = vmatprep.subr.mxu0 0.0
  %7808 = vmatpush1.msra.mxu0 0.0
  %7809 = vmatprep.subr.mxu0 0.0
  %7810 = vmatpush1.msra.mxu0 0.0
  %7811 = vmatprep.subr.mxu0 0.0
  %7812 = vmatpush1.msra.mxu0 0.0
  %7813 = vmatprep.subr.mxu0 0.0
  %7814 = vmatpush1.msra.mxu0 0.0
  %7815 = vmatprep.subr.mxu0 0.0
  %7816 = vmatpush1.msra.mxu0 0.0
  %7817 = vmatprep.subr.mxu0 0.0
  %7818 = vmatpush1.msra.mxu0 0.0
  %7819 = vmatprep.subr.mxu0 0.0
  %7820 = vmatpush1.msra.mxu0 0.0
  %7821 = vmatprep.subr.mxu0 0.0
  %7822 = vmatpush1.msra.mxu0 0.0
  %7823 = vmatprep.subr.mxu0 0.0
  %7824 = vmatpush1.msra.mxu0 0.0
  %7825 = vmatprep.subr.mxu0 0.0
  %7826 = vmatpush1.msra.mxu0 0.0
  %7827 = vmatprep.subr.mxu0 0.0
  %7828 = vmatpush1.msra.mxu0 0.0
  %7829 = vmatprep.subr.mxu0 0.0
  %7830 = vmatpush1.msra.mxu0 0.0
  %7831 = vmatprep.subr.mxu0 0.0
  %7832 = vmatpush1.msra.mxu0 0.0
  %7833 = vmatprep.subr.mxu0 0.0
  %7834 = vmatpush1.msra.mxu0 0.0
  %7835 = vmatprep.subr.mxu0 0.0
  %7836 = vmatpush1.msra.mxu0 0.0
  %7837 = vmatprep.subr.mxu0 0.0
  %7838 = vmatpush1.msra.mxu0 0.0
  %7839 = vmatprep.subr.mxu0 0.0
  %7840 = vmatpush1.msra.mxu0 0.0
  %7841 = vmatprep.subr.mxu0 0.0
  %7842 = vmatpush1.msra.mxu0 0.0
  %7843 = vmatprep.subr.mxu0 0.0
  %7844 = vmatpush1.msra.mxu0 0.0
  %7845 = vmatprep.subr.mxu0 0.0
  %7846 = vmatpush1.msra.mxu0 0.0
  %7847 = vmatprep.subr.mxu0 0.0
  %7848 = vmatpush1.msra.mxu0 0.0
  %7849 = vmatprep.subr.mxu0 0.0
  %7850 = vmatpush1.msra.mxu0 0.0
  %7851 = vmatprep.subr.mxu0 0.0
  %7852 = vmatpush1.msra.mxu0 0.0
  %7853 = vmatprep.subr.mxu0 0.0
  %7854 = vmatpush1.msra.mxu0 0.0
  %7855 = vmatprep.subr.mxu0 0.0
  %7856 = vmatpush1.msra.mxu0 0.0
  %7857 = vmatprep.mubr.f32.mxu0 0.0
  %7858 = vmatmul.mubr.f32.gmra.mrb[0].mxu0 %v7743
  %v7859 = vpop.f32.mrb[0].mxu0
  %v7860 = vadd.f32 0.0, %v7859
  %v7861 = vpop.f32.mrb[0].mxu0
  %7862 = vmatprep.mubr.f32.mxu0 0.0
  %7863 = vmatmul.mubr.f32.gmra.mrb[0].mxu0 %v7746
  %v7864 = vpop.f32.mrb[0].mxu0
  %v7865 = vadd.f32 0.0, %v7864
  %v7866 = vpop.f32.mrb[0].mxu0
  %7867 = vmatprep.mubr.f32.mxu0 0.0
  %7868 = vmatmul.mubr.f32.gmra.mrb[0].mxu0 %v7749
  %v7869 = vpop.f32.mrb[0].mxu0
  %v7870 = vadd.f32 0.0, %v7869
  %v7871 = vpop.f32.mrb[0].mxu0
  %7872 = vmatprep.mubr.f32.mxu0 0.0
  %7873 = vmatmul.mubr.f32.gmra.mrb[0].mxu0 %v7752
  %v7874 = vpop.f32.mrb[0].mxu0
  %v7875 = vadd.f32 0.0, %v7874
  %v7876 = vpop.f32.mrb[0].mxu0
  %7877 = vmatprep.mubr.f32.mxu0 0.0
  %7878 = vmatmul.mubr.f32.gmra.mrb[0].mxu0 %v7755
  %v7879 = vpop.f32.mrb[0].mxu0
  %v7880 = vadd.f32 0.0, %v7879
  %v7881 = vpop.f32.mrb[0].mxu0
  %7882 = vmatprep.mubr.f32.mxu0 0.0
  %7883 = vmatmul.mubr.f32.gmra.mrb[0].mxu0 %v7758
  %v7884 = vpop.f32.mrb[0].mxu0
  %v7885 = vadd.f32 0.0, %v7884
  %v7886 = vpop.f32.mrb[0].mxu0
  %7887 = vmatprep.mubr.f32.mxu0 0.0
  %7888 = vmatmul.mubr.f32.gmra.mrb[0].mxu0 %v7761
  %v7889 = vpop.f32.mrb[0].mxu0
  %v7890 = vadd.f32 0.0, %v7889
  %v7891 = vpop.f32.mrb[0].mxu0
  %7892 = vmatprep.mubr.f32.mxu0 0.0
  %7893 = vmatmul.mubr.f32.gmra.mrb[0].mxu0 %v7764
  %v7894 = vpop.f32.mrb[0].mxu0
  %v7895 = vadd.f32 0.0, %v7894
  %v7896 = vpop.f32.mrb[0].mxu0
  %7897 = vmatprep.mubr.f32.mxu0 0.0
  %7898 = vmatmul.mubr.f32.gmra.mrb[0].mxu0 %v7767
  %v7899 = vpop.f32.mrb[0].mxu0
  %v7900 = vadd.f32 0.0, %v7899
  %v7901 = vpop.f32.mrb[0].mxu0
  %7902 = vmatprep.mubr.f32.mxu0 0.0
  %7903 = vmatmul.mubr.f32.gmra.mrb[0].mxu0 %v7770
  %v7904 = vpop.f32.mrb[0].mxu0
  %v7905 = vadd.f32 0.0, %v7904
  %v7906 = vpop.f32.mrb[0].mxu0
  %7907 = vmatprep.mubr.f32.mxu0 0.0
  %7908 = vmatmul.mubr.f32.gmra.mrb[0].mxu0 %v7773
  %v7909 = vpop.f32.mrb[0].mxu0
  %v7910 = vadd.f32 0.0, %v7909
  %v7911 = vpop.f32.mrb[0].mxu0
  %7912 = vmatprep.mubr.f32.mxu0 0.0
  %7913 = vmatmul.mubr.f32.gmra.mrb[0].mxu0 %v7776
  %v7914 = vpop.f32.mrb[0].mxu0
  %v7915 = vadd.f32 0.0, %v7914
  %v7916 = vpop.f32.mrb[0].mxu0
  %7917 = vmatprep.mubr.f32.mxu0 0.0
  %7918 = vmatmul.mubr.f32.gmra.mrb[0].mxu0 %v7779
  %v7919 = vpop.f32.mrb[0].mxu0
  %v7920 = vadd.f32 0.0, %v7919
  %v7921 = vpop.f32.mrb[0].mxu0
  %7922 = vmatprep.mubr.f32.mxu0 0.0
  %7923 = vmatmul.mubr.f32.gmra.mrb[0].mxu0 %v7782
  %v7924 = vpop.f32.mrb[0].mxu0
  %v7925 = vadd.f32 0.0, %v7924
  %v7926 = vpop.f32.mrb[0].mxu0
  %7927 = vmatprep.mubr.f32.mxu0 0.0
  %7928 = vmatmul.mubr.f32.gmra.mrb[0].mxu0 %v7785
  %v7929 = vpop.f32.mrb[0].mxu0
  %v7930 = vadd.f32 0.0, %v7929
  %v7931 = vpop.f32.mrb[0].mxu0
  %7932 = vmatprep.mubr.f32.mxu0 0.0
  %7933 = vmatmul.mubr.f32.gmra.mrb[0].mxu0 %v7788
  %v7934 = vpop.f32.mrb[0].mxu0
  %v7935 = vadd.f32 0.0, %v7934
  %v7936 = vpop.f32.mrb[0].mxu0
  %7937 = vdwg.mxu0
  %v7938 = vadd.f32 %v7497, %v7860
  %v7939 = vadd.f32 %v7498, %v7865
  %v7940 = vadd.f32 %v7499, %v7870
  %v7941 = vadd.f32 %v7500, %v7875
  %v7942 = vadd.f32 %v7501, %v7880
  %v7943 = vadd.f32 %v7502, %v7885
  %v7944 = vadd.f32 %v7503, %v7890
  %v7945 = vadd.f32 %v7504, %v7895
  %v7946 = vadd.f32 %v7505, %v7900
  %v7947 = vadd.f32 %v7506, %v7905
  %v7948 = vadd.f32 %v7507, %v7910
  %v7949 = vadd.f32 %v7508, %v7915
  %v7950 = vadd.f32 %v7509, %v7920
  %v7951 = vadd.f32 %v7510, %v7925
  %v7952 = vadd.f32 %v7511, %v7930
  %v7953 = vadd.f32 %v7512, %v7935
  %s7954 = scalar_lea.vmem %s0, 2304
  %v7955 = vld [vmem:[%s7954] sm:$0xff]
  %v7956 = vld [vmem:[%s7954 + $0x8] sm:$0xff]
  %v7957 = vld [vmem:[%s7954 + $0x10] sm:$0xff]
  %v7958 = vld [vmem:[%s7954 + $0x18] sm:$0xff]
  %v7959 = vld [vmem:[%s7954 + $0x20] sm:$0xff]
  %v7960 = vld [vmem:[%s7954 + $0x28] sm:$0xff]
  %v7961 = vld [vmem:[%s7954 + $0x30] sm:$0xff]
  %v7962 = vld [vmem:[%s7954 + $0x38] sm:$0xff]
  %v7963 = vld [vmem:[%s7954 + $0x40] sm:$0xff]
  %v7964 = vld [vmem:[%s7954 + $0x48] sm:$0xff]
  %v7965 = vld [vmem:[%s7954 + $0x50] sm:$0xff]
  %v7966 = vld [vmem:[%s7954 + $0x58] sm:$0xff]
  %v7967 = vld [vmem:[%s7954 + $0x60] sm:$0xff]
  %v7968 = vld [vmem:[%s7954 + $0x68] sm:$0xff]
  %v7969 = vld [vmem:[%s7954 + $0x70] sm:$0xff]
  %v7970 = vld [vmem:[%s7954 + $0x78] sm:$0xff]
  %v7972 = vsel %vm59, %v7955, 0
  %v7975 = vsel %vm59, %v7956, 0
  %v7978 = vsel %vm59, %v7957, 0
  %v7981 = vsel %vm59, %v7958, 0
  %v7984 = vsel %vm59, %v7959, 0
  %v7987 = vsel %vm59, %v7960, 0
  %v7990 = vsel %vm59, %v7961, 0
  %v7993 = vsel %vm59, %v7962, 0
  %v7996 = vsel %vm59, %v7963, 0
  %v7999 = vsel %vm59, %v7964, 0
  %v8002 = vsel %vm59, %v7965, 0
  %v8005 = vsel %vm59, %v7966, 0
  %v8008 = vsel %vm59, %v7967, 0
  %v8011 = vsel %vm59, %v7968, 0
  %v8014 = vsel %vm59, %v7969, 0
  %v8017 = vsel %vm59, %v7970, 0
  %8019 = vmatprep.subr.mxu0 0.0
  %8020 = vmatpush1.msra.mxu0 %v32
  %8021 = vmatprep.subr.mxu0 0.0
  %8022 = vmatpush1.msra.mxu0 %v33
  %8023 = vmatprep.subr.mxu0 0.0
  %8024 = vmatpush1.msra.mxu0 %v34
  %8025 = vmatprep.subr.mxu0 0.0
  %8026 = vmatpush1.msra.mxu0 %v110
  %8027 = vmatprep.subr.mxu0 0.0
  %8028 = vmatpush1.msra.mxu0 0.0
  %8029 = vmatprep.subr.mxu0 0.0
  %8030 = vmatpush1.msra.mxu0 0.0
  %8031 = vmatprep.subr.mxu0 0.0
  %8032 = vmatpush1.msra.mxu0 0.0
  %8033 = vmatprep.subr.mxu0 0.0
  %8034 = vmatpush1.msra.mxu0 0.0
  %8035 = vmatprep.subr.mxu0 0.0
  %8036 = vmatpush1.msra.mxu0 0.0
  %8037 = vmatprep.subr.mxu0 0.0
  %8038 = vmatpush1.msra.mxu0 0.0
  %8039 = vmatprep.subr.mxu0 0.0
  %8040 = vmatpush1.msra.mxu0 0.0
  %8041 = vmatprep.subr.mxu0 0.0
  %8042 = vmatpush1.msra.mxu0 0.0
  %8043 = vmatprep.subr.mxu0 0.0
  %8044 = vmatpush1.msra.mxu0 0.0
  %8045 = vmatprep.subr.mxu0 0.0
  %8046 = vmatpush1.msra.mxu0 0.0
  %8047 = vmatprep.subr.mxu0 0.0
  %8048 = vmatpush1.msra.mxu0 0.0
  %8049 = vmatprep.subr.mxu0 0.0
  %8050 = vmatpush1.msra.mxu0 0.0
  %8051 = vmatprep.subr.mxu0 0.0
  %8052 = vmatpush1.msra.mxu0 0.0
  %8053 = vmatprep.subr.mxu0 0.0
  %8054 = vmatpush1.msra.mxu0 0.0
  %8055 = vmatprep.subr.mxu0 0.0
  %8056 = vmatpush1.msra.mxu0 0.0
  %8057 = vmatprep.subr.mxu0 0.0
  %8058 = vmatpush1.msra.mxu0 0.0
  %8059 = vmatprep.subr.mxu0 0.0
  %8060 = vmatpush1.msra.mxu0 0.0
  %8061 = vmatprep.subr.mxu0 0.0
  %8062 = vmatpush1.msra.mxu0 0.0
  %8063 = vmatprep.subr.mxu0 0.0
  %8064 = vmatpush1.msra.mxu0 0.0
  %8065 = vmatprep.subr.mxu0 0.0
  %8066 = vmatpush1.msra.mxu0 0.0
  %8067 = vmatprep.subr.mxu0 0.0
  %8068 = vmatpush1.msra.mxu0 0.0
  %8069 = vmatprep.subr.mxu0 0.0
  %8070 = vmatpush1.msra.mxu0 0.0
  %8071 = vmatprep.subr.mxu0 0.0
  %8072 = vmatpush1.msra.mxu0 0.0
  %8073 = vmatprep.subr.mxu0 0.0
  %8074 = vmatpush1.msra.mxu0 0.0
  %8075 = vmatprep.subr.mxu0 0.0
  %8076 = vmatpush1.msra.mxu0 0.0
  %8077 = vmatprep.subr.mxu0 0.0
  %8078 = vmatpush1.msra.mxu0 0.0
  %8079 = vmatprep.subr.mxu0 0.0
  %8080 = vmatpush1.msra.mxu0 0.0
  %8081 = vmatprep.subr.mxu0 0.0
  %8082 = vmatpush1.msra.mxu0 0.0
  %8083 = vmatprep.mubr.f32.mxu0 0.0
  %8084 = vmatmul.mubr.f32.gmra.mrb[0].mxu0 %v7972
  %v8085 = vpop.f32.mrb[0].mxu0
  %v8086 = vadd.f32 %v57, %v8085
  %v8087 = vpop.f32.mrb[0].mxu0
  %8088 = vmatprep.mubr.f32.mxu0 0.0
  %8089 = vmatmul.mubr.f32.gmra.mrb[0].mxu0 %v7975
  %v8090 = vpop.f32.mrb[0].mxu0
  %v8091 = vadd.f32 %v57, %v8090
  %v8092 = vpop.f32.mrb[0].mxu0
  %8093 = vmatprep.mubr.f32.mxu0 0.0
  %8094 = vmatmul.mubr.f32.gmra.mrb[0].mxu0 %v7978
  %v8095 = vpop.f32.mrb[0].mxu0
  %v8096 = vadd.f32 %v57, %v8095
  %v8097 = vpop.f32.mrb[0].mxu0
  %8098 = vmatprep.mubr.f32.mxu0 0.0
  %8099 = vmatmul.mubr.f32.gmra.mrb[0].mxu0 %v7981
  %v8100 = vpop.f32.mrb[0].mxu0
  %v8101 = vadd.f32 %v57, %v8100
  %v8102 = vpop.f32.mrb[0].mxu0
  %8103 = vmatprep.mubr.f32.mxu0 0.0
  %8104 = vmatmul.mubr.f32.gmra.mrb[0].mxu0 %v7984
  %v8105 = vpop.f32.mrb[0].mxu0
  %v8106 = vadd.f32 %v57, %v8105
  %v8107 = vpop.f32.mrb[0].mxu0
  %8108 = vmatprep.mubr.f32.mxu0 0.0
  %8109 = vmatmul.mubr.f32.gmra.mrb[0].mxu0 %v7987
  %v8110 = vpop.f32.mrb[0].mxu0
  %v8111 = vadd.f32 %v57, %v8110
  %v8112 = vpop.f32.mrb[0].mxu0
  %8113 = vmatprep.mubr.f32.mxu0 0.0
  %8114 = vmatmul.mubr.f32.gmra.mrb[0].mxu0 %v7990
  %v8115 = vpop.f32.mrb[0].mxu0
  %v8116 = vadd.f32 %v57, %v8115
  %v8117 = vpop.f32.mrb[0].mxu0
  %8118 = vmatprep.mubr.f32.mxu0 0.0
  %8119 = vmatmul.mubr.f32.gmra.mrb[0].mxu0 %v7993
  %v8120 = vpop.f32.mrb[0].mxu0
  %v8121 = vadd.f32 %v57, %v8120
  %v8122 = vpop.f32.mrb[0].mxu0
  %8123 = vmatprep.mubr.f32.mxu0 0.0
  %8124 = vmatmul.mubr.f32.gmra.mrb[0].mxu0 %v7996
  %v8125 = vpop.f32.mrb[0].mxu0
  %v8126 = vadd.f32 %v57, %v8125
  %v8127 = vpop.f32.mrb[0].mxu0
  %8128 = vmatprep.mubr.f32.mxu0 0.0
  %8129 = vmatmul.mubr.f32.gmra.mrb[0].mxu0 %v7999
  %v8130 = vpop.f32.mrb[0].mxu0
  %v8131 = vadd.f32 %v57, %v8130
  %v8132 = vpop.f32.mrb[0].mxu0
  %8133 = vmatprep.mubr.f32.mxu0 0.0
  %8134 = vmatmul.mubr.f32.gmra.mrb[0].mxu0 %v8002
  %v8135 = vpop.f32.mrb[0].mxu0
  %v8136 = vadd.f32 %v57, %v8135
  %v8137 = vpop.f32.mrb[0].mxu0
  %8138 = vmatprep.mubr.f32.mxu0 0.0
  %8139 = vmatmul.mubr.f32.gmra.mrb[0].mxu0 %v8005
  %v8140 = vpop.f32.mrb[0].mxu0
  %v8141 = vadd.f32 %v57, %v8140
  %v8142 = vpop.f32.mrb[0].mxu0
  %8143 = vmatprep.mubr.f32.mxu0 0.0
  %8144 = vmatmul.mubr.f32.gmra.mrb[0].mxu0 %v8008
  %v8145 = vpop.f32.mrb[0].mxu0
  %v8146 = vadd.f32 %v57, %v8145
  %v8147 = vpop.f32.mrb[0].mxu0
  %8148 = vmatprep.mubr.f32.mxu0 0.0
  %8149 = vmatmul.mubr.f32.gmra.mrb[0].mxu0 %v8011
  %v8150 = vpop.f32.mrb[0].mxu0
  %v8151 = vadd.f32 %v57, %v8150
  %v8152 = vpop.f32.mrb[0].mxu0
  %8153 = vmatprep.mubr.f32.mxu0 0.0
  %8154 = vmatmul.mubr.f32.gmra.mrb[0].mxu0 %v8014
  %v8155 = vpop.f32.mrb[0].mxu0
  %v8156 = vadd.f32 %v57, %v8155
  %v8157 = vpop.f32.mrb[0].mxu0
  %8158 = vmatprep.mubr.f32.mxu0 0.0
  %8159 = vmatmul.mubr.f32.gmra.mrb[0].mxu0 %v8017
  %v8160 = vpop.f32.mrb[0].mxu0
  %v8161 = vadd.f32 %v57, %v8160
  %v8162 = vpop.f32.mrb[0].mxu0
  %8163 = vdwg.mxu0
  %v8164 = vmax.f32 %v8086, 0.0
  %v8165 = vmax.f32 %v8091, 0.0
  %v8166 = vmax.f32 %v8096, 0.0
  %v8167 = vmax.f32 %v8101, 0.0
  %v8168 = vmax.f32 %v8106, 0.0
  %v8169 = vmax.f32 %v8111, 0.0
  %v8170 = vmax.f32 %v8116, 0.0
  %v8171 = vmax.f32 %v8121, 0.0
  %v8172 = vmax.f32 %v8126, 0.0
  %v8173 = vmax.f32 %v8131, 0.0
  %v8174 = vmax.f32 %v8136, 0.0
  %v8175 = vmax.f32 %v8141, 0.0
  %v8176 = vmax.f32 %v8146, 0.0
  %v8177 = vmax.f32 %v8151, 0.0
  %v8178 = vmax.f32 %v8156, 0.0
  %v8179 = vmax.f32 %v8161, 0.0
  %s8180 = scalar_lea.vmem %s3, 288
  %v8181 = vld [vmem:[%s8180] sm:$0xff]
  %v8182 = vld [vmem:[%s8180 + $0x8] sm:$0x3]
  %v8184 = vsel %vm504, %v8164, 0
  %v8187 = vsel %vm504, %v8165, 0
  %v8190 = vsel %vm504, %v8166, 0
  %v8193 = vsel %vm504, %v8167, 0
  %v8196 = vsel %vm504, %v8168, 0
  %v8199 = vsel %vm504, %v8169, 0
  %v8202 = vsel %vm504, %v8170, 0
  %v8205 = vsel %vm504, %v8171, 0
  %v8208 = vsel %vm504, %v8172, 0
  %v8211 = vsel %vm504, %v8173, 0
  %v8214 = vsel %vm504, %v8174, 0
  %v8217 = vsel %vm504, %v8175, 0
  %v8220 = vsel %vm504, %v8176, 0
  %v8223 = vsel %vm504, %v8177, 0
  %v8226 = vsel %vm504, %v8178, 0
  %v8229 = vsel %vm504, %v8179, 0
  %v8232 = vsel %vm553, %v8182, 0
  %8234 = vmatprep.subr.mxu0 0.0
  %8235 = vmatpush1.msra.mxu0 %v8181
  %8236 = vmatprep.subr.mxu0 0.0
  %8237 = vmatpush1.msra.mxu0 %v8232
  %8238 = vmatprep.subr.mxu0 0.0
  %8239 = vmatpush1.msra.mxu0 0.0
  %8240 = vmatprep.subr.mxu0 0.0
  %8241 = vmatpush1.msra.mxu0 0.0
  %8242 = vmatprep.subr.mxu0 0.0
  %8243 = vmatpush1.msra.mxu0 0.0
  %8244 = vmatprep.subr.mxu0 0.0
  %8245 = vmatpush1.msra.mxu0 0.0
  %8246 = vmatprep.subr.mxu0 0.0
  %8247 = vmatpush1.msra.mxu0 0.0
  %8248 = vmatprep.subr.mxu0 0.0
  %8249 = vmatpush1.msra.mxu0 0.0
  %8250 = vmatprep.subr.mxu0 0.0
  %8251 = vmatpush1.msra.mxu0 0.0
  %8252 = vmatprep.subr.mxu0 0.0
  %8253 = vmatpush1.msra.mxu0 0.0
  %8254 = vmatprep.subr.mxu0 0.0
  %8255 = vmatpush1.msra.mxu0 0.0
  %8256 = vmatprep.subr.mxu0 0.0
  %8257 = vmatpush1.msra.mxu0 0.0
  %8258 = vmatprep.subr.mxu0 0.0
  %8259 = vmatpush1.msra.mxu0 0.0
  %8260 = vmatprep.subr.mxu0 0.0
  %8261 = vmatpush1.msra.mxu0 0.0
  %8262 = vmatprep.subr.mxu0 0.0
  %8263 = vmatpush1.msra.mxu0 0.0
  %8264 = vmatprep.subr.mxu0 0.0
  %8265 = vmatpush1.msra.mxu0 0.0
  %8266 = vmatprep.subr.mxu0 0.0
  %8267 = vmatpush1.msra.mxu0 0.0
  %8268 = vmatprep.subr.mxu0 0.0
  %8269 = vmatpush1.msra.mxu0 0.0
  %8270 = vmatprep.subr.mxu0 0.0
  %8271 = vmatpush1.msra.mxu0 0.0
  %8272 = vmatprep.subr.mxu0 0.0
  %8273 = vmatpush1.msra.mxu0 0.0
  %8274 = vmatprep.subr.mxu0 0.0
  %8275 = vmatpush1.msra.mxu0 0.0
  %8276 = vmatprep.subr.mxu0 0.0
  %8277 = vmatpush1.msra.mxu0 0.0
  %8278 = vmatprep.subr.mxu0 0.0
  %8279 = vmatpush1.msra.mxu0 0.0
  %8280 = vmatprep.subr.mxu0 0.0
  %8281 = vmatpush1.msra.mxu0 0.0
  %8282 = vmatprep.subr.mxu0 0.0
  %8283 = vmatpush1.msra.mxu0 0.0
  %8284 = vmatprep.subr.mxu0 0.0
  %8285 = vmatpush1.msra.mxu0 0.0
  %8286 = vmatprep.subr.mxu0 0.0
  %8287 = vmatpush1.msra.mxu0 0.0
  %8288 = vmatprep.subr.mxu0 0.0
  %8289 = vmatpush1.msra.mxu0 0.0
  %8290 = vmatprep.subr.mxu0 0.0
  %8291 = vmatpush1.msra.mxu0 0.0
  %8292 = vmatprep.subr.mxu0 0.0
  %8293 = vmatpush1.msra.mxu0 0.0
  %8294 = vmatprep.subr.mxu0 0.0
  %8295 = vmatpush1.msra.mxu0 0.0
  %8296 = vmatprep.subr.mxu0 0.0
  %8297 = vmatpush1.msra.mxu0 0.0
  %8298 = vmatprep.mubr.f32.mxu0 0.0
  %8299 = vmatmul.mubr.f32.gmra.mrb[0].mxu0 %v8184
  %v8300 = vpop.f32.mrb[0].mxu0
  %v8301 = vadd.f32 0.0, %v8300
  %v8302 = vpop.f32.mrb[0].mxu0
  %8303 = vmatprep.mubr.f32.mxu0 0.0
  %8304 = vmatmul.mubr.f32.gmra.mrb[0].mxu0 %v8187
  %v8305 = vpop.f32.mrb[0].mxu0
  %v8306 = vadd.f32 0.0, %v8305
  %v8307 = vpop.f32.mrb[0].mxu0
  %8308 = vmatprep.mubr.f32.mxu0 0.0
  %8309 = vmatmul.mubr.f32.gmra.mrb[0].mxu0 %v8190
  %v8310 = vpop.f32.mrb[0].mxu0
  %v8311 = vadd.f32 0.0, %v8310
  %v8312 = vpop.f32.mrb[0].mxu0
  %8313 = vmatprep.mubr.f32.mxu0 0.0
  %8314 = vmatmul.mubr.f32.gmra.mrb[0].mxu0 %v8193
  %v8315 = vpop.f32.mrb[0].mxu0
  %v8316 = vadd.f32 0.0, %v8315
  %v8317 = vpop.f32.mrb[0].mxu0
  %8318 = vmatprep.mubr.f32.mxu0 0.0
  %8319 = vmatmul.mubr.f32.gmra.mrb[0].mxu0 %v8196
  %v8320 = vpop.f32.mrb[0].mxu0
  %v8321 = vadd.f32 0.0, %v8320
  %v8322 = vpop.f32.mrb[0].mxu0
  %8323 = vmatprep.mubr.f32.mxu0 0.0
  %8324 = vmatmul.mubr.f32.gmra.mrb[0].mxu0 %v8199
  %v8325 = vpop.f32.mrb[0].mxu0
  %v8326 = vadd.f32 0.0, %v8325
  %v8327 = vpop.f32.mrb[0].mxu0
  %8328 = vmatprep.mubr.f32.mxu0 0.0
  %8329 = vmatmul.mubr.f32.gmra.mrb[0].mxu0 %v8202
  %v8330 = vpop.f32.mrb[0].mxu0
  %v8331 = vadd.f32 0.0, %v8330
  %v8332 = vpop.f32.mrb[0].mxu0
  %8333 = vmatprep.mubr.f32.mxu0 0.0
  %8334 = vmatmul.mubr.f32.gmra.mrb[0].mxu0 %v8205
  %v8335 = vpop.f32.mrb[0].mxu0
  %v8336 = vadd.f32 0.0, %v8335
  %v8337 = vpop.f32.mrb[0].mxu0
  %8338 = vmatprep.mubr.f32.mxu0 0.0
  %8339 = vmatmul.mubr.f32.gmra.mrb[0].mxu0 %v8208
  %v8340 = vpop.f32.mrb[0].mxu0
  %v8341 = vadd.f32 0.0, %v8340
  %v8342 = vpop.f32.mrb[0].mxu0
  %8343 = vmatprep.mubr.f32.mxu0 0.0
  %8344 = vmatmul.mubr.f32.gmra.mrb[0].mxu0 %v8211
  %v8345 = vpop.f32.mrb[0].mxu0
  %v8346 = vadd.f32 0.0, %v8345
  %v8347 = vpop.f32.mrb[0].mxu0
  %8348 = vmatprep.mubr.f32.mxu0 0.0
  %8349 = vmatmul.mubr.f32.gmra.mrb[0].mxu0 %v8214
  %v8350 = vpop.f32.mrb[0].mxu0
  %v8351 = vadd.f32 0.0, %v8350
  %v8352 = vpop.f32.mrb[0].mxu0
  %8353 = vmatprep.mubr.f32.mxu0 0.0
  %8354 = vmatmul.mubr.f32.gmra.mrb[0].mxu0 %v8217
  %v8355 = vpop.f32.mrb[0].mxu0
  %v8356 = vadd.f32 0.0, %v8355
  %v8357 = vpop.f32.mrb[0].mxu0
  %8358 = vmatprep.mubr.f32.mxu0 0.0
  %8359 = vmatmul.mubr.f32.gmra.mrb[0].mxu0 %v8220
  %v8360 = vpop.f32.mrb[0].mxu0
  %v8361 = vadd.f32 0.0, %v8360
  %v8362 = vpop.f32.mrb[0].mxu0
  %8363 = vmatprep.mubr.f32.mxu0 0.0
  %8364 = vmatmul.mubr.f32.gmra.mrb[0].mxu0 %v8223
  %v8365 = vpop.f32.mrb[0].mxu0
  %v8366 = vadd.f32 0.0, %v8365
  %v8367 = vpop.f32.mrb[0].mxu0
  %8368 = vmatprep.mubr.f32.mxu0 0.0
  %8369 = vmatmul.mubr.f32.gmra.mrb[0].mxu0 %v8226
  %v8370 = vpop.f32.mrb[0].mxu0
  %v8371 = vadd.f32 0.0, %v8370
  %v8372 = vpop.f32.mrb[0].mxu0
  %8373 = vmatprep.mubr.f32.mxu0 0.0
  %8374 = vmatmul.mubr.f32.gmra.mrb[0].mxu0 %v8229
  %v8375 = vpop.f32.mrb[0].mxu0
  %v8376 = vadd.f32 0.0, %v8375
  %v8377 = vpop.f32.mrb[0].mxu0
  %8378 = vdwg.mxu0
  %v8379 = vadd.f32 %v7938, %v8301
  %v8380 = vadd.f32 %v7939, %v8306
  %v8381 = vadd.f32 %v7940, %v8311
  %v8382 = vadd.f32 %v7941, %v8316
  %v8383 = vadd.f32 %v7942, %v8321
  %v8384 = vadd.f32 %v7943, %v8326
  %v8385 = vadd.f32 %v7944, %v8331
  %v8386 = vadd.f32 %v7945, %v8336
  %v8387 = vadd.f32 %v7946, %v8341
  %v8388 = vadd.f32 %v7947, %v8346
  %v8389 = vadd.f32 %v7948, %v8351
  %v8390 = vadd.f32 %v7949, %v8356
  %v8391 = vadd.f32 %v7950, %v8361
  %v8392 = vadd.f32 %v7951, %v8366
  %v8393 = vadd.f32 %v7952, %v8371
  %v8394 = vadd.f32 %v7953, %v8376
  %s8395 = scalar_lea.vmem %s0, 2432
  %v8396 = vld [vmem:[%s8395] sm:$0xff]
  %v8397 = vld [vmem:[%s8395 + $0x8] sm:$0xff]
  %v8398 = vld [vmem:[%s8395 + $0x10] sm:$0xff]
  %v8399 = vld [vmem:[%s8395 + $0x18] sm:$0xff]
  %v8400 = vld [vmem:[%s8395 + $0x20] sm:$0xff]
  %v8401 = vld [vmem:[%s8395 + $0x28] sm:$0xff]
  %v8402 = vld [vmem:[%s8395 + $0x30] sm:$0xff]
  %v8403 = vld [vmem:[%s8395 + $0x38] sm:$0xff]
  %v8404 = vld [vmem:[%s8395 + $0x40] sm:$0xff]
  %v8405 = vld [vmem:[%s8395 + $0x48] sm:$0xff]
  %v8406 = vld [vmem:[%s8395 + $0x50] sm:$0xff]
  %v8407 = vld [vmem:[%s8395 + $0x58] sm:$0xff]
  %v8408 = vld [vmem:[%s8395 + $0x60] sm:$0xff]
  %v8409 = vld [vmem:[%s8395 + $0x68] sm:$0xff]
  %v8410 = vld [vmem:[%s8395 + $0x70] sm:$0xff]
  %v8411 = vld [vmem:[%s8395 + $0x78] sm:$0xff]
  %v8413 = vsel %vm59, %v8396, 0
  %v8416 = vsel %vm59, %v8397, 0
  %v8419 = vsel %vm59, %v8398, 0
  %v8422 = vsel %vm59, %v8399, 0
  %v8425 = vsel %vm59, %v8400, 0
  %v8428 = vsel %vm59, %v8401, 0
  %v8431 = vsel %vm59, %v8402, 0
  %v8434 = vsel %vm59, %v8403, 0
  %v8437 = vsel %vm59, %v8404, 0
  %v8440 = vsel %vm59, %v8405, 0
  %v8443 = vsel %vm59, %v8406, 0
  %v8446 = vsel %vm59, %v8407, 0
  %v8449 = vsel %vm59, %v8408, 0
  %v8452 = vsel %vm59, %v8409, 0
  %v8455 = vsel %vm59, %v8410, 0
  %v8458 = vsel %vm59, %v8411, 0
  %8460 = vmatprep.subr.mxu0 0.0
  %8461 = vmatpush1.msra.mxu0 %v32
  %8462 = vmatprep.subr.mxu0 0.0
  %8463 = vmatpush1.msra.mxu0 %v33
  %8464 = vmatprep.subr.mxu0 0.0
  %8465 = vmatpush1.msra.mxu0 %v34
  %8466 = vmatprep.subr.mxu0 0.0
  %8467 = vmatpush1.msra.mxu0 %v110
  %8468 = vmatprep.subr.mxu0 0.0
  %8469 = vmatpush1.msra.mxu0 0.0
  %8470 = vmatprep.subr.mxu0 0.0
  %8471 = vmatpush1.msra.mxu0 0.0
  %8472 = vmatprep.subr.mxu0 0.0
  %8473 = vmatpush1.msra.mxu0 0.0
  %8474 = vmatprep.subr.mxu0 0.0
  %8475 = vmatpush1.msra.mxu0 0.0
  %8476 = vmatprep.subr.mxu0 0.0
  %8477 = vmatpush1.msra.mxu0 0.0
  %8478 = vmatprep.subr.mxu0 0.0
  %8479 = vmatpush1.msra.mxu0 0.0
  %8480 = vmatprep.subr.mxu0 0.0
  %8481 = vmatpush1.msra.mxu0 0.0
  %8482 = vmatprep.subr.mxu0 0.0
  %8483 = vmatpush1.msra.mxu0 0.0
  %8484 = vmatprep.subr.mxu0 0.0
  %8485 = vmatpush1.msra.mxu0 0.0
  %8486 = vmatprep.subr.mxu0 0.0
  %8487 = vmatpush1.msra.mxu0 0.0
  %8488 = vmatprep.subr.mxu0 0.0
  %8489 = vmatpush1.msra.mxu0 0.0
  %8490 = vmatprep.subr.mxu0 0.0
  %8491 = vmatpush1.msra.mxu0 0.0
  %8492 = vmatprep.subr.mxu0 0.0
  %8493 = vmatpush1.msra.mxu0 0.0
  %8494 = vmatprep.subr.mxu0 0.0
  %8495 = vmatpush1.msra.mxu0 0.0
  %8496 = vmatprep.subr.mxu0 0.0
  %8497 = vmatpush1.msra.mxu0 0.0
  %8498 = vmatprep.subr.mxu0 0.0
  %8499 = vmatpush1.msra.mxu0 0.0
  %8500 = vmatprep.subr.mxu0 0.0
  %8501 = vmatpush1.msra.mxu0 0.0
  %8502 = vmatprep.subr.mxu0 0.0
  %8503 = vmatpush1.msra.mxu0 0.0
  %8504 = vmatprep.subr.mxu0 0.0
  %8505 = vmatpush1.msra.mxu0 0.0
  %8506 = vmatprep.subr.mxu0 0.0
  %8507 = vmatpush1.msra.mxu0 0.0
  %8508 = vmatprep.subr.mxu0 0.0
  %8509 = vmatpush1.msra.mxu0 0.0
  %8510 = vmatprep.subr.mxu0 0.0
  %8511 = vmatpush1.msra.mxu0 0.0
  %8512 = vmatprep.subr.mxu0 0.0
  %8513 = vmatpush1.msra.mxu0 0.0
  %8514 = vmatprep.subr.mxu0 0.0
  %8515 = vmatpush1.msra.mxu0 0.0
  %8516 = vmatprep.subr.mxu0 0.0
  %8517 = vmatpush1.msra.mxu0 0.0
  %8518 = vmatprep.subr.mxu0 0.0
  %8519 = vmatpush1.msra.mxu0 0.0
  %8520 = vmatprep.subr.mxu0 0.0
  %8521 = vmatpush1.msra.mxu0 0.0
  %8522 = vmatprep.subr.mxu0 0.0
  %8523 = vmatpush1.msra.mxu0 0.0
  %8524 = vmatprep.mubr.f32.mxu0 0.0
  %8525 = vmatmul.mubr.f32.gmra.mrb[0].mxu0 %v8413
  %v8526 = vpop.f32.mrb[0].mxu0
  %v8527 = vadd.f32 %v57, %v8526
  %v8528 = vpop.f32.mrb[0].mxu0
  %8529 = vmatprep.mubr.f32.mxu0 0.0
  %8530 = vmatmul.mubr.f32.gmra.mrb[0].mxu0 %v8416
  %v8531 = vpop.f32.mrb[0].mxu0
  %v8532 = vadd.f32 %v57, %v8531
  %v8533 = vpop.f32.mrb[0].mxu0
  %8534 = vmatprep.mubr.f32.mxu0 0.0
  %8535 = vmatmul.mubr.f32.gmra.mrb[0].mxu0 %v8419
  %v8536 = vpop.f32.mrb[0].mxu0
  %v8537 = vadd.f32 %v57, %v8536
  %v8538 = vpop.f32.mrb[0].mxu0
  %8539 = vmatprep.mubr.f32.mxu0 0.0
  %8540 = vmatmul.mubr.f32.gmra.mrb[0].mxu0 %v8422
  %v8541 = vpop.f32.mrb[0].mxu0
  %v8542 = vadd.f32 %v57, %v8541
  %v8543 = vpop.f32.mrb[0].mxu0
  %8544 = vmatprep.mubr.f32.mxu0 0.0
  %8545 = vmatmul.mubr.f32.gmra.mrb[0].mxu0 %v8425
  %v8546 = vpop.f32.mrb[0].mxu0
  %v8547 = vadd.f32 %v57, %v8546
  %v8548 = vpop.f32.mrb[0].mxu0
  %8549 = vmatprep.mubr.f32.mxu0 0.0
  %8550 = vmatmul.mubr.f32.gmra.mrb[0].mxu0 %v8428
  %v8551 = vpop.f32.mrb[0].mxu0
  %v8552 = vadd.f32 %v57, %v8551
  %v8553 = vpop.f32.mrb[0].mxu0
  %8554 = vmatprep.mubr.f32.mxu0 0.0
  %8555 = vmatmul.mubr.f32.gmra.mrb[0].mxu0 %v8431
  %v8556 = vpop.f32.mrb[0].mxu0
  %v8557 = vadd.f32 %v57, %v8556
  %v8558 = vpop.f32.mrb[0].mxu0
  %8559 = vmatprep.mubr.f32.mxu0 0.0
  %8560 = vmatmul.mubr.f32.gmra.mrb[0].mxu0 %v8434
  %v8561 = vpop.f32.mrb[0].mxu0
  %v8562 = vadd.f32 %v57, %v8561
  %v8563 = vpop.f32.mrb[0].mxu0
  %8564 = vmatprep.mubr.f32.mxu0 0.0
  %8565 = vmatmul.mubr.f32.gmra.mrb[0].mxu0 %v8437
  %v8566 = vpop.f32.mrb[0].mxu0
  %v8567 = vadd.f32 %v57, %v8566
  %v8568 = vpop.f32.mrb[0].mxu0
  %8569 = vmatprep.mubr.f32.mxu0 0.0
  %8570 = vmatmul.mubr.f32.gmra.mrb[0].mxu0 %v8440
  %v8571 = vpop.f32.mrb[0].mxu0
  %v8572 = vadd.f32 %v57, %v8571
  %v8573 = vpop.f32.mrb[0].mxu0
  %8574 = vmatprep.mubr.f32.mxu0 0.0
  %8575 = vmatmul.mubr.f32.gmra.mrb[0].mxu0 %v8443
  %v8576 = vpop.f32.mrb[0].mxu0
  %v8577 = vadd.f32 %v57, %v8576
  %v8578 = vpop.f32.mrb[0].mxu0
  %8579 = vmatprep.mubr.f32.mxu0 0.0
  %8580 = vmatmul.mubr.f32.gmra.mrb[0].mxu0 %v8446
  %v8581 = vpop.f32.mrb[0].mxu0
  %v8582 = vadd.f32 %v57, %v8581
  %v8583 = vpop.f32.mrb[0].mxu0
  %8584 = vmatprep.mubr.f32.mxu0 0.0
  %8585 = vmatmul.mubr.f32.gmra.mrb[0].mxu0 %v8449
  %v8586 = vpop.f32.mrb[0].mxu0
  %v8587 = vadd.f32 %v57, %v8586
  %v8588 = vpop.f32.mrb[0].mxu0
  %8589 = vmatprep.mubr.f32.mxu0 0.0
  %8590 = vmatmul.mubr.f32.gmra.mrb[0].mxu0 %v8452
  %v8591 = vpop.f32.mrb[0].mxu0
  %v8592 = vadd.f32 %v57, %v8591
  %v8593 = vpop.f32.mrb[0].mxu0
  %8594 = vmatprep.mubr.f32.mxu0 0.0
  %8595 = vmatmul.mubr.f32.gmra.mrb[0].mxu0 %v8455
  %v8596 = vpop.f32.mrb[0].mxu0
  %v8597 = vadd.f32 %v57, %v8596
  %v8598 = vpop.f32.mrb[0].mxu0
  %8599 = vmatprep.mubr.f32.mxu0 0.0
  %8600 = vmatmul.mubr.f32.gmra.mrb[0].mxu0 %v8458
  %v8601 = vpop.f32.mrb[0].mxu0
  %v8602 = vadd.f32 %v57, %v8601
  %v8603 = vpop.f32.mrb[0].mxu0
  %8604 = vdwg.mxu0
  %v8605 = vmax.f32 %v8527, 0.0
  %v8606 = vmax.f32 %v8532, 0.0
  %v8607 = vmax.f32 %v8537, 0.0
  %v8608 = vmax.f32 %v8542, 0.0
  %v8609 = vmax.f32 %v8547, 0.0
  %v8610 = vmax.f32 %v8552, 0.0
  %v8611 = vmax.f32 %v8557, 0.0
  %v8612 = vmax.f32 %v8562, 0.0
  %v8613 = vmax.f32 %v8567, 0.0
  %v8614 = vmax.f32 %v8572, 0.0
  %v8615 = vmax.f32 %v8577, 0.0
  %v8616 = vmax.f32 %v8582, 0.0
  %v8617 = vmax.f32 %v8587, 0.0
  %v8618 = vmax.f32 %v8592, 0.0
  %v8619 = vmax.f32 %v8597, 0.0
  %v8620 = vmax.f32 %v8602, 0.0
  %s8621 = scalar_lea.vmem %s3, 304
  %v8622 = vld [vmem:[%s8621] sm:$0xff]
  %v8623 = vld [vmem:[%s8621 + $0x8] sm:$0x3]
  %v8625 = vsel %vm504, %v8605, 0
  %v8628 = vsel %vm504, %v8606, 0
  %v8631 = vsel %vm504, %v8607, 0
  %v8634 = vsel %vm504, %v8608, 0
  %v8637 = vsel %vm504, %v8609, 0
  %v8640 = vsel %vm504, %v8610, 0
  %v8643 = vsel %vm504, %v8611, 0
  %v8646 = vsel %vm504, %v8612, 0
  %v8649 = vsel %vm504, %v8613, 0
  %v8652 = vsel %vm504, %v8614, 0
  %v8655 = vsel %vm504, %v8615, 0
  %v8658 = vsel %vm504, %v8616, 0
  %v8661 = vsel %vm504, %v8617, 0
  %v8664 = vsel %vm504, %v8618, 0
  %v8667 = vsel %vm504, %v8619, 0
  %v8670 = vsel %vm504, %v8620, 0
  %v8673 = vsel %vm553, %v8623, 0
  %8675 = vmatprep.subr.mxu0 0.0
  %8676 = vmatpush1.msra.mxu0 %v8622
  %8677 = vmatprep.subr.mxu0 0.0
  %8678 = vmatpush1.msra.mxu0 %v8673
  %8679 = vmatprep.subr.mxu0 0.0
  %8680 = vmatpush1.msra.mxu0 0.0
  %8681 = vmatprep.subr.mxu0 0.0
  %8682 = vmatpush1.msra.mxu0 0.0
  %8683 = vmatprep.subr.mxu0 0.0
  %8684 = vmatpush1.msra.mxu0 0.0
  %8685 = vmatprep.subr.mxu0 0.0
  %8686 = vmatpush1.msra.mxu0 0.0
  %8687 = vmatprep.subr.mxu0 0.0
  %8688 = vmatpush1.msra.mxu0 0.0
  %8689 = vmatprep.subr.mxu0 0.0
  %8690 = vmatpush1.msra.mxu0 0.0
  %8691 = vmatprep.subr.mxu0 0.0
  %8692 = vmatpush1.msra.mxu0 0.0
  %8693 = vmatprep.subr.mxu0 0.0
  %8694 = vmatpush1.msra.mxu0 0.0
  %8695 = vmatprep.subr.mxu0 0.0
  %8696 = vmatpush1.msra.mxu0 0.0
  %8697 = vmatprep.subr.mxu0 0.0
  %8698 = vmatpush1.msra.mxu0 0.0
  %8699 = vmatprep.subr.mxu0 0.0
  %8700 = vmatpush1.msra.mxu0 0.0
  %8701 = vmatprep.subr.mxu0 0.0
  %8702 = vmatpush1.msra.mxu0 0.0
  %8703 = vmatprep.subr.mxu0 0.0
  %8704 = vmatpush1.msra.mxu0 0.0
  %8705 = vmatprep.subr.mxu0 0.0
  %8706 = vmatpush1.msra.mxu0 0.0
  %8707 = vmatprep.subr.mxu0 0.0
  %8708 = vmatpush1.msra.mxu0 0.0
  %8709 = vmatprep.subr.mxu0 0.0
  %8710 = vmatpush1.msra.mxu0 0.0
  %8711 = vmatprep.subr.mxu0 0.0
  %8712 = vmatpush1.msra.mxu0 0.0
  %8713 = vmatprep.subr.mxu0 0.0
  %8714 = vmatpush1.msra.mxu0 0.0
  %8715 = vmatprep.subr.mxu0 0.0
  %8716 = vmatpush1.msra.mxu0 0.0
  %8717 = vmatprep.subr.mxu0 0.0
  %8718 = vmatpush1.msra.mxu0 0.0
  %8719 = vmatprep.subr.mxu0 0.0
  %8720 = vmatpush1.msra.mxu0 0.0
  %8721 = vmatprep.subr.mxu0 0.0
  %8722 = vmatpush1.msra.mxu0 0.0
  %8723 = vmatprep.subr.mxu0 0.0
  %8724 = vmatpush1.msra.mxu0 0.0
  %8725 = vmatprep.subr.mxu0 0.0
  %8726 = vmatpush1.msra.mxu0 0.0
  %8727 = vmatprep.subr.mxu0 0.0
  %8728 = vmatpush1.msra.mxu0 0.0
  %8729 = vmatprep.subr.mxu0 0.0
  %8730 = vmatpush1.msra.mxu0 0.0
  %8731 = vmatprep.subr.mxu0 0.0
  %8732 = vmatpush1.msra.mxu0 0.0
  %8733 = vmatprep.subr.mxu0 0.0
  %8734 = vmatpush1.msra.mxu0 0.0
  %8735 = vmatprep.subr.mxu0 0.0
  %8736 = vmatpush1.msra.mxu0 0.0
  %8737 = vmatprep.subr.mxu0 0.0
  %8738 = vmatpush1.msra.mxu0 0.0
  %8739 = vmatprep.mubr.f32.mxu0 0.0
  %8740 = vmatmul.mubr.f32.gmra.mrb[0].mxu0 %v8625
  %v8741 = vpop.f32.mrb[0].mxu0
  %v8742 = vadd.f32 0.0, %v8741
  %v8743 = vpop.f32.mrb[0].mxu0
  %8744 = vmatprep.mubr.f32.mxu0 0.0
  %8745 = vmatmul.mubr.f32.gmra.mrb[0].mxu0 %v8628
  %v8746 = vpop.f32.mrb[0].mxu0
  %v8747 = vadd.f32 0.0, %v8746
  %v8748 = vpop.f32.mrb[0].mxu0
  %8749 = vmatprep.mubr.f32.mxu0 0.0
  %8750 = vmatmul.mubr.f32.gmra.mrb[0].mxu0 %v8631
  %v8751 = vpop.f32.mrb[0].mxu0
  %v8752 = vadd.f32 0.0, %v8751
  %v8753 = vpop.f32.mrb[0].mxu0
  %8754 = vmatprep.mubr.f32.mxu0 0.0
  %8755 = vmatmul.mubr.f32.gmra.mrb[0].mxu0 %v8634
  %v8756 = vpop.f32.mrb[0].mxu0
  %v8757 = vadd.f32 0.0, %v8756
  %v8758 = vpop.f32.mrb[0].mxu0
  %8759 = vmatprep.mubr.f32.mxu0 0.0
  %8760 = vmatmul.mubr.f32.gmra.mrb[0].mxu0 %v8637
  %v8761 = vpop.f32.mrb[0].mxu0
  %v8762 = vadd.f32 0.0, %v8761
  %v8763 = vpop.f32.mrb[0].mxu0
  %8764 = vmatprep.mubr.f32.mxu0 0.0
  %8765 = vmatmul.mubr.f32.gmra.mrb[0].mxu0 %v8640
  %v8766 = vpop.f32.mrb[0].mxu0
  %v8767 = vadd.f32 0.0, %v8766
  %v8768 = vpop.f32.mrb[0].mxu0
  %8769 = vmatprep.mubr.f32.mxu0 0.0
  %8770 = vmatmul.mubr.f32.gmra.mrb[0].mxu0 %v8643
  %v8771 = vpop.f32.mrb[0].mxu0
  %v8772 = vadd.f32 0.0, %v8771
  %v8773 = vpop.f32.mrb[0].mxu0
  %8774 = vmatprep.mubr.f32.mxu0 0.0
  %8775 = vmatmul.mubr.f32.gmra.mrb[0].mxu0 %v8646
  %v8776 = vpop.f32.mrb[0].mxu0
  %v8777 = vadd.f32 0.0, %v8776
  %v8778 = vpop.f32.mrb[0].mxu0
  %8779 = vmatprep.mubr.f32.mxu0 0.0
  %8780 = vmatmul.mubr.f32.gmra.mrb[0].mxu0 %v8649
  %v8781 = vpop.f32.mrb[0].mxu0
  %v8782 = vadd.f32 0.0, %v8781
  %v8783 = vpop.f32.mrb[0].mxu0
  %8784 = vmatprep.mubr.f32.mxu0 0.0
  %8785 = vmatmul.mubr.f32.gmra.mrb[0].mxu0 %v8652
  %v8786 = vpop.f32.mrb[0].mxu0
  %v8787 = vadd.f32 0.0, %v8786
  %v8788 = vpop.f32.mrb[0].mxu0
  %8789 = vmatprep.mubr.f32.mxu0 0.0
  %8790 = vmatmul.mubr.f32.gmra.mrb[0].mxu0 %v8655
  %v8791 = vpop.f32.mrb[0].mxu0
  %v8792 = vadd.f32 0.0, %v8791
  %v8793 = vpop.f32.mrb[0].mxu0
  %8794 = vmatprep.mubr.f32.mxu0 0.0
  %8795 = vmatmul.mubr.f32.gmra.mrb[0].mxu0 %v8658
  %v8796 = vpop.f32.mrb[0].mxu0
  %v8797 = vadd.f32 0.0, %v8796
  %v8798 = vpop.f32.mrb[0].mxu0
  %8799 = vmatprep.mubr.f32.mxu0 0.0
  %8800 = vmatmul.mubr.f32.gmra.mrb[0].mxu0 %v8661
  %v8801 = vpop.f32.mrb[0].mxu0
  %v8802 = vadd.f32 0.0, %v8801
  %v8803 = vpop.f32.mrb[0].mxu0
  %8804 = vmatprep.mubr.f32.mxu0 0.0
  %8805 = vmatmul.mubr.f32.gmra.mrb[0].mxu0 %v8664
  %v8806 = vpop.f32.mrb[0].mxu0
  %v8807 = vadd.f32 0.0, %v8806
  %v8808 = vpop.f32.mrb[0].mxu0
  %8809 = vmatprep.mubr.f32.mxu0 0.0
  %8810 = vmatmul.mubr.f32.gmra.mrb[0].mxu0 %v8667
  %v8811 = vpop.f32.mrb[0].mxu0
  %v8812 = vadd.f32 0.0, %v8811
  %v8813 = vpop.f32.mrb[0].mxu0
  %8814 = vmatprep.mubr.f32.mxu0 0.0
  %8815 = vmatmul.mubr.f32.gmra.mrb[0].mxu0 %v8670
  %v8816 = vpop.f32.mrb[0].mxu0
  %v8817 = vadd.f32 0.0, %v8816
  %v8818 = vpop.f32.mrb[0].mxu0
  %8819 = vdwg.mxu0
  %v8820 = vadd.f32 %v8379, %v8742
  %v8821 = vadd.f32 %v8380, %v8747
  %v8822 = vadd.f32 %v8381, %v8752
  %v8823 = vadd.f32 %v8382, %v8757
  %v8824 = vadd.f32 %v8383, %v8762
  %v8825 = vadd.f32 %v8384, %v8767
  %v8826 = vadd.f32 %v8385, %v8772
  %v8827 = vadd.f32 %v8386, %v8777
  %v8828 = vadd.f32 %v8387, %v8782
  %v8829 = vadd.f32 %v8388, %v8787
  %v8830 = vadd.f32 %v8389, %v8792
  %v8831 = vadd.f32 %v8390, %v8797
  %v8832 = vadd.f32 %v8391, %v8802
  %v8833 = vadd.f32 %v8392, %v8807
  %v8834 = vadd.f32 %v8393, %v8812
  %v8835 = vadd.f32 %v8394, %v8817
  %s8836 = scalar_lea.vmem %s0, 2560
  %v8837 = vld [vmem:[%s8836] sm:$0xff]
  %v8838 = vld [vmem:[%s8836 + $0x8] sm:$0xff]
  %v8839 = vld [vmem:[%s8836 + $0x10] sm:$0xff]
  %v8840 = vld [vmem:[%s8836 + $0x18] sm:$0xff]
  %v8841 = vld [vmem:[%s8836 + $0x20] sm:$0xff]
  %v8842 = vld [vmem:[%s8836 + $0x28] sm:$0xff]
  %v8843 = vld [vmem:[%s8836 + $0x30] sm:$0xff]
  %v8844 = vld [vmem:[%s8836 + $0x38] sm:$0xff]
  %v8845 = vld [vmem:[%s8836 + $0x40] sm:$0xff]
  %v8846 = vld [vmem:[%s8836 + $0x48] sm:$0xff]
  %v8847 = vld [vmem:[%s8836 + $0x50] sm:$0xff]
  %v8848 = vld [vmem:[%s8836 + $0x58] sm:$0xff]
  %v8849 = vld [vmem:[%s8836 + $0x60] sm:$0xff]
  %v8850 = vld [vmem:[%s8836 + $0x68] sm:$0xff]
  %v8851 = vld [vmem:[%s8836 + $0x70] sm:$0xff]
  %v8852 = vld [vmem:[%s8836 + $0x78] sm:$0xff]
  %v8854 = vsel %vm59, %v8837, 0
  %v8857 = vsel %vm59, %v8838, 0
  %v8860 = vsel %vm59, %v8839, 0
  %v8863 = vsel %vm59, %v8840, 0
  %v8866 = vsel %vm59, %v8841, 0
  %v8869 = vsel %vm59, %v8842, 0
  %v8872 = vsel %vm59, %v8843, 0
  %v8875 = vsel %vm59, %v8844, 0
  %v8878 = vsel %vm59, %v8845, 0
  %v8881 = vsel %vm59, %v8846, 0
  %v8884 = vsel %vm59, %v8847, 0
  %v8887 = vsel %vm59, %v8848, 0
  %v8890 = vsel %vm59, %v8849, 0
  %v8893 = vsel %vm59, %v8850, 0
  %v8896 = vsel %vm59, %v8851, 0
  %v8899 = vsel %vm59, %v8852, 0
  %8901 = vmatprep.subr.mxu0 0.0
  %8902 = vmatpush1.msra.mxu0 %v32
  %8903 = vmatprep.subr.mxu0 0.0
  %8904 = vmatpush1.msra.mxu0 %v33
  %8905 = vmatprep.subr.mxu0 0.0
  %8906 = vmatpush1.msra.mxu0 %v34
  %8907 = vmatprep.subr.mxu0 0.0
  %8908 = vmatpush1.msra.mxu0 %v110
  %8909 = vmatprep.subr.mxu0 0.0
  %8910 = vmatpush1.msra.mxu0 0.0
  %8911 = vmatprep.subr.mxu0 0.0
  %8912 = vmatpush1.msra.mxu0 0.0
  %8913 = vmatprep.subr.mxu0 0.0
  %8914 = vmatpush1.msra.mxu0 0.0
  %8915 = vmatprep.subr.mxu0 0.0
  %8916 = vmatpush1.msra.mxu0 0.0
  %8917 = vmatprep.subr.mxu0 0.0
  %8918 = vmatpush1.msra.mxu0 0.0
  %8919 = vmatprep.subr.mxu0 0.0
  %8920 = vmatpush1.msra.mxu0 0.0
  %8921 = vmatprep.subr.mxu0 0.0
  %8922 = vmatpush1.msra.mxu0 0.0
  %8923 = vmatprep.subr.mxu0 0.0
  %8924 = vmatpush1.msra.mxu0 0.0
  %8925 = vmatprep.subr.mxu0 0.0
  %8926 = vmatpush1.msra.mxu0 0.0
  %8927 = vmatprep.subr.mxu0 0.0
  %8928 = vmatpush1.msra.mxu0 0.0
  %8929 = vmatprep.subr.mxu0 0.0
  %8930 = vmatpush1.msra.mxu0 0.0
  %8931 = vmatprep.subr.mxu0 0.0
  %8932 = vmatpush1.msra.mxu0 0.0
  %8933 = vmatprep.subr.mxu0 0.0
  %8934 = vmatpush1.msra.mxu0 0.0
  %8935 = vmatprep.subr.mxu0 0.0
  %8936 = vmatpush1.msra.mxu0 0.0
  %8937 = vmatprep.subr.mxu0 0.0
  %8938 = vmatpush1.msra.mxu0 0.0
  %8939 = vmatprep.subr.mxu0 0.0
  %8940 = vmatpush1.msra.mxu0 0.0
  %8941 = vmatprep.subr.mxu0 0.0
  %8942 = vmatpush1.msra.mxu0 0.0
  %8943 = vmatprep.subr.mxu0 0.0
  %8944 = vmatpush1.msra.mxu0 0.0
  %8945 = vmatprep.subr.mxu0 0.0
  %8946 = vmatpush1.msra.mxu0 0.0
  %8947 = vmatprep.subr.mxu0 0.0
  %8948 = vmatpush1.msra.mxu0 0.0
  %8949 = vmatprep.subr.mxu0 0.0
  %8950 = vmatpush1.msra.mxu0 0.0
  %8951 = vmatprep.subr.mxu0 0.0
  %8952 = vmatpush1.msra.mxu0 0.0
  %8953 = vmatprep.subr.mxu0 0.0
  %8954 = vmatpush1.msra.mxu0 0.0
  %8955 = vmatprep.subr.mxu0 0.0
  %8956 = vmatpush1.msra.mxu0 0.0
  %8957 = vmatprep.subr.mxu0 0.0
  %8958 = vmatpush1.msra.mxu0 0.0
  %8959 = vmatprep.subr.mxu0 0.0
  %8960 = vmatpush1.msra.mxu0 0.0
  %8961 = vmatprep.subr.mxu0 0.0
  %8962 = vmatpush1.msra.mxu0 0.0
  %8963 = vmatprep.subr.mxu0 0.0
  %8964 = vmatpush1.msra.mxu0 0.0
  %8965 = vmatprep.mubr.f32.mxu0 0.0
  %8966 = vmatmul.mubr.f32.gmra.mrb[0].mxu0 %v8854
  %v8967 = vpop.f32.mrb[0].mxu0
  %v8968 = vadd.f32 %v57, %v8967
  %v8969 = vpop.f32.mrb[0].mxu0
  %8970 = vmatprep.mubr.f32.mxu0 0.0
  %8971 = vmatmul.mubr.f32.gmra.mrb[0].mxu0 %v8857
  %v8972 = vpop.f32.mrb[0].mxu0
  %v8973 = vadd.f32 %v57, %v8972
  %v8974 = vpop.f32.mrb[0].mxu0
  %8975 = vmatprep.mubr.f32.mxu0 0.0
  %8976 = vmatmul.mubr.f32.gmra.mrb[0].mxu0 %v8860
  %v8977 = vpop.f32.mrb[0].mxu0
  %v8978 = vadd.f32 %v57, %v8977
  %v8979 = vpop.f32.mrb[0].mxu0
  %8980 = vmatprep.mubr.f32.mxu0 0.0
  %8981 = vmatmul.mubr.f32.gmra.mrb[0].mxu0 %v8863
  %v8982 = vpop.f32.mrb[0].mxu0
  %v8983 = vadd.f32 %v57, %v8982
  %v8984 = vpop.f32.mrb[0].mxu0
  %8985 = vmatprep.mubr.f32.mxu0 0.0
  %8986 = vmatmul.mubr.f32.gmra.mrb[0].mxu0 %v8866
  %v8987 = vpop.f32.mrb[0].mxu0
  %v8988 = vadd.f32 %v57, %v8987
  %v8989 = vpop.f32.mrb[0].mxu0
  %8990 = vmatprep.mubr.f32.mxu0 0.0
  %8991 = vmatmul.mubr.f32.gmra.mrb[0].mxu0 %v8869
  %v8992 = vpop.f32.mrb[0].mxu0
  %v8993 = vadd.f32 %v57, %v8992
  %v8994 = vpop.f32.mrb[0].mxu0
  %8995 = vmatprep.mubr.f32.mxu0 0.0
  %8996 = vmatmul.mubr.f32.gmra.mrb[0].mxu0 %v8872
  %v8997 = vpop.f32.mrb[0].mxu0
  %v8998 = vadd.f32 %v57, %v8997
  %v8999 = vpop.f32.mrb[0].mxu0
  %9000 = vmatprep.mubr.f32.mxu0 0.0
  %9001 = vmatmul.mubr.f32.gmra.mrb[0].mxu0 %v8875
  %v9002 = vpop.f32.mrb[0].mxu0
  %v9003 = vadd.f32 %v57, %v9002
  %v9004 = vpop.f32.mrb[0].mxu0
  %9005 = vmatprep.mubr.f32.mxu0 0.0
  %9006 = vmatmul.mubr.f32.gmra.mrb[0].mxu0 %v8878
  %v9007 = vpop.f32.mrb[0].mxu0
  %v9008 = vadd.f32 %v57, %v9007
  %v9009 = vpop.f32.mrb[0].mxu0
  %9010 = vmatprep.mubr.f32.mxu0 0.0
  %9011 = vmatmul.mubr.f32.gmra.mrb[0].mxu0 %v8881
  %v9012 = vpop.f32.mrb[0].mxu0
  %v9013 = vadd.f32 %v57, %v9012
  %v9014 = vpop.f32.mrb[0].mxu0
  %9015 = vmatprep.mubr.f32.mxu0 0.0
  %9016 = vmatmul.mubr.f32.gmra.mrb[0].mxu0 %v8884
  %v9017 = vpop.f32.mrb[0].mxu0
  %v9018 = vadd.f32 %v57, %v9017
  %v9019 = vpop.f32.mrb[0].mxu0
  %9020 = vmatprep.mubr.f32.mxu0 0.0
  %9021 = vmatmul.mubr.f32.gmra.mrb[0].mxu0 %v8887
  %v9022 = vpop.f32.mrb[0].mxu0
  %v9023 = vadd.f32 %v57, %v9022
  %v9024 = vpop.f32.mrb[0].mxu0
  %9025 = vmatprep.mubr.f32.mxu0 0.0
  %9026 = vmatmul.mubr.f32.gmra.mrb[0].mxu0 %v8890
  %v9027 = vpop.f32.mrb[0].mxu0
  %v9028 = vadd.f32 %v57, %v9027
  %v9029 = vpop.f32.mrb[0].mxu0
  %9030 = vmatprep.mubr.f32.mxu0 0.0
  %9031 = vmatmul.mubr.f32.gmra.mrb[0].mxu0 %v8893
  %v9032 = vpop.f32.mrb[0].mxu0
  %v9033 = vadd.f32 %v57, %v9032
  %v9034 = vpop.f32.mrb[0].mxu0
  %9035 = vmatprep.mubr.f32.mxu0 0.0
  %9036 = vmatmul.mubr.f32.gmra.mrb[0].mxu0 %v8896
  %v9037 = vpop.f32.mrb[0].mxu0
  %v9038 = vadd.f32 %v57, %v9037
  %v9039 = vpop.f32.mrb[0].mxu0
  %9040 = vmatprep.mubr.f32.mxu0 0.0
  %9041 = vmatmul.mubr.f32.gmra.mrb[0].mxu0 %v8899
  %v9042 = vpop.f32.mrb[0].mxu0
  %v9043 = vadd.f32 %v57, %v9042
  %v9044 = vpop.f32.mrb[0].mxu0
  %9045 = vdwg.mxu0
  %v9046 = vmax.f32 %v8968, 0.0
  %v9047 = vmax.f32 %v8973, 0.0
  %v9048 = vmax.f32 %v8978, 0.0
  %v9049 = vmax.f32 %v8983, 0.0
  %v9050 = vmax.f32 %v8988, 0.0
  %v9051 = vmax.f32 %v8993, 0.0
  %v9052 = vmax.f32 %v8998, 0.0
  %v9053 = vmax.f32 %v9003, 0.0
  %v9054 = vmax.f32 %v9008, 0.0
  %v9055 = vmax.f32 %v9013, 0.0
  %v9056 = vmax.f32 %v9018, 0.0
  %v9057 = vmax.f32 %v9023, 0.0
  %v9058 = vmax.f32 %v9028, 0.0
  %v9059 = vmax.f32 %v9033, 0.0
  %v9060 = vmax.f32 %v9038, 0.0
  %v9061 = vmax.f32 %v9043, 0.0
  %s9062 = scalar_lea.vmem %s3, 320
  %v9063 = vld [vmem:[%s9062] sm:$0xff]
  %v9064 = vld [vmem:[%s9062 + $0x8] sm:$0x3]
  %v9066 = vsel %vm504, %v9046, 0
  %v9069 = vsel %vm504, %v9047, 0
  %v9072 = vsel %vm504, %v9048, 0
  %v9075 = vsel %vm504, %v9049, 0
  %v9078 = vsel %vm504, %v9050, 0
  %v9081 = vsel %vm504, %v9051, 0
  %v9084 = vsel %vm504, %v9052, 0
  %v9087 = vsel %vm504, %v9053, 0
  %v9090 = vsel %vm504, %v9054, 0
  %v9093 = vsel %vm504, %v9055, 0
  %v9096 = vsel %vm504, %v9056, 0
  %v9099 = vsel %vm504, %v9057, 0
  %v9102 = vsel %vm504, %v9058, 0
  %v9105 = vsel %vm504, %v9059, 0
  %v9108 = vsel %vm504, %v9060, 0
  %v9111 = vsel %vm504, %v9061, 0
  %v9114 = vsel %vm553, %v9064, 0
  %9116 = vmatprep.subr.mxu0 0.0
  %9117 = vmatpush1.msra.mxu0 %v9063
  %9118 = vmatprep.subr.mxu0 0.0
  %9119 = vmatpush1.msra.mxu0 %v9114
  %9120 = vmatprep.subr.mxu0 0.0
  %9121 = vmatpush1.msra.mxu0 0.0
  %9122 = vmatprep.subr.mxu0 0.0
  %9123 = vmatpush1.msra.mxu0 0.0
  %9124 = vmatprep.subr.mxu0 0.0
  %9125 = vmatpush1.msra.mxu0 0.0
  %9126 = vmatprep.subr.mxu0 0.0
  %9127 = vmatpush1.msra.mxu0 0.0
  %9128 = vmatprep.subr.mxu0 0.0
  %9129 = vmatpush1.msra.mxu0 0.0
  %9130 = vmatprep.subr.mxu0 0.0
  %9131 = vmatpush1.msra.mxu0 0.0
  %9132 = vmatprep.subr.mxu0 0.0
  %9133 = vmatpush1.msra.mxu0 0.0
  %9134 = vmatprep.subr.mxu0 0.0
  %9135 = vmatpush1.msra.mxu0 0.0
  %9136 = vmatprep.subr.mxu0 0.0
  %9137 = vmatpush1.msra.mxu0 0.0
  %9138 = vmatprep.subr.mxu0 0.0
  %9139 = vmatpush1.msra.mxu0 0.0
  %9140 = vmatprep.subr.mxu0 0.0
  %9141 = vmatpush1.msra.mxu0 0.0
  %9142 = vmatprep.subr.mxu0 0.0
  %9143 = vmatpush1.msra.mxu0 0.0
  %9144 = vmatprep.subr.mxu0 0.0
  %9145 = vmatpush1.msra.mxu0 0.0
  %9146 = vmatprep.subr.mxu0 0.0
  %9147 = vmatpush1.msra.mxu0 0.0
  %9148 = vmatprep.subr.mxu0 0.0
  %9149 = vmatpush1.msra.mxu0 0.0
  %9150 = vmatprep.subr.mxu0 0.0
  %9151 = vmatpush1.msra.mxu0 0.0
  %9152 = vmatprep.subr.mxu0 0.0
  %9153 = vmatpush1.msra.mxu0 0.0
  %9154 = vmatprep.subr.mxu0 0.0
  %9155 = vmatpush1.msra.mxu0 0.0
  %9156 = vmatprep.subr.mxu0 0.0
  %9157 = vmatpush1.msra.mxu0 0.0
  %9158 = vmatprep.subr.mxu0 0.0
  %9159 = vmatpush1.msra.mxu0 0.0
  %9160 = vmatprep.subr.mxu0 0.0
  %9161 = vmatpush1.msra.mxu0 0.0
  %9162 = vmatprep.subr.mxu0 0.0
  %9163 = vmatpush1.msra.mxu0 0.0
  %9164 = vmatprep.subr.mxu0 0.0
  %9165 = vmatpush1.msra.mxu0 0.0
  %9166 = vmatprep.subr.mxu0 0.0
  %9167 = vmatpush1.msra.mxu0 0.0
  %9168 = vmatprep.subr.mxu0 0.0
  %9169 = vmatpush1.msra.mxu0 0.0
  %9170 = vmatprep.subr.mxu0 0.0
  %9171 = vmatpush1.msra.mxu0 0.0
  %9172 = vmatprep.subr.mxu0 0.0
  %9173 = vmatpush1.msra.mxu0 0.0
  %9174 = vmatprep.subr.mxu0 0.0
  %9175 = vmatpush1.msra.mxu0 0.0
  %9176 = vmatprep.subr.mxu0 0.0
  %9177 = vmatpush1.msra.mxu0 0.0
  %9178 = vmatprep.subr.mxu0 0.0
  %9179 = vmatpush1.msra.mxu0 0.0
  %9180 = vmatprep.mubr.f32.mxu0 0.0
  %9181 = vmatmul.mubr.f32.gmra.mrb[0].mxu0 %v9066
  %v9182 = vpop.f32.mrb[0].mxu0
  %v9183 = vadd.f32 0.0, %v9182
  %v9184 = vpop.f32.mrb[0].mxu0
  %9185 = vmatprep.mubr.f32.mxu0 0.0
  %9186 = vmatmul.mubr.f32.gmra.mrb[0].mxu0 %v9069
  %v9187 = vpop.f32.mrb[0].mxu0
  %v9188 = vadd.f32 0.0, %v9187
  %v9189 = vpop.f32.mrb[0].mxu0
  %9190 = vmatprep.mubr.f32.mxu0 0.0
  %9191 = vmatmul.mubr.f32.gmra.mrb[0].mxu0 %v9072
  %v9192 = vpop.f32.mrb[0].mxu0
  %v9193 = vadd.f32 0.0, %v9192
  %v9194 = vpop.f32.mrb[0].mxu0
  %9195 = vmatprep.mubr.f32.mxu0 0.0
  %9196 = vmatmul.mubr.f32.gmra.mrb[0].mxu0 %v9075
  %v9197 = vpop.f32.mrb[0].mxu0
  %v9198 = vadd.f32 0.0, %v9197
  %v9199 = vpop.f32.mrb[0].mxu0
  %9200 = vmatprep.mubr.f32.mxu0 0.0
  %9201 = vmatmul.mubr.f32.gmra.mrb[0].mxu0 %v9078
  %v9202 = vpop.f32.mrb[0].mxu0
  %v9203 = vadd.f32 0.0, %v9202
  %v9204 = vpop.f32.mrb[0].mxu0
  %9205 = vmatprep.mubr.f32.mxu0 0.0
  %9206 = vmatmul.mubr.f32.gmra.mrb[0].mxu0 %v9081
  %v9207 = vpop.f32.mrb[0].mxu0
  %v9208 = vadd.f32 0.0, %v9207
  %v9209 = vpop.f32.mrb[0].mxu0
  %9210 = vmatprep.mubr.f32.mxu0 0.0
  %9211 = vmatmul.mubr.f32.gmra.mrb[0].mxu0 %v9084
  %v9212 = vpop.f32.mrb[0].mxu0
  %v9213 = vadd.f32 0.0, %v9212
  %v9214 = vpop.f32.mrb[0].mxu0
  %9215 = vmatprep.mubr.f32.mxu0 0.0
  %9216 = vmatmul.mubr.f32.gmra.mrb[0].mxu0 %v9087
  %v9217 = vpop.f32.mrb[0].mxu0
  %v9218 = vadd.f32 0.0, %v9217
  %v9219 = vpop.f32.mrb[0].mxu0
  %9220 = vmatprep.mubr.f32.mxu0 0.0
  %9221 = vmatmul.mubr.f32.gmra.mrb[0].mxu0 %v9090
  %v9222 = vpop.f32.mrb[0].mxu0
  %v9223 = vadd.f32 0.0, %v9222
  %v9224 = vpop.f32.mrb[0].mxu0
  %9225 = vmatprep.mubr.f32.mxu0 0.0
  %9226 = vmatmul.mubr.f32.gmra.mrb[0].mxu0 %v9093
  %v9227 = vpop.f32.mrb[0].mxu0
  %v9228 = vadd.f32 0.0, %v9227
  %v9229 = vpop.f32.mrb[0].mxu0
  %9230 = vmatprep.mubr.f32.mxu0 0.0
  %9231 = vmatmul.mubr.f32.gmra.mrb[0].mxu0 %v9096
  %v9232 = vpop.f32.mrb[0].mxu0
  %v9233 = vadd.f32 0.0, %v9232
  %v9234 = vpop.f32.mrb[0].mxu0
  %9235 = vmatprep.mubr.f32.mxu0 0.0
  %9236 = vmatmul.mubr.f32.gmra.mrb[0].mxu0 %v9099
  %v9237 = vpop.f32.mrb[0].mxu0
  %v9238 = vadd.f32 0.0, %v9237
  %v9239 = vpop.f32.mrb[0].mxu0
  %9240 = vmatprep.mubr.f32.mxu0 0.0
  %9241 = vmatmul.mubr.f32.gmra.mrb[0].mxu0 %v9102
  %v9242 = vpop.f32.mrb[0].mxu0
  %v9243 = vadd.f32 0.0, %v9242
  %v9244 = vpop.f32.mrb[0].mxu0
  %9245 = vmatprep.mubr.f32.mxu0 0.0
  %9246 = vmatmul.mubr.f32.gmra.mrb[0].mxu0 %v9105
  %v9247 = vpop.f32.mrb[0].mxu0
  %v9248 = vadd.f32 0.0, %v9247
  %v9249 = vpop.f32.mrb[0].mxu0
  %9250 = vmatprep.mubr.f32.mxu0 0.0
  %9251 = vmatmul.mubr.f32.gmra.mrb[0].mxu0 %v9108
  %v9252 = vpop.f32.mrb[0].mxu0
  %v9253 = vadd.f32 0.0, %v9252
  %v9254 = vpop.f32.mrb[0].mxu0
  %9255 = vmatprep.mubr.f32.mxu0 0.0
  %9256 = vmatmul.mubr.f32.gmra.mrb[0].mxu0 %v9111
  %v9257 = vpop.f32.mrb[0].mxu0
  %v9258 = vadd.f32 0.0, %v9257
  %v9259 = vpop.f32.mrb[0].mxu0
  %9260 = vdwg.mxu0
  %v9261 = vadd.f32 %v8820, %v9183
  %v9262 = vadd.f32 %v8821, %v9188
  %v9263 = vadd.f32 %v8822, %v9193
  %v9264 = vadd.f32 %v8823, %v9198
  %v9265 = vadd.f32 %v8824, %v9203
  %v9266 = vadd.f32 %v8825, %v9208
  %v9267 = vadd.f32 %v8826, %v9213
  %v9268 = vadd.f32 %v8827, %v9218
  %v9269 = vadd.f32 %v8828, %v9223
  %v9270 = vadd.f32 %v8829, %v9228
  %v9271 = vadd.f32 %v8830, %v9233
  %v9272 = vadd.f32 %v8831, %v9238
  %v9273 = vadd.f32 %v8832, %v9243
  %v9274 = vadd.f32 %v8833, %v9248
  %v9275 = vadd.f32 %v8834, %v9253
  %v9276 = vadd.f32 %v8835, %v9258
  %s9277 = scalar_lea.vmem %s0, 2688
  %v9278 = vld [vmem:[%s9277] sm:$0xff]
  %v9279 = vld [vmem:[%s9277 + $0x8] sm:$0xff]
  %v9280 = vld [vmem:[%s9277 + $0x10] sm:$0xff]
  %v9281 = vld [vmem:[%s9277 + $0x18] sm:$0xff]
  %v9282 = vld [vmem:[%s9277 + $0x20] sm:$0xff]
  %v9283 = vld [vmem:[%s9277 + $0x28] sm:$0xff]
  %v9284 = vld [vmem:[%s9277 + $0x30] sm:$0xff]
  %v9285 = vld [vmem:[%s9277 + $0x38] sm:$0xff]
  %v9286 = vld [vmem:[%s9277 + $0x40] sm:$0xff]
  %v9287 = vld [vmem:[%s9277 + $0x48] sm:$0xff]
  %v9288 = vld [vmem:[%s9277 + $0x50] sm:$0xff]
  %v9289 = vld [vmem:[%s9277 + $0x58] sm:$0xff]
  %v9290 = vld [vmem:[%s9277 + $0x60] sm:$0xff]
  %v9291 = vld [vmem:[%s9277 + $0x68] sm:$0xff]
  %v9292 = vld [vmem:[%s9277 + $0x70] sm:$0xff]
  %v9293 = vld [vmem:[%s9277 + $0x78] sm:$0xff]
  %v9295 = vsel %vm59, %v9278, 0
  %v9298 = vsel %vm59, %v9279, 0
  %v9301 = vsel %vm59, %v9280, 0
  %v9304 = vsel %vm59, %v9281, 0
  %v9307 = vsel %vm59, %v9282, 0
  %v9310 = vsel %vm59, %v9283, 0
  %v9313 = vsel %vm59, %v9284, 0
  %v9316 = vsel %vm59, %v9285, 0
  %v9319 = vsel %vm59, %v9286, 0
  %v9322 = vsel %vm59, %v9287, 0
  %v9325 = vsel %vm59, %v9288, 0
  %v9328 = vsel %vm59, %v9289, 0
  %v9331 = vsel %vm59, %v9290, 0
  %v9334 = vsel %vm59, %v9291, 0
  %v9337 = vsel %vm59, %v9292, 0
  %v9340 = vsel %vm59, %v9293, 0
  %9342 = vmatprep.subr.mxu0 0.0
  %9343 = vmatpush1.msra.mxu0 %v32
  %9344 = vmatprep.subr.mxu0 0.0
  %9345 = vmatpush1.msra.mxu0 %v33
  %9346 = vmatprep.subr.mxu0 0.0
  %9347 = vmatpush1.msra.mxu0 %v34
  %9348 = vmatprep.subr.mxu0 0.0
  %9349 = vmatpush1.msra.mxu0 %v110
  %9350 = vmatprep.subr.mxu0 0.0
  %9351 = vmatpush1.msra.mxu0 0.0
  %9352 = vmatprep.subr.mxu0 0.0
  %9353 = vmatpush1.msra.mxu0 0.0
  %9354 = vmatprep.subr.mxu0 0.0
  %9355 = vmatpush1.msra.mxu0 0.0
  %9356 = vmatprep.subr.mxu0 0.0
  %9357 = vmatpush1.msra.mxu0 0.0
  %9358 = vmatprep.subr.mxu0 0.0
  %9359 = vmatpush1.msra.mxu0 0.0
  %9360 = vmatprep.subr.mxu0 0.0
  %9361 = vmatpush1.msra.mxu0 0.0
  %9362 = vmatprep.subr.mxu0 0.0
  %9363 = vmatpush1.msra.mxu0 0.0
  %9364 = vmatprep.subr.mxu0 0.0
  %9365 = vmatpush1.msra.mxu0 0.0
  %9366 = vmatprep.subr.mxu0 0.0
  %9367 = vmatpush1.msra.mxu0 0.0
  %9368 = vmatprep.subr.mxu0 0.0
  %9369 = vmatpush1.msra.mxu0 0.0
  %9370 = vmatprep.subr.mxu0 0.0
  %9371 = vmatpush1.msra.mxu0 0.0
  %9372 = vmatprep.subr.mxu0 0.0
  %9373 = vmatpush1.msra.mxu0 0.0
  %9374 = vmatprep.subr.mxu0 0.0
  %9375 = vmatpush1.msra.mxu0 0.0
  %9376 = vmatprep.subr.mxu0 0.0
  %9377 = vmatpush1.msra.mxu0 0.0
  %9378 = vmatprep.subr.mxu0 0.0
  %9379 = vmatpush1.msra.mxu0 0.0
  %9380 = vmatprep.subr.mxu0 0.0
  %9381 = vmatpush1.msra.mxu0 0.0
  %9382 = vmatprep.subr.mxu0 0.0
  %9383 = vmatpush1.msra.mxu0 0.0
  %9384 = vmatprep.subr.mxu0 0.0
  %9385 = vmatpush1.msra.mxu0 0.0
  %9386 = vmatprep.subr.mxu0 0.0
  %9387 = vmatpush1.msra.mxu0 0.0
  %9388 = vmatprep.subr.mxu0 0.0
  %9389 = vmatpush1.msra.mxu0 0.0
  %9390 = vmatprep.subr.mxu0 0.0
  %9391 = vmatpush1.msra.mxu0 0.0
  %9392 = vmatprep.subr.mxu0 0.0
  %9393 = vmatpush1.msra.mxu0 0.0
  %9394 = vmatprep.subr.mxu0 0.0
  %9395 = vmatpush1.msra.mxu0 0.0
  %9396 = vmatprep.subr.mxu0 0.0
  %9397 = vmatpush1.msra.mxu0 0.0
  %9398 = vmatprep.subr.mxu0 0.0
  %9399 = vmatpush1.msra.mxu0 0.0
  %9400 = vmatprep.subr.mxu0 0.0
  %9401 = vmatpush1.msra.mxu0 0.0
  %9402 = vmatprep.subr.mxu0 0.0
  %9403 = vmatpush1.msra.mxu0 0.0
  %9404 = vmatprep.subr.mxu0 0.0
  %9405 = vmatpush1.msra.mxu0 0.0
  %9406 = vmatprep.mubr.f32.mxu0 0.0
  %9407 = vmatmul.mubr.f32.gmra.mrb[0].mxu0 %v9295
  %v9408 = vpop.f32.mrb[0].mxu0
  %v9409 = vadd.f32 %v57, %v9408
  %v9410 = vpop.f32.mrb[0].mxu0
  %9411 = vmatprep.mubr.f32.mxu0 0.0
  %9412 = vmatmul.mubr.f32.gmra.mrb[0].mxu0 %v9298
  %v9413 = vpop.f32.mrb[0].mxu0
  %v9414 = vadd.f32 %v57, %v9413
  %v9415 = vpop.f32.mrb[0].mxu0
  %9416 = vmatprep.mubr.f32.mxu0 0.0
  %9417 = vmatmul.mubr.f32.gmra.mrb[0].mxu0 %v9301
  %v9418 = vpop.f32.mrb[0].mxu0
  %v9419 = vadd.f32 %v57, %v9418
  %v9420 = vpop.f32.mrb[0].mxu0
  %9421 = vmatprep.mubr.f32.mxu0 0.0
  %9422 = vmatmul.mubr.f32.gmra.mrb[0].mxu0 %v9304
  %v9423 = vpop.f32.mrb[0].mxu0
  %v9424 = vadd.f32 %v57, %v9423
  %v9425 = vpop.f32.mrb[0].mxu0
  %9426 = vmatprep.mubr.f32.mxu0 0.0
  %9427 = vmatmul.mubr.f32.gmra.mrb[0].mxu0 %v9307
  %v9428 = vpop.f32.mrb[0].mxu0
  %v9429 = vadd.f32 %v57, %v9428
  %v9430 = vpop.f32.mrb[0].mxu0
  %9431 = vmatprep.mubr.f32.mxu0 0.0
  %9432 = vmatmul.mubr.f32.gmra.mrb[0].mxu0 %v9310
  %v9433 = vpop.f32.mrb[0].mxu0
  %v9434 = vadd.f32 %v57, %v9433
  %v9435 = vpop.f32.mrb[0].mxu0
  %9436 = vmatprep.mubr.f32.mxu0 0.0
  %9437 = vmatmul.mubr.f32.gmra.mrb[0].mxu0 %v9313
  %v9438 = vpop.f32.mrb[0].mxu0
  %v9439 = vadd.f32 %v57, %v9438
  %v9440 = vpop.f32.mrb[0].mxu0
  %9441 = vmatprep.mubr.f32.mxu0 0.0
  %9442 = vmatmul.mubr.f32.gmra.mrb[0].mxu0 %v9316
  %v9443 = vpop.f32.mrb[0].mxu0
  %v9444 = vadd.f32 %v57, %v9443
  %v9445 = vpop.f32.mrb[0].mxu0
  %9446 = vmatprep.mubr.f32.mxu0 0.0
  %9447 = vmatmul.mubr.f32.gmra.mrb[0].mxu0 %v9319
  %v9448 = vpop.f32.mrb[0].mxu0
  %v9449 = vadd.f32 %v57, %v9448
  %v9450 = vpop.f32.mrb[0].mxu0
  %9451 = vmatprep.mubr.f32.mxu0 0.0
  %9452 = vmatmul.mubr.f32.gmra.mrb[0].mxu0 %v9322
  %v9453 = vpop.f32.mrb[0].mxu0
  %v9454 = vadd.f32 %v57, %v9453
  %v9455 = vpop.f32.mrb[0].mxu0
  %9456 = vmatprep.mubr.f32.mxu0 0.0
  %9457 = vmatmul.mubr.f32.gmra.mrb[0].mxu0 %v9325
  %v9458 = vpop.f32.mrb[0].mxu0
  %v9459 = vadd.f32 %v57, %v9458
  %v9460 = vpop.f32.mrb[0].mxu0
  %9461 = vmatprep.mubr.f32.mxu0 0.0
  %9462 = vmatmul.mubr.f32.gmra.mrb[0].mxu0 %v9328
  %v9463 = vpop.f32.mrb[0].mxu0
  %v9464 = vadd.f32 %v57, %v9463
  %v9465 = vpop.f32.mrb[0].mxu0
  %9466 = vmatprep.mubr.f32.mxu0 0.0
  %9467 = vmatmul.mubr.f32.gmra.mrb[0].mxu0 %v9331
  %v9468 = vpop.f32.mrb[0].mxu0
  %v9469 = vadd.f32 %v57, %v9468
  %v9470 = vpop.f32.mrb[0].mxu0
  %9471 = vmatprep.mubr.f32.mxu0 0.0
  %9472 = vmatmul.mubr.f32.gmra.mrb[0].mxu0 %v9334
  %v9473 = vpop.f32.mrb[0].mxu0
  %v9474 = vadd.f32 %v57, %v9473
  %v9475 = vpop.f32.mrb[0].mxu0
  %9476 = vmatprep.mubr.f32.mxu0 0.0
  %9477 = vmatmul.mubr.f32.gmra.mrb[0].mxu0 %v9337
  %v9478 = vpop.f32.mrb[0].mxu0
  %v9479 = vadd.f32 %v57, %v9478
  %v9480 = vpop.f32.mrb[0].mxu0
  %9481 = vmatprep.mubr.f32.mxu0 0.0
  %9482 = vmatmul.mubr.f32.gmra.mrb[0].mxu0 %v9340
  %v9483 = vpop.f32.mrb[0].mxu0
  %v9484 = vadd.f32 %v57, %v9483
  %v9485 = vpop.f32.mrb[0].mxu0
  %9486 = vdwg.mxu0
  %v9487 = vmax.f32 %v9409, 0.0
  %v9488 = vmax.f32 %v9414, 0.0
  %v9489 = vmax.f32 %v9419, 0.0
  %v9490 = vmax.f32 %v9424, 0.0
  %v9491 = vmax.f32 %v9429, 0.0
  %v9492 = vmax.f32 %v9434, 0.0
  %v9493 = vmax.f32 %v9439, 0.0
  %v9494 = vmax.f32 %v9444, 0.0
  %v9495 = vmax.f32 %v9449, 0.0
  %v9496 = vmax.f32 %v9454, 0.0
  %v9497 = vmax.f32 %v9459, 0.0
  %v9498 = vmax.f32 %v9464, 0.0
  %v9499 = vmax.f32 %v9469, 0.0
  %v9500 = vmax.f32 %v9474, 0.0
  %v9501 = vmax.f32 %v9479, 0.0
  %v9502 = vmax.f32 %v9484, 0.0
  %s9503 = scalar_lea.vmem %s3, 336
  %v9504 = vld [vmem:[%s9503] sm:$0xff]
  %v9505 = vld [vmem:[%s9503 + $0x8] sm:$0x3]
  %v9507 = vsel %vm504, %v9487, 0
  %v9510 = vsel %vm504, %v9488, 0
  %v9513 = vsel %vm504, %v9489, 0
  %v9516 = vsel %vm504, %v9490, 0
  %v9519 = vsel %vm504, %v9491, 0
  %v9522 = vsel %vm504, %v9492, 0
  %v9525 = vsel %vm504, %v9493, 0
  %v9528 = vsel %vm504, %v9494, 0
  %v9531 = vsel %vm504, %v9495, 0
  %v9534 = vsel %vm504, %v9496, 0
  %v9537 = vsel %vm504, %v9497, 0
  %v9540 = vsel %vm504, %v9498, 0
  %v9543 = vsel %vm504, %v9499, 0
  %v9546 = vsel %vm504, %v9500, 0
  %v9549 = vsel %vm504, %v9501, 0
  %v9552 = vsel %vm504, %v9502, 0
  %v9555 = vsel %vm553, %v9505, 0
  %9557 = vmatprep.subr.mxu0 0.0
  %9558 = vmatpush1.msra.mxu0 %v9504
  %9559 = vmatprep.subr.mxu0 0.0
  %9560 = vmatpush1.msra.mxu0 %v9555
  %9561 = vmatprep.subr.mxu0 0.0
  %9562 = vmatpush1.msra.mxu0 0.0
  %9563 = vmatprep.subr.mxu0 0.0
  %9564 = vmatpush1.msra.mxu0 0.0
  %9565 = vmatprep.subr.mxu0 0.0
  %9566 = vmatpush1.msra.mxu0 0.0
  %9567 = vmatprep.subr.mxu0 0.0
  %9568 = vmatpush1.msra.mxu0 0.0
  %9569 = vmatprep.subr.mxu0 0.0
  %9570 = vmatpush1.msra.mxu0 0.0
  %9571 = vmatprep.subr.mxu0 0.0
  %9572 = vmatpush1.msra.mxu0 0.0
  %9573 = vmatprep.subr.mxu0 0.0
  %9574 = vmatpush1.msra.mxu0 0.0
  %9575 = vmatprep.subr.mxu0 0.0
  %9576 = vmatpush1.msra.mxu0 0.0
  %9577 = vmatprep.subr.mxu0 0.0
  %9578 = vmatpush1.msra.mxu0 0.0
  %9579 = vmatprep.subr.mxu0 0.0
  %9580 = vmatpush1.msra.mxu0 0.0
  %9581 = vmatprep.subr.mxu0 0.0
  %9582 = vmatpush1.msra.mxu0 0.0
  %9583 = vmatprep.subr.mxu0 0.0
  %9584 = vmatpush1.msra.mxu0 0.0
  %9585 = vmatprep.subr.mxu0 0.0
  %9586 = vmatpush1.msra.mxu0 0.0
  %9587 = vmatprep.subr.mxu0 0.0
  %9588 = vmatpush1.msra.mxu0 0.0
  %9589 = vmatprep.subr.mxu0 0.0
  %9590 = vmatpush1.msra.mxu0 0.0
  %9591 = vmatprep.subr.mxu0 0.0
  %9592 = vmatpush1.msra.mxu0 0.0
  %9593 = vmatprep.subr.mxu0 0.0
  %9594 = vmatpush1.msra.mxu0 0.0
  %9595 = vmatprep.subr.mxu0 0.0
  %9596 = vmatpush1.msra.mxu0 0.0
  %9597 = vmatprep.subr.mxu0 0.0
  %9598 = vmatpush1.msra.mxu0 0.0
  %9599 = vmatprep.subr.mxu0 0.0
  %9600 = vmatpush1.msra.mxu0 0.0
  %9601 = vmatprep.subr.mxu0 0.0
  %9602 = vmatpush1.msra.mxu0 0.0
  %9603 = vmatprep.subr.mxu0 0.0
  %9604 = vmatpush1.msra.mxu0 0.0
  %9605 = vmatprep.subr.mxu0 0.0
  %9606 = vmatpush1.msra.mxu0 0.0
  %9607 = vmatprep.subr.mxu0 0.0
  %9608 = vmatpush1.msra.mxu0 0.0
  %9609 = vmatprep.subr.mxu0 0.0
  %9610 = vmatpush1.msra.mxu0 0.0
  %9611 = vmatprep.subr.mxu0 0.0
  %9612 = vmatpush1.msra.mxu0 0.0
  %9613 = vmatprep.subr.mxu0 0.0
  %9614 = vmatpush1.msra.mxu0 0.0
  %9615 = vmatprep.subr.mxu0 0.0
  %9616 = vmatpush1.msra.mxu0 0.0
  %9617 = vmatprep.subr.mxu0 0.0
  %9618 = vmatpush1.msra.mxu0 0.0
  %9619 = vmatprep.subr.mxu0 0.0
  %9620 = vmatpush1.msra.mxu0 0.0
  %9621 = vmatprep.mubr.f32.mxu0 0.0
  %9622 = vmatmul.mubr.f32.gmra.mrb[0].mxu0 %v9507
  %v9623 = vpop.f32.mrb[0].mxu0
  %v9624 = vadd.f32 0.0, %v9623
  %v9625 = vpop.f32.mrb[0].mxu0
  %9626 = vmatprep.mubr.f32.mxu0 0.0
  %9627 = vmatmul.mubr.f32.gmra.mrb[0].mxu0 %v9510
  %v9628 = vpop.f32.mrb[0].mxu0
  %v9629 = vadd.f32 0.0, %v9628
  %v9630 = vpop.f32.mrb[0].mxu0
  %9631 = vmatprep.mubr.f32.mxu0 0.0
  %9632 = vmatmul.mubr.f32.gmra.mrb[0].mxu0 %v9513
  %v9633 = vpop.f32.mrb[0].mxu0
  %v9634 = vadd.f32 0.0, %v9633
  %v9635 = vpop.f32.mrb[0].mxu0
  %9636 = vmatprep.mubr.f32.mxu0 0.0
  %9637 = vmatmul.mubr.f32.gmra.mrb[0].mxu0 %v9516
  %v9638 = vpop.f32.mrb[0].mxu0
  %v9639 = vadd.f32 0.0, %v9638
  %v9640 = vpop.f32.mrb[0].mxu0
  %9641 = vmatprep.mubr.f32.mxu0 0.0
  %9642 = vmatmul.mubr.f32.gmra.mrb[0].mxu0 %v9519
  %v9643 = vpop.f32.mrb[0].mxu0
  %v9644 = vadd.f32 0.0, %v9643
  %v9645 = vpop.f32.mrb[0].mxu0
  %9646 = vmatprep.mubr.f32.mxu0 0.0
  %9647 = vmatmul.mubr.f32.gmra.mrb[0].mxu0 %v9522
  %v9648 = vpop.f32.mrb[0].mxu0
  %v9649 = vadd.f32 0.0, %v9648
  %v9650 = vpop.f32.mrb[0].mxu0
  %9651 = vmatprep.mubr.f32.mxu0 0.0
  %9652 = vmatmul.mubr.f32.gmra.mrb[0].mxu0 %v9525
  %v9653 = vpop.f32.mrb[0].mxu0
  %v9654 = vadd.f32 0.0, %v9653
  %v9655 = vpop.f32.mrb[0].mxu0
  %9656 = vmatprep.mubr.f32.mxu0 0.0
  %9657 = vmatmul.mubr.f32.gmra.mrb[0].mxu0 %v9528
  %v9658 = vpop.f32.mrb[0].mxu0
  %v9659 = vadd.f32 0.0, %v9658
  %v9660 = vpop.f32.mrb[0].mxu0
  %9661 = vmatprep.mubr.f32.mxu0 0.0
  %9662 = vmatmul.mubr.f32.gmra.mrb[0].mxu0 %v9531
  %v9663 = vpop.f32.mrb[0].mxu0
  %v9664 = vadd.f32 0.0, %v9663
  %v9665 = vpop.f32.mrb[0].mxu0
  %9666 = vmatprep.mubr.f32.mxu0 0.0
  %9667 = vmatmul.mubr.f32.gmra.mrb[0].mxu0 %v9534
  %v9668 = vpop.f32.mrb[0].mxu0
  %v9669 = vadd.f32 0.0, %v9668
  %v9670 = vpop.f32.mrb[0].mxu0
  %9671 = vmatprep.mubr.f32.mxu0 0.0
  %9672 = vmatmul.mubr.f32.gmra.mrb[0].mxu0 %v9537
  %v9673 = vpop.f32.mrb[0].mxu0
  %v9674 = vadd.f32 0.0, %v9673
  %v9675 = vpop.f32.mrb[0].mxu0
  %9676 = vmatprep.mubr.f32.mxu0 0.0
  %9677 = vmatmul.mubr.f32.gmra.mrb[0].mxu0 %v9540
  %v9678 = vpop.f32.mrb[0].mxu0
  %v9679 = vadd.f32 0.0, %v9678
  %v9680 = vpop.f32.mrb[0].mxu0
  %9681 = vmatprep.mubr.f32.mxu0 0.0
  %9682 = vmatmul.mubr.f32.gmra.mrb[0].mxu0 %v9543
  %v9683 = vpop.f32.mrb[0].mxu0
  %v9684 = vadd.f32 0.0, %v9683
  %v9685 = vpop.f32.mrb[0].mxu0
  %9686 = vmatprep.mubr.f32.mxu0 0.0
  %9687 = vmatmul.mubr.f32.gmra.mrb[0].mxu0 %v9546
  %v9688 = vpop.f32.mrb[0].mxu0
  %v9689 = vadd.f32 0.0, %v9688
  %v9690 = vpop.f32.mrb[0].mxu0
  %9691 = vmatprep.mubr.f32.mxu0 0.0
  %9692 = vmatmul.mubr.f32.gmra.mrb[0].mxu0 %v9549
  %v9693 = vpop.f32.mrb[0].mxu0
  %v9694 = vadd.f32 0.0, %v9693
  %v9695 = vpop.f32.mrb[0].mxu0
  %9696 = vmatprep.mubr.f32.mxu0 0.0
  %9697 = vmatmul.mubr.f32.gmra.mrb[0].mxu0 %v9552
  %v9698 = vpop.f32.mrb[0].mxu0
  %v9699 = vadd.f32 0.0, %v9698
  %v9700 = vpop.f32.mrb[0].mxu0
  %9701 = vdwg.mxu0
  %v9702 = vadd.f32 %v9261, %v9624
  %v9703 = vadd.f32 %v9262, %v9629
  %v9704 = vadd.f32 %v9263, %v9634
  %v9705 = vadd.f32 %v9264, %v9639
  %v9706 = vadd.f32 %v9265, %v9644
  %v9707 = vadd.f32 %v9266, %v9649
  %v9708 = vadd.f32 %v9267, %v9654
  %v9709 = vadd.f32 %v9268, %v9659
  %v9710 = vadd.f32 %v9269, %v9664
  %v9711 = vadd.f32 %v9270, %v9669
  %v9712 = vadd.f32 %v9271, %v9674
  %v9713 = vadd.f32 %v9272, %v9679
  %v9714 = vadd.f32 %v9273, %v9684
  %v9715 = vadd.f32 %v9274, %v9689
  %v9716 = vadd.f32 %v9275, %v9694
  %v9717 = vadd.f32 %v9276, %v9699
  %s9718 = scalar_lea.vmem %s0, 2816
  %v9719 = vld [vmem:[%s9718] sm:$0xff]
  %v9720 = vld [vmem:[%s9718 + $0x8] sm:$0xff]
  %v9721 = vld [vmem:[%s9718 + $0x10] sm:$0xff]
  %v9722 = vld [vmem:[%s9718 + $0x18] sm:$0xff]
  %v9723 = vld [vmem:[%s9718 + $0x20] sm:$0xff]
  %v9724 = vld [vmem:[%s9718 + $0x28] sm:$0xff]
  %v9725 = vld [vmem:[%s9718 + $0x30] sm:$0xff]
  %v9726 = vld [vmem:[%s9718 + $0x38] sm:$0xff]
  %v9727 = vld [vmem:[%s9718 + $0x40] sm:$0xff]
  %v9728 = vld [vmem:[%s9718 + $0x48] sm:$0xff]
  %v9729 = vld [vmem:[%s9718 + $0x50] sm:$0xff]
  %v9730 = vld [vmem:[%s9718 + $0x58] sm:$0xff]
  %v9731 = vld [vmem:[%s9718 + $0x60] sm:$0xff]
  %v9732 = vld [vmem:[%s9718 + $0x68] sm:$0xff]
  %v9733 = vld [vmem:[%s9718 + $0x70] sm:$0xff]
  %v9734 = vld [vmem:[%s9718 + $0x78] sm:$0xff]
  %v9736 = vsel %vm59, %v9719, 0
  %v9739 = vsel %vm59, %v9720, 0
  %v9742 = vsel %vm59, %v9721, 0
  %v9745 = vsel %vm59, %v9722, 0
  %v9748 = vsel %vm59, %v9723, 0
  %v9751 = vsel %vm59, %v9724, 0
  %v9754 = vsel %vm59, %v9725, 0
  %v9757 = vsel %vm59, %v9726, 0
  %v9760 = vsel %vm59, %v9727, 0
  %v9763 = vsel %vm59, %v9728, 0
  %v9766 = vsel %vm59, %v9729, 0
  %v9769 = vsel %vm59, %v9730, 0
  %v9772 = vsel %vm59, %v9731, 0
  %v9775 = vsel %vm59, %v9732, 0
  %v9778 = vsel %vm59, %v9733, 0
  %v9781 = vsel %vm59, %v9734, 0
  %9783 = vmatprep.subr.mxu0 0.0
  %9784 = vmatpush1.msra.mxu0 %v32
  %9785 = vmatprep.subr.mxu0 0.0
  %9786 = vmatpush1.msra.mxu0 %v33
  %9787 = vmatprep.subr.mxu0 0.0
  %9788 = vmatpush1.msra.mxu0 %v34
  %9789 = vmatprep.subr.mxu0 0.0
  %9790 = vmatpush1.msra.mxu0 %v110
  %9791 = vmatprep.subr.mxu0 0.0
  %9792 = vmatpush1.msra.mxu0 0.0
  %9793 = vmatprep.subr.mxu0 0.0
  %9794 = vmatpush1.msra.mxu0 0.0
  %9795 = vmatprep.subr.mxu0 0.0
  %9796 = vmatpush1.msra.mxu0 0.0
  %9797 = vmatprep.subr.mxu0 0.0
  %9798 = vmatpush1.msra.mxu0 0.0
  %9799 = vmatprep.subr.mxu0 0.0
  %9800 = vmatpush1.msra.mxu0 0.0
  %9801 = vmatprep.subr.mxu0 0.0
  %9802 = vmatpush1.msra.mxu0 0.0
  %9803 = vmatprep.subr.mxu0 0.0
  %9804 = vmatpush1.msra.mxu0 0.0
  %9805 = vmatprep.subr.mxu0 0.0
  %9806 = vmatpush1.msra.mxu0 0.0
  %9807 = vmatprep.subr.mxu0 0.0
  %9808 = vmatpush1.msra.mxu0 0.0
  %9809 = vmatprep.subr.mxu0 0.0
  %9810 = vmatpush1.msra.mxu0 0.0
  %9811 = vmatprep.subr.mxu0 0.0
  %9812 = vmatpush1.msra.mxu0 0.0
  %9813 = vmatprep.subr.mxu0 0.0
  %9814 = vmatpush1.msra.mxu0 0.0
  %9815 = vmatprep.subr.mxu0 0.0
  %9816 = vmatpush1.msra.mxu0 0.0
  %9817 = vmatprep.subr.mxu0 0.0
  %9818 = vmatpush1.msra.mxu0 0.0
  %9819 = vmatprep.subr.mxu0 0.0
  %9820 = vmatpush1.msra.mxu0 0.0
  %9821 = vmatprep.subr.mxu0 0.0
  %9822 = vmatpush1.msra.mxu0 0.0
  %9823 = vmatprep.subr.mxu0 0.0
  %9824 = vmatpush1.msra.mxu0 0.0
  %9825 = vmatprep.subr.mxu0 0.0
  %9826 = vmatpush1.msra.mxu0 0.0
  %9827 = vmatprep.subr.mxu0 0.0
  %9828 = vmatpush1.msra.mxu0 0.0
  %9829 = vmatprep.subr.mxu0 0.0
  %9830 = vmatpush1.msra.mxu0 0.0
  %9831 = vmatprep.subr.mxu0 0.0
  %9832 = vmatpush1.msra.mxu0 0.0
  %9833 = vmatprep.subr.mxu0 0.0
  %9834 = vmatpush1.msra.mxu0 0.0
  %9835 = vmatprep.subr.mxu0 0.0
  %9836 = vmatpush1.msra.mxu0 0.0
  %9837 = vmatprep.subr.mxu0 0.0
  %9838 = vmatpush1.msra.mxu0 0.0
  %9839 = vmatprep.subr.mxu0 0.0
  %9840 = vmatpush1.msra.mxu0 0.0
  %9841 = vmatprep.subr.mxu0 0.0
  %9842 = vmatpush1.msra.mxu0 0.0
  %9843 = vmatprep.subr.mxu0 0.0
  %9844 = vmatpush1.msra.mxu0 0.0
  %9845 = vmatprep.subr.mxu0 0.0
  %9846 = vmatpush1.msra.mxu0 0.0
  %9847 = vmatprep.mubr.f32.mxu0 0.0
  %9848 = vmatmul.mubr.f32.gmra.mrb[0].mxu0 %v9736
  %v9849 = vpop.f32.mrb[0].mxu0
  %v9850 = vadd.f32 %v57, %v9849
  %v9851 = vpop.f32.mrb[0].mxu0
  %9852 = vmatprep.mubr.f32.mxu0 0.0
  %9853 = vmatmul.mubr.f32.gmra.mrb[0].mxu0 %v9739
  %v9854 = vpop.f32.mrb[0].mxu0
  %v9855 = vadd.f32 %v57, %v9854
  %v9856 = vpop.f32.mrb[0].mxu0
  %9857 = vmatprep.mubr.f32.mxu0 0.0
  %9858 = vmatmul.mubr.f32.gmra.mrb[0].mxu0 %v9742
  %v9859 = vpop.f32.mrb[0].mxu0
  %v9860 = vadd.f32 %v57, %v9859
  %v9861 = vpop.f32.mrb[0].mxu0
  %9862 = vmatprep.mubr.f32.mxu0 0.0
  %9863 = vmatmul.mubr.f32.gmra.mrb[0].mxu0 %v9745
  %v9864 = vpop.f32.mrb[0].mxu0
  %v9865 = vadd.f32 %v57, %v9864
  %v9866 = vpop.f32.mrb[0].mxu0
  %9867 = vmatprep.mubr.f32.mxu0 0.0
  %9868 = vmatmul.mubr.f32.gmra.mrb[0].mxu0 %v9748
  %v9869 = vpop.f32.mrb[0].mxu0
  %v9870 = vadd.f32 %v57, %v9869
  %v9871 = vpop.f32.mrb[0].mxu0
  %9872 = vmatprep.mubr.f32.mxu0 0.0
  %9873 = vmatmul.mubr.f32.gmra.mrb[0].mxu0 %v9751
  %v9874 = vpop.f32.mrb[0].mxu0
  %v9875 = vadd.f32 %v57, %v9874
  %v9876 = vpop.f32.mrb[0].mxu0
  %9877 = vmatprep.mubr.f32.mxu0 0.0
  %9878 = vmatmul.mubr.f32.gmra.mrb[0].mxu0 %v9754
  %v9879 = vpop.f32.mrb[0].mxu0
  %v9880 = vadd.f32 %v57, %v9879
  %v9881 = vpop.f32.mrb[0].mxu0
  %9882 = vmatprep.mubr.f32.mxu0 0.0
  %9883 = vmatmul.mubr.f32.gmra.mrb[0].mxu0 %v9757
  %v9884 = vpop.f32.mrb[0].mxu0
  %v9885 = vadd.f32 %v57, %v9884
  %v9886 = vpop.f32.mrb[0].mxu0
  %9887 = vmatprep.mubr.f32.mxu0 0.0
  %9888 = vmatmul.mubr.f32.gmra.mrb[0].mxu0 %v9760
  %v9889 = vpop.f32.mrb[0].mxu0
  %v9890 = vadd.f32 %v57, %v9889
  %v9891 = vpop.f32.mrb[0].mxu0
  %9892 = vmatprep.mubr.f32.mxu0 0.0
  %9893 = vmatmul.mubr.f32.gmra.mrb[0].mxu0 %v9763
  %v9894 = vpop.f32.mrb[0].mxu0
  %v9895 = vadd.f32 %v57, %v9894
  %v9896 = vpop.f32.mrb[0].mxu0
  %9897 = vmatprep.mubr.f32.mxu0 0.0
  %9898 = vmatmul.mubr.f32.gmra.mrb[0].mxu0 %v9766
  %v9899 = vpop.f32.mrb[0].mxu0
  %v9900 = vadd.f32 %v57, %v9899
  %v9901 = vpop.f32.mrb[0].mxu0
  %9902 = vmatprep.mubr.f32.mxu0 0.0
  %9903 = vmatmul.mubr.f32.gmra.mrb[0].mxu0 %v9769
  %v9904 = vpop.f32.mrb[0].mxu0
  %v9905 = vadd.f32 %v57, %v9904
  %v9906 = vpop.f32.mrb[0].mxu0
  %9907 = vmatprep.mubr.f32.mxu0 0.0
  %9908 = vmatmul.mubr.f32.gmra.mrb[0].mxu0 %v9772
  %v9909 = vpop.f32.mrb[0].mxu0
  %v9910 = vadd.f32 %v57, %v9909
  %v9911 = vpop.f32.mrb[0].mxu0
  %9912 = vmatprep.mubr.f32.mxu0 0.0
  %9913 = vmatmul.mubr.f32.gmra.mrb[0].mxu0 %v9775
  %v9914 = vpop.f32.mrb[0].mxu0
  %v9915 = vadd.f32 %v57, %v9914
  %v9916 = vpop.f32.mrb[0].mxu0
  %9917 = vmatprep.mubr.f32.mxu0 0.0
  %9918 = vmatmul.mubr.f32.gmra.mrb[0].mxu0 %v9778
  %v9919 = vpop.f32.mrb[0].mxu0
  %v9920 = vadd.f32 %v57, %v9919
  %v9921 = vpop.f32.mrb[0].mxu0
  %9922 = vmatprep.mubr.f32.mxu0 0.0
  %9923 = vmatmul.mubr.f32.gmra.mrb[0].mxu0 %v9781
  %v9924 = vpop.f32.mrb[0].mxu0
  %v9925 = vadd.f32 %v57, %v9924
  %v9926 = vpop.f32.mrb[0].mxu0
  %9927 = vdwg.mxu0
  %v9928 = vmax.f32 %v9850, 0.0
  %v9929 = vmax.f32 %v9855, 0.0
  %v9930 = vmax.f32 %v9860, 0.0
  %v9931 = vmax.f32 %v9865, 0.0
  %v9932 = vmax.f32 %v9870, 0.0
  %v9933 = vmax.f32 %v9875, 0.0
  %v9934 = vmax.f32 %v9880, 0.0
  %v9935 = vmax.f32 %v9885, 0.0
  %v9936 = vmax.f32 %v9890, 0.0
  %v9937 = vmax.f32 %v9895, 0.0
  %v9938 = vmax.f32 %v9900, 0.0
  %v9939 = vmax.f32 %v9905, 0.0
  %v9940 = vmax.f32 %v9910, 0.0
  %v9941 = vmax.f32 %v9915, 0.0
  %v9942 = vmax.f32 %v9920, 0.0
  %v9943 = vmax.f32 %v9925, 0.0
  %s9944 = scalar_lea.vmem %s3, 352
  %v9945 = vld [vmem:[%s9944] sm:$0xff]
  %v9946 = vld [vmem:[%s9944 + $0x8] sm:$0x3]
  %v9948 = vsel %vm504, %v9928, 0
  %v9951 = vsel %vm504, %v9929, 0
  %v9954 = vsel %vm504, %v9930, 0
  %v9957 = vsel %vm504, %v9931, 0
  %v9960 = vsel %vm504, %v9932, 0
  %v9963 = vsel %vm504, %v9933, 0
  %v9966 = vsel %vm504, %v9934, 0
  %v9969 = vsel %vm504, %v9935, 0
  %v9972 = vsel %vm504, %v9936, 0
  %v9975 = vsel %vm504, %v9937, 0
  %v9978 = vsel %vm504, %v9938, 0
  %v9981 = vsel %vm504, %v9939, 0
  %v9984 = vsel %vm504, %v9940, 0
  %v9987 = vsel %vm504, %v9941, 0
  %v9990 = vsel %vm504, %v9942, 0
  %v9993 = vsel %vm504, %v9943, 0
  %v9996 = vsel %vm553, %v9946, 0
  %9998 = vmatprep.subr.mxu0 0.0
  %9999 = vmatpush1.msra.mxu0 %v9945
  %10000 = vmatprep.subr.mxu0 0.0
  %10001 = vmatpush1.msra.mxu0 %v9996
  %10002 = vmatprep.subr.mxu0 0.0
  %10003 = vmatpush1.msra.mxu0 0.0
  %10004 = vmatprep.subr.mxu0 0.0
  %10005 = vmatpush1.msra.mxu0 0.0
  %10006 = vmatprep.subr.mxu0 0.0
  %10007 = vmatpush1.msra.mxu0 0.0
  %10008 = vmatprep.subr.mxu0 0.0
  %10009 = vmatpush1.msra.mxu0 0.0
  %10010 = vmatprep.subr.mxu0 0.0
  %10011 = vmatpush1.msra.mxu0 0.0
  %10012 = vmatprep.subr.mxu0 0.0
  %10013 = vmatpush1.msra.mxu0 0.0
  %10014 = vmatprep.subr.mxu0 0.0
  %10015 = vmatpush1.msra.mxu0 0.0
  %10016 = vmatprep.subr.mxu0 0.0
  %10017 = vmatpush1.msra.mxu0 0.0
  %10018 = vmatprep.subr.mxu0 0.0
  %10019 = vmatpush1.msra.mxu0 0.0
  %10020 = vmatprep.subr.mxu0 0.0
  %10021 = vmatpush1.msra.mxu0 0.0
  %10022 = vmatprep.subr.mxu0 0.0
  %10023 = vmatpush1.msra.mxu0 0.0
  %10024 = vmatprep.subr.mxu0 0.0
  %10025 = vmatpush1.msra.mxu0 0.0
  %10026 = vmatprep.subr.mxu0 0.0
  %10027 = vmatpush1.msra.mxu0 0.0
  %10028 = vmatprep.subr.mxu0 0.0
  %10029 = vmatpush1.msra.mxu0 0.0
  %10030 = vmatprep.subr.mxu0 0.0
  %10031 = vmatpush1.msra.mxu0 0.0
  %10032 = vmatprep.subr.mxu0 0.0
  %10033 = vmatpush1.msra.mxu0 0.0
  %10034 = vmatprep.subr.mxu0 0.0
  %10035 = vmatpush1.msra.mxu0 0.0
  %10036 = vmatprep.subr.mxu0 0.0
  %10037 = vmatpush1.msra.mxu0 0.0
  %10038 = vmatprep.subr.mxu0 0.0
  %10039 = vmatpush1.msra.mxu0 0.0
  %10040 = vmatprep.subr.mxu0 0.0
  %10041 = vmatpush1.msra.mxu0 0.0
  %10042 = vmatprep.subr.mxu0 0.0
  %10043 = vmatpush1.msra.mxu0 0.0
  %10044 = vmatprep.subr.mxu0 0.0
  %10045 = vmatpush1.msra.mxu0 0.0
  %10046 = vmatprep.subr.mxu0 0.0
  %10047 = vmatpush1.msra.mxu0 0.0
  %10048 = vmatprep.subr.mxu0 0.0
  %10049 = vmatpush1.msra.mxu0 0.0
  %10050 = vmatprep.subr.mxu0 0.0
  %10051 = vmatpush1.msra.mxu0 0.0
  %10052 = vmatprep.subr.mxu0 0.0
  %10053 = vmatpush1.msra.mxu0 0.0
  %10054 = vmatprep.subr.mxu0 0.0
  %10055 = vmatpush1.msra.mxu0 0.0
  %10056 = vmatprep.subr.mxu0 0.0
  %10057 = vmatpush1.msra.mxu0 0.0
  %10058 = vmatprep.subr.mxu0 0.0
  %10059 = vmatpush1.msra.mxu0 0.0
  %10060 = vmatprep.subr.mxu0 0.0
  %10061 = vmatpush1.msra.mxu0 0.0
  %10062 = vmatprep.mubr.f32.mxu0 0.0
  %10063 = vmatmul.mubr.f32.gmra.mrb[0].mxu0 %v9948
  %v10064 = vpop.f32.mrb[0].mxu0
  %v10065 = vadd.f32 0.0, %v10064
  %v10066 = vpop.f32.mrb[0].mxu0
  %10067 = vmatprep.mubr.f32.mxu0 0.0
  %10068 = vmatmul.mubr.f32.gmra.mrb[0].mxu0 %v9951
  %v10069 = vpop.f32.mrb[0].mxu0
  %v10070 = vadd.f32 0.0, %v10069
  %v10071 = vpop.f32.mrb[0].mxu0
  %10072 = vmatprep.mubr.f32.mxu0 0.0
  %10073 = vmatmul.mubr.f32.gmra.mrb[0].mxu0 %v9954
  %v10074 = vpop.f32.mrb[0].mxu0
  %v10075 = vadd.f32 0.0, %v10074
  %v10076 = vpop.f32.mrb[0].mxu0
  %10077 = vmatprep.mubr.f32.mxu0 0.0
  %10078 = vmatmul.mubr.f32.gmra.mrb[0].mxu0 %v9957
  %v10079 = vpop.f32.mrb[0].mxu0
  %v10080 = vadd.f32 0.0, %v10079
  %v10081 = vpop.f32.mrb[0].mxu0
  %10082 = vmatprep.mubr.f32.mxu0 0.0
  %10083 = vmatmul.mubr.f32.gmra.mrb[0].mxu0 %v9960
  %v10084 = vpop.f32.mrb[0].mxu0
  %v10085 = vadd.f32 0.0, %v10084
  %v10086 = vpop.f32.mrb[0].mxu0
  %10087 = vmatprep.mubr.f32.mxu0 0.0
  %10088 = vmatmul.mubr.f32.gmra.mrb[0].mxu0 %v9963
  %v10089 = vpop.f32.mrb[0].mxu0
  %v10090 = vadd.f32 0.0, %v10089
  %v10091 = vpop.f32.mrb[0].mxu0
  %10092 = vmatprep.mubr.f32.mxu0 0.0
  %10093 = vmatmul.mubr.f32.gmra.mrb[0].mxu0 %v9966
  %v10094 = vpop.f32.mrb[0].mxu0
  %v10095 = vadd.f32 0.0, %v10094
  %v10096 = vpop.f32.mrb[0].mxu0
  %10097 = vmatprep.mubr.f32.mxu0 0.0
  %10098 = vmatmul.mubr.f32.gmra.mrb[0].mxu0 %v9969
  %v10099 = vpop.f32.mrb[0].mxu0
  %v10100 = vadd.f32 0.0, %v10099
  %v10101 = vpop.f32.mrb[0].mxu0
  %10102 = vmatprep.mubr.f32.mxu0 0.0
  %10103 = vmatmul.mubr.f32.gmra.mrb[0].mxu0 %v9972
  %v10104 = vpop.f32.mrb[0].mxu0
  %v10105 = vadd.f32 0.0, %v10104
  %v10106 = vpop.f32.mrb[0].mxu0
  %10107 = vmatprep.mubr.f32.mxu0 0.0
  %10108 = vmatmul.mubr.f32.gmra.mrb[0].mxu0 %v9975
  %v10109 = vpop.f32.mrb[0].mxu0
  %v10110 = vadd.f32 0.0, %v10109
  %v10111 = vpop.f32.mrb[0].mxu0
  %10112 = vmatprep.mubr.f32.mxu0 0.0
  %10113 = vmatmul.mubr.f32.gmra.mrb[0].mxu0 %v9978
  %v10114 = vpop.f32.mrb[0].mxu0
  %v10115 = vadd.f32 0.0, %v10114
  %v10116 = vpop.f32.mrb[0].mxu0
  %10117 = vmatprep.mubr.f32.mxu0 0.0
  %10118 = vmatmul.mubr.f32.gmra.mrb[0].mxu0 %v9981
  %v10119 = vpop.f32.mrb[0].mxu0
  %v10120 = vadd.f32 0.0, %v10119
  %v10121 = vpop.f32.mrb[0].mxu0
  %10122 = vmatprep.mubr.f32.mxu0 0.0
  %10123 = vmatmul.mubr.f32.gmra.mrb[0].mxu0 %v9984
  %v10124 = vpop.f32.mrb[0].mxu0
  %v10125 = vadd.f32 0.0, %v10124
  %v10126 = vpop.f32.mrb[0].mxu0
  %10127 = vmatprep.mubr.f32.mxu0 0.0
  %10128 = vmatmul.mubr.f32.gmra.mrb[0].mxu0 %v9987
  %v10129 = vpop.f32.mrb[0].mxu0
  %v10130 = vadd.f32 0.0, %v10129
  %v10131 = vpop.f32.mrb[0].mxu0
  %10132 = vmatprep.mubr.f32.mxu0 0.0
  %10133 = vmatmul.mubr.f32.gmra.mrb[0].mxu0 %v9990
  %v10134 = vpop.f32.mrb[0].mxu0
  %v10135 = vadd.f32 0.0, %v10134
  %v10136 = vpop.f32.mrb[0].mxu0
  %10137 = vmatprep.mubr.f32.mxu0 0.0
  %10138 = vmatmul.mubr.f32.gmra.mrb[0].mxu0 %v9993
  %v10139 = vpop.f32.mrb[0].mxu0
  %v10140 = vadd.f32 0.0, %v10139
  %v10141 = vpop.f32.mrb[0].mxu0
  %10142 = vdwg.mxu0
  %v10143 = vadd.f32 %v9702, %v10065
  %v10144 = vadd.f32 %v9703, %v10070
  %v10145 = vadd.f32 %v9704, %v10075
  %v10146 = vadd.f32 %v9705, %v10080
  %v10147 = vadd.f32 %v9706, %v10085
  %v10148 = vadd.f32 %v9707, %v10090
  %v10149 = vadd.f32 %v9708, %v10095
  %v10150 = vadd.f32 %v9709, %v10100
  %v10151 = vadd.f32 %v9710, %v10105
  %v10152 = vadd.f32 %v9711, %v10110
  %v10153 = vadd.f32 %v9712, %v10115
  %v10154 = vadd.f32 %v9713, %v10120
  %v10155 = vadd.f32 %v9714, %v10125
  %v10156 = vadd.f32 %v9715, %v10130
  %v10157 = vadd.f32 %v9716, %v10135
  %v10158 = vadd.f32 %v9717, %v10140
  %s10159 = scalar_lea.vmem %s0, 2944
  %v10160 = vld [vmem:[%s10159] sm:$0xff]
  %v10161 = vld [vmem:[%s10159 + $0x8] sm:$0xff]
  %v10162 = vld [vmem:[%s10159 + $0x10] sm:$0xff]
  %v10163 = vld [vmem:[%s10159 + $0x18] sm:$0xff]
  %v10164 = vld [vmem:[%s10159 + $0x20] sm:$0xff]
  %v10165 = vld [vmem:[%s10159 + $0x28] sm:$0xff]
  %v10166 = vld [vmem:[%s10159 + $0x30] sm:$0xff]
  %v10167 = vld [vmem:[%s10159 + $0x38] sm:$0xff]
  %v10168 = vld [vmem:[%s10159 + $0x40] sm:$0xff]
  %v10169 = vld [vmem:[%s10159 + $0x48] sm:$0xff]
  %v10170 = vld [vmem:[%s10159 + $0x50] sm:$0xff]
  %v10171 = vld [vmem:[%s10159 + $0x58] sm:$0xff]
  %v10172 = vld [vmem:[%s10159 + $0x60] sm:$0xff]
  %v10173 = vld [vmem:[%s10159 + $0x68] sm:$0xff]
  %v10174 = vld [vmem:[%s10159 + $0x70] sm:$0xff]
  %v10175 = vld [vmem:[%s10159 + $0x78] sm:$0xff]
  %v10177 = vsel %vm59, %v10160, 0
  %v10180 = vsel %vm59, %v10161, 0
  %v10183 = vsel %vm59, %v10162, 0
  %v10186 = vsel %vm59, %v10163, 0
  %v10189 = vsel %vm59, %v10164, 0
  %v10192 = vsel %vm59, %v10165, 0
  %v10195 = vsel %vm59, %v10166, 0
  %v10198 = vsel %vm59, %v10167, 0
  %v10201 = vsel %vm59, %v10168, 0
  %v10204 = vsel %vm59, %v10169, 0
  %v10207 = vsel %vm59, %v10170, 0
  %v10210 = vsel %vm59, %v10171, 0
  %v10213 = vsel %vm59, %v10172, 0
  %v10216 = vsel %vm59, %v10173, 0
  %v10219 = vsel %vm59, %v10174, 0
  %v10222 = vsel %vm59, %v10175, 0
  %10224 = vmatprep.subr.mxu0 0.0
  %10225 = vmatpush1.msra.mxu0 %v32
  %10226 = vmatprep.subr.mxu0 0.0
  %10227 = vmatpush1.msra.mxu0 %v33
  %10228 = vmatprep.subr.mxu0 0.0
  %10229 = vmatpush1.msra.mxu0 %v34
  %10230 = vmatprep.subr.mxu0 0.0
  %10231 = vmatpush1.msra.mxu0 %v110
  %10232 = vmatprep.subr.mxu0 0.0
  %10233 = vmatpush1.msra.mxu0 0.0
  %10234 = vmatprep.subr.mxu0 0.0
  %10235 = vmatpush1.msra.mxu0 0.0
  %10236 = vmatprep.subr.mxu0 0.0
  %10237 = vmatpush1.msra.mxu0 0.0
  %10238 = vmatprep.subr.mxu0 0.0
  %10239 = vmatpush1.msra.mxu0 0.0
  %10240 = vmatprep.subr.mxu0 0.0
  %10241 = vmatpush1.msra.mxu0 0.0
  %10242 = vmatprep.subr.mxu0 0.0
  %10243 = vmatpush1.msra.mxu0 0.0
  %10244 = vmatprep.subr.mxu0 0.0
  %10245 = vmatpush1.msra.mxu0 0.0
  %10246 = vmatprep.subr.mxu0 0.0
  %10247 = vmatpush1.msra.mxu0 0.0
  %10248 = vmatprep.subr.mxu0 0.0
  %10249 = vmatpush1.msra.mxu0 0.0
  %10250 = vmatprep.subr.mxu0 0.0
  %10251 = vmatpush1.msra.mxu0 0.0
  %10252 = vmatprep.subr.mxu0 0.0
  %10253 = vmatpush1.msra.mxu0 0.0
  %10254 = vmatprep.subr.mxu0 0.0
  %10255 = vmatpush1.msra.mxu0 0.0
  %10256 = vmatprep.subr.mxu0 0.0
  %10257 = vmatpush1.msra.mxu0 0.0
  %10258 = vmatprep.subr.mxu0 0.0
  %10259 = vmatpush1.msra.mxu0 0.0
  %10260 = vmatprep.subr.mxu0 0.0
  %10261 = vmatpush1.msra.mxu0 0.0
  %10262 = vmatprep.subr.mxu0 0.0
  %10263 = vmatpush1.msra.mxu0 0.0
  %10264 = vmatprep.subr.mxu0 0.0
  %10265 = vmatpush1.msra.mxu0 0.0
  %10266 = vmatprep.subr.mxu0 0.0
  %10267 = vmatpush1.msra.mxu0 0.0
  %10268 = vmatprep.subr.mxu0 0.0
  %10269 = vmatpush1.msra.mxu0 0.0
  %10270 = vmatprep.subr.mxu0 0.0
  %10271 = vmatpush1.msra.mxu0 0.0
  %10272 = vmatprep.subr.mxu0 0.0
  %10273 = vmatpush1.msra.mxu0 0.0
  %10274 = vmatprep.subr.mxu0 0.0
  %10275 = vmatpush1.msra.mxu0 0.0
  %10276 = vmatprep.subr.mxu0 0.0
  %10277 = vmatpush1.msra.mxu0 0.0
  %10278 = vmatprep.subr.mxu0 0.0
  %10279 = vmatpush1.msra.mxu0 0.0
  %10280 = vmatprep.subr.mxu0 0.0
  %10281 = vmatpush1.msra.mxu0 0.0
  %10282 = vmatprep.subr.mxu0 0.0
  %10283 = vmatpush1.msra.mxu0 0.0
  %10284 = vmatprep.subr.mxu0 0.0
  %10285 = vmatpush1.msra.mxu0 0.0
  %10286 = vmatprep.subr.mxu0 0.0
  %10287 = vmatpush1.msra.mxu0 0.0
  %10288 = vmatprep.mubr.f32.mxu0 0.0
  %10289 = vmatmul.mubr.f32.gmra.mrb[0].mxu0 %v10177
  %v10290 = vpop.f32.mrb[0].mxu0
  %v10291 = vadd.f32 %v57, %v10290
  %v10292 = vpop.f32.mrb[0].mxu0
  %10293 = vmatprep.mubr.f32.mxu0 0.0
  %10294 = vmatmul.mubr.f32.gmra.mrb[0].mxu0 %v10180
  %v10295 = vpop.f32.mrb[0].mxu0
  %v10296 = vadd.f32 %v57, %v10295
  %v10297 = vpop.f32.mrb[0].mxu0
  %10298 = vmatprep.mubr.f32.mxu0 0.0
  %10299 = vmatmul.mubr.f32.gmra.mrb[0].mxu0 %v10183
  %v10300 = vpop.f32.mrb[0].mxu0
  %v10301 = vadd.f32 %v57, %v10300
  %v10302 = vpop.f32.mrb[0].mxu0
  %10303 = vmatprep.mubr.f32.mxu0 0.0
  %10304 = vmatmul.mubr.f32.gmra.mrb[0].mxu0 %v10186
  %v10305 = vpop.f32.mrb[0].mxu0
  %v10306 = vadd.f32 %v57, %v10305
  %v10307 = vpop.f32.mrb[0].mxu0
  %10308 = vmatprep.mubr.f32.mxu0 0.0
  %10309 = vmatmul.mubr.f32.gmra.mrb[0].mxu0 %v10189
  %v10310 = vpop.f32.mrb[0].mxu0
  %v10311 = vadd.f32 %v57, %v10310
  %v10312 = vpop.f32.mrb[0].mxu0
  %10313 = vmatprep.mubr.f32.mxu0 0.0
  %10314 = vmatmul.mubr.f32.gmra.mrb[0].mxu0 %v10192
  %v10315 = vpop.f32.mrb[0].mxu0
  %v10316 = vadd.f32 %v57, %v10315
  %v10317 = vpop.f32.mrb[0].mxu0
  %10318 = vmatprep.mubr.f32.mxu0 0.0
  %10319 = vmatmul.mubr.f32.gmra.mrb[0].mxu0 %v10195
  %v10320 = vpop.f32.mrb[0].mxu0
  %v10321 = vadd.f32 %v57, %v10320
  %v10322 = vpop.f32.mrb[0].mxu0
  %10323 = vmatprep.mubr.f32.mxu0 0.0
  %10324 = vmatmul.mubr.f32.gmra.mrb[0].mxu0 %v10198
  %v10325 = vpop.f32.mrb[0].mxu0
  %v10326 = vadd.f32 %v57, %v10325
  %v10327 = vpop.f32.mrb[0].mxu0
  %10328 = vmatprep.mubr.f32.mxu0 0.0
  %10329 = vmatmul.mubr.f32.gmra.mrb[0].mxu0 %v10201
  %v10330 = vpop.f32.mrb[0].mxu0
  %v10331 = vadd.f32 %v57, %v10330
  %v10332 = vpop.f32.mrb[0].mxu0
  %10333 = vmatprep.mubr.f32.mxu0 0.0
  %10334 = vmatmul.mubr.f32.gmra.mrb[0].mxu0 %v10204
  %v10335 = vpop.f32.mrb[0].mxu0
  %v10336 = vadd.f32 %v57, %v10335
  %v10337 = vpop.f32.mrb[0].mxu0
  %10338 = vmatprep.mubr.f32.mxu0 0.0
  %10339 = vmatmul.mubr.f32.gmra.mrb[0].mxu0 %v10207
  %v10340 = vpop.f32.mrb[0].mxu0
  %v10341 = vadd.f32 %v57, %v10340
  %v10342 = vpop.f32.mrb[0].mxu0
  %10343 = vmatprep.mubr.f32.mxu0 0.0
  %10344 = vmatmul.mubr.f32.gmra.mrb[0].mxu0 %v10210
  %v10345 = vpop.f32.mrb[0].mxu0
  %v10346 = vadd.f32 %v57, %v10345
  %v10347 = vpop.f32.mrb[0].mxu0
  %10348 = vmatprep.mubr.f32.mxu0 0.0
  %10349 = vmatmul.mubr.f32.gmra.mrb[0].mxu0 %v10213
  %v10350 = vpop.f32.mrb[0].mxu0
  %v10351 = vadd.f32 %v57, %v10350
  %v10352 = vpop.f32.mrb[0].mxu0
  %10353 = vmatprep.mubr.f32.mxu0 0.0
  %10354 = vmatmul.mubr.f32.gmra.mrb[0].mxu0 %v10216
  %v10355 = vpop.f32.mrb[0].mxu0
  %v10356 = vadd.f32 %v57, %v10355
  %v10357 = vpop.f32.mrb[0].mxu0
  %10358 = vmatprep.mubr.f32.mxu0 0.0
  %10359 = vmatmul.mubr.f32.gmra.mrb[0].mxu0 %v10219
  %v10360 = vpop.f32.mrb[0].mxu0
  %v10361 = vadd.f32 %v57, %v10360
  %v10362 = vpop.f32.mrb[0].mxu0
  %10363 = vmatprep.mubr.f32.mxu0 0.0
  %10364 = vmatmul.mubr.f32.gmra.mrb[0].mxu0 %v10222
  %v10365 = vpop.f32.mrb[0].mxu0
  %v10366 = vadd.f32 %v57, %v10365
  %v10367 = vpop.f32.mrb[0].mxu0
  %10368 = vdwg.mxu0
  %v10369 = vmax.f32 %v10291, 0.0
  %v10370 = vmax.f32 %v10296, 0.0
  %v10371 = vmax.f32 %v10301, 0.0
  %v10372 = vmax.f32 %v10306, 0.0
  %v10373 = vmax.f32 %v10311, 0.0
  %v10374 = vmax.f32 %v10316, 0.0
  %v10375 = vmax.f32 %v10321, 0.0
  %v10376 = vmax.f32 %v10326, 0.0
  %v10377 = vmax.f32 %v10331, 0.0
  %v10378 = vmax.f32 %v10336, 0.0
  %v10379 = vmax.f32 %v10341, 0.0
  %v10380 = vmax.f32 %v10346, 0.0
  %v10381 = vmax.f32 %v10351, 0.0
  %v10382 = vmax.f32 %v10356, 0.0
  %v10383 = vmax.f32 %v10361, 0.0
  %v10384 = vmax.f32 %v10366, 0.0
  %s10385 = scalar_lea.vmem %s3, 368
  %v10386 = vld [vmem:[%s10385] sm:$0xff]
  %v10387 = vld [vmem:[%s10385 + $0x8] sm:$0x3]
  %v10389 = vsel %vm504, %v10369, 0
  %v10392 = vsel %vm504, %v10370, 0
  %v10395 = vsel %vm504, %v10371, 0
  %v10398 = vsel %vm504, %v10372, 0
  %v10401 = vsel %vm504, %v10373, 0
  %v10404 = vsel %vm504, %v10374, 0
  %v10407 = vsel %vm504, %v10375, 0
  %v10410 = vsel %vm504, %v10376, 0
  %v10413 = vsel %vm504, %v10377, 0
  %v10416 = vsel %vm504, %v10378, 0
  %v10419 = vsel %vm504, %v10379, 0
  %v10422 = vsel %vm504, %v10380, 0
  %v10425 = vsel %vm504, %v10381, 0
  %v10428 = vsel %vm504, %v10382, 0
  %v10431 = vsel %vm504, %v10383, 0
  %v10434 = vsel %vm504, %v10384, 0
  %v10437 = vsel %vm553, %v10387, 0
  %10439 = vmatprep.subr.mxu0 0.0
  %10440 = vmatpush1.msra.mxu0 %v10386
  %10441 = vmatprep.subr.mxu0 0.0
  %10442 = vmatpush1.msra.mxu0 %v10437
  %10443 = vmatprep.subr.mxu0 0.0
  %10444 = vmatpush1.msra.mxu0 0.0
  %10445 = vmatprep.subr.mxu0 0.0
  %10446 = vmatpush1.msra.mxu0 0.0
  %10447 = vmatprep.subr.mxu0 0.0
  %10448 = vmatpush1.msra.mxu0 0.0
  %10449 = vmatprep.subr.mxu0 0.0
  %10450 = vmatpush1.msra.mxu0 0.0
  %10451 = vmatprep.subr.mxu0 0.0
  %10452 = vmatpush1.msra.mxu0 0.0
  %10453 = vmatprep.subr.mxu0 0.0
  %10454 = vmatpush1.msra.mxu0 0.0
  %10455 = vmatprep.subr.mxu0 0.0
  %10456 = vmatpush1.msra.mxu0 0.0
  %10457 = vmatprep.subr.mxu0 0.0
  %10458 = vmatpush1.msra.mxu0 0.0
  %10459 = vmatprep.subr.mxu0 0.0
  %10460 = vmatpush1.msra.mxu0 0.0
  %10461 = vmatprep.subr.mxu0 0.0
  %10462 = vmatpush1.msra.mxu0 0.0
  %10463 = vmatprep.subr.mxu0 0.0
  %10464 = vmatpush1.msra.mxu0 0.0
  %10465 = vmatprep.subr.mxu0 0.0
  %10466 = vmatpush1.msra.mxu0 0.0
  %10467 = vmatprep.subr.mxu0 0.0
  %10468 = vmatpush1.msra.mxu0 0.0
  %10469 = vmatprep.subr.mxu0 0.0
  %10470 = vmatpush1.msra.mxu0 0.0
  %10471 = vmatprep.subr.mxu0 0.0
  %10472 = vmatpush1.msra.mxu0 0.0
  %10473 = vmatprep.subr.mxu0 0.0
  %10474 = vmatpush1.msra.mxu0 0.0
  %10475 = vmatprep.subr.mxu0 0.0
  %10476 = vmatpush1.msra.mxu0 0.0
  %10477 = vmatprep.subr.mxu0 0.0
  %10478 = vmatpush1.msra.mxu0 0.0
  %10479 = vmatprep.subr.mxu0 0.0
  %10480 = vmatpush1.msra.mxu0 0.0
  %10481 = vmatprep.subr.mxu0 0.0
  %10482 = vmatpush1.msra.mxu0 0.0
  %10483 = vmatprep.subr.mxu0 0.0
  %10484 = vmatpush1.msra.mxu0 0.0
  %10485 = vmatprep.subr.mxu0 0.0
  %10486 = vmatpush1.msra.mxu0 0.0
  %10487 = vmatprep.subr.mxu0 0.0
  %10488 = vmatpush1.msra.mxu0 0.0
  %10489 = vmatprep.subr.mxu0 0.0
  %10490 = vmatpush1.msra.mxu0 0.0
  %10491 = vmatprep.subr.mxu0 0.0
  %10492 = vmatpush1.msra.mxu0 0.0
  %10493 = vmatprep.subr.mxu0 0.0
  %10494 = vmatpush1.msra.mxu0 0.0
  %10495 = vmatprep.subr.mxu0 0.0
  %10496 = vmatpush1.msra.mxu0 0.0
  %10497 = vmatprep.subr.mxu0 0.0
  %10498 = vmatpush1.msra.mxu0 0.0
  %10499 = vmatprep.subr.mxu0 0.0
  %10500 = vmatpush1.msra.mxu0 0.0
  %10501 = vmatprep.subr.mxu0 0.0
  %10502 = vmatpush1.msra.mxu0 0.0
  %10503 = vmatprep.mubr.f32.mxu0 0.0
  %10504 = vmatmul.mubr.f32.gmra.mrb[0].mxu0 %v10389
  %v10505 = vpop.f32.mrb[0].mxu0
  %v10506 = vadd.f32 0.0, %v10505
  %v10507 = vpop.f32.mrb[0].mxu0
  %10508 = vmatprep.mubr.f32.mxu0 0.0
  %10509 = vmatmul.mubr.f32.gmra.mrb[0].mxu0 %v10392
  %v10510 = vpop.f32.mrb[0].mxu0
  %v10511 = vadd.f32 0.0, %v10510
  %v10512 = vpop.f32.mrb[0].mxu0
  %10513 = vmatprep.mubr.f32.mxu0 0.0
  %10514 = vmatmul.mubr.f32.gmra.mrb[0].mxu0 %v10395
  %v10515 = vpop.f32.mrb[0].mxu0
  %v10516 = vadd.f32 0.0, %v10515
  %v10517 = vpop.f32.mrb[0].mxu0
  %10518 = vmatprep.mubr.f32.mxu0 0.0
  %10519 = vmatmul.mubr.f32.gmra.mrb[0].mxu0 %v10398
  %v10520 = vpop.f32.mrb[0].mxu0
  %v10521 = vadd.f32 0.0, %v10520
  %v10522 = vpop.f32.mrb[0].mxu0
  %10523 = vmatprep.mubr.f32.mxu0 0.0
  %10524 = vmatmul.mubr.f32.gmra.mrb[0].mxu0 %v10401
  %v10525 = vpop.f32.mrb[0].mxu0
  %v10526 = vadd.f32 0.0, %v10525
  %v10527 = vpop.f32.mrb[0].mxu0
  %10528 = vmatprep.mubr.f32.mxu0 0.0
  %10529 = vmatmul.mubr.f32.gmra.mrb[0].mxu0 %v10404
  %v10530 = vpop.f32.mrb[0].mxu0
  %v10531 = vadd.f32 0.0, %v10530
  %v10532 = vpop.f32.mrb[0].mxu0
  %10533 = vmatprep.mubr.f32.mxu0 0.0
  %10534 = vmatmul.mubr.f32.gmra.mrb[0].mxu0 %v10407
  %v10535 = vpop.f32.mrb[0].mxu0
  %v10536 = vadd.f32 0.0, %v10535
  %v10537 = vpop.f32.mrb[0].mxu0
  %10538 = vmatprep.mubr.f32.mxu0 0.0
  %10539 = vmatmul.mubr.f32.gmra.mrb[0].mxu0 %v10410
  %v10540 = vpop.f32.mrb[0].mxu0
  %v10541 = vadd.f32 0.0, %v10540
  %v10542 = vpop.f32.mrb[0].mxu0
  %10543 = vmatprep.mubr.f32.mxu0 0.0
  %10544 = vmatmul.mubr.f32.gmra.mrb[0].mxu0 %v10413
  %v10545 = vpop.f32.mrb[0].mxu0
  %v10546 = vadd.f32 0.0, %v10545
  %v10547 = vpop.f32.mrb[0].mxu0
  %10548 = vmatprep.mubr.f32.mxu0 0.0
  %10549 = vmatmul.mubr.f32.gmra.mrb[0].mxu0 %v10416
  %v10550 = vpop.f32.mrb[0].mxu0
  %v10551 = vadd.f32 0.0, %v10550
  %v10552 = vpop.f32.mrb[0].mxu0
  %10553 = vmatprep.mubr.f32.mxu0 0.0
  %10554 = vmatmul.mubr.f32.gmra.mrb[0].mxu0 %v10419
  %v10555 = vpop.f32.mrb[0].mxu0
  %v10556 = vadd.f32 0.0, %v10555
  %v10557 = vpop.f32.mrb[0].mxu0
  %10558 = vmatprep.mubr.f32.mxu0 0.0
  %10559 = vmatmul.mubr.f32.gmra.mrb[0].mxu0 %v10422
  %v10560 = vpop.f32.mrb[0].mxu0
  %v10561 = vadd.f32 0.0, %v10560
  %v10562 = vpop.f32.mrb[0].mxu0
  %10563 = vmatprep.mubr.f32.mxu0 0.0
  %10564 = vmatmul.mubr.f32.gmra.mrb[0].mxu0 %v10425
  %v10565 = vpop.f32.mrb[0].mxu0
  %v10566 = vadd.f32 0.0, %v10565
  %v10567 = vpop.f32.mrb[0].mxu0
  %10568 = vmatprep.mubr.f32.mxu0 0.0
  %10569 = vmatmul.mubr.f32.gmra.mrb[0].mxu0 %v10428
  %v10570 = vpop.f32.mrb[0].mxu0
  %v10571 = vadd.f32 0.0, %v10570
  %v10572 = vpop.f32.mrb[0].mxu0
  %10573 = vmatprep.mubr.f32.mxu0 0.0
  %10574 = vmatmul.mubr.f32.gmra.mrb[0].mxu0 %v10431
  %v10575 = vpop.f32.mrb[0].mxu0
  %v10576 = vadd.f32 0.0, %v10575
  %v10577 = vpop.f32.mrb[0].mxu0
  %10578 = vmatprep.mubr.f32.mxu0 0.0
  %10579 = vmatmul.mubr.f32.gmra.mrb[0].mxu0 %v10434
  %v10580 = vpop.f32.mrb[0].mxu0
  %v10581 = vadd.f32 0.0, %v10580
  %v10582 = vpop.f32.mrb[0].mxu0
  %10583 = vdwg.mxu0
  %v10584 = vadd.f32 %v10143, %v10506
  %v10585 = vadd.f32 %v10144, %v10511
  %v10586 = vadd.f32 %v10145, %v10516
  %v10587 = vadd.f32 %v10146, %v10521
  %v10588 = vadd.f32 %v10147, %v10526
  %v10589 = vadd.f32 %v10148, %v10531
  %v10590 = vadd.f32 %v10149, %v10536
  %v10591 = vadd.f32 %v10150, %v10541
  %v10592 = vadd.f32 %v10151, %v10546
  %v10593 = vadd.f32 %v10152, %v10551
  %v10594 = vadd.f32 %v10153, %v10556
  %v10595 = vadd.f32 %v10154, %v10561
  %v10596 = vadd.f32 %v10155, %v10566
  %v10597 = vadd.f32 %v10156, %v10571
  %v10598 = vadd.f32 %v10157, %v10576
  %v10599 = vadd.f32 %v10158, %v10581
  %s10600 = scalar_lea.vmem %s0, 3072
  %v10601 = vld [vmem:[%s10600] sm:$0xff]
  %v10602 = vld [vmem:[%s10600 + $0x8] sm:$0xff]
  %v10603 = vld [vmem:[%s10600 + $0x10] sm:$0xff]
  %v10604 = vld [vmem:[%s10600 + $0x18] sm:$0xff]
  %v10605 = vld [vmem:[%s10600 + $0x20] sm:$0xff]
  %v10606 = vld [vmem:[%s10600 + $0x28] sm:$0xff]
  %v10607 = vld [vmem:[%s10600 + $0x30] sm:$0xff]
  %v10608 = vld [vmem:[%s10600 + $0x38] sm:$0xff]
  %v10609 = vld [vmem:[%s10600 + $0x40] sm:$0xff]
  %v10610 = vld [vmem:[%s10600 + $0x48] sm:$0xff]
  %v10611 = vld [vmem:[%s10600 + $0x50] sm:$0xff]
  %v10612 = vld [vmem:[%s10600 + $0x58] sm:$0xff]
  %v10613 = vld [vmem:[%s10600 + $0x60] sm:$0xff]
  %v10614 = vld [vmem:[%s10600 + $0x68] sm:$0xff]
  %v10615 = vld [vmem:[%s10600 + $0x70] sm:$0xff]
  %v10616 = vld [vmem:[%s10600 + $0x78] sm:$0xff]
  %v10618 = vsel %vm59, %v10601, 0
  %v10621 = vsel %vm59, %v10602, 0
  %v10624 = vsel %vm59, %v10603, 0
  %v10627 = vsel %vm59, %v10604, 0
  %v10630 = vsel %vm59, %v10605, 0
  %v10633 = vsel %vm59, %v10606, 0
  %v10636 = vsel %vm59, %v10607, 0
  %v10639 = vsel %vm59, %v10608, 0
  %v10642 = vsel %vm59, %v10609, 0
  %v10645 = vsel %vm59, %v10610, 0
  %v10648 = vsel %vm59, %v10611, 0
  %v10651 = vsel %vm59, %v10612, 0
  %v10654 = vsel %vm59, %v10613, 0
  %v10657 = vsel %vm59, %v10614, 0
  %v10660 = vsel %vm59, %v10615, 0
  %v10663 = vsel %vm59, %v10616, 0
  %10665 = vmatprep.subr.mxu0 0.0
  %10666 = vmatpush1.msra.mxu0 %v32
  %10667 = vmatprep.subr.mxu0 0.0
  %10668 = vmatpush1.msra.mxu0 %v33
  %10669 = vmatprep.subr.mxu0 0.0
  %10670 = vmatpush1.msra.mxu0 %v34
  %10671 = vmatprep.subr.mxu0 0.0
  %10672 = vmatpush1.msra.mxu0 %v110
  %10673 = vmatprep.subr.mxu0 0.0
  %10674 = vmatpush1.msra.mxu0 0.0
  %10675 = vmatprep.subr.mxu0 0.0
  %10676 = vmatpush1.msra.mxu0 0.0
  %10677 = vmatprep.subr.mxu0 0.0
  %10678 = vmatpush1.msra.mxu0 0.0
  %10679 = vmatprep.subr.mxu0 0.0
  %10680 = vmatpush1.msra.mxu0 0.0
  %10681 = vmatprep.subr.mxu0 0.0
  %10682 = vmatpush1.msra.mxu0 0.0
  %10683 = vmatprep.subr.mxu0 0.0
  %10684 = vmatpush1.msra.mxu0 0.0
  %10685 = vmatprep.subr.mxu0 0.0
  %10686 = vmatpush1.msra.mxu0 0.0
  %10687 = vmatprep.subr.mxu0 0.0
  %10688 = vmatpush1.msra.mxu0 0.0
  %10689 = vmatprep.subr.mxu0 0.0
  %10690 = vmatpush1.msra.mxu0 0.0
  %10691 = vmatprep.subr.mxu0 0.0
  %10692 = vmatpush1.msra.mxu0 0.0
  %10693 = vmatprep.subr.mxu0 0.0
  %10694 = vmatpush1.msra.mxu0 0.0
  %10695 = vmatprep.subr.mxu0 0.0
  %10696 = vmatpush1.msra.mxu0 0.0
  %10697 = vmatprep.subr.mxu0 0.0
  %10698 = vmatpush1.msra.mxu0 0.0
  %10699 = vmatprep.subr.mxu0 0.0
  %10700 = vmatpush1.msra.mxu0 0.0
  %10701 = vmatprep.subr.mxu0 0.0
  %10702 = vmatpush1.msra.mxu0 0.0
  %10703 = vmatprep.subr.mxu0 0.0
  %10704 = vmatpush1.msra.mxu0 0.0
  %10705 = vmatprep.subr.mxu0 0.0
  %10706 = vmatpush1.msra.mxu0 0.0
  %10707 = vmatprep.subr.mxu0 0.0
  %10708 = vmatpush1.msra.mxu0 0.0
  %10709 = vmatprep.subr.mxu0 0.0
  %10710 = vmatpush1.msra.mxu0 0.0
  %10711 = vmatprep.subr.mxu0 0.0
  %10712 = vmatpush1.msra.mxu0 0.0
  %10713 = vmatprep.subr.mxu0 0.0
  %10714 = vmatpush1.msra.mxu0 0.0
  %10715 = vmatprep.subr.mxu0 0.0
  %10716 = vmatpush1.msra.mxu0 0.0
  %10717 = vmatprep.subr.mxu0 0.0
  %10718 = vmatpush1.msra.mxu0 0.0
  %10719 = vmatprep.subr.mxu0 0.0
  %10720 = vmatpush1.msra.mxu0 0.0
  %10721 = vmatprep.subr.mxu0 0.0
  %10722 = vmatpush1.msra.mxu0 0.0
  %10723 = vmatprep.subr.mxu0 0.0
  %10724 = vmatpush1.msra.mxu0 0.0
  %10725 = vmatprep.subr.mxu0 0.0
  %10726 = vmatpush1.msra.mxu0 0.0
  %10727 = vmatprep.subr.mxu0 0.0
  %10728 = vmatpush1.msra.mxu0 0.0
  %10729 = vmatprep.mubr.f32.mxu0 0.0
  %10730 = vmatmul.mubr.f32.gmra.mrb[0].mxu0 %v10618
  %v10731 = vpop.f32.mrb[0].mxu0
  %v10732 = vadd.f32 %v57, %v10731
  %v10733 = vpop.f32.mrb[0].mxu0
  %10734 = vmatprep.mubr.f32.mxu0 0.0
  %10735 = vmatmul.mubr.f32.gmra.mrb[0].mxu0 %v10621
  %v10736 = vpop.f32.mrb[0].mxu0
  %v10737 = vadd.f32 %v57, %v10736
  %v10738 = vpop.f32.mrb[0].mxu0
  %10739 = vmatprep.mubr.f32.mxu0 0.0
  %10740 = vmatmul.mubr.f32.gmra.mrb[0].mxu0 %v10624
  %v10741 = vpop.f32.mrb[0].mxu0
  %v10742 = vadd.f32 %v57, %v10741
  %v10743 = vpop.f32.mrb[0].mxu0
  %10744 = vmatprep.mubr.f32.mxu0 0.0
  %10745 = vmatmul.mubr.f32.gmra.mrb[0].mxu0 %v10627
  %v10746 = vpop.f32.mrb[0].mxu0
  %v10747 = vadd.f32 %v57, %v10746
  %v10748 = vpop.f32.mrb[0].mxu0
  %10749 = vmatprep.mubr.f32.mxu0 0.0
  %10750 = vmatmul.mubr.f32.gmra.mrb[0].mxu0 %v10630
  %v10751 = vpop.f32.mrb[0].mxu0
  %v10752 = vadd.f32 %v57, %v10751
  %v10753 = vpop.f32.mrb[0].mxu0
  %10754 = vmatprep.mubr.f32.mxu0 0.0
  %10755 = vmatmul.mubr.f32.gmra.mrb[0].mxu0 %v10633
  %v10756 = vpop.f32.mrb[0].mxu0
  %v10757 = vadd.f32 %v57, %v10756
  %v10758 = vpop.f32.mrb[0].mxu0
  %10759 = vmatprep.mubr.f32.mxu0 0.0
  %10760 = vmatmul.mubr.f32.gmra.mrb[0].mxu0 %v10636
  %v10761 = vpop.f32.mrb[0].mxu0
  %v10762 = vadd.f32 %v57, %v10761
  %v10763 = vpop.f32.mrb[0].mxu0
  %10764 = vmatprep.mubr.f32.mxu0 0.0
  %10765 = vmatmul.mubr.f32.gmra.mrb[0].mxu0 %v10639
  %v10766 = vpop.f32.mrb[0].mxu0
  %v10767 = vadd.f32 %v57, %v10766
  %v10768 = vpop.f32.mrb[0].mxu0
  %10769 = vmatprep.mubr.f32.mxu0 0.0
  %10770 = vmatmul.mubr.f32.gmra.mrb[0].mxu0 %v10642
  %v10771 = vpop.f32.mrb[0].mxu0
  %v10772 = vadd.f32 %v57, %v10771
  %v10773 = vpop.f32.mrb[0].mxu0
  %10774 = vmatprep.mubr.f32.mxu0 0.0
  %10775 = vmatmul.mubr.f32.gmra.mrb[0].mxu0 %v10645
  %v10776 = vpop.f32.mrb[0].mxu0
  %v10777 = vadd.f32 %v57, %v10776
  %v10778 = vpop.f32.mrb[0].mxu0
  %10779 = vmatprep.mubr.f32.mxu0 0.0
  %10780 = vmatmul.mubr.f32.gmra.mrb[0].mxu0 %v10648
  %v10781 = vpop.f32.mrb[0].mxu0
  %v10782 = vadd.f32 %v57, %v10781
  %v10783 = vpop.f32.mrb[0].mxu0
  %10784 = vmatprep.mubr.f32.mxu0 0.0
  %10785 = vmatmul.mubr.f32.gmra.mrb[0].mxu0 %v10651
  %v10786 = vpop.f32.mrb[0].mxu0
  %v10787 = vadd.f32 %v57, %v10786
  %v10788 = vpop.f32.mrb[0].mxu0
  %10789 = vmatprep.mubr.f32.mxu0 0.0
  %10790 = vmatmul.mubr.f32.gmra.mrb[0].mxu0 %v10654
  %v10791 = vpop.f32.mrb[0].mxu0
  %v10792 = vadd.f32 %v57, %v10791
  %v10793 = vpop.f32.mrb[0].mxu0
  %10794 = vmatprep.mubr.f32.mxu0 0.0
  %10795 = vmatmul.mubr.f32.gmra.mrb[0].mxu0 %v10657
  %v10796 = vpop.f32.mrb[0].mxu0
  %v10797 = vadd.f32 %v57, %v10796
  %v10798 = vpop.f32.mrb[0].mxu0
  %10799 = vmatprep.mubr.f32.mxu0 0.0
  %10800 = vmatmul.mubr.f32.gmra.mrb[0].mxu0 %v10660
  %v10801 = vpop.f32.mrb[0].mxu0
  %v10802 = vadd.f32 %v57, %v10801
  %v10803 = vpop.f32.mrb[0].mxu0
  %10804 = vmatprep.mubr.f32.mxu0 0.0
  %10805 = vmatmul.mubr.f32.gmra.mrb[0].mxu0 %v10663
  %v10806 = vpop.f32.mrb[0].mxu0
  %v10807 = vadd.f32 %v57, %v10806
  %v10808 = vpop.f32.mrb[0].mxu0
  %10809 = vdwg.mxu0
  %v10810 = vmax.f32 %v10732, 0.0
  %v10811 = vmax.f32 %v10737, 0.0
  %v10812 = vmax.f32 %v10742, 0.0
  %v10813 = vmax.f32 %v10747, 0.0
  %v10814 = vmax.f32 %v10752, 0.0
  %v10815 = vmax.f32 %v10757, 0.0
  %v10816 = vmax.f32 %v10762, 0.0
  %v10817 = vmax.f32 %v10767, 0.0
  %v10818 = vmax.f32 %v10772, 0.0
  %v10819 = vmax.f32 %v10777, 0.0
  %v10820 = vmax.f32 %v10782, 0.0
  %v10821 = vmax.f32 %v10787, 0.0
  %v10822 = vmax.f32 %v10792, 0.0
  %v10823 = vmax.f32 %v10797, 0.0
  %v10824 = vmax.f32 %v10802, 0.0
  %v10825 = vmax.f32 %v10807, 0.0
  %s10826 = scalar_lea.vmem %s3, 384
  %v10827 = vld [vmem:[%s10826] sm:$0xff]
  %v10828 = vld [vmem:[%s10826 + $0x8] sm:$0x3]
  %v10830 = vsel %vm504, %v10810, 0
  %v10833 = vsel %vm504, %v10811, 0
  %v10836 = vsel %vm504, %v10812, 0
  %v10839 = vsel %vm504, %v10813, 0
  %v10842 = vsel %vm504, %v10814, 0
  %v10845 = vsel %vm504, %v10815, 0
  %v10848 = vsel %vm504, %v10816, 0
  %v10851 = vsel %vm504, %v10817, 0
  %v10854 = vsel %vm504, %v10818, 0
  %v10857 = vsel %vm504, %v10819, 0
  %v10860 = vsel %vm504, %v10820, 0
  %v10863 = vsel %vm504, %v10821, 0
  %v10866 = vsel %vm504, %v10822, 0
  %v10869 = vsel %vm504, %v10823, 0
  %v10872 = vsel %vm504, %v10824, 0
  %v10875 = vsel %vm504, %v10825, 0
  %v10878 = vsel %vm553, %v10828, 0
  %10880 = vmatprep.subr.mxu0 0.0
  %10881 = vmatpush1.msra.mxu0 %v10827
  %10882 = vmatprep.subr.mxu0 0.0
  %10883 = vmatpush1.msra.mxu0 %v10878
  %10884 = vmatprep.subr.mxu0 0.0
  %10885 = vmatpush1.msra.mxu0 0.0
  %10886 = vmatprep.subr.mxu0 0.0
  %10887 = vmatpush1.msra.mxu0 0.0
  %10888 = vmatprep.subr.mxu0 0.0
  %10889 = vmatpush1.msra.mxu0 0.0
  %10890 = vmatprep.subr.mxu0 0.0
  %10891 = vmatpush1.msra.mxu0 0.0
  %10892 = vmatprep.subr.mxu0 0.0
  %10893 = vmatpush1.msra.mxu0 0.0
  %10894 = vmatprep.subr.mxu0 0.0
  %10895 = vmatpush1.msra.mxu0 0.0
  %10896 = vmatprep.subr.mxu0 0.0
  %10897 = vmatpush1.msra.mxu0 0.0
  %10898 = vmatprep.subr.mxu0 0.0
  %10899 = vmatpush1.msra.mxu0 0.0
  %10900 = vmatprep.subr.mxu0 0.0
  %10901 = vmatpush1.msra.mxu0 0.0
  %10902 = vmatprep.subr.mxu0 0.0
  %10903 = vmatpush1.msra.mxu0 0.0
  %10904 = vmatprep.subr.mxu0 0.0
  %10905 = vmatpush1.msra.mxu0 0.0
  %10906 = vmatprep.subr.mxu0 0.0
  %10907 = vmatpush1.msra.mxu0 0.0
  %10908 = vmatprep.subr.mxu0 0.0
  %10909 = vmatpush1.msra.mxu0 0.0
  %10910 = vmatprep.subr.mxu0 0.0
  %10911 = vmatpush1.msra.mxu0 0.0
  %10912 = vmatprep.subr.mxu0 0.0
  %10913 = vmatpush1.msra.mxu0 0.0
  %10914 = vmatprep.subr.mxu0 0.0
  %10915 = vmatpush1.msra.mxu0 0.0
  %10916 = vmatprep.subr.mxu0 0.0
  %10917 = vmatpush1.msra.mxu0 0.0
  %10918 = vmatprep.subr.mxu0 0.0
  %10919 = vmatpush1.msra.mxu0 0.0
  %10920 = vmatprep.subr.mxu0 0.0
  %10921 = vmatpush1.msra.mxu0 0.0
  %10922 = vmatprep.subr.mxu0 0.0
  %10923 = vmatpush1.msra.mxu0 0.0
  %10924 = vmatprep.subr.mxu0 0.0
  %10925 = vmatpush1.msra.mxu0 0.0
  %10926 = vmatprep.subr.mxu0 0.0
  %10927 = vmatpush1.msra.mxu0 0.0
  %10928 = vmatprep.subr.mxu0 0.0
  %10929 = vmatpush1.msra.mxu0 0.0
  %10930 = vmatprep.subr.mxu0 0.0
  %10931 = vmatpush1.msra.mxu0 0.0
  %10932 = vmatprep.subr.mxu0 0.0
  %10933 = vmatpush1.msra.mxu0 0.0
  %10934 = vmatprep.subr.mxu0 0.0
  %10935 = vmatpush1.msra.mxu0 0.0
  %10936 = vmatprep.subr.mxu0 0.0
  %10937 = vmatpush1.msra.mxu0 0.0
  %10938 = vmatprep.subr.mxu0 0.0
  %10939 = vmatpush1.msra.mxu0 0.0
  %10940 = vmatprep.subr.mxu0 0.0
  %10941 = vmatpush1.msra.mxu0 0.0
  %10942 = vmatprep.subr.mxu0 0.0
  %10943 = vmatpush1.msra.mxu0 0.0
  %10944 = vmatprep.mubr.f32.mxu0 0.0
  %10945 = vmatmul.mubr.f32.gmra.mrb[0].mxu0 %v10830
  %v10946 = vpop.f32.mrb[0].mxu0
  %v10947 = vadd.f32 0.0, %v10946
  %v10948 = vpop.f32.mrb[0].mxu0
  %10949 = vmatprep.mubr.f32.mxu0 0.0
  %10950 = vmatmul.mubr.f32.gmra.mrb[0].mxu0 %v10833
  %v10951 = vpop.f32.mrb[0].mxu0
  %v10952 = vadd.f32 0.0, %v10951
  %v10953 = vpop.f32.mrb[0].mxu0
  %10954 = vmatprep.mubr.f32.mxu0 0.0
  %10955 = vmatmul.mubr.f32.gmra.mrb[0].mxu0 %v10836
  %v10956 = vpop.f32.mrb[0].mxu0
  %v10957 = vadd.f32 0.0, %v10956
  %v10958 = vpop.f32.mrb[0].mxu0
  %10959 = vmatprep.mubr.f32.mxu0 0.0
  %10960 = vmatmul.mubr.f32.gmra.mrb[0].mxu0 %v10839
  %v10961 = vpop.f32.mrb[0].mxu0
  %v10962 = vadd.f32 0.0, %v10961
  %v10963 = vpop.f32.mrb[0].mxu0
  %10964 = vmatprep.mubr.f32.mxu0 0.0
  %10965 = vmatmul.mubr.f32.gmra.mrb[0].mxu0 %v10842
  %v10966 = vpop.f32.mrb[0].mxu0
  %v10967 = vadd.f32 0.0, %v10966
  %v10968 = vpop.f32.mrb[0].mxu0
  %10969 = vmatprep.mubr.f32.mxu0 0.0
  %10970 = vmatmul.mubr.f32.gmra.mrb[0].mxu0 %v10845
  %v10971 = vpop.f32.mrb[0].mxu0
  %v10972 = vadd.f32 0.0, %v10971
  %v10973 = vpop.f32.mrb[0].mxu0
  %10974 = vmatprep.mubr.f32.mxu0 0.0
  %10975 = vmatmul.mubr.f32.gmra.mrb[0].mxu0 %v10848
  %v10976 = vpop.f32.mrb[0].mxu0
  %v10977 = vadd.f32 0.0, %v10976
  %v10978 = vpop.f32.mrb[0].mxu0
  %10979 = vmatprep.mubr.f32.mxu0 0.0
  %10980 = vmatmul.mubr.f32.gmra.mrb[0].mxu0 %v10851
  %v10981 = vpop.f32.mrb[0].mxu0
  %v10982 = vadd.f32 0.0, %v10981
  %v10983 = vpop.f32.mrb[0].mxu0
  %10984 = vmatprep.mubr.f32.mxu0 0.0
  %10985 = vmatmul.mubr.f32.gmra.mrb[0].mxu0 %v10854
  %v10986 = vpop.f32.mrb[0].mxu0
  %v10987 = vadd.f32 0.0, %v10986
  %v10988 = vpop.f32.mrb[0].mxu0
  %10989 = vmatprep.mubr.f32.mxu0 0.0
  %10990 = vmatmul.mubr.f32.gmra.mrb[0].mxu0 %v10857
  %v10991 = vpop.f32.mrb[0].mxu0
  %v10992 = vadd.f32 0.0, %v10991
  %v10993 = vpop.f32.mrb[0].mxu0
  %10994 = vmatprep.mubr.f32.mxu0 0.0
  %10995 = vmatmul.mubr.f32.gmra.mrb[0].mxu0 %v10860
  %v10996 = vpop.f32.mrb[0].mxu0
  %v10997 = vadd.f32 0.0, %v10996
  %v10998 = vpop.f32.mrb[0].mxu0
  %10999 = vmatprep.mubr.f32.mxu0 0.0
  %11000 = vmatmul.mubr.f32.gmra.mrb[0].mxu0 %v10863
  %v11001 = vpop.f32.mrb[0].mxu0
  %v11002 = vadd.f32 0.0, %v11001
  %v11003 = vpop.f32.mrb[0].mxu0
  %11004 = vmatprep.mubr.f32.mxu0 0.0
  %11005 = vmatmul.mubr.f32.gmra.mrb[0].mxu0 %v10866
  %v11006 = vpop.f32.mrb[0].mxu0
  %v11007 = vadd.f32 0.0, %v11006
  %v11008 = vpop.f32.mrb[0].mxu0
  %11009 = vmatprep.mubr.f32.mxu0 0.0
  %11010 = vmatmul.mubr.f32.gmra.mrb[0].mxu0 %v10869
  %v11011 = vpop.f32.mrb[0].mxu0
  %v11012 = vadd.f32 0.0, %v11011
  %v11013 = vpop.f32.mrb[0].mxu0
  %11014 = vmatprep.mubr.f32.mxu0 0.0
  %11015 = vmatmul.mubr.f32.gmra.mrb[0].mxu0 %v10872
  %v11016 = vpop.f32.mrb[0].mxu0
  %v11017 = vadd.f32 0.0, %v11016
  %v11018 = vpop.f32.mrb[0].mxu0
  %11019 = vmatprep.mubr.f32.mxu0 0.0
  %11020 = vmatmul.mubr.f32.gmra.mrb[0].mxu0 %v10875
  %v11021 = vpop.f32.mrb[0].mxu0
  %v11022 = vadd.f32 0.0, %v11021
  %v11023 = vpop.f32.mrb[0].mxu0
  %11024 = vdwg.mxu0
  %v11025 = vadd.f32 %v10584, %v10947
  %v11026 = vadd.f32 %v10585, %v10952
  %v11027 = vadd.f32 %v10586, %v10957
  %v11028 = vadd.f32 %v10587, %v10962
  %v11029 = vadd.f32 %v10588, %v10967
  %v11030 = vadd.f32 %v10589, %v10972
  %v11031 = vadd.f32 %v10590, %v10977
  %v11032 = vadd.f32 %v10591, %v10982
  %v11033 = vadd.f32 %v10592, %v10987
  %v11034 = vadd.f32 %v10593, %v10992
  %v11035 = vadd.f32 %v10594, %v10997
  %v11036 = vadd.f32 %v10595, %v11002
  %v11037 = vadd.f32 %v10596, %v11007
  %v11038 = vadd.f32 %v10597, %v11012
  %v11039 = vadd.f32 %v10598, %v11017
  %v11040 = vadd.f32 %v10599, %v11022
  %v11041 = vld [vmem:[%s4] sm:$0x1]
  %v11043 = vlaneseq
  %v11044 = vshrl.u32 %v11043, 7
  %v11045 = vsub.s32 0, %v11044
  %v11046 = vrot.slane %v11041, %v11045
  %v11048 = vadd.f32 %v11025, %v11046
  %v11049 = vadd.f32 %v11026, %v11046
  %v11050 = vadd.f32 %v11027, %v11046
  %v11051 = vadd.f32 %v11028, %v11046
  %v11052 = vadd.f32 %v11029, %v11046
  %v11053 = vadd.f32 %v11030, %v11046
  %v11054 = vadd.f32 %v11031, %v11046
  %v11055 = vadd.f32 %v11032, %v11046
  %v11056 = vadd.f32 %v11033, %v11046
  %v11057 = vadd.f32 %v11034, %v11046
  %v11058 = vadd.f32 %v11035, %v11046
  %v11059 = vadd.f32 %v11036, %v11046
  %v11060 = vadd.f32 %v11037, %v11046
  %v11061 = vadd.f32 %v11038, %v11046
  %v11062 = vadd.f32 %v11039, %v11046
  %v11063 = vadd.f32 %v11040, %v11046
  %v11064 = vmax.f32 %v11048, 0.0
  %v11065 = vmax.f32 %v11049, 0.0
  %v11066 = vmax.f32 %v11050, 0.0
  %v11067 = vmax.f32 %v11051, 0.0
  %v11068 = vmax.f32 %v11052, 0.0
  %v11069 = vmax.f32 %v11053, 0.0
  %v11070 = vmax.f32 %v11054, 0.0
  %v11071 = vmax.f32 %v11055, 0.0
  %v11072 = vmax.f32 %v11056, 0.0
  %v11073 = vmax.f32 %v11057, 0.0
  %v11074 = vmax.f32 %v11058, 0.0
  %v11075 = vmax.f32 %v11059, 0.0
  %v11076 = vmax.f32 %v11060, 0.0
  %v11077 = vmax.f32 %v11061, 0.0
  %v11078 = vmax.f32 %v11062, 0.0
  %v11079 = vmax.f32 %v11063, 0.0
  %v11080 = vld [vmem:[%s5] sm:$0xff]
  %v11081 = vld [vmem:[%s5 + $0x8] sm:$0xff]
  %v11082 = vld [vmem:[%s5 + $0x10] sm:$0xf]
  %s11083 = scalar_lea.vmem %s5, 24
  %v11084 = vld [vmem:[%s11083] sm:$0xff]
  %v11085 = vld [vmem:[%s11083 + $0x8] sm:$0xff]
  %v11086 = vld [vmem:[%s11083 + $0x10] sm:$0xf]
  %vm11087 = vcmask 162816
  %v11089 = vsel %vm11087, %v11065, 0
  %vm11091 = vcmask 1043456
  %v11093 = vsel %vm11091, %v11086, 0
  %11095 = vmatprep.subr.mxu0 0.0
  %11096 = vmatpush1.msra.mxu0 %v11084
  %11097 = vmatprep.subr.mxu0 0.0
  %11098 = vmatpush1.msra.mxu0 %v11085
  %11099 = vmatprep.subr.mxu0 0.0
  %11100 = vmatpush1.msra.mxu0 %v11093
  %11101 = vmatprep.subr.mxu0 0.0
  %11102 = vmatpush1.msra.mxu0 0.0
  %11103 = vmatprep.subr.mxu0 0.0
  %11104 = vmatpush1.msra.mxu0 0.0
  %11105 = vmatprep.subr.mxu0 0.0
  %11106 = vmatpush1.msra.mxu0 0.0
  %11107 = vmatprep.subr.mxu0 0.0
  %11108 = vmatpush1.msra.mxu0 0.0
  %11109 = vmatprep.subr.mxu0 0.0
  %11110 = vmatpush1.msra.mxu0 0.0
  %11111 = vmatprep.subr.mxu0 0.0
  %11112 = vmatpush1.msra.mxu0 0.0
  %11113 = vmatprep.subr.mxu0 0.0
  %11114 = vmatpush1.msra.mxu0 0.0
  %11115 = vmatprep.subr.mxu0 0.0
  %11116 = vmatpush1.msra.mxu0 0.0
  %11117 = vmatprep.subr.mxu0 0.0
  %11118 = vmatpush1.msra.mxu0 0.0
  %11119 = vmatprep.subr.mxu0 0.0
  %11120 = vmatpush1.msra.mxu0 0.0
  %11121 = vmatprep.subr.mxu0 0.0
  %11122 = vmatpush1.msra.mxu0 0.0
  %11123 = vmatprep.subr.mxu0 0.0
  %11124 = vmatpush1.msra.mxu0 0.0
  %11125 = vmatprep.subr.mxu0 0.0
  %11126 = vmatpush1.msra.mxu0 0.0
  %11127 = vmatprep.subr.mxu0 0.0
  %11128 = vmatpush1.msra.mxu0 0.0
  %11129 = vmatprep.subr.mxu0 0.0
  %11130 = vmatpush1.msra.mxu0 0.0
  %11131 = vmatprep.subr.mxu0 0.0
  %11132 = vmatpush1.msra.mxu0 0.0
  %11133 = vmatprep.subr.mxu0 0.0
  %11134 = vmatpush1.msra.mxu0 0.0
  %11135 = vmatprep.subr.mxu0 0.0
  %11136 = vmatpush1.msra.mxu0 0.0
  %11137 = vmatprep.subr.mxu0 0.0
  %11138 = vmatpush1.msra.mxu0 0.0
  %11139 = vmatprep.subr.mxu0 0.0
  %11140 = vmatpush1.msra.mxu0 0.0
  %11141 = vmatprep.subr.mxu0 0.0
  %11142 = vmatpush1.msra.mxu0 0.0
  %11143 = vmatprep.subr.mxu0 0.0
  %11144 = vmatpush1.msra.mxu0 0.0
  %11145 = vmatprep.subr.mxu0 0.0
  %11146 = vmatpush1.msra.mxu0 0.0
  %11147 = vmatprep.subr.mxu0 0.0
  %11148 = vmatpush1.msra.mxu0 0.0
  %11149 = vmatprep.subr.mxu0 0.0
  %11150 = vmatpush1.msra.mxu0 0.0
  %11151 = vmatprep.subr.mxu0 0.0
  %11152 = vmatpush1.msra.mxu0 0.0
  %11153 = vmatprep.subr.mxu0 0.0
  %11154 = vmatpush1.msra.mxu0 0.0
  %11155 = vmatprep.subr.mxu0 0.0
  %11156 = vmatpush1.msra.mxu0 0.0
  %11157 = vmatprep.subr.mxu0 0.0
  %11158 = vmatpush1.msra.mxu0 0.0
  %11159 = vmatprep.mubr.f32.mxu0 0.0
  %11160 = vmatmul.mubr.f32.gmra.mrb[0].mxu0 %v11089
  %v11161 = vpop.f32.mrb[0].mxu0
  %v11162 = vadd.f32 0.0, %v11161
  %v11163 = vpop.f32.mrb[0].mxu0
  %11164 = vdwg.mxu0
  %v11166 = vsel %vm11087, %v11064, 0
  %v11169 = vsel %vm11091, %v11082, 0
  %11171 = vmatprep.subr.mxu0 0.0
  %11172 = vmatpush1.msra.mxu0 %v11080
  %11173 = vmatprep.subr.mxu0 0.0
  %11174 = vmatpush1.msra.mxu0 %v11081
  %11175 = vmatprep.subr.mxu0 0.0
  %11176 = vmatpush1.msra.mxu0 %v11169
  %11177 = vmatprep.subr.mxu0 0.0
  %11178 = vmatpush1.msra.mxu0 0.0
  %11179 = vmatprep.subr.mxu0 0.0
  %11180 = vmatpush1.msra.mxu0 0.0
  %11181 = vmatprep.subr.mxu0 0.0
  %11182 = vmatpush1.msra.mxu0 0.0
  %11183 = vmatprep.subr.mxu0 0.0
  %11184 = vmatpush1.msra.mxu0 0.0
  %11185 = vmatprep.subr.mxu0 0.0
  %11186 = vmatpush1.msra.mxu0 0.0
  %11187 = vmatprep.subr.mxu0 0.0
  %11188 = vmatpush1.msra.mxu0 0.0
  %11189 = vmatprep.subr.mxu0 0.0
  %11190 = vmatpush1.msra.mxu0 0.0
  %11191 = vmatprep.subr.mxu0 0.0
  %11192 = vmatpush1.msra.mxu0 0.0
  %11193 = vmatprep.subr.mxu0 0.0
  %11194 = vmatpush1.msra.mxu0 0.0
  %11195 = vmatprep.subr.mxu0 0.0
  %11196 = vmatpush1.msra.mxu0 0.0
  %11197 = vmatprep.subr.mxu0 0.0
  %11198 = vmatpush1.msra.mxu0 0.0
  %11199 = vmatprep.subr.mxu0 0.0
  %11200 = vmatpush1.msra.mxu0 0.0
  %11201 = vmatprep.subr.mxu0 0.0
  %11202 = vmatpush1.msra.mxu0 0.0
  %11203 = vmatprep.subr.mxu0 0.0
  %11204 = vmatpush1.msra.mxu0 0.0
  %11205 = vmatprep.subr.mxu0 0.0
  %11206 = vmatpush1.msra.mxu0 0.0
  %11207 = vmatprep.subr.mxu0 0.0
  %11208 = vmatpush1.msra.mxu0 0.0
  %11209 = vmatprep.subr.mxu0 0.0
  %11210 = vmatpush1.msra.mxu0 0.0
  %11211 = vmatprep.subr.mxu0 0.0
  %11212 = vmatpush1.msra.mxu0 0.0
  %11213 = vmatprep.subr.mxu0 0.0
  %11214 = vmatpush1.msra.mxu0 0.0
  %11215 = vmatprep.subr.mxu0 0.0
  %11216 = vmatpush1.msra.mxu0 0.0
  %11217 = vmatprep.subr.mxu0 0.0
  %11218 = vmatpush1.msra.mxu0 0.0
  %11219 = vmatprep.subr.mxu0 0.0
  %11220 = vmatpush1.msra.mxu0 0.0
  %11221 = vmatprep.subr.mxu0 0.0
  %11222 = vmatpush1.msra.mxu0 0.0
  %11223 = vmatprep.subr.mxu0 0.0
  %11224 = vmatpush1.msra.mxu0 0.0
  %11225 = vmatprep.subr.mxu0 0.0
  %11226 = vmatpush1.msra.mxu0 0.0
  %11227 = vmatprep.subr.mxu0 0.0
  %11228 = vmatpush1.msra.mxu0 0.0
  %11229 = vmatprep.subr.mxu0 0.0
  %11230 = vmatpush1.msra.mxu0 0.0
  %11231 = vmatprep.subr.mxu0 0.0
  %11232 = vmatpush1.msra.mxu0 0.0
  %11233 = vmatprep.subr.mxu0 0.0
  %11234 = vmatpush1.msra.mxu0 0.0
  %11235 = vmatprep.mubr.f32.mxu0 0.0
  %11236 = vmatmul.mubr.f32.gmra.mrb[0].mxu0 %v11166
  %v11237 = vpop.f32.mrb[0].mxu0
  %v11238 = vadd.f32 %v11162, %v11237
  %v11239 = vpop.f32.mrb[0].mxu0
  %11240 = vdwg.mxu0
  %s11241 = scalar_lea.vmem %s5, 48
  %v11242 = vld [vmem:[%s11241] sm:$0xff]
  %v11243 = vld [vmem:[%s11241 + $0x8] sm:$0xff]
  %v11244 = vld [vmem:[%s11241 + $0x10] sm:$0xf]
  %v11246 = vsel %vm11087, %v11066, 0
  %v11249 = vsel %vm11091, %v11244, 0
  %11251 = vmatprep.subr.mxu0 0.0
  %11252 = vmatpush1.msra.mxu0 %v11242
  %11253 = vmatprep.subr.mxu0 0.0
  %11254 = vmatpush1.msra.mxu0 %v11243
  %11255 = vmatprep.subr.mxu0 0.0
  %11256 = vmatpush1.msra.mxu0 %v11249
  %11257 = vmatprep.subr.mxu0 0.0
  %11258 = vmatpush1.msra.mxu0 0.0
  %11259 = vmatprep.subr.mxu0 0.0
  %11260 = vmatpush1.msra.mxu0 0.0
  %11261 = vmatprep.subr.mxu0 0.0
  %11262 = vmatpush1.msra.mxu0 0.0
  %11263 = vmatprep.subr.mxu0 0.0
  %11264 = vmatpush1.msra.mxu0 0.0
  %11265 = vmatprep.subr.mxu0 0.0
  %11266 = vmatpush1.msra.mxu0 0.0
  %11267 = vmatprep.subr.mxu0 0.0
  %11268 = vmatpush1.msra.mxu0 0.0
  %11269 = vmatprep.subr.mxu0 0.0
  %11270 = vmatpush1.msra.mxu0 0.0
  %11271 = vmatprep.subr.mxu0 0.0
  %11272 = vmatpush1.msra.mxu0 0.0
  %11273 = vmatprep.subr.mxu0 0.0
  %11274 = vmatpush1.msra.mxu0 0.0
  %11275 = vmatprep.subr.mxu0 0.0
  %11276 = vmatpush1.msra.mxu0 0.0
  %11277 = vmatprep.subr.mxu0 0.0
  %11278 = vmatpush1.msra.mxu0 0.0
  %11279 = vmatprep.subr.mxu0 0.0
  %11280 = vmatpush1.msra.mxu0 0.0
  %11281 = vmatprep.subr.mxu0 0.0
  %11282 = vmatpush1.msra.mxu0 0.0
  %11283 = vmatprep.subr.mxu0 0.0
  %11284 = vmatpush1.msra.mxu0 0.0
  %11285 = vmatprep.subr.mxu0 0.0
  %11286 = vmatpush1.msra.mxu0 0.0
  %11287 = vmatprep.subr.mxu0 0.0
  %11288 = vmatpush1.msra.mxu0 0.0
  %11289 = vmatprep.subr.mxu0 0.0
  %11290 = vmatpush1.msra.mxu0 0.0
  %11291 = vmatprep.subr.mxu0 0.0
  %11292 = vmatpush1.msra.mxu0 0.0
  %11293 = vmatprep.subr.mxu0 0.0
  %11294 = vmatpush1.msra.mxu0 0.0
  %11295 = vmatprep.subr.mxu0 0.0
  %11296 = vmatpush1.msra.mxu0 0.0
  %11297 = vmatprep.subr.mxu0 0.0
  %11298 = vmatpush1.msra.mxu0 0.0
  %11299 = vmatprep.subr.mxu0 0.0
  %11300 = vmatpush1.msra.mxu0 0.0
  %11301 = vmatprep.subr.mxu0 0.0
  %11302 = vmatpush1.msra.mxu0 0.0
  %11303 = vmatprep.subr.mxu0 0.0
  %11304 = vmatpush1.msra.mxu0 0.0
  %11305 = vmatprep.subr.mxu0 0.0
  %11306 = vmatpush1.msra.mxu0 0.0
  %11307 = vmatprep.subr.mxu0 0.0
  %11308 = vmatpush1.msra.mxu0 0.0
  %11309 = vmatprep.subr.mxu0 0.0
  %11310 = vmatpush1.msra.mxu0 0.0
  %11311 = vmatprep.subr.mxu0 0.0
  %11312 = vmatpush1.msra.mxu0 0.0
  %11313 = vmatprep.subr.mxu0 0.0
  %11314 = vmatpush1.msra.mxu0 0.0
  %11315 = vmatprep.mubr.f32.mxu0 0.0
  %11316 = vmatmul.mubr.f32.gmra.mrb[0].mxu0 %v11246
  %v11317 = vpop.f32.mrb[0].mxu0
  %v11318 = vadd.f32 0.0, %v11317
  %v11319 = vpop.f32.mrb[0].mxu0
  %11320 = vdwg.mxu0
  %v11321 = vadd.f32 %v11238, %v11318
  %s11322 = scalar_lea.vmem %s5, 72
  %v11323 = vld [vmem:[%s11322] sm:$0xff]
  %v11324 = vld [vmem:[%s11322 + $0x8] sm:$0xff]
  %v11325 = vld [vmem:[%s11322 + $0x10] sm:$0xf]
  %v11327 = vsel %vm11087, %v11067, 0
  %v11330 = vsel %vm11091, %v11325, 0
  %11332 = vmatprep.subr.mxu0 0.0
  %11333 = vmatpush1.msra.mxu0 %v11323
  %11334 = vmatprep.subr.mxu0 0.0
  %11335 = vmatpush1.msra.mxu0 %v11324
  %11336 = vmatprep.subr.mxu0 0.0
  %11337 = vmatpush1.msra.mxu0 %v11330
  %11338 = vmatprep.subr.mxu0 0.0
  %11339 = vmatpush1.msra.mxu0 0.0
  %11340 = vmatprep.subr.mxu0 0.0
  %11341 = vmatpush1.msra.mxu0 0.0
  %11342 = vmatprep.subr.mxu0 0.0
  %11343 = vmatpush1.msra.mxu0 0.0
  %11344 = vmatprep.subr.mxu0 0.0
  %11345 = vmatpush1.msra.mxu0 0.0
  %11346 = vmatprep.subr.mxu0 0.0
  %11347 = vmatpush1.msra.mxu0 0.0
  %11348 = vmatprep.subr.mxu0 0.0
  %11349 = vmatpush1.msra.mxu0 0.0
  %11350 = vmatprep.subr.mxu0 0.0
  %11351 = vmatpush1.msra.mxu0 0.0
  %11352 = vmatprep.subr.mxu0 0.0
  %11353 = vmatpush1.msra.mxu0 0.0
  %11354 = vmatprep.subr.mxu0 0.0
  %11355 = vmatpush1.msra.mxu0 0.0
  %11356 = vmatprep.subr.mxu0 0.0
  %11357 = vmatpush1.msra.mxu0 0.0
  %11358 = vmatprep.subr.mxu0 0.0
  %11359 = vmatpush1.msra.mxu0 0.0
  %11360 = vmatprep.subr.mxu0 0.0
  %11361 = vmatpush1.msra.mxu0 0.0
  %11362 = vmatprep.subr.mxu0 0.0
  %11363 = vmatpush1.msra.mxu0 0.0
  %11364 = vmatprep.subr.mxu0 0.0
  %11365 = vmatpush1.msra.mxu0 0.0
  %11366 = vmatprep.subr.mxu0 0.0
  %11367 = vmatpush1.msra.mxu0 0.0
  %11368 = vmatprep.subr.mxu0 0.0
  %11369 = vmatpush1.msra.mxu0 0.0
  %11370 = vmatprep.subr.mxu0 0.0
  %11371 = vmatpush1.msra.mxu0 0.0
  %11372 = vmatprep.subr.mxu0 0.0
  %11373 = vmatpush1.msra.mxu0 0.0
  %11374 = vmatprep.subr.mxu0 0.0
  %11375 = vmatpush1.msra.mxu0 0.0
  %11376 = vmatprep.subr.mxu0 0.0
  %11377 = vmatpush1.msra.mxu0 0.0
  %11378 = vmatprep.subr.mxu0 0.0
  %11379 = vmatpush1.msra.mxu0 0.0
  %11380 = vmatprep.subr.mxu0 0.0
  %11381 = vmatpush1.msra.mxu0 0.0
  %11382 = vmatprep.subr.mxu0 0.0
  %11383 = vmatpush1.msra.mxu0 0.0
  %11384 = vmatprep.subr.mxu0 0.0
  %11385 = vmatpush1.msra.mxu0 0.0
  %11386 = vmatprep.subr.mxu0 0.0
  %11387 = vmatpush1.msra.mxu0 0.0
  %11388 = vmatprep.subr.mxu0 0.0
  %11389 = vmatpush1.msra.mxu0 0.0
  %11390 = vmatprep.subr.mxu0 0.0
  %11391 = vmatpush1.msra.mxu0 0.0
  %11392 = vmatprep.subr.mxu0 0.0
  %11393 = vmatpush1.msra.mxu0 0.0
  %11394 = vmatprep.subr.mxu0 0.0
  %11395 = vmatpush1.msra.mxu0 0.0
  %11396 = vmatprep.mubr.f32.mxu0 0.0
  %11397 = vmatmul.mubr.f32.gmra.mrb[0].mxu0 %v11327
  %v11398 = vpop.f32.mrb[0].mxu0
  %v11399 = vadd.f32 0.0, %v11398
  %v11400 = vpop.f32.mrb[0].mxu0
  %11401 = vdwg.mxu0
  %v11402 = vadd.f32 %v11321, %v11399
  %s11403 = scalar_lea.vmem %s5, 96
  %v11404 = vld [vmem:[%s11403] sm:$0xff]
  %v11405 = vld [vmem:[%s11403 + $0x8] sm:$0xff]
  %v11406 = vld [vmem:[%s11403 + $0x10] sm:$0xf]
  %v11408 = vsel %vm11087, %v11068, 0
  %v11411 = vsel %vm11091, %v11406, 0
  %11413 = vmatprep.subr.mxu0 0.0
  %11414 = vmatpush1.msra.mxu0 %v11404
  %11415 = vmatprep.subr.mxu0 0.0
  %11416 = vmatpush1.msra.mxu0 %v11405
  %11417 = vmatprep.subr.mxu0 0.0
  %11418 = vmatpush1.msra.mxu0 %v11411
  %11419 = vmatprep.subr.mxu0 0.0
  %11420 = vmatpush1.msra.mxu0 0.0
  %11421 = vmatprep.subr.mxu0 0.0
  %11422 = vmatpush1.msra.mxu0 0.0
  %11423 = vmatprep.subr.mxu0 0.0
  %11424 = vmatpush1.msra.mxu0 0.0
  %11425 = vmatprep.subr.mxu0 0.0
  %11426 = vmatpush1.msra.mxu0 0.0
  %11427 = vmatprep.subr.mxu0 0.0
  %11428 = vmatpush1.msra.mxu0 0.0
  %11429 = vmatprep.subr.mxu0 0.0
  %11430 = vmatpush1.msra.mxu0 0.0
  %11431 = vmatprep.subr.mxu0 0.0
  %11432 = vmatpush1.msra.mxu0 0.0
  %11433 = vmatprep.subr.mxu0 0.0
  %11434 = vmatpush1.msra.mxu0 0.0
  %11435 = vmatprep.subr.mxu0 0.0
  %11436 = vmatpush1.msra.mxu0 0.0
  %11437 = vmatprep.subr.mxu0 0.0
  %11438 = vmatpush1.msra.mxu0 0.0
  %11439 = vmatprep.subr.mxu0 0.0
  %11440 = vmatpush1.msra.mxu0 0.0
  %11441 = vmatprep.subr.mxu0 0.0
  %11442 = vmatpush1.msra.mxu0 0.0
  %11443 = vmatprep.subr.mxu0 0.0
  %11444 = vmatpush1.msra.mxu0 0.0
  %11445 = vmatprep.subr.mxu0 0.0
  %11446 = vmatpush1.msra.mxu0 0.0
  %11447 = vmatprep.subr.mxu0 0.0
  %11448 = vmatpush1.msra.mxu0 0.0
  %11449 = vmatprep.subr.mxu0 0.0
  %11450 = vmatpush1.msra.mxu0 0.0
  %11451 = vmatprep.subr.mxu0 0.0
  %11452 = vmatpush1.msra.mxu0 0.0
  %11453 = vmatprep.subr.mxu0 0.0
  %11454 = vmatpush1.msra.mxu0 0.0
  %11455 = vmatprep.subr.mxu0 0.0
  %11456 = vmatpush1.msra.mxu0 0.0
  %11457 = vmatprep.subr.mxu0 0.0
  %11458 = vmatpush1.msra.mxu0 0.0
  %11459 = vmatprep.subr.mxu0 0.0
  %11460 = vmatpush1.msra.mxu0 0.0
  %11461 = vmatprep.subr.mxu0 0.0
  %11462 = vmatpush1.msra.mxu0 0.0
  %11463 = vmatprep.subr.mxu0 0.0
  %11464 = vmatpush1.msra.mxu0 0.0
  %11465 = vmatprep.subr.mxu0 0.0
  %11466 = vmatpush1.msra.mxu0 0.0
  %11467 = vmatprep.subr.mxu0 0.0
  %11468 = vmatpush1.msra.mxu0 0.0
  %11469 = vmatprep.subr.mxu0 0.0
  %11470 = vmatpush1.msra.mxu0 0.0
  %11471 = vmatprep.subr.mxu0 0.0
  %11472 = vmatpush1.msra.mxu0 0.0
  %11473 = vmatprep.subr.mxu0 0.0
  %11474 = vmatpush1.msra.mxu0 0.0
  %11475 = vmatprep.subr.mxu0 0.0
  %11476 = vmatpush1.msra.mxu0 0.0
  %11477 = vmatprep.mubr.f32.mxu0 0.0
  %11478 = vmatmul.mubr.f32.gmra.mrb[0].mxu0 %v11408
  %v11479 = vpop.f32.mrb[0].mxu0
  %v11480 = vadd.f32 0.0, %v11479
  %v11481 = vpop.f32.mrb[0].mxu0
  %11482 = vdwg.mxu0
  %v11483 = vadd.f32 %v11402, %v11480
  %s11484 = scalar_lea.vmem %s5, 120
  %v11485 = vld [vmem:[%s11484] sm:$0xff]
  %v11486 = vld [vmem:[%s11484 + $0x8] sm:$0xff]
  %v11487 = vld [vmem:[%s11484 + $0x10] sm:$0xf]
  %v11489 = vsel %vm11087, %v11069, 0
  %v11492 = vsel %vm11091, %v11487, 0
  %11494 = vmatprep.subr.mxu0 0.0
  %11495 = vmatpush1.msra.mxu0 %v11485
  %11496 = vmatprep.subr.mxu0 0.0
  %11497 = vmatpush1.msra.mxu0 %v11486
  %11498 = vmatprep.subr.mxu0 0.0
  %11499 = vmatpush1.msra.mxu0 %v11492
  %11500 = vmatprep.subr.mxu0 0.0
  %11501 = vmatpush1.msra.mxu0 0.0
  %11502 = vmatprep.subr.mxu0 0.0
  %11503 = vmatpush1.msra.mxu0 0.0
  %11504 = vmatprep.subr.mxu0 0.0
  %11505 = vmatpush1.msra.mxu0 0.0
  %11506 = vmatprep.subr.mxu0 0.0
  %11507 = vmatpush1.msra.mxu0 0.0
  %11508 = vmatprep.subr.mxu0 0.0
  %11509 = vmatpush1.msra.mxu0 0.0
  %11510 = vmatprep.subr.mxu0 0.0
  %11511 = vmatpush1.msra.mxu0 0.0
  %11512 = vmatprep.subr.mxu0 0.0
  %11513 = vmatpush1.msra.mxu0 0.0
  %11514 = vmatprep.subr.mxu0 0.0
  %11515 = vmatpush1.msra.mxu0 0.0
  %11516 = vmatprep.subr.mxu0 0.0
  %11517 = vmatpush1.msra.mxu0 0.0
  %11518 = vmatprep.subr.mxu0 0.0
  %11519 = vmatpush1.msra.mxu0 0.0
  %11520 = vmatprep.subr.mxu0 0.0
  %11521 = vmatpush1.msra.mxu0 0.0
  %11522 = vmatprep.subr.mxu0 0.0
  %11523 = vmatpush1.msra.mxu0 0.0
  %11524 = vmatprep.subr.mxu0 0.0
  %11525 = vmatpush1.msra.mxu0 0.0
  %11526 = vmatprep.subr.mxu0 0.0
  %11527 = vmatpush1.msra.mxu0 0.0
  %11528 = vmatprep.subr.mxu0 0.0
  %11529 = vmatpush1.msra.mxu0 0.0
  %11530 = vmatprep.subr.mxu0 0.0
  %11531 = vmatpush1.msra.mxu0 0.0
  %11532 = vmatprep.subr.mxu0 0.0
  %11533 = vmatpush1.msra.mxu0 0.0
  %11534 = vmatprep.subr.mxu0 0.0
  %11535 = vmatpush1.msra.mxu0 0.0
  %11536 = vmatprep.subr.mxu0 0.0
  %11537 = vmatpush1.msra.mxu0 0.0
  %11538 = vmatprep.subr.mxu0 0.0
  %11539 = vmatpush1.msra.mxu0 0.0
  %11540 = vmatprep.subr.mxu0 0.0
  %11541 = vmatpush1.msra.mxu0 0.0
  %11542 = vmatprep.subr.mxu0 0.0
  %11543 = vmatpush1.msra.mxu0 0.0
  %11544 = vmatprep.subr.mxu0 0.0
  %11545 = vmatpush1.msra.mxu0 0.0
  %11546 = vmatprep.subr.mxu0 0.0
  %11547 = vmatpush1.msra.mxu0 0.0
  %11548 = vmatprep.subr.mxu0 0.0
  %11549 = vmatpush1.msra.mxu0 0.0
  %11550 = vmatprep.subr.mxu0 0.0
  %11551 = vmatpush1.msra.mxu0 0.0
  %11552 = vmatprep.subr.mxu0 0.0
  %11553 = vmatpush1.msra.mxu0 0.0
  %11554 = vmatprep.subr.mxu0 0.0
  %11555 = vmatpush1.msra.mxu0 0.0
  %11556 = vmatprep.subr.mxu0 0.0
  %11557 = vmatpush1.msra.mxu0 0.0
  %11558 = vmatprep.mubr.f32.mxu0 0.0
  %11559 = vmatmul.mubr.f32.gmra.mrb[0].mxu0 %v11489
  %v11560 = vpop.f32.mrb[0].mxu0
  %v11561 = vadd.f32 0.0, %v11560
  %v11562 = vpop.f32.mrb[0].mxu0
  %11563 = vdwg.mxu0
  %v11564 = vadd.f32 %v11483, %v11561
  %s11565 = scalar_lea.vmem %s5, 144
  %v11566 = vld [vmem:[%s11565] sm:$0xff]
  %v11567 = vld [vmem:[%s11565 + $0x8] sm:$0xff]
  %v11568 = vld [vmem:[%s11565 + $0x10] sm:$0xf]
  %v11570 = vsel %vm11087, %v11070, 0
  %v11573 = vsel %vm11091, %v11568, 0
  %11575 = vmatprep.subr.mxu0 0.0
  %11576 = vmatpush1.msra.mxu0 %v11566
  %11577 = vmatprep.subr.mxu0 0.0
  %11578 = vmatpush1.msra.mxu0 %v11567
  %11579 = vmatprep.subr.mxu0 0.0
  %11580 = vmatpush1.msra.mxu0 %v11573
  %11581 = vmatprep.subr.mxu0 0.0
  %11582 = vmatpush1.msra.mxu0 0.0
  %11583 = vmatprep.subr.mxu0 0.0
  %11584 = vmatpush1.msra.mxu0 0.0
  %11585 = vmatprep.subr.mxu0 0.0
  %11586 = vmatpush1.msra.mxu0 0.0
  %11587 = vmatprep.subr.mxu0 0.0
  %11588 = vmatpush1.msra.mxu0 0.0
  %11589 = vmatprep.subr.mxu0 0.0
  %11590 = vmatpush1.msra.mxu0 0.0
  %11591 = vmatprep.subr.mxu0 0.0
  %11592 = vmatpush1.msra.mxu0 0.0
  %11593 = vmatprep.subr.mxu0 0.0
  %11594 = vmatpush1.msra.mxu0 0.0
  %11595 = vmatprep.subr.mxu0 0.0
  %11596 = vmatpush1.msra.mxu0 0.0
  %11597 = vmatprep.subr.mxu0 0.0
  %11598 = vmatpush1.msra.mxu0 0.0
  %11599 = vmatprep.subr.mxu0 0.0
  %11600 = vmatpush1.msra.mxu0 0.0
  %11601 = vmatprep.subr.mxu0 0.0
  %11602 = vmatpush1.msra.mxu0 0.0
  %11603 = vmatprep.subr.mxu0 0.0
  %11604 = vmatpush1.msra.mxu0 0.0
  %11605 = vmatprep.subr.mxu0 0.0
  %11606 = vmatpush1.msra.mxu0 0.0
  %11607 = vmatprep.subr.mxu0 0.0
  %11608 = vmatpush1.msra.mxu0 0.0
  %11609 = vmatprep.subr.mxu0 0.0
  %11610 = vmatpush1.msra.mxu0 0.0
  %11611 = vmatprep.subr.mxu0 0.0
  %11612 = vmatpush1.msra.mxu0 0.0
  %11613 = vmatprep.subr.mxu0 0.0
  %11614 = vmatpush1.msra.mxu0 0.0
  %11615 = vmatprep.subr.mxu0 0.0
  %11616 = vmatpush1.msra.mxu0 0.0
  %11617 = vmatprep.subr.mxu0 0.0
  %11618 = vmatpush1.msra.mxu0 0.0
  %11619 = vmatprep.subr.mxu0 0.0
  %11620 = vmatpush1.msra.mxu0 0.0
  %11621 = vmatprep.subr.mxu0 0.0
  %11622 = vmatpush1.msra.mxu0 0.0
  %11623 = vmatprep.subr.mxu0 0.0
  %11624 = vmatpush1.msra.mxu0 0.0
  %11625 = vmatprep.subr.mxu0 0.0
  %11626 = vmatpush1.msra.mxu0 0.0
  %11627 = vmatprep.subr.mxu0 0.0
  %11628 = vmatpush1.msra.mxu0 0.0
  %11629 = vmatprep.subr.mxu0 0.0
  %11630 = vmatpush1.msra.mxu0 0.0
  %11631 = vmatprep.subr.mxu0 0.0
  %11632 = vmatpush1.msra.mxu0 0.0
  %11633 = vmatprep.subr.mxu0 0.0
  %11634 = vmatpush1.msra.mxu0 0.0
  %11635 = vmatprep.subr.mxu0 0.0
  %11636 = vmatpush1.msra.mxu0 0.0
  %11637 = vmatprep.subr.mxu0 0.0
  %11638 = vmatpush1.msra.mxu0 0.0
  %11639 = vmatprep.mubr.f32.mxu0 0.0
  %11640 = vmatmul.mubr.f32.gmra.mrb[0].mxu0 %v11570
  %v11641 = vpop.f32.mrb[0].mxu0
  %v11642 = vadd.f32 0.0, %v11641
  %v11643 = vpop.f32.mrb[0].mxu0
  %11644 = vdwg.mxu0
  %v11645 = vadd.f32 %v11564, %v11642
  %s11646 = scalar_lea.vmem %s5, 168
  %v11647 = vld [vmem:[%s11646] sm:$0xff]
  %v11648 = vld [vmem:[%s11646 + $0x8] sm:$0xff]
  %v11649 = vld [vmem:[%s11646 + $0x10] sm:$0xf]
  %v11651 = vsel %vm11087, %v11071, 0
  %v11654 = vsel %vm11091, %v11649, 0
  %11656 = vmatprep.subr.mxu0 0.0
  %11657 = vmatpush1.msra.mxu0 %v11647
  %11658 = vmatprep.subr.mxu0 0.0
  %11659 = vmatpush1.msra.mxu0 %v11648
  %11660 = vmatprep.subr.mxu0 0.0
  %11661 = vmatpush1.msra.mxu0 %v11654
  %11662 = vmatprep.subr.mxu0 0.0
  %11663 = vmatpush1.msra.mxu0 0.0
  %11664 = vmatprep.subr.mxu0 0.0
  %11665 = vmatpush1.msra.mxu0 0.0
  %11666 = vmatprep.subr.mxu0 0.0
  %11667 = vmatpush1.msra.mxu0 0.0
  %11668 = vmatprep.subr.mxu0 0.0
  %11669 = vmatpush1.msra.mxu0 0.0
  %11670 = vmatprep.subr.mxu0 0.0
  %11671 = vmatpush1.msra.mxu0 0.0
  %11672 = vmatprep.subr.mxu0 0.0
  %11673 = vmatpush1.msra.mxu0 0.0
  %11674 = vmatprep.subr.mxu0 0.0
  %11675 = vmatpush1.msra.mxu0 0.0
  %11676 = vmatprep.subr.mxu0 0.0
  %11677 = vmatpush1.msra.mxu0 0.0
  %11678 = vmatprep.subr.mxu0 0.0
  %11679 = vmatpush1.msra.mxu0 0.0
  %11680 = vmatprep.subr.mxu0 0.0
  %11681 = vmatpush1.msra.mxu0 0.0
  %11682 = vmatprep.subr.mxu0 0.0
  %11683 = vmatpush1.msra.mxu0 0.0
  %11684 = vmatprep.subr.mxu0 0.0
  %11685 = vmatpush1.msra.mxu0 0.0
  %11686 = vmatprep.subr.mxu0 0.0
  %11687 = vmatpush1.msra.mxu0 0.0
  %11688 = vmatprep.subr.mxu0 0.0
  %11689 = vmatpush1.msra.mxu0 0.0
  %11690 = vmatprep.subr.mxu0 0.0
  %11691 = vmatpush1.msra.mxu0 0.0
  %11692 = vmatprep.subr.mxu0 0.0
  %11693 = vmatpush1.msra.mxu0 0.0
  %11694 = vmatprep.subr.mxu0 0.0
  %11695 = vmatpush1.msra.mxu0 0.0
  %11696 = vmatprep.subr.mxu0 0.0
  %11697 = vmatpush1.msra.mxu0 0.0
  %11698 = vmatprep.subr.mxu0 0.0
  %11699 = vmatpush1.msra.mxu0 0.0
  %11700 = vmatprep.subr.mxu0 0.0
  %11701 = vmatpush1.msra.mxu0 0.0
  %11702 = vmatprep.subr.mxu0 0.0
  %11703 = vmatpush1.msra.mxu0 0.0
  %11704 = vmatprep.subr.mxu0 0.0
  %11705 = vmatpush1.msra.mxu0 0.0
  %11706 = vmatprep.subr.mxu0 0.0
  %11707 = vmatpush1.msra.mxu0 0.0
  %11708 = vmatprep.subr.mxu0 0.0
  %11709 = vmatpush1.msra.mxu0 0.0
  %11710 = vmatprep.subr.mxu0 0.0
  %11711 = vmatpush1.msra.mxu0 0.0
  %11712 = vmatprep.subr.mxu0 0.0
  %11713 = vmatpush1.msra.mxu0 0.0
  %11714 = vmatprep.subr.mxu0 0.0
  %11715 = vmatpush1.msra.mxu0 0.0
  %11716 = vmatprep.subr.mxu0 0.0
  %11717 = vmatpush1.msra.mxu0 0.0
  %11718 = vmatprep.subr.mxu0 0.0
  %11719 = vmatpush1.msra.mxu0 0.0
  %11720 = vmatprep.mubr.f32.mxu0 0.0
  %11721 = vmatmul.mubr.f32.gmra.mrb[0].mxu0 %v11651
  %v11722 = vpop.f32.mrb[0].mxu0
  %v11723 = vadd.f32 0.0, %v11722
  %v11724 = vpop.f32.mrb[0].mxu0
  %11725 = vdwg.mxu0
  %v11726 = vadd.f32 %v11645, %v11723
  %s11727 = scalar_lea.vmem %s5, 192
  %v11728 = vld [vmem:[%s11727] sm:$0xff]
  %v11729 = vld [vmem:[%s11727 + $0x8] sm:$0xff]
  %v11730 = vld [vmem:[%s11727 + $0x10] sm:$0xf]
  %v11732 = vsel %vm11087, %v11072, 0
  %v11735 = vsel %vm11091, %v11730, 0
  %11737 = vmatprep.subr.mxu0 0.0
  %11738 = vmatpush1.msra.mxu0 %v11728
  %11739 = vmatprep.subr.mxu0 0.0
  %11740 = vmatpush1.msra.mxu0 %v11729
  %11741 = vmatprep.subr.mxu0 0.0
  %11742 = vmatpush1.msra.mxu0 %v11735
  %11743 = vmatprep.subr.mxu0 0.0
  %11744 = vmatpush1.msra.mxu0 0.0
  %11745 = vmatprep.subr.mxu0 0.0
  %11746 = vmatpush1.msra.mxu0 0.0
  %11747 = vmatprep.subr.mxu0 0.0
  %11748 = vmatpush1.msra.mxu0 0.0
  %11749 = vmatprep.subr.mxu0 0.0
  %11750 = vmatpush1.msra.mxu0 0.0
  %11751 = vmatprep.subr.mxu0 0.0
  %11752 = vmatpush1.msra.mxu0 0.0
  %11753 = vmatprep.subr.mxu0 0.0
  %11754 = vmatpush1.msra.mxu0 0.0
  %11755 = vmatprep.subr.mxu0 0.0
  %11756 = vmatpush1.msra.mxu0 0.0
  %11757 = vmatprep.subr.mxu0 0.0
  %11758 = vmatpush1.msra.mxu0 0.0
  %11759 = vmatprep.subr.mxu0 0.0
  %11760 = vmatpush1.msra.mxu0 0.0
  %11761 = vmatprep.subr.mxu0 0.0
  %11762 = vmatpush1.msra.mxu0 0.0
  %11763 = vmatprep.subr.mxu0 0.0
  %11764 = vmatpush1.msra.mxu0 0.0
  %11765 = vmatprep.subr.mxu0 0.0
  %11766 = vmatpush1.msra.mxu0 0.0
  %11767 = vmatprep.subr.mxu0 0.0
  %11768 = vmatpush1.msra.mxu0 0.0
  %11769 = vmatprep.subr.mxu0 0.0
  %11770 = vmatpush1.msra.mxu0 0.0
  %11771 = vmatprep.subr.mxu0 0.0
  %11772 = vmatpush1.msra.mxu0 0.0
  %11773 = vmatprep.subr.mxu0 0.0
  %11774 = vmatpush1.msra.mxu0 0.0
  %11775 = vmatprep.subr.mxu0 0.0
  %11776 = vmatpush1.msra.mxu0 0.0
  %11777 = vmatprep.subr.mxu0 0.0
  %11778 = vmatpush1.msra.mxu0 0.0
  %11779 = vmatprep.subr.mxu0 0.0
  %11780 = vmatpush1.msra.mxu0 0.0
  %11781 = vmatprep.subr.mxu0 0.0
  %11782 = vmatpush1.msra.mxu0 0.0
  %11783 = vmatprep.subr.mxu0 0.0
  %11784 = vmatpush1.msra.mxu0 0.0
  %11785 = vmatprep.subr.mxu0 0.0
  %11786 = vmatpush1.msra.mxu0 0.0
  %11787 = vmatprep.subr.mxu0 0.0
  %11788 = vmatpush1.msra.mxu0 0.0
  %11789 = vmatprep.subr.mxu0 0.0
  %11790 = vmatpush1.msra.mxu0 0.0
  %11791 = vmatprep.subr.mxu0 0.0
  %11792 = vmatpush1.msra.mxu0 0.0
  %11793 = vmatprep.subr.mxu0 0.0
  %11794 = vmatpush1.msra.mxu0 0.0
  %11795 = vmatprep.subr.mxu0 0.0
  %11796 = vmatpush1.msra.mxu0 0.0
  %11797 = vmatprep.subr.mxu0 0.0
  %11798 = vmatpush1.msra.mxu0 0.0
  %11799 = vmatprep.subr.mxu0 0.0
  %11800 = vmatpush1.msra.mxu0 0.0
  %11801 = vmatprep.mubr.f32.mxu0 0.0
  %11802 = vmatmul.mubr.f32.gmra.mrb[0].mxu0 %v11732
  %v11803 = vpop.f32.mrb[0].mxu0
  %v11804 = vadd.f32 0.0, %v11803
  %v11805 = vpop.f32.mrb[0].mxu0
  %11806 = vdwg.mxu0
  %v11807 = vadd.f32 %v11726, %v11804
  %s11808 = scalar_lea.vmem %s5, 216
  %v11809 = vld [vmem:[%s11808] sm:$0xff]
  %v11810 = vld [vmem:[%s11808 + $0x8] sm:$0xff]
  %v11811 = vld [vmem:[%s11808 + $0x10] sm:$0xf]
  %v11813 = vsel %vm11087, %v11073, 0
  %v11816 = vsel %vm11091, %v11811, 0
  %11818 = vmatprep.subr.mxu0 0.0
  %11819 = vmatpush1.msra.mxu0 %v11809
  %11820 = vmatprep.subr.mxu0 0.0
  %11821 = vmatpush1.msra.mxu0 %v11810
  %11822 = vmatprep.subr.mxu0 0.0
  %11823 = vmatpush1.msra.mxu0 %v11816
  %11824 = vmatprep.subr.mxu0 0.0
  %11825 = vmatpush1.msra.mxu0 0.0
  %11826 = vmatprep.subr.mxu0 0.0
  %11827 = vmatpush1.msra.mxu0 0.0
  %11828 = vmatprep.subr.mxu0 0.0
  %11829 = vmatpush1.msra.mxu0 0.0
  %11830 = vmatprep.subr.mxu0 0.0
  %11831 = vmatpush1.msra.mxu0 0.0
  %11832 = vmatprep.subr.mxu0 0.0
  %11833 = vmatpush1.msra.mxu0 0.0
  %11834 = vmatprep.subr.mxu0 0.0
  %11835 = vmatpush1.msra.mxu0 0.0
  %11836 = vmatprep.subr.mxu0 0.0
  %11837 = vmatpush1.msra.mxu0 0.0
  %11838 = vmatprep.subr.mxu0 0.0
  %11839 = vmatpush1.msra.mxu0 0.0
  %11840 = vmatprep.subr.mxu0 0.0
  %11841 = vmatpush1.msra.mxu0 0.0
  %11842 = vmatprep.subr.mxu0 0.0
  %11843 = vmatpush1.msra.mxu0 0.0
  %11844 = vmatprep.subr.mxu0 0.0
  %11845 = vmatpush1.msra.mxu0 0.0
  %11846 = vmatprep.subr.mxu0 0.0
  %11847 = vmatpush1.msra.mxu0 0.0
  %11848 = vmatprep.subr.mxu0 0.0
  %11849 = vmatpush1.msra.mxu0 0.0
  %11850 = vmatprep.subr.mxu0 0.0
  %11851 = vmatpush1.msra.mxu0 0.0
  %11852 = vmatprep.subr.mxu0 0.0
  %11853 = vmatpush1.msra.mxu0 0.0
  %11854 = vmatprep.subr.mxu0 0.0
  %11855 = vmatpush1.msra.mxu0 0.0
  %11856 = vmatprep.subr.mxu0 0.0
  %11857 = vmatpush1.msra.mxu0 0.0
  %11858 = vmatprep.subr.mxu0 0.0
  %11859 = vmatpush1.msra.mxu0 0.0
  %11860 = vmatprep.subr.mxu0 0.0
  %11861 = vmatpush1.msra.mxu0 0.0
  %11862 = vmatprep.subr.mxu0 0.0
  %11863 = vmatpush1.msra.mxu0 0.0
  %11864 = vmatprep.subr.mxu0 0.0
  %11865 = vmatpush1.msra.mxu0 0.0
  %11866 = vmatprep.subr.mxu0 0.0
  %11867 = vmatpush1.msra.mxu0 0.0
  %11868 = vmatprep.subr.mxu0 0.0
  %11869 = vmatpush1.msra.mxu0 0.0
  %11870 = vmatprep.subr.mxu0 0.0
  %11871 = vmatpush1.msra.mxu0 0.0
  %11872 = vmatprep.subr.mxu0 0.0
  %11873 = vmatpush1.msra.mxu0 0.0
  %11874 = vmatprep.subr.mxu0 0.0
  %11875 = vmatpush1.msra.mxu0 0.0
  %11876 = vmatprep.subr.mxu0 0.0
  %11877 = vmatpush1.msra.mxu0 0.0
  %11878 = vmatprep.subr.mxu0 0.0
  %11879 = vmatpush1.msra.mxu0 0.0
  %11880 = vmatprep.subr.mxu0 0.0
  %11881 = vmatpush1.msra.mxu0 0.0
  %11882 = vmatprep.mubr.f32.mxu0 0.0
  %11883 = vmatmul.mubr.f32.gmra.mrb[0].mxu0 %v11813
  %v11884 = vpop.f32.mrb[0].mxu0
  %v11885 = vadd.f32 0.0, %v11884
  %v11886 = vpop.f32.mrb[0].mxu0
  %11887 = vdwg.mxu0
  %v11888 = vadd.f32 %v11807, %v11885
  %s11889 = scalar_lea.vmem %s5, 240
  %v11890 = vld [vmem:[%s11889] sm:$0xff]
  %v11891 = vld [vmem:[%s11889 + $0x8] sm:$0xff]
  %v11892 = vld [vmem:[%s11889 + $0x10] sm:$0xf]
  %v11894 = vsel %vm11087, %v11074, 0
  %v11897 = vsel %vm11091, %v11892, 0
  %11899 = vmatprep.subr.mxu0 0.0
  %11900 = vmatpush1.msra.mxu0 %v11890
  %11901 = vmatprep.subr.mxu0 0.0
  %11902 = vmatpush1.msra.mxu0 %v11891
  %11903 = vmatprep.subr.mxu0 0.0
  %11904 = vmatpush1.msra.mxu0 %v11897
  %11905 = vmatprep.subr.mxu0 0.0
  %11906 = vmatpush1.msra.mxu0 0.0
  %11907 = vmatprep.subr.mxu0 0.0
  %11908 = vmatpush1.msra.mxu0 0.0
  %11909 = vmatprep.subr.mxu0 0.0
  %11910 = vmatpush1.msra.mxu0 0.0
  %11911 = vmatprep.subr.mxu0 0.0
  %11912 = vmatpush1.msra.mxu0 0.0
  %11913 = vmatprep.subr.mxu0 0.0
  %11914 = vmatpush1.msra.mxu0 0.0
  %11915 = vmatprep.subr.mxu0 0.0
  %11916 = vmatpush1.msra.mxu0 0.0
  %11917 = vmatprep.subr.mxu0 0.0
  %11918 = vmatpush1.msra.mxu0 0.0
  %11919 = vmatprep.subr.mxu0 0.0
  %11920 = vmatpush1.msra.mxu0 0.0
  %11921 = vmatprep.subr.mxu0 0.0
  %11922 = vmatpush1.msra.mxu0 0.0
  %11923 = vmatprep.subr.mxu0 0.0
  %11924 = vmatpush1.msra.mxu0 0.0
  %11925 = vmatprep.subr.mxu0 0.0
  %11926 = vmatpush1.msra.mxu0 0.0
  %11927 = vmatprep.subr.mxu0 0.0
  %11928 = vmatpush1.msra.mxu0 0.0
  %11929 = vmatprep.subr.mxu0 0.0
  %11930 = vmatpush1.msra.mxu0 0.0
  %11931 = vmatprep.subr.mxu0 0.0
  %11932 = vmatpush1.msra.mxu0 0.0
  %11933 = vmatprep.subr.mxu0 0.0
  %11934 = vmatpush1.msra.mxu0 0.0
  %11935 = vmatprep.subr.mxu0 0.0
  %11936 = vmatpush1.msra.mxu0 0.0
  %11937 = vmatprep.subr.mxu0 0.0
  %11938 = vmatpush1.msra.mxu0 0.0
  %11939 = vmatprep.subr.mxu0 0.0
  %11940 = vmatpush1.msra.mxu0 0.0
  %11941 = vmatprep.subr.mxu0 0.0
  %11942 = vmatpush1.msra.mxu0 0.0
  %11943 = vmatprep.subr.mxu0 0.0
  %11944 = vmatpush1.msra.mxu0 0.0
  %11945 = vmatprep.subr.mxu0 0.0
  %11946 = vmatpush1.msra.mxu0 0.0
  %11947 = vmatprep.subr.mxu0 0.0
  %11948 = vmatpush1.msra.mxu0 0.0
  %11949 = vmatprep.subr.mxu0 0.0
  %11950 = vmatpush1.msra.mxu0 0.0
  %11951 = vmatprep.subr.mxu0 0.0
  %11952 = vmatpush1.msra.mxu0 0.0
  %11953 = vmatprep.subr.mxu0 0.0
  %11954 = vmatpush1.msra.mxu0 0.0
  %11955 = vmatprep.subr.mxu0 0.0
  %11956 = vmatpush1.msra.mxu0 0.0
  %11957 = vmatprep.subr.mxu0 0.0
  %11958 = vmatpush1.msra.mxu0 0.0
  %11959 = vmatprep.subr.mxu0 0.0
  %11960 = vmatpush1.msra.mxu0 0.0
  %11961 = vmatprep.subr.mxu0 0.0
  %11962 = vmatpush1.msra.mxu0 0.0
  %11963 = vmatprep.mubr.f32.mxu0 0.0
  %11964 = vmatmul.mubr.f32.gmra.mrb[0].mxu0 %v11894
  %v11965 = vpop.f32.mrb[0].mxu0
  %v11966 = vadd.f32 0.0, %v11965
  %v11967 = vpop.f32.mrb[0].mxu0
  %11968 = vdwg.mxu0
  %v11969 = vadd.f32 %v11888, %v11966
  %s11970 = scalar_lea.vmem %s5, 264
  %v11971 = vld [vmem:[%s11970] sm:$0xff]
  %v11972 = vld [vmem:[%s11970 + $0x8] sm:$0xff]
  %v11973 = vld [vmem:[%s11970 + $0x10] sm:$0xf]
  %v11975 = vsel %vm11087, %v11075, 0
  %v11978 = vsel %vm11091, %v11973, 0
  %11980 = vmatprep.subr.mxu0 0.0
  %11981 = vmatpush1.msra.mxu0 %v11971
  %11982 = vmatprep.subr.mxu0 0.0
  %11983 = vmatpush1.msra.mxu0 %v11972
  %11984 = vmatprep.subr.mxu0 0.0
  %11985 = vmatpush1.msra.mxu0 %v11978
  %11986 = vmatprep.subr.mxu0 0.0
  %11987 = vmatpush1.msra.mxu0 0.0
  %11988 = vmatprep.subr.mxu0 0.0
  %11989 = vmatpush1.msra.mxu0 0.0
  %11990 = vmatprep.subr.mxu0 0.0
  %11991 = vmatpush1.msra.mxu0 0.0
  %11992 = vmatprep.subr.mxu0 0.0
  %11993 = vmatpush1.msra.mxu0 0.0
  %11994 = vmatprep.subr.mxu0 0.0
  %11995 = vmatpush1.msra.mxu0 0.0
  %11996 = vmatprep.subr.mxu0 0.0
  %11997 = vmatpush1.msra.mxu0 0.0
  %11998 = vmatprep.subr.mxu0 0.0
  %11999 = vmatpush1.msra.mxu0 0.0
  %12000 = vmatprep.subr.mxu0 0.0
  %12001 = vmatpush1.msra.mxu0 0.0
  %12002 = vmatprep.subr.mxu0 0.0
  %12003 = vmatpush1.msra.mxu0 0.0
  %12004 = vmatprep.subr.mxu0 0.0
  %12005 = vmatpush1.msra.mxu0 0.0
  %12006 = vmatprep.subr.mxu0 0.0
  %12007 = vmatpush1.msra.mxu0 0.0
  %12008 = vmatprep.subr.mxu0 0.0
  %12009 = vmatpush1.msra.mxu0 0.0
  %12010 = vmatprep.subr.mxu0 0.0
  %12011 = vmatpush1.msra.mxu0 0.0
  %12012 = vmatprep.subr.mxu0 0.0
  %12013 = vmatpush1.msra.mxu0 0.0
  %12014 = vmatprep.subr.mxu0 0.0
  %12015 = vmatpush1.msra.mxu0 0.0
  %12016 = vmatprep.subr.mxu0 0.0
  %12017 = vmatpush1.msra.mxu0 0.0
  %12018 = vmatprep.subr.mxu0 0.0
  %12019 = vmatpush1.msra.mxu0 0.0
  %12020 = vmatprep.subr.mxu0 0.0
  %12021 = vmatpush1.msra.mxu0 0.0
  %12022 = vmatprep.subr.mxu0 0.0
  %12023 = vmatpush1.msra.mxu0 0.0
  %12024 = vmatprep.subr.mxu0 0.0
  %12025 = vmatpush1.msra.mxu0 0.0
  %12026 = vmatprep.subr.mxu0 0.0
  %12027 = vmatpush1.msra.mxu0 0.0
  %12028 = vmatprep.subr.mxu0 0.0
  %12029 = vmatpush1.msra.mxu0 0.0
  %12030 = vmatprep.subr.mxu0 0.0
  %12031 = vmatpush1.msra.mxu0 0.0
  %12032 = vmatprep.subr.mxu0 0.0
  %12033 = vmatpush1.msra.mxu0 0.0
  %12034 = vmatprep.subr.mxu0 0.0
  %12035 = vmatpush1.msra.mxu0 0.0
  %12036 = vmatprep.subr.mxu0 0.0
  %12037 = vmatpush1.msra.mxu0 0.0
  %12038 = vmatprep.subr.mxu0 0.0
  %12039 = vmatpush1.msra.mxu0 0.0
  %12040 = vmatprep.subr.mxu0 0.0
  %12041 = vmatpush1.msra.mxu0 0.0
  %12042 = vmatprep.subr.mxu0 0.0
  %12043 = vmatpush1.msra.mxu0 0.0
  %12044 = vmatprep.mubr.f32.mxu0 0.0
  %12045 = vmatmul.mubr.f32.gmra.mrb[0].mxu0 %v11975
  %v12046 = vpop.f32.mrb[0].mxu0
  %v12047 = vadd.f32 0.0, %v12046
  %v12048 = vpop.f32.mrb[0].mxu0
  %12049 = vdwg.mxu0
  %v12050 = vadd.f32 %v11969, %v12047
  %s12051 = scalar_lea.vmem %s5, 288
  %v12052 = vld [vmem:[%s12051] sm:$0xff]
  %v12053 = vld [vmem:[%s12051 + $0x8] sm:$0xff]
  %v12054 = vld [vmem:[%s12051 + $0x10] sm:$0xf]
  %v12056 = vsel %vm11087, %v11076, 0
  %v12059 = vsel %vm11091, %v12054, 0
  %12061 = vmatprep.subr.mxu0 0.0
  %12062 = vmatpush1.msra.mxu0 %v12052
  %12063 = vmatprep.subr.mxu0 0.0
  %12064 = vmatpush1.msra.mxu0 %v12053
  %12065 = vmatprep.subr.mxu0 0.0
  %12066 = vmatpush1.msra.mxu0 %v12059
  %12067 = vmatprep.subr.mxu0 0.0
  %12068 = vmatpush1.msra.mxu0 0.0
  %12069 = vmatprep.subr.mxu0 0.0
  %12070 = vmatpush1.msra.mxu0 0.0
  %12071 = vmatprep.subr.mxu0 0.0
  %12072 = vmatpush1.msra.mxu0 0.0
  %12073 = vmatprep.subr.mxu0 0.0
  %12074 = vmatpush1.msra.mxu0 0.0
  %12075 = vmatprep.subr.mxu0 0.0
  %12076 = vmatpush1.msra.mxu0 0.0
  %12077 = vmatprep.subr.mxu0 0.0
  %12078 = vmatpush1.msra.mxu0 0.0
  %12079 = vmatprep.subr.mxu0 0.0
  %12080 = vmatpush1.msra.mxu0 0.0
  %12081 = vmatprep.subr.mxu0 0.0
  %12082 = vmatpush1.msra.mxu0 0.0
  %12083 = vmatprep.subr.mxu0 0.0
  %12084 = vmatpush1.msra.mxu0 0.0
  %12085 = vmatprep.subr.mxu0 0.0
  %12086 = vmatpush1.msra.mxu0 0.0
  %12087 = vmatprep.subr.mxu0 0.0
  %12088 = vmatpush1.msra.mxu0 0.0
  %12089 = vmatprep.subr.mxu0 0.0
  %12090 = vmatpush1.msra.mxu0 0.0
  %12091 = vmatprep.subr.mxu0 0.0
  %12092 = vmatpush1.msra.mxu0 0.0
  %12093 = vmatprep.subr.mxu0 0.0
  %12094 = vmatpush1.msra.mxu0 0.0
  %12095 = vmatprep.subr.mxu0 0.0
  %12096 = vmatpush1.msra.mxu0 0.0
  %12097 = vmatprep.subr.mxu0 0.0
  %12098 = vmatpush1.msra.mxu0 0.0
  %12099 = vmatprep.subr.mxu0 0.0
  %12100 = vmatpush1.msra.mxu0 0.0
  %12101 = vmatprep.subr.mxu0 0.0
  %12102 = vmatpush1.msra.mxu0 0.0
  %12103 = vmatprep.subr.mxu0 0.0
  %12104 = vmatpush1.msra.mxu0 0.0
  %12105 = vmatprep.subr.mxu0 0.0
  %12106 = vmatpush1.msra.mxu0 0.0
  %12107 = vmatprep.subr.mxu0 0.0
  %12108 = vmatpush1.msra.mxu0 0.0
  %12109 = vmatprep.subr.mxu0 0.0
  %12110 = vmatpush1.msra.mxu0 0.0
  %12111 = vmatprep.subr.mxu0 0.0
  %12112 = vmatpush1.msra.mxu0 0.0
  %12113 = vmatprep.subr.mxu0 0.0
  %12114 = vmatpush1.msra.mxu0 0.0
  %12115 = vmatprep.subr.mxu0 0.0
  %12116 = vmatpush1.msra.mxu0 0.0
  %12117 = vmatprep.subr.mxu0 0.0
  %12118 = vmatpush1.msra.mxu0 0.0
  %12119 = vmatprep.subr.mxu0 0.0
  %12120 = vmatpush1.msra.mxu0 0.0
  %12121 = vmatprep.subr.mxu0 0.0
  %12122 = vmatpush1.msra.mxu0 0.0
  %12123 = vmatprep.subr.mxu0 0.0
  %12124 = vmatpush1.msra.mxu0 0.0
  %12125 = vmatprep.mubr.f32.mxu0 0.0
  %12126 = vmatmul.mubr.f32.gmra.mrb[0].mxu0 %v12056
  %v12127 = vpop.f32.mrb[0].mxu0
  %v12128 = vadd.f32 0.0, %v12127
  %v12129 = vpop.f32.mrb[0].mxu0
  %12130 = vdwg.mxu0
  %v12131 = vadd.f32 %v12050, %v12128
  %s12132 = scalar_lea.vmem %s5, 312
  %v12133 = vld [vmem:[%s12132] sm:$0xff]
  %v12134 = vld [vmem:[%s12132 + $0x8] sm:$0xff]
  %v12135 = vld [vmem:[%s12132 + $0x10] sm:$0xf]
  %v12137 = vsel %vm11087, %v11077, 0
  %v12140 = vsel %vm11091, %v12135, 0
  %12142 = vmatprep.subr.mxu0 0.0
  %12143 = vmatpush1.msra.mxu0 %v12133
  %12144 = vmatprep.subr.mxu0 0.0
  %12145 = vmatpush1.msra.mxu0 %v12134
  %12146 = vmatprep.subr.mxu0 0.0
  %12147 = vmatpush1.msra.mxu0 %v12140
  %12148 = vmatprep.subr.mxu0 0.0
  %12149 = vmatpush1.msra.mxu0 0.0
  %12150 = vmatprep.subr.mxu0 0.0
  %12151 = vmatpush1.msra.mxu0 0.0
  %12152 = vmatprep.subr.mxu0 0.0
  %12153 = vmatpush1.msra.mxu0 0.0
  %12154 = vmatprep.subr.mxu0 0.0
  %12155 = vmatpush1.msra.mxu0 0.0
  %12156 = vmatprep.subr.mxu0 0.0
  %12157 = vmatpush1.msra.mxu0 0.0
  %12158 = vmatprep.subr.mxu0 0.0
  %12159 = vmatpush1.msra.mxu0 0.0
  %12160 = vmatprep.subr.mxu0 0.0
  %12161 = vmatpush1.msra.mxu0 0.0
  %12162 = vmatprep.subr.mxu0 0.0
  %12163 = vmatpush1.msra.mxu0 0.0
  %12164 = vmatprep.subr.mxu0 0.0
  %12165 = vmatpush1.msra.mxu0 0.0
  %12166 = vmatprep.subr.mxu0 0.0
  %12167 = vmatpush1.msra.mxu0 0.0
  %12168 = vmatprep.subr.mxu0 0.0
  %12169 = vmatpush1.msra.mxu0 0.0
  %12170 = vmatprep.subr.mxu0 0.0
  %12171 = vmatpush1.msra.mxu0 0.0
  %12172 = vmatprep.subr.mxu0 0.0
  %12173 = vmatpush1.msra.mxu0 0.0
  %12174 = vmatprep.subr.mxu0 0.0
  %12175 = vmatpush1.msra.mxu0 0.0
  %12176 = vmatprep.subr.mxu0 0.0
  %12177 = vmatpush1.msra.mxu0 0.0
  %12178 = vmatprep.subr.mxu0 0.0
  %12179 = vmatpush1.msra.mxu0 0.0
  %12180 = vmatprep.subr.mxu0 0.0
  %12181 = vmatpush1.msra.mxu0 0.0
  %12182 = vmatprep.subr.mxu0 0.0
  %12183 = vmatpush1.msra.mxu0 0.0
  %12184 = vmatprep.subr.mxu0 0.0
  %12185 = vmatpush1.msra.mxu0 0.0
  %12186 = vmatprep.subr.mxu0 0.0
  %12187 = vmatpush1.msra.mxu0 0.0
  %12188 = vmatprep.subr.mxu0 0.0
  %12189 = vmatpush1.msra.mxu0 0.0
  %12190 = vmatprep.subr.mxu0 0.0
  %12191 = vmatpush1.msra.mxu0 0.0
  %12192 = vmatprep.subr.mxu0 0.0
  %12193 = vmatpush1.msra.mxu0 0.0
  %12194 = vmatprep.subr.mxu0 0.0
  %12195 = vmatpush1.msra.mxu0 0.0
  %12196 = vmatprep.subr.mxu0 0.0
  %12197 = vmatpush1.msra.mxu0 0.0
  %12198 = vmatprep.subr.mxu0 0.0
  %12199 = vmatpush1.msra.mxu0 0.0
  %12200 = vmatprep.subr.mxu0 0.0
  %12201 = vmatpush1.msra.mxu0 0.0
  %12202 = vmatprep.subr.mxu0 0.0
  %12203 = vmatpush1.msra.mxu0 0.0
  %12204 = vmatprep.subr.mxu0 0.0
  %12205 = vmatpush1.msra.mxu0 0.0
  %12206 = vmatprep.mubr.f32.mxu0 0.0
  %12207 = vmatmul.mubr.f32.gmra.mrb[0].mxu0 %v12137
  %v12208 = vpop.f32.mrb[0].mxu0
  %v12209 = vadd.f32 0.0, %v12208
  %v12210 = vpop.f32.mrb[0].mxu0
  %12211 = vdwg.mxu0
  %v12212 = vadd.f32 %v12131, %v12209
  %s12213 = scalar_lea.vmem %s5, 336
  %v12214 = vld [vmem:[%s12213] sm:$0xff]
  %v12215 = vld [vmem:[%s12213 + $0x8] sm:$0xff]
  %v12216 = vld [vmem:[%s12213 + $0x10] sm:$0xf]
  %v12218 = vsel %vm11087, %v11078, 0
  %v12221 = vsel %vm11091, %v12216, 0
  %12223 = vmatprep.subr.mxu0 0.0
  %12224 = vmatpush1.msra.mxu0 %v12214
  %12225 = vmatprep.subr.mxu0 0.0
  %12226 = vmatpush1.msra.mxu0 %v12215
  %12227 = vmatprep.subr.mxu0 0.0
  %12228 = vmatpush1.msra.mxu0 %v12221
  %12229 = vmatprep.subr.mxu0 0.0
  %12230 = vmatpush1.msra.mxu0 0.0
  %12231 = vmatprep.subr.mxu0 0.0
  %12232 = vmatpush1.msra.mxu0 0.0
  %12233 = vmatprep.subr.mxu0 0.0
  %12234 = vmatpush1.msra.mxu0 0.0
  %12235 = vmatprep.subr.mxu0 0.0
  %12236 = vmatpush1.msra.mxu0 0.0
  %12237 = vmatprep.subr.mxu0 0.0
  %12238 = vmatpush1.msra.mxu0 0.0
  %12239 = vmatprep.subr.mxu0 0.0
  %12240 = vmatpush1.msra.mxu0 0.0
  %12241 = vmatprep.subr.mxu0 0.0
  %12242 = vmatpush1.msra.mxu0 0.0
  %12243 = vmatprep.subr.mxu0 0.0
  %12244 = vmatpush1.msra.mxu0 0.0
  %12245 = vmatprep.subr.mxu0 0.0
  %12246 = vmatpush1.msra.mxu0 0.0
  %12247 = vmatprep.subr.mxu0 0.0
  %12248 = vmatpush1.msra.mxu0 0.0
  %12249 = vmatprep.subr.mxu0 0.0
  %12250 = vmatpush1.msra.mxu0 0.0
  %12251 = vmatprep.subr.mxu0 0.0
  %12252 = vmatpush1.msra.mxu0 0.0
  %12253 = vmatprep.subr.mxu0 0.0
  %12254 = vmatpush1.msra.mxu0 0.0
  %12255 = vmatprep.subr.mxu0 0.0
  %12256 = vmatpush1.msra.mxu0 0.0
  %12257 = vmatprep.subr.mxu0 0.0
  %12258 = vmatpush1.msra.mxu0 0.0
  %12259 = vmatprep.subr.mxu0 0.0
  %12260 = vmatpush1.msra.mxu0 0.0
  %12261 = vmatprep.subr.mxu0 0.0
  %12262 = vmatpush1.msra.mxu0 0.0
  %12263 = vmatprep.subr.mxu0 0.0
  %12264 = vmatpush1.msra.mxu0 0.0
  %12265 = vmatprep.subr.mxu0 0.0
  %12266 = vmatpush1.msra.mxu0 0.0
  %12267 = vmatprep.subr.mxu0 0.0
  %12268 = vmatpush1.msra.mxu0 0.0
  %12269 = vmatprep.subr.mxu0 0.0
  %12270 = vmatpush1.msra.mxu0 0.0
  %12271 = vmatprep.subr.mxu0 0.0
  %12272 = vmatpush1.msra.mxu0 0.0
  %12273 = vmatprep.subr.mxu0 0.0
  %12274 = vmatpush1.msra.mxu0 0.0
  %12275 = vmatprep.subr.mxu0 0.0
  %12276 = vmatpush1.msra.mxu0 0.0
  %12277 = vmatprep.subr.mxu0 0.0
  %12278 = vmatpush1.msra.mxu0 0.0
  %12279 = vmatprep.subr.mxu0 0.0
  %12280 = vmatpush1.msra.mxu0 0.0
  %12281 = vmatprep.subr.mxu0 0.0
  %12282 = vmatpush1.msra.mxu0 0.0
  %12283 = vmatprep.subr.mxu0 0.0
  %12284 = vmatpush1.msra.mxu0 0.0
  %12285 = vmatprep.subr.mxu0 0.0
  %12286 = vmatpush1.msra.mxu0 0.0
  %12287 = vmatprep.mubr.f32.mxu0 0.0
  %12288 = vmatmul.mubr.f32.gmra.mrb[0].mxu0 %v12218
  %v12289 = vpop.f32.mrb[0].mxu0
  %v12290 = vadd.f32 0.0, %v12289
  %v12291 = vpop.f32.mrb[0].mxu0
  %12292 = vdwg.mxu0
  %v12293 = vadd.f32 %v12212, %v12290
  %s12294 = scalar_lea.vmem %s5, 360
  %v12295 = vld [vmem:[%s12294] sm:$0xff]
  %v12296 = vld [vmem:[%s12294 + $0x8] sm:$0xff]
  %v12297 = vld [vmem:[%s12294 + $0x10] sm:$0xf]
  %v12299 = vsel %vm11087, %v11079, 0
  %v12302 = vsel %vm11091, %v12297, 0
  %12304 = vmatprep.subr.mxu0 0.0
  %12305 = vmatpush1.msra.mxu0 %v12295
  %12306 = vmatprep.subr.mxu0 0.0
  %12307 = vmatpush1.msra.mxu0 %v12296
  %12308 = vmatprep.subr.mxu0 0.0
  %12309 = vmatpush1.msra.mxu0 %v12302
  %12310 = vmatprep.subr.mxu0 0.0
  %12311 = vmatpush1.msra.mxu0 0.0
  %12312 = vmatprep.subr.mxu0 0.0
  %12313 = vmatpush1.msra.mxu0 0.0
  %12314 = vmatprep.subr.mxu0 0.0
  %12315 = vmatpush1.msra.mxu0 0.0
  %12316 = vmatprep.subr.mxu0 0.0
  %12317 = vmatpush1.msra.mxu0 0.0
  %12318 = vmatprep.subr.mxu0 0.0
  %12319 = vmatpush1.msra.mxu0 0.0
  %12320 = vmatprep.subr.mxu0 0.0
  %12321 = vmatpush1.msra.mxu0 0.0
  %12322 = vmatprep.subr.mxu0 0.0
  %12323 = vmatpush1.msra.mxu0 0.0
  %12324 = vmatprep.subr.mxu0 0.0
  %12325 = vmatpush1.msra.mxu0 0.0
  %12326 = vmatprep.subr.mxu0 0.0
  %12327 = vmatpush1.msra.mxu0 0.0
  %12328 = vmatprep.subr.mxu0 0.0
  %12329 = vmatpush1.msra.mxu0 0.0
  %12330 = vmatprep.subr.mxu0 0.0
  %12331 = vmatpush1.msra.mxu0 0.0
  %12332 = vmatprep.subr.mxu0 0.0
  %12333 = vmatpush1.msra.mxu0 0.0
  %12334 = vmatprep.subr.mxu0 0.0
  %12335 = vmatpush1.msra.mxu0 0.0
  %12336 = vmatprep.subr.mxu0 0.0
  %12337 = vmatpush1.msra.mxu0 0.0
  %12338 = vmatprep.subr.mxu0 0.0
  %12339 = vmatpush1.msra.mxu0 0.0
  %12340 = vmatprep.subr.mxu0 0.0
  %12341 = vmatpush1.msra.mxu0 0.0
  %12342 = vmatprep.subr.mxu0 0.0
  %12343 = vmatpush1.msra.mxu0 0.0
  %12344 = vmatprep.subr.mxu0 0.0
  %12345 = vmatpush1.msra.mxu0 0.0
  %12346 = vmatprep.subr.mxu0 0.0
  %12347 = vmatpush1.msra.mxu0 0.0
  %12348 = vmatprep.subr.mxu0 0.0
  %12349 = vmatpush1.msra.mxu0 0.0
  %12350 = vmatprep.subr.mxu0 0.0
  %12351 = vmatpush1.msra.mxu0 0.0
  %12352 = vmatprep.subr.mxu0 0.0
  %12353 = vmatpush1.msra.mxu0 0.0
  %12354 = vmatprep.subr.mxu0 0.0
  %12355 = vmatpush1.msra.mxu0 0.0
  %12356 = vmatprep.subr.mxu0 0.0
  %12357 = vmatpush1.msra.mxu0 0.0
  %12358 = vmatprep.subr.mxu0 0.0
  %12359 = vmatpush1.msra.mxu0 0.0
  %12360 = vmatprep.subr.mxu0 0.0
  %12361 = vmatpush1.msra.mxu0 0.0
  %12362 = vmatprep.subr.mxu0 0.0
  %12363 = vmatpush1.msra.mxu0 0.0
  %12364 = vmatprep.subr.mxu0 0.0
  %12365 = vmatpush1.msra.mxu0 0.0
  %12366 = vmatprep.subr.mxu0 0.0
  %12367 = vmatpush1.msra.mxu0 0.0
  %12368 = vmatprep.mubr.f32.mxu0 0.0
  %12369 = vmatmul.mubr.f32.gmra.mrb[0].mxu0 %v12299
  %v12370 = vpop.f32.mrb[0].mxu0
  %v12371 = vadd.f32 0.0, %v12370
  %v12372 = vpop.f32.mrb[0].mxu0
  %12373 = vdwg.mxu0
  %v12374 = vadd.f32 %v12293, %v12371
  %v12375 = vld [vmem:[%s6] sm:$0x1]
  %v12377 = vlaneseq
  %v12378 = vshrl.u32 %v12377, 7
  %v12379 = vsub.s32 0, %v12378
  %v12380 = vrot.slane %v12375, %v12379
  %v12382 = vadd.f32 %v12374, %v12380
  %v12383 = vmax.f32 %v12382, 0.0
  %v12384 = vld [vmem:[%s7] sm:$0xff]
  %v12385 = vld [vmem:[%s7 + $0x8] sm:$0xff]
  %v12386 = vld [vmem:[%s7 + $0x10] sm:$0xff]
  %v12387 = vld [vmem:[%s7 + $0x18] sm:$0xff]
  %v12388 = vld [vmem:[%s7 + $0x20] sm:$0xff]
  %v12389 = vld [vmem:[%s7 + $0x28] sm:$0xff]
  %v12390 = vld [vmem:[%s7 + $0x30] sm:$0xff]
  %v12391 = vld [vmem:[%s7 + $0x38] sm:$0xf]
  %v12392 = vld [vmem:[%s8] sm:$0x1]
  %v12394 = vlaneseq
  %v12395 = vshrl.u32 %v12394, 7
  %v12396 = vsub.s32 0, %v12395
  %v12397 = vrot.slane %v12392, %v12396
  %vm12399 = vcmask 490496
  %v12401 = vsel %vm12399, %v12383, 0
  %v12404 = vsel %vm11091, %v12391, 0
  %12406 = vmatprep.subr.mxu0 0.0
  %12407 = vmatpush1.msra.mxu0 %v12384
  %12408 = vmatprep.subr.mxu0 0.0
  %12409 = vmatpush1.msra.mxu0 %v12385
  %12410 = vmatprep.subr.mxu0 0.0
  %12411 = vmatpush1.msra.mxu0 %v12386
  %12412 = vmatprep.subr.mxu0 0.0
  %12413 = vmatpush1.msra.mxu0 %v12387
  %12414 = vmatprep.subr.mxu0 0.0
  %12415 = vmatpush1.msra.mxu0 %v12388
  %12416 = vmatprep.subr.mxu0 0.0
  %12417 = vmatpush1.msra.mxu0 %v12389
  %12418 = vmatprep.subr.mxu0 0.0
  %12419 = vmatpush1.msra.mxu0 %v12390
  %12420 = vmatprep.subr.mxu0 0.0
  %12421 = vmatpush1.msra.mxu0 %v12404
  %12422 = vmatprep.subr.mxu0 0.0
  %12423 = vmatpush1.msra.mxu0 0.0
  %12424 = vmatprep.subr.mxu0 0.0
  %12425 = vmatpush1.msra.mxu0 0.0
  %12426 = vmatprep.subr.mxu0 0.0
  %12427 = vmatpush1.msra.mxu0 0.0
  %12428 = vmatprep.subr.mxu0 0.0
  %12429 = vmatpush1.msra.mxu0 0.0
  %12430 = vmatprep.subr.mxu0 0.0
  %12431 = vmatpush1.msra.mxu0 0.0
  %12432 = vmatprep.subr.mxu0 0.0
  %12433 = vmatpush1.msra.mxu0 0.0
  %12434 = vmatprep.subr.mxu0 0.0
  %12435 = vmatpush1.msra.mxu0 0.0
  %12436 = vmatprep.subr.mxu0 0.0
  %12437 = vmatpush1.msra.mxu0 0.0
  %12438 = vmatprep.subr.mxu0 0.0
  %12439 = vmatpush1.msra.mxu0 0.0
  %12440 = vmatprep.subr.mxu0 0.0
  %12441 = vmatpush1.msra.mxu0 0.0
  %12442 = vmatprep.subr.mxu0 0.0
  %12443 = vmatpush1.msra.mxu0 0.0
  %12444 = vmatprep.subr.mxu0 0.0
  %12445 = vmatpush1.msra.mxu0 0.0
  %12446 = vmatprep.subr.mxu0 0.0
  %12447 = vmatpush1.msra.mxu0 0.0
  %12448 = vmatprep.subr.mxu0 0.0
  %12449 = vmatpush1.msra.mxu0 0.0
  %12450 = vmatprep.subr.mxu0 0.0
  %12451 = vmatpush1.msra.mxu0 0.0
  %12452 = vmatprep.subr.mxu0 0.0
  %12453 = vmatpush1.msra.mxu0 0.0
  %12454 = vmatprep.subr.mxu0 0.0
  %12455 = vmatpush1.msra.mxu0 0.0
  %12456 = vmatprep.subr.mxu0 0.0
  %12457 = vmatpush1.msra.mxu0 0.0
  %12458 = vmatprep.subr.mxu0 0.0
  %12459 = vmatpush1.msra.mxu0 0.0
  %12460 = vmatprep.subr.mxu0 0.0
  %12461 = vmatpush1.msra.mxu0 0.0
  %12462 = vmatprep.subr.mxu0 0.0
  %12463 = vmatpush1.msra.mxu0 0.0
  %12464 = vmatprep.subr.mxu0 0.0
  %12465 = vmatpush1.msra.mxu0 0.0
  %12466 = vmatprep.subr.mxu0 0.0
  %12467 = vmatpush1.msra.mxu0 0.0
  %12468 = vmatprep.subr.mxu0 0.0
  %12469 = vmatpush1.msra.mxu0 0.0
  %12470 = vmatprep.mubr.f32.mxu0 0.0
  %12471 = vmatmul.mubr.f32.gmra.mrb[0].mxu0 %v12401
  %v12472 = vpop.f32.mrb[0].mxu0
  %v12473 = vadd.f32 %v12397, %v12472
  %v12474 = vpop.f32.mrb[0].mxu0
  %12475 = vdwg.mxu0
  %v12476 = vsel %vm504, %v12473, -inf
  %12477 = vmax.xlane.f32.xlu0 %v12476
  %v12478 = vpop.xlane.xlu0 %12477
  %v12479 = vsub.f32 %v12473, %v12478
  %v12480 = vmul.f32 %v12479, 1.442695
  %v12481 = vpow.pop %v12480
  %v12482 = vsel %vm504, %v12481, 0.0
  %12483 = vadd.xlane.f32.xlu0 %v12482
  %v12484 = vpop.xlane.xlu0 %12483
  %v12485 = vrcp.pop %v12484
  %v12486 = vmul.f32 %v12481, %v12485
  %12487 = vst.msk [vmem:[%s9] sm:$0xff] %vm504, %v12486
  // Predicated region
  $region38: #{convnet_forward.1} parent=0 // pred_check
    _
  $region39: #{convnet_forward.1} parent=0 // pred_check_branch
    %12489 = sbr.rel (0) target = $region41
  $region40: #{convnet_forward.1} parent=0 // pred_region
    _
  $region41: #{convnet_forward.1} parent=0 // pred_fallthru
    _
  // Predicated region
  $region42: #{convnet_forward.1} parent=0 // pred_check
    _
  $region43: #{convnet_forward.1} parent=0 // pred_check_branch
    %12491 = sbr.rel (0) target = $region45
  $region44: #{convnet_forward.1} parent=0 // pred_region
    _
  $region45: #{convnet_forward.1} parent=0 // pred_fallthru
    _

</llo_original>
